<compile_context>
chip_gen: v6e
topology: v6e:2x2x1
jax: 0.10.0
libtpu: 0.0.40
codegen_flags: <defaults>
</compile_context>

<pallas_src>
import math
from functools import partial

import jax
import jax.numpy as jnp
from jax import lax
from jax.experimental import pallas as pl
from jax.experimental.pallas import tpu as pltpu


_LN_EPS = 1e-5
# contract dim1 of x:(M,K) with dim1 of w:(N,K) -> (M,N)   (PyTorch y = x @ W.T)
_CDIMS = (((1,), (1,)), ((), ()))


def _matmul_nt(x, w):
    """x @ w.T on the MXU: bf16 inputs, f32 accumulation, no transpose op."""
    return lax.dot_general(x.astype(jnp.bfloat16), w.astype(jnp.bfloat16),
                           _CDIMS, preferred_element_type=jnp.float32)


def _add_layernorm(y, res, g, b):
    """LayerNorm(y + res) over the last dim, f32 (PyTorch semantics)."""
    h = y + res
    mu = jnp.mean(h, axis=-1, keepdims=True)
    var = jnp.mean((h - mu) * (h - mu), axis=-1, keepdims=True)
    return (h - mu) * lax.rsqrt(var + _LN_EPS) * g + b


def _row_tile(m, preferred=512):
    """Row tile for the row-parallel kernels.  <= preferred rows -> one block;
    else largest multiple of 8 <= preferred dividing m; else `preferred`
    (caller pads the rows up to a multiple of the tile)."""
    if m <= preferred:
        return m
    t = preferred
    while t >= 8:
        if m % t == 0:
            return t
        t -= 8
    return preferred


def _pad_rows(x, tm):
    """Pad rows of (M, D) up to a multiple of tm (robust last-tile handling)."""
    m = x.shape[0]
    mp = ((m + tm - 1) // tm) * tm
    if mp != m:
        x = jnp.pad(x, ((0, mp - m), (0, 0)))
    return x, mp


def _const_spec(shape, buffered):
    """BlockSpec for a weight that is resident across the whole grid."""
    zeros = (0,) * len(shape)
    if buffered:
        # Constant index_map -> request single buffering (halves weight VMEM).
        return pl.BlockSpec(shape, lambda *_: zeros, pipeline_mode=pl.Buffered(1))
    return pl.BlockSpec(shape, lambda *_: zeros)


# ----------------------------------------------------------------------------
# Attention core: per-head softmax(QK^T)V with the output projection folded in
# as a lane-dense (Sq, D) f32 accumulator (no narrow scratch stores).
# ----------------------------------------------------------------------------

def _mha_core(q_scaled, k, v, wo_ref, nhead):
    """q_scaled: (Sq, D) (already * 1/sqrt(Dh)), k/v: (Sk, D),
    wo_ref: (nhead, D, Dh) with wo_ref[h][n, d] = W_out[n, h*Dh + d].
    Returns sum_h (softmax(q_h k_h^T) v_h) @ W_out_h^T  : (Sq, D) f32."""
    Sq = q_scaled.shape[0]
    D = wo_ref.shape[1]
    Dh = wo_ref.shape[2]
    acc = jnp.zeros((Sq, D), jnp.float32)
    for h in range(nhead):                      # static unroll (nhead small)
        sl = slice(h * Dh, (h + 1) * Dh)
        qh = q_scaled[:, sl].astype(jnp.bfloat16)
        kh = k[:, sl].astype(jnp.bfloat16)
        vh = v[:, sl].astype(jnp.bfloat16)
        s = lax.dot_general(qh, kh, _CDIMS,
                            preferred_element_type=jnp.float32)   # (Sq, Sk)
        m = jnp.max(s, axis=-1, keepdims=True)
        p = jnp.exp(s - m)
        l = jnp.sum(p, axis=-1, keepdims=True)
        p = p * pl.reciprocal(l, approx=True)                     # EUP, ~free
        oh = jnp.dot(p.astype(jnp.bfloat16), vh,
                     preferred_element_type=jnp.float32)          # (Sq, Dh)
        # Fused, lane-dense output-projection accumulation (no heads scratch).
        acc = acc + lax.dot_general(oh.astype(jnp.bfloat16), wo_ref[h], _CDIMS,
                                    preferred_element_type=jnp.float32)
    return acc


# ----------------------------------------------------------------------------
# Fused self-attn + cross-attn (+ add & LN after each) for one decoder layer
# ----------------------------------------------------------------------------

def _attn_pair_kernel(x_ref, mkv_ref,
                      wis_ref, bis_ref, wos_ref, bos_ref, g1_ref, be1_ref,
                      wqc_ref, bqc_ref, woc_ref, boc_ref, g2_ref, be2_ref,
                      o_ref, *, nhead, scale):
    D = x_ref.shape[2]
    x = x_ref[0]                                  # (Sq, D) bf16
    x32 = x.astype(jnp.float32)

    # --- self-attention: ONE fused QKV projection on a single x block -------
    qkv = _matmul_nt(x, wis_ref[...]) + bis_ref[...]              # (Sq, 3D) f32
    y = _mha_core(qkv[:, :D] * scale, qkv[:, D:2 * D], qkv[:, 2 * D:],
                  wos_ref, nhead) + bos_ref[...]
    h1 = _add_layernorm(y, x32, g1_ref[...], be1_ref[...])        # (Sq, D) f32

    # --- cross-attention: memory K|V precomputed (hoisted out of the layer) -
    mkv = mkv_ref[0]                                              # (Sk, 2D) bf16
    q = _matmul_nt(h1, wqc_ref[...]) + bqc_ref[...]               # (Sq, D) f32
    y = _mha_core(q * scale, mkv[:, :D], mkv[:, D:], woc_ref, nhead) + boc_ref[...]
    h2 = _add_layernorm(y, h1, g2_ref[...], be2_ref[...])

    o_ref[0] = h2.astype(o_ref.dtype)


def attn_block(x, mem_kv, prm, nhead, buffered):
    """Fused self-attn + cross-attn (with their residual adds & LayerNorms).
    x: (B, Sq, D) bf16; mem_kv: (B, Sk, 2D) bf16 (precomputed memory K|V)."""
    B, Sq, D = x.shape
    Sk = mem_kv.shape[1]
    Dh = D // nhead
    scale = 1.0 / math.sqrt(Dh)
    ws = partial(_const_spec, buffered=buffered)
    s, c = prm["self"], prm["cross"]

    kernel = partial(_attn_pair_kernel, nhead=nhead, scale=scale)
    return pl.pallas_call(
        kernel,
        out_shape=jax.ShapeDtypeStruct((B, Sq, D), jnp.bfloat16),
        grid=(B,),
        in_specs=[
            pl.BlockSpec((1, Sq, D), lambda b: (b, 0, 0)),          # x
            pl.BlockSpec((1, Sk, 2 * D), lambda b: (b, 0, 0)),      # memory K|V
            ws((3 * D, D)), ws((1, 3 * D)),                         # self in_proj
            ws((nhead, D, Dh)), ws((1, D)),                         # self out_proj
            ws((1, D)), ws((1, D)),                                 # ln1
            ws((D, D)), ws((1, D)),                                 # cross q_proj
            ws((nhead, D, Dh)), ws((1, D)),                         # cross out_proj
            ws((1, D)), ws((1, D)),                                 # ln2
        ],
        out_specs=pl.BlockSpec((1, Sq, D), lambda b: (b, 0, 0)),
        compiler_params=pltpu.CompilerParams(
            dimension_semantics=("parallel",)),
    )(x, mem_kv,
      s["w_in"], s["b_in"], s["wo"], s["bo"], s["ln_g"], s["ln_b"],
      c["wq"], c["bq"], c["wo"], c["bo"], c["ln_g"], c["ln_b"])


# ----------------------------------------------------------------------------
# Hoisted memory K|V projection (row-tiled linear)
# ----------------------------------------------------------------------------

def _kv_proj_kernel(x_ref, w_ref, b_ref, o_ref):
    o_ref[...] = (_matmul_nt(x_ref[...], w_ref[...]) + b_ref[...]).astype(o_ref.dtype)


def kv_proj_block(mem2d, prm, buffered):
    """(M, D) -> (M, 2D) bf16: K|V projection of memory, computed once."""
    M, D = mem2d.shape
    tm = _row_tile(M)
    xp, Mp = _pad_rows(mem2d, tm)
    ws = partial(_const_spec, buffered=buffered)
    out = pl.pallas_call(
        _kv_proj_kernel,
        out_shape=jax.ShapeDtypeStruct((Mp, 2 * D), jnp.bfloat16),
        grid=(Mp // tm,),
        in_specs=[pl.BlockSpec((tm, D), lambda i: (i, 0)),
                  ws((2 * D, D)), ws((1, 2 * D))],
        out_specs=pl.BlockSpec((tm, 2 * D), lambda i: (i, 0)),
        compiler_params=pltpu.CompilerParams(
            dimension_semantics=("parallel",)),
    )(xp, prm["wkv"], prm["bkv"])
    return out if Mp == M else out[:M]


# ----------------------------------------------------------------------------
# Fused feed-forward block (linear1 + ReLU + linear2 + residual add + LN)
# ----------------------------------------------------------------------------

def _ffn_kernel(x_ref, w1_ref, b1_ref, w2_ref, b2_ref, g_ref, b_ref, o_ref):
    x = x_ref[...]                                        # (tm, D) bf16
    x32 = x.astype(jnp.float32)
    h = _matmul_nt(x, w1_ref[...]) + b1_ref[...]          # (tm, FF) f32
    h = jnp.maximum(h, 0.0)                               # fused ReLU
    y = _matmul_nt(h, w2_ref[...]) + b2_ref[...]          # (tm, D) f32
    o_ref[...] = _add_layernorm(y, x32, g_ref[...], b_ref[...]).astype(o_ref.dtype)


def ffn_block(x2d, prm, buffered, out_dtype):
    """x2d: (M, D) bf16 -> LayerNorm(x + W2 @ relu(W1 @ x + b1) + b2)."""
    M, D = x2d.shape
    FF = prm["w1"].shape[0]
    tm = _row_tile(M)
    xp, Mp = _pad_rows(x2d, tm)
    ws = partial(_const_spec, buffered=buffered)
    out = pl.pallas_call(
        _ffn_kernel,
        out_shape=jax.ShapeDtypeStruct((Mp, D), out_dtype),
        grid=(Mp // tm,),
        in_specs=[pl.BlockSpec((tm, D), lambda i: (i, 0)),
                  ws((FF, D)), ws((1, FF)),
                  ws((D, FF)), ws((1, D)),
                  ws((1, D)), ws((1, D))],
        out_specs=pl.BlockSpec((tm, D), lambda i: (i, 0)),
        compiler_params=pltpu.CompilerParams(
            dimension_semantics=("parallel",)),
    )(xp, prm["w1"], prm["b1"], prm["w2"], prm["b2"], prm["ln_g"], prm["ln_b"])
    return out if Mp == M else out[:M]


# ----------------------------------------------------------------------------
# Model glue
# ----------------------------------------------------------------------------

def prepare_layer_params(p, d_model, nhead):
    """Pre-cast weights to bf16, split/reshape once in the wrapper so the
    kernels never slice narrow lanes of weights."""
    D = d_model
    Dh = D // nhead

    def split_out_w(w):                     # (D, D) -> (nhead, D, Dh), bf16
        return jnp.transpose(w.reshape(D, nhead, Dh), (1, 0, 2)).astype(jnp.bfloat16)

    sa, ca = p["self_attn"], p["cross_attn"]
    return {
        "self": {
            "w_in": sa["in_w"].astype(jnp.bfloat16),        # (3D, D) fused QKV
            "b_in": sa["in_b"].reshape(1, 3 * D),
            "wo": split_out_w(sa["out_w"]),
            "bo": sa["out_b"].reshape(1, D),
            "ln_g": p["ln1_g"].reshape(1, D),
            "ln_b": p["ln1_b"].reshape(1, D),
        },
        "cross": {
            "wq": ca["in_w"][:D].astype(jnp.bfloat16),      # (D, D) query proj
            "bq": ca["in_b"][:D].reshape(1, D),
            "wkv": ca["in_w"][D:].astype(jnp.bfloat16),     # (2D, D) hoisted K|V
            "bkv": ca["in_b"][D:].reshape(1, 2 * D),
            "wo": split_out_w(ca["out_w"]),
            "bo": ca["out_b"].reshape(1, D),
            "ln_g": p["ln2_g"].reshape(1, D),
            "ln_b": p["ln2_b"].reshape(1, D),
        },
        "ffn": {
            "w1": p["w1"].astype(jnp.bfloat16),
            "b1": p["b1"].reshape(1, -1),
            "w2": p["w2"].astype(jnp.bfloat16),
            "b2": p["b2"].reshape(1, -1),
            "ln_g": p["ln3_g"].reshape(1, D),
            "ln_b": p["ln3_b"].reshape(1, D),
        },
    }


def decoder_layer(x, mem_kv, prm, nhead, buffered, out_dtype):
    """Post-norm decoder layer; x: (B, S, D) bf16, mem_kv: (B, Sk, 2D) bf16."""
    B, S, D = x.shape
    x = attn_block(x, mem_kv, prm, nhead, buffered)         # self+cross, 1 call
    x = ffn_block(x.reshape(B * S, D), prm["ffn"], buffered, out_dtype)
    return x.reshape(B, S, D)


def transformer_decoder(tgt, memory, layer_params, num_layers, nhead,
                        buffered_weights=True):
    """TransformerDecoder.forward: loop layers, then unsqueeze(0).
    _get_clones deep-copies the SAME layer -> all layers share identical
    initial parameters -> one param set reused for every layer."""
    S, B, D = tgt.shape
    assert D % nhead == 0
    prm = prepare_layer_params(layer_params, D, nhead)

    # (S, B, D) -> (B, S, D); inter-kernel activations streamed in bf16.
    x = jnp.transpose(tgt, (1, 0, 2)).astype(jnp.bfloat16)
    mem = jnp.transpose(memory, (1, 0, 2)).astype(jnp.bfloat16)
    Sk = mem.shape[1]

    # Hoisted cross-attention K|V: memory is constant across layers and the
    # cloned layers share weights, so project it exactly once.
    mem_kv = kv_proj_block(mem.reshape(B * Sk, D), prm["cross"],
                           buffered_weights).reshape(B, Sk, 2 * D)

    for li in range(num_layers):
        last = li == num_layers - 1
        x = decoder_layer(x, mem_kv, prm, nhead, buffered_weights,
                          jnp.float32 if last else jnp.bfloat16)

    x = x.astype(jnp.float32)
    return jnp.transpose(x, (1, 0, 2))[None, ...]            # (1, S, B, D)


# ----------------------------------------------------------------------------
# Deterministic parameter init + demo
# ----------------------------------------------------------------------------

def init_params(key, d_model, nhead, dim_ff):
    ks = jax.random.split(key, 12)
    s = 0.05

    def mha_params(k0, k1, k2, k3):
        return {
            "in_w": s * jax.random.normal(k0, (3 * d_model, d_model), jnp.float32),
            "in_b": s * jax.random.normal(k1, (3 * d_model,), jnp.float32),
            "out_w": s * jax.random.normal(k2, (d_model, d_model), jnp.float32),
            "out_b": s * jax.random.normal(k3, (d_model,), jnp.float32),
        }

    return {
        "self_attn": mha_params(ks[0], ks[1], ks[2], ks[3]),
        "cross_attn": mha_params(ks[4], ks[5], ks[6], ks[7]),
        "w1": s * jax.random.normal(ks[8], (dim_ff, d_model), jnp.float32),
        "b1": s * jax.random.normal(ks[9], (dim_ff,), jnp.float32),
        "w2": s * jax.random.normal(ks[10], (d_model, dim_ff), jnp.float32),
        "b2": s * jax.random.normal(ks[11], (d_model,), jnp.float32),
        "ln1_g": jnp.ones((d_model,), jnp.float32),
        "ln1_b": jnp.zeros((d_model,), jnp.float32),
        "ln2_g": jnp.ones((d_model,), jnp.float32),
        "ln2_b": jnp.zeros((d_model,), jnp.float32),
        "ln3_g": jnp.ones((d_model,), jnp.float32),
        "ln3_b": jnp.zeros((d_model,), jnp.float32),
    }


if __name__ == "__main__":
    S_TGT, S_MEM, B, D_MODEL = 8, 8, 2, 32
    NHEAD, DIM_FF, NUM_LAYERS = 4, 64, 2

    root = jax.random.PRNGKey(0)
    k_p, k_t, k_m = jax.random.split(root, 3)

    params = init_params(k_p, D_MODEL, NHEAD, DIM_FF)
    tgt = jax.random.normal(k_t, (S_TGT, B, D_MODEL), jnp.float32)
    memory = jax.random.normal(k_m, (S_MEM, B, D_MODEL), jnp.float32)

    def make_fwd(buffered):
        return jax.jit(lambda t, m, p: transformer_decoder(
            t, m, p, NUM_LAYERS, NHEAD, buffered_weights=buffered))

    try:
        out = jax.block_until_ready(make_fwd(True)(tgt, memory, params))
    except Exception:
        # pl.Buffered(1) (single-buffered resident weights) not supported on
        # this jax/libtpu combo -> fall back to default double-buffered specs.
        out = jax.block_until_ready(make_fwd(False)(tgt, memory, params))

    assert out.shape == (1, S_TGT, B, D_MODEL), out.shape
    assert bool(jnp.all(jnp.isfinite(out)))
    print("KERNEL_OK")
</pallas_src>

<mosaic_0001>
module attributes {stable_mosaic.version = 11 : i64} {
  func.func @_kv_proj_kernel(%arg0: i32, %arg1: memref<16x32xbf16, #tpu.memory_space<vmem>>, %arg2: memref<64x32xbf16, #tpu.memory_space<vmem>>, %arg3: memref<1x64xf32, #tpu.memory_space<vmem>>, %arg4: memref<16x64xbf16, #tpu.memory_space<vmem>>) attributes {dimension_semantics = [#tpu.dimension_semantics<parallel>], iteration_bounds = array<i64: 1>, scalar_prefetch = 0 : i64, scratch_operands = 0 : i64, tpu.core_type = #tpu.core_type<tc>, window_params = [{transform_indices = @transform_0, window_bounds = array<i64: 16, 32>}, {pipeline_mode = #tpu.pipeline_mode<synchronous>, transform_indices = @transform_1, window_bounds = array<i64: 64, 32>}, {pipeline_mode = #tpu.pipeline_mode<synchronous>, transform_indices = @transform_2, window_bounds = array<i64: 1, 64>}, {transform_indices = @transform_3, window_bounds = array<i64: 16, 64>}]} {
    %c0 = arith.constant 0 : index
    %c0_0 = arith.constant 0 : index
    %0 = vector.load %arg1[%c0, %c0_0] : memref<16x32xbf16, #tpu.memory_space<vmem>>, vector<16x32xbf16>
    %c0_1 = arith.constant 0 : index
    %c0_2 = arith.constant 0 : index
    %1 = vector.load %arg2[%c0_1, %c0_2] : memref<64x32xbf16, #tpu.memory_space<vmem>>, vector<64x32xbf16>
    %cst = arith.constant dense<0.000000e+00> : vector<16x64xf32>
    %2 = tpu.matmul %0, %1, %cst {dimension_numbers = #tpu.dot_dimension_numbers<[1], [1], [0], [0], [0, 0, 1, 0], [], []>} : vector<16x32xbf16>, vector<64x32xbf16>, vector<16x64xf32> -> vector<16x64xf32>
    %c0_3 = arith.constant 0 : index
    %c0_4 = arith.constant 0 : index
    %3 = vector.load %arg3[%c0_3, %c0_4] : memref<1x64xf32, #tpu.memory_space<vmem>>, vector<1x64xf32>
    %4 = vector.broadcast %3 : vector<1x64xf32> to vector<16x64xf32>
    %5 = arith.addf %2, %4 : vector<16x64xf32>
    %6 = arith.truncf %5 : vector<16x64xf32> to vector<16x64xbf16>
    %c0_5 = arith.constant 0 : index
    %c0_6 = arith.constant 0 : index
    %7 = vector.load %arg4[%c0_5, %c0_6] : memref<16x64xbf16, #tpu.memory_space<vmem>>, vector<16x64xbf16>
    tpu.vector_store %arg4[%c0_5, %c0_6], %6 {strides = array<i32>} : memref<16x64xbf16, #tpu.memory_space<vmem>>, vector<16x64xbf16>,
    return
  }
  func.func @transform_0(%arg0: i32) -> (i32, i32) {
    %c0_i32 = arith.constant 0 : i32
    %c0_i32_0 = arith.constant 0 : i32
    return %arg0, %c0_i32 : i32, i32
  }
  func.func @transform_1(%arg0: i32) -> (i32, i32) {
    %c0_i32 = arith.constant 0 : i32
    %c0_i32_0 = arith.constant 0 : i32
    %c0_i32_1 = arith.constant 0 : i32
    return %c0_i32, %c0_i32_0 : i32, i32
  }
  func.func @transform_2(%arg0: i32) -> (i32, i32) {
    %c0_i32 = arith.constant 0 : i32
    %c0_i32_0 = arith.constant 0 : i32
    %c0_i32_1 = arith.constant 0 : i32
    return %c0_i32, %c0_i32_0 : i32, i32
  }
  func.func @transform_3(%arg0: i32) -> (i32, i32) {
    %c0_i32 = arith.constant 0 : i32
    %c0_i32_0 = arith.constant 0 : i32
    return %arg0, %c0_i32 : i32, i32
  }
}

module attributes {stable_mosaic.version = 11 : i64} {
  func.func @_attn_pair_kernel(%arg0: i32, %arg1: memref<1x8x32xbf16, #tpu.memory_space<vmem>>, %arg2: memref<1x8x64xbf16, #tpu.memory_space<vmem>>, %arg3: memref<96x32xbf16, #tpu.memory_space<vmem>>, %arg4: memref<1x96xf32, #tpu.memory_space<vmem>>, %arg5: memref<4x32x8xbf16, #tpu.memory_space<vmem>>, %arg6: memref<1x32xf32, #tpu.memory_space<vmem>>, %arg7: memref<1x32xf32, #tpu.memory_space<vmem>>, %arg8: memref<1x32xf32, #tpu.memory_space<vmem>>, %arg9: memref<32x32xbf16, #tpu.memory_space<vmem>>, %arg10: memref<1x32xf32, #tpu.memory_space<vmem>>, %arg11: memref<4x32x8xbf16, #tpu.memory_space<vmem>>, %arg12: memref<1x32xf32, #tpu.memory_space<vmem>>, %arg13: memref<1x32xf32, #tpu.memory_space<vmem>>, %arg14: memref<1x32xf32, #tpu.memory_space<vmem>>, %arg15: memref<1x8x32xbf16, #tpu.memory_space<vmem>>) attributes {dimension_semantics = [#tpu.dimension_semantics<parallel>], iteration_bounds = array<i64: 2>, scalar_prefetch = 0 : i64, scratch_operands = 0 : i64, tpu.core_type = #tpu.core_type<tc>, window_params = [{transform_indices = @transform_0, window_bounds = array<i64: 1, 8, 32>}, {transform_indices = @transform_1, window_bounds = array<i64: 1, 8, 64>}, {pipeline_mode = #tpu.pipeline_mode<synchronous>, transform_indices = @transform_2, window_bounds = array<i64: 96, 32>}, {pipeline_mode = #tpu.pipeline_mode<synchronous>, transform_indices = @transform_3, window_bounds = array<i64: 1, 96>}, {pipeline_mode = #tpu.pipeline_mode<synchronous>, transform_indices = @transform_4, window_bounds = array<i64: 4, 32, 8>}, {pipeline_mode = #tpu.pipeline_mode<synchronous>, transform_indices = @transform_5, window_bounds = array<i64: 1, 32>}, {pipeline_mode = #tpu.pipeline_mode<synchronous>, transform_indices = @transform_6, window_bounds = array<i64: 1, 32>}, {pipeline_mode = #tpu.pipeline_mode<synchronous>, transform_indices = @transform_7, window_bounds = array<i64: 1, 32>}, {pipeline_mode = #tpu.pipeline_mode<synchronous>, transform_indices = @transform_8, window_bounds = array<i64: 32, 32>}, {pipeline_mode = #tpu.pipeline_mode<synchronous>, transform_indices = @transform_9, window_bounds = array<i64: 1, 32>}, {pipeline_mode = #tpu.pipeline_mode<synchronous>, transform_indices = @transform_10, window_bounds = array<i64: 4, 32, 8>}, {pipeline_mode = #tpu.pipeline_mode<synchronous>, transform_indices = @transform_11, window_bounds = array<i64: 1, 32>}, {pipeline_mode = #tpu.pipeline_mode<synchronous>, transform_indices = @transform_12, window_bounds = array<i64: 1, 32>}, {pipeline_mode = #tpu.pipeline_mode<synchronous>, transform_indices = @transform_13, window_bounds = array<i64: 1, 32>}, {transform_indices = @transform_14, window_bounds = array<i64: 1, 8, 32>}]} {
    %c0 = arith.constant 0 : index
    %c0_0 = arith.constant 0 : index
    %c0_1 = arith.constant 0 : index
    %0 = vector.load %arg1[%c0, %c0_0, %c0_1] : memref<1x8x32xbf16, #tpu.memory_space<vmem>>, vector<1x8x32xbf16>
    %1 = vector.shape_cast %0 : vector<1x8x32xbf16> to vector<8x32xbf16>
    %2 = arith.extf %1 : vector<8x32xbf16> to vector<8x32xf32>
    %c0_2 = arith.constant 0 : index
    %c0_3 = arith.constant 0 : index
    %3 = vector.load %arg3[%c0_2, %c0_3] : memref<96x32xbf16, #tpu.memory_space<vmem>>, vector<96x32xbf16>
    %cst = arith.constant dense<0.000000e+00> : vector<8x96xf32>
    %4 = tpu.matmul %1, %3, %cst {dimension_numbers = #tpu.dot_dimension_numbers<[1], [1], [0], [0], [0, 0, 1, 0], [], []>} : vector<8x32xbf16>, vector<96x32xbf16>, vector<8x96xf32> -> vector<8x96xf32>
    %c0_4 = arith.constant 0 : index
    %c0_5 = arith.constant 0 : index
    %5 = vector.load %arg4[%c0_4, %c0_5] : memref<1x96xf32, #tpu.memory_space<vmem>>, vector<1x96xf32>
    %6 = vector.broadcast %5 : vector<1x96xf32> to vector<8x96xf32>
    %7 = arith.addf %4, %6 : vector<8x96xf32>
    %8 = vector.extract_strided_slice %7 {offsets = [0, 0], sizes = [8, 32], strides = [1, 1]} : vector<8x96xf32> to vector<8x32xf32>
    %cst_6 = arith.constant 0.353553385 : f32
    %9 = vector.broadcast %cst_6 : f32 to vector<8x32xf32>
    %10 = arith.mulf %8, %9 : vector<8x32xf32>
    %11 = vector.extract_strided_slice %7 {offsets = [0, 32], sizes = [8, 32], strides = [1, 1]} : vector<8x96xf32> to vector<8x32xf32>
    %12 = vector.extract_strided_slice %7 {offsets = [0, 64], sizes = [8, 32], strides = [1, 1]} : vector<8x96xf32> to vector<8x32xf32>
    %cst_7 = arith.constant 0.000000e+00 : f32
    %13 = vector.broadcast %cst_7 : f32 to vector<8x32xf32>
    %14 = vector.extract_strided_slice %10 {offsets = [0, 0], sizes = [8, 8], strides = [1, 1]} : vector<8x32xf32> to vector<8x8xf32>
    %15 = arith.truncf %14 : vector<8x8xf32> to vector<8x8xbf16>
    %16 = vector.extract_strided_slice %11 {offsets = [0, 0], sizes = [8, 8], strides = [1, 1]} : vector<8x32xf32> to vector<8x8xf32>
    %17 = arith.truncf %16 : vector<8x8xf32> to vector<8x8xbf16>
    %18 = vector.extract_strided_slice %12 {offsets = [0, 0], sizes = [8, 8], strides = [1, 1]} : vector<8x32xf32> to vector<8x8xf32>
    %19 = arith.truncf %18 : vector<8x8xf32> to vector<8x8xbf16>
    %cst_8 = arith.constant dense<0.000000e+00> : vector<8x8xf32>
    %20 = tpu.matmul %15, %17, %cst_8 {dimension_numbers = #tpu.dot_dimension_numbers<[1], [1], [0], [0], [0, 0, 1, 0], [], []>} : vector<8x8xbf16>, vector<8x8xbf16>, vector<8x8xf32> -> vector<8x8xf32>
    %cst_9 = arith.constant dense<0xFF800000> : vector<8xf32>
    %21 = vector.multi_reduction <maximumf>, %20, %cst_9 [1] : vector<8x8xf32> to vector<8xf32>
    %22 = vector.shape_cast %21 : vector<8xf32> to vector<8x1xf32>
    %23 = vector.broadcast %22 : vector<8x1xf32> to vector<8x8xf32>
    %24 = arith.subf %20, %23 : vector<8x8xf32>
    %25 = math.exp %24 : vector<8x8xf32>
    %cst_10 = arith.constant dense<0.000000e+00> : vector<8xf32>
    %26 = vector.multi_reduction <add>, %25, %cst_10 [1] : vector<8x8xf32> to vector<8xf32>
    %27 = vector.shape_cast %26 : vector<8xf32> to vector<8x1xf32>
    %28 = tpu.reciprocal %27 {approx = true} : vector<8x1xf32> -> vector<8x1xf32>
    %29 = vector.broadcast %28 : vector<8x1xf32> to vector<8x8xf32>
    %30 = arith.mulf %25, %29 : vector<8x8xf32>
    %31 = arith.truncf %30 : vector<8x8xf32> to vector<8x8xbf16>
    %cst_11 = arith.constant dense<0.000000e+00> : vector<8x8xf32>
    %32 = tpu.matmul %31, %19, %cst_11 {dimension_numbers = #tpu.dot_dimension_numbers<[1], [0], [0], [1], [0, 0, 1, 1], [], []>} : vector<8x8xbf16>, vector<8x8xbf16>, vector<8x8xf32> -> vector<8x8xf32>
    %33 = arith.truncf %32 : vector<8x8xf32> to vector<8x8xbf16>
    %c0_12 = arith.constant 0 : index
    %c0_13 = arith.constant 0 : index
    %c0_14 = arith.constant 0 : index
    %34 = vector.load %arg5[%c0_12, %c0_13, %c0_14] : memref<4x32x8xbf16, #tpu.memory_space<vmem>>, vector<1x32x8xbf16>
    %35 = vector.shape_cast %34 : vector<1x32x8xbf16> to vector<32x8xbf16>
    %cst_15 = arith.constant dense<0.000000e+00> : vector<8x32xf32>
    %36 = tpu.matmul %33, %35, %cst_15 {dimension_numbers = #tpu.dot_dimension_numbers<[1], [1], [0], [0], [0, 0, 1, 0], [], []>} : vector<8x8xbf16>, vector<32x8xbf16>, vector<8x32xf32> -> vector<8x32xf32>
    %37 = arith.addf %13, %36 : vector<8x32xf32>
    %38 = vector.extract_strided_slice %10 {offsets = [0, 8], sizes = [8, 8], strides = [1, 1]} : vector<8x32xf32> to vector<8x8xf32>
    %39 = arith.truncf %38 : vector<8x8xf32> to vector<8x8xbf16>
    %40 = vector.extract_strided_slice %11 {offsets = [0, 8], sizes = [8, 8], strides = [1, 1]} : vector<8x32xf32> to vector<8x8xf32>
    %41 = arith.truncf %40 : vector<8x8xf32> to vector<8x8xbf16>
    %42 = vector.extract_strided_slice %12 {offsets = [0, 8], sizes = [8, 8], strides = [1, 1]} : vector<8x32xf32> to vector<8x8xf32>
    %43 = arith.truncf %42 : vector<8x8xf32> to vector<8x8xbf16>
    %cst_16 = arith.constant dense<0.000000e+00> : vector<8x8xf32>
    %44 = tpu.matmul %39, %41, %cst_16 {dimension_numbers = #tpu.dot_dimension_numbers<[1], [1], [0], [0], [0, 0, 1, 0], [], []>} : vector<8x8xbf16>, vector<8x8xbf16>, vector<8x8xf32> -> vector<8x8xf32>
    %cst_17 = arith.constant dense<0xFF800000> : vector<8xf32>
    %45 = vector.multi_reduction <maximumf>, %44, %cst_17 [1] : vector<8x8xf32> to vector<8xf32>
    %46 = vector.shape_cast %45 : vector<8xf32> to vector<8x1xf32>
    %47 = vector.broadcast %46 : vector<8x1xf32> to vector<8x8xf32>
    %48 = arith.subf %44, %47 : vector<8x8xf32>
    %49 = math.exp %48 : vector<8x8xf32>
    %cst_18 = arith.constant dense<0.000000e+00> : vector<8xf32>
    %50 = vector.multi_reduction <add>, %49, %cst_18 [1] : vector<8x8xf32> to vector<8xf32>
    %51 = vector.shape_cast %50 : vector<8xf32> to vector<8x1xf32>
    %52 = tpu.reciprocal %51 {approx = true} : vector<8x1xf32> -> vector<8x1xf32>
    %53 = vector.broadcast %52 : vector<8x1xf32> to vector<8x8xf32>
    %54 = arith.mulf %49, %53 : vector<8x8xf32>
    %55 = arith.truncf %54 : vector<8x8xf32> to vector<8x8xbf16>
    %cst_19 = arith.constant dense<0.000000e+00> : vector<8x8xf32>
    %56 = tpu.matmul %55, %43, %cst_19 {dimension_numbers = #tpu.dot_dimension_numbers<[1], [0], [0], [1], [0, 0, 1, 1], [], []>} : vector<8x8xbf16>, vector<8x8xbf16>, vector<8x8xf32> -> vector<8x8xf32>
    %57 = arith.truncf %56 : vector<8x8xf32> to vector<8x8xbf16>
    %c1 = arith.constant 1 : index
    %c0_20 = arith.constant 0 : index
    %c0_21 = arith.constant 0 : index
    %58 = vector.load %arg5[%c1, %c0_20, %c0_21] : memref<4x32x8xbf16, #tpu.memory_space<vmem>>, vector<1x32x8xbf16>
    %59 = vector.shape_cast %58 : vector<1x32x8xbf16> to vector<32x8xbf16>
    %cst_22 = arith.constant dense<0.000000e+00> : vector<8x32xf32>
    %60 = tpu.matmul %57, %59, %cst_22 {dimension_numbers = #tpu.dot_dimension_numbers<[1], [1], [0], [0], [0, 0, 1, 0], [], []>} : vector<8x8xbf16>, vector<32x8xbf16>, vector<8x32xf32> -> vector<8x32xf32>
    %61 = arith.addf %37, %60 : vector<8x32xf32>
    %62 = vector.extract_strided_slice %10 {offsets = [0, 16], sizes = [8, 8], strides = [1, 1]} : vector<8x32xf32> to vector<8x8xf32>
    %63 = arith.truncf %62 : vector<8x8xf32> to vector<8x8xbf16>
    %64 = vector.extract_strided_slice %11 {offsets = [0, 16], sizes = [8, 8], strides = [1, 1]} : vector<8x32xf32> to vector<8x8xf32>
    %65 = arith.truncf %64 : vector<8x8xf32> to vector<8x8xbf16>
    %66 = vector.extract_strided_slice %12 {offsets = [0, 16], sizes = [8, 8], strides = [1, 1]} : vector<8x32xf32> to vector<8x8xf32>
    %67 = arith.truncf %66 : vector<8x8xf32> to vector<8x8xbf16>
    %cst_23 = arith.constant dense<0.000000e+00> : vector<8x8xf32>
    %68 = tpu.matmul %63, %65, %cst_23 {dimension_numbers = #tpu.dot_dimension_numbers<[1], [1], [0], [0], [0, 0, 1, 0], [], []>} : vector<8x8xbf16>, vector<8x8xbf16>, vector<8x8xf32> -> vector<8x8xf32>
    %cst_24 = arith.constant dense<0xFF800000> : vector<8xf32>
    %69 = vector.multi_reduction <maximumf>, %68, %cst_24 [1] : vector<8x8xf32> to vector<8xf32>
    %70 = vector.shape_cast %69 : vector<8xf32> to vector<8x1xf32>
    %71 = vector.broadcast %70 : vector<8x1xf32> to vector<8x8xf32>
    %72 = arith.subf %68, %71 : vector<8x8xf32>
    %73 = math.exp %72 : vector<8x8xf32>
    %cst_25 = arith.constant dense<0.000000e+00> : vector<8xf32>
    %74 = vector.multi_reduction <add>, %73, %cst_25 [1] : vector<8x8xf32> to vector<8xf32>
    %75 = vector.shape_cast %74 : vector<8xf32> to vector<8x1xf32>
    %76 = tpu.reciprocal %75 {approx = true} : vector<8x1xf32> -> vector<8x1xf32>
    %77 = vector.broadcast %76 : vector<8x1xf32> to vector<8x8xf32>
    %78 = arith.mulf %73, %77 : vector<8x8xf32>
    %79 = arith.truncf %78 : vector<8x8xf32> to vector<8x8xbf16>
    %cst_26 = arith.constant dense<0.000000e+00> : vector<8x8xf32>
    %80 = tpu.matmul %79, %67, %cst_26 {dimension_numbers = #tpu.dot_dimension_numbers<[1], [0], [0], [1], [0, 0, 1, 1], [], []>} : vector<8x8xbf16>, vector<8x8xbf16>, vector<8x8xf32> -> vector<8x8xf32>
    %81 = arith.truncf %80 : vector<8x8xf32> to vector<8x8xbf16>
    %c2 = arith.constant 2 : index
    %c0_27 = arith.constant 0 : index
    %c0_28 = arith.constant 0 : index
    %82 = vector.load %arg5[%c2, %c0_27, %c0_28] : memref<4x32x8xbf16, #tpu.memory_space<vmem>>, vector<1x32x8xbf16>
    %83 = vector.shape_cast %82 : vector<1x32x8xbf16> to vector<32x8xbf16>
    %cst_29 = arith.constant dense<0.000000e+00> : vector<8x32xf32>
    %84 = tpu.matmul %81, %83, %cst_29 {dimension_numbers = #tpu.dot_dimension_numbers<[1], [1], [0], [0], [0, 0, 1, 0], [], []>} : vector<8x8xbf16>, vector<32x8xbf16>, vector<8x32xf32> -> vector<8x32xf32>
    %85 = arith.addf %61, %84 : vector<8x32xf32>
    %86 = vector.extract_strided_slice %10 {offsets = [0, 24], sizes = [8, 8], strides = [1, 1]} : vector<8x32xf32> to vector<8x8xf32>
    %87 = arith.truncf %86 : vector<8x8xf32> to vector<8x8xbf16>
    %88 = vector.extract_strided_slice %11 {offsets = [0, 24], sizes = [8, 8], strides = [1, 1]} : vector<8x32xf32> to vector<8x8xf32>
    %89 = arith.truncf %88 : vector<8x8xf32> to vector<8x8xbf16>
    %90 = vector.extract_strided_slice %12 {offsets = [0, 24], sizes = [8, 8], strides = [1, 1]} : vector<8x32xf32> to vector<8x8xf32>
    %91 = arith.truncf %90 : vector<8x8xf32> to vector<8x8xbf16>
    %cst_30 = arith.constant dense<0.000000e+00> : vector<8x8xf32>
    %92 = tpu.matmul %87, %89, %cst_30 {dimension_numbers = #tpu.dot_dimension_numbers<[1], [1], [0], [0], [0, 0, 1, 0], [], []>} : vector<8x8xbf16>, vector<8x8xbf16>, vector<8x8xf32> -> vector<8x8xf32>
    %cst_31 = arith.constant dense<0xFF800000> : vector<8xf32>
    %93 = vector.multi_reduction <maximumf>, %92, %cst_31 [1] : vector<8x8xf32> to vector<8xf32>
    %94 = vector.shape_cast %93 : vector<8xf32> to vector<8x1xf32>
    %95 = vector.broadcast %94 : vector<8x1xf32> to vector<8x8xf32>
    %96 = arith.subf %92, %95 : vector<8x8xf32>
    %97 = math.exp %96 : vector<8x8xf32>
    %cst_32 = arith.constant dense<0.000000e+00> : vector<8xf32>
    %98 = vector.multi_reduction <add>, %97, %cst_32 [1] : vector<8x8xf32> to vector<8xf32>
    %99 = vector.shape_cast %98 : vector<8xf32> to vector<8x1xf32>
    %100 = tpu.reciprocal %99 {approx = true} : vector<8x1xf32> -> vector<8x1xf32>
    %101 = vector.broadcast %100 : vector<8x1xf32> to vector<8x8xf32>
    %102 = arith.mulf %97, %101 : vector<8x8xf32>
    %103 = arith.truncf %102 : vector<8x8xf32> to vector<8x8xbf16>
    %cst_33 = arith.constant dense<0.000000e+00> : vector<8x8xf32>
    %104 = tpu.matmul %103, %91, %cst_33 {dimension_numbers = #tpu.dot_dimension_numbers<[1], [0], [0], [1], [0, 0, 1, 1], [], []>} : vector<8x8xbf16>, vector<8x8xbf16>, vector<8x8xf32> -> vector<8x8xf32>
    %105 = arith.truncf %104 : vector<8x8xf32> to vector<8x8xbf16>
    %c3 = arith.constant 3 : index
    %c0_34 = arith.constant 0 : index
    %c0_35 = arith.constant 0 : index
    %106 = vector.load %arg5[%c3, %c0_34, %c0_35] : memref<4x32x8xbf16, #tpu.memory_space<vmem>>, vector<1x32x8xbf16>
    %107 = vector.shape_cast %106 : vector<1x32x8xbf16> to vector<32x8xbf16>
    %cst_36 = arith.constant dense<0.000000e+00> : vector<8x32xf32>
    %108 = tpu.matmul %105, %107, %cst_36 {dimension_numbers = #tpu.dot_dimension_numbers<[1], [1], [0], [0], [0, 0, 1, 0], [], []>} : vector<8x8xbf16>, vector<32x8xbf16>, vector<8x32xf32> -> vector<8x32xf32>
    %109 = arith.addf %85, %108 : vector<8x32xf32>
    %c0_37 = arith.constant 0 : index
    %c0_38 = arith.constant 0 : index
    %110 = vector.load %arg6[%c0_37, %c0_38] : memref<1x32xf32, #tpu.memory_space<vmem>>, vector<1x32xf32>
    %111 = vector.broadcast %110 : vector<1x32xf32> to vector<8x32xf32>
    %112 = arith.addf %109, %111 : vector<8x32xf32>
    %c0_39 = arith.constant 0 : index
    %c0_40 = arith.constant 0 : index
    %113 = vector.load %arg7[%c0_39, %c0_40] : memref<1x32xf32, #tpu.memory_space<vmem>>, vector<1x32xf32>
    %c0_41 = arith.constant 0 : index
    %c0_42 = arith.constant 0 : index
    %114 = vector.load %arg8[%c0_41, %c0_42] : memref<1x32xf32, #tpu.memory_space<vmem>>, vector<1x32xf32>
    %115 = arith.addf %112, %2 : vector<8x32xf32>
    %cst_43 = arith.constant dense<0.000000e+00> : vector<8xf32>
    %116 = vector.multi_reduction <add>, %115, %cst_43 [1] : vector<8x32xf32> to vector<8xf32>
    %117 = vector.shape_cast %116 : vector<8xf32> to vector<8x1xf32>
    %cst_44 = arith.constant 3.200000e+01 : f32
    %118 = vector.broadcast %cst_44 : f32 to vector<8x1xf32>
    %119 = arith.divf %117, %118 : vector<8x1xf32>
    %120 = vector.broadcast %119 : vector<8x1xf32> to vector<8x32xf32>
    %121 = arith.subf %115, %120 : vector<8x32xf32>
    %122 = vector.broadcast %119 : vector<8x1xf32> to vector<8x32xf32>
    %123 = arith.subf %115, %122 : vector<8x32xf32>
    %124 = arith.mulf %121, %123 : vector<8x32xf32>
    %cst_45 = arith.constant dense<0.000000e+00> : vector<8xf32>
    %125 = vector.multi_reduction <add>, %124, %cst_45 [1] : vector<8x32xf32> to vector<8xf32>
    %126 = vector.shape_cast %125 : vector<8xf32> to vector<8x1xf32>
    %cst_46 = arith.constant 3.200000e+01 : f32
    %127 = vector.broadcast %cst_46 : f32 to vector<8x1xf32>
    %128 = arith.divf %126, %127 : vector<8x1xf32>
    %129 = vector.broadcast %119 : vector<8x1xf32> to vector<8x32xf32>
    %130 = arith.subf %115, %129 : vector<8x32xf32>
    %cst_47 = arith.constant 9.99999974E-6 : f32
    %131 = vector.broadcast %cst_47 : f32 to vector<8x1xf32>
    %132 = arith.addf %128, %131 : vector<8x1xf32>
    %133 = math.rsqrt %132 : vector<8x1xf32>
    %134 = vector.broadcast %133 : vector<8x1xf32> to vector<8x32xf32>
    %135 = arith.mulf %130, %134 : vector<8x32xf32>
    %136 = vector.broadcast %113 : vector<1x32xf32> to vector<8x32xf32>
    %137 = arith.mulf %135, %136 : vector<8x32xf32>
    %138 = vector.broadcast %114 : vector<1x32xf32> to vector<8x32xf32>
    %139 = arith.addf %137, %138 : vector<8x32xf32>
    %c0_48 = arith.constant 0 : index
    %c0_49 = arith.constant 0 : index
    %c0_50 = arith.constant 0 : index
    %140 = vector.load %arg2[%c0_48, %c0_49, %c0_50] : memref<1x8x64xbf16, #tpu.memory_space<vmem>>, vector<1x8x64xbf16>
    %141 = vector.shape_cast %140 : vector<1x8x64xbf16> to vector<8x64xbf16>
    %c0_51 = arith.constant 0 : index
    %c0_52 = arith.constant 0 : index
    %142 = vector.load %arg9[%c0_51, %c0_52] : memref<32x32xbf16, #tpu.memory_space<vmem>>, vector<32x32xbf16>
    %143 = arith.truncf %139 : vector<8x32xf32> to vector<8x32xbf16>
    %cst_53 = arith.constant dense<0.000000e+00> : vector<8x32xf32>
    %144 = tpu.matmul %143, %142, %cst_53 {dimension_numbers = #tpu.dot_dimension_numbers<[1], [1], [0], [0], [0, 0, 1, 0], [], []>} : vector<8x32xbf16>, vector<32x32xbf16>, vector<8x32xf32> -> vector<8x32xf32>
    %c0_54 = arith.constant 0 : index
    %c0_55 = arith.constant 0 : index
    %145 = vector.load %arg10[%c0_54, %c0_55] : memref<1x32xf32, #tpu.memory_space<vmem>>, vector<1x32xf32>
    %146 = vector.broadcast %145 : vector<1x32xf32> to vector<8x32xf32>
    %147 = arith.addf %144, %146 : vector<8x32xf32>
    %cst_56 = arith.constant 0.353553385 : f32
    %148 = vector.broadcast %cst_56 : f32 to vector<8x32xf32>
    %149 = arith.mulf %147, %148 : vector<8x32xf32>
    %150 = vector.extract_strided_slice %141 {offsets = [0, 0], sizes = [8, 32], strides = [1, 1]} : vector<8x64xbf16> to vector<8x32xbf16>
    %151 = vector.extract_strided_slice %141 {offsets = [0, 32], sizes = [8, 32], strides = [1, 1]} : vector<8x64xbf16> to vector<8x32xbf16>
    %cst_57 = arith.constant 0.000000e+00 : f32
    %152 = vector.broadcast %cst_57 : f32 to vector<8x32xf32>
    %153 = vector.extract_strided_slice %149 {offsets = [0, 0], sizes = [8, 8], strides = [1, 1]} : vector<8x32xf32> to vector<8x8xf32>
    %154 = arith.truncf %153 : vector<8x8xf32> to vector<8x8xbf16>
    %155 = vector.extract_strided_slice %150 {offsets = [0, 0], sizes = [8, 8], strides = [1, 1]} : vector<8x32xbf16> to vector<8x8xbf16>
    %156 = vector.extract_strided_slice %151 {offsets = [0, 0], sizes = [8, 8], strides = [1, 1]} : vector<8x32xbf16> to vector<8x8xbf16>
    %cst_58 = arith.constant dense<0.000000e+00> : vector<8x8xf32>
    %157 = tpu.matmul %154, %155, %cst_58 {dimension_numbers = #tpu.dot_dimension_numbers<[1], [1], [0], [0], [0, 0, 1, 0], [], []>} : vector<8x8xbf16>, vector<8x8xbf16>, vector<8x8xf32> -> vector<8x8xf32>
    %cst_59 = arith.constant dense<0xFF800000> : vector<8xf32>
    %158 = vector.multi_reduction <maximumf>, %157, %cst_59 [1] : vector<8x8xf32> to vector<8xf32>
    %159 = vector.shape_cast %158 : vector<8xf32> to vector<8x1xf32>
    %160 = vector.broadcast %159 : vector<8x1xf32> to vector<8x8xf32>
    %161 = arith.subf %157, %160 : vector<8x8xf32>
    %162 = math.exp %161 : vector<8x8xf32>
    %cst_60 = arith.constant dense<0.000000e+00> : vector<8xf32>
    %163 = vector.multi_reduction <add>, %162, %cst_60 [1] : vector<8x8xf32> to vector<8xf32>
    %164 = vector.shape_cast %163 : vector<8xf32> to vector<8x1xf32>
    %165 = tpu.reciprocal %164 {approx = true} : vector<8x1xf32> -> vector<8x1xf32>
    %166 = vector.broadcast %165 : vector<8x1xf32> to vector<8x8xf32>
    %167 = arith.mulf %162, %166 : vector<8x8xf32>
    %168 = arith.truncf %167 : vector<8x8xf32> to vector<8x8xbf16>
    %cst_61 = arith.constant dense<0.000000e+00> : vector<8x8xf32>
    %169 = tpu.matmul %168, %156, %cst_61 {dimension_numbers = #tpu.dot_dimension_numbers<[1], [0], [0], [1], [0, 0, 1, 1], [], []>} : vector<8x8xbf16>, vector<8x8xbf16>, vector<8x8xf32> -> vector<8x8xf32>
    %170 = arith.truncf %169 : vector<8x8xf32> to vector<8x8xbf16>
    %c0_62 = arith.constant 0 : index
    %c0_63 = arith.constant 0 : index
    %c0_64 = arith.constant 0 : index
    %171 = vector.load %arg11[%c0_62, %c0_63, %c0_64] : memref<4x32x8xbf16, #tpu.memory_space<vmem>>, vector<1x32x8xbf16>
    %172 = vector.shape_cast %171 : vector<1x32x8xbf16> to vector<32x8xbf16>
    %cst_65 = arith.constant dense<0.000000e+00> : vector<8x32xf32>
    %173 = tpu.matmul %170, %172, %cst_65 {dimension_numbers = #tpu.dot_dimension_numbers<[1], [1], [0], [0], [0, 0, 1, 0], [], []>} : vector<8x8xbf16>, vector<32x8xbf16>, vector<8x32xf32> -> vector<8x32xf32>
    %174 = arith.addf %152, %173 : vector<8x32xf32>
    %175 = vector.extract_strided_slice %149 {offsets = [0, 8], sizes = [8, 8], strides = [1, 1]} : vector<8x32xf32> to vector<8x8xf32>
    %176 = arith.truncf %175 : vector<8x8xf32> to vector<8x8xbf16>
    %177 = vector.extract_strided_slice %150 {offsets = [0, 8], sizes = [8, 8], strides = [1, 1]} : vector<8x32xbf16> to vector<8x8xbf16>
    %178 = vector.extract_strided_slice %151 {offsets = [0, 8], sizes = [8, 8], strides = [1, 1]} : vector<8x32xbf16> to vector<8x8xbf16>
    %cst_66 = arith.constant dense<0.000000e+00> : vector<8x8xf32>
    %179 = tpu.matmul %176, %177, %cst_66 {dimension_numbers = #tpu.dot_dimension_numbers<[1], [1], [0], [0], [0, 0, 1, 0], [], []>} : vector<8x8xbf16>, vector<8x8xbf16>, vector<8x8xf32> -> vector<8x8xf32>
    %cst_67 = arith.constant dense<0xFF800000> : vector<8xf32>
    %180 = vector.multi_reduction <maximumf>, %179, %cst_67 [1] : vector<8x8xf32> to vector<8xf32>
    %181 = vector.shape_cast %180 : vector<8xf32> to vector<8x1xf32>
    %182 = vector.broadcast %181 : vector<8x1xf32> to vector<8x8xf32>
    %183 = arith.subf %179, %182 : vector<8x8xf32>
    %184 = math.exp %183 : vector<8x8xf32>
    %cst_68 = arith.constant dense<0.000000e+00> : vector<8xf32>
    %185 = vector.multi_reduction <add>, %184, %cst_68 [1] : vector<8x8xf32> to vector<8xf32>
    %186 = vector.shape_cast %185 : vector<8xf32> to vector<8x1xf32>
    %187 = tpu.reciprocal %186 {approx = true} : vector<8x1xf32> -> vector<8x1xf32>
    %188 = vector.broadcast %187 : vector<8x1xf32> to vector<8x8xf32>
    %189 = arith.mulf %184, %188 : vector<8x8xf32>
    %190 = arith.truncf %189 : vector<8x8xf32> to vector<8x8xbf16>
    %cst_69 = arith.constant dense<0.000000e+00> : vector<8x8xf32>
    %191 = tpu.matmul %190, %178, %cst_69 {dimension_numbers = #tpu.dot_dimension_numbers<[1], [0], [0], [1], [0, 0, 1, 1], [], []>} : vector<8x8xbf16>, vector<8x8xbf16>, vector<8x8xf32> -> vector<8x8xf32>
    %192 = arith.truncf %191 : vector<8x8xf32> to vector<8x8xbf16>
    %c1_70 = arith.constant 1 : index
    %c0_71 = arith.constant 0 : index
    %c0_72 = arith.constant 0 : index
    %193 = vector.load %arg11[%c1_70, %c0_71, %c0_72] : memref<4x32x8xbf16, #tpu.memory_space<vmem>>, vector<1x32x8xbf16>
    %194 = vector.shape_cast %193 : vector<1x32x8xbf16> to vector<32x8xbf16>
    %cst_73 = arith.constant dense<0.000000e+00> : vector<8x32xf32>
    %195 = tpu.matmul %192, %194, %cst_73 {dimension_numbers = #tpu.dot_dimension_numbers<[1], [1], [0], [0], [0, 0, 1, 0], [], []>} : vector<8x8xbf16>, vector<32x8xbf16>, vector<8x32xf32> -> vector<8x32xf32>
    %196 = arith.addf %174, %195 : vector<8x32xf32>
    %197 = vector.extract_strided_slice %149 {offsets = [0, 16], sizes = [8, 8], strides = [1, 1]} : vector<8x32xf32> to vector<8x8xf32>
    %198 = arith.truncf %197 : vector<8x8xf32> to vector<8x8xbf16>
    %199 = vector.extract_strided_slice %150 {offsets = [0, 16], sizes = [8, 8], strides = [1, 1]} : vector<8x32xbf16> to vector<8x8xbf16>
    %200 = vector.extract_strided_slice %151 {offsets = [0, 16], sizes = [8, 8], strides = [1, 1]} : vector<8x32xbf16> to vector<8x8xbf16>
    %cst_74 = arith.constant dense<0.000000e+00> : vector<8x8xf32>
    %201 = tpu.matmul %198, %199, %cst_74 {dimension_numbers = #tpu.dot_dimension_numbers<[1], [1], [0], [0], [0, 0, 1, 0], [], []>} : vector<8x8xbf16>, vector<8x8xbf16>, vector<8x8xf32> -> vector<8x8xf32>
    %cst_75 = arith.constant dense<0xFF800000> : vector<8xf32>
    %202 = vector.multi_reduction <maximumf>, %201, %cst_75 [1] : vector<8x8xf32> to vector<8xf32>
    %203 = vector.shape_cast %202 : vector<8xf32> to vector<8x1xf32>
    %204 = vector.broadcast %203 : vector<8x1xf32> to vector<8x8xf32>
    %205 = arith.subf %201, %204 : vector<8x8xf32>
    %206 = math.exp %205 : vector<8x8xf32>
    %cst_76 = arith.constant dense<0.000000e+00> : vector<8xf32>
    %207 = vector.multi_reduction <add>, %206, %cst_76 [1] : vector<8x8xf32> to vector<8xf32>
    %208 = vector.shape_cast %207 : vector<8xf32> to vector<8x1xf32>
    %209 = tpu.reciprocal %208 {approx = true} : vector<8x1xf32> -> vector<8x1xf32>
    %210 = vector.broadcast %209 : vector<8x1xf32> to vector<8x8xf32>
    %211 = arith.mulf %206, %210 : vector<8x8xf32>
    %212 = arith.truncf %211 : vector<8x8xf32> to vector<8x8xbf16>
    %cst_77 = arith.constant dense<0.000000e+00> : vector<8x8xf32>
    %213 = tpu.matmul %212, %200, %cst_77 {dimension_numbers = #tpu.dot_dimension_numbers<[1], [0], [0], [1], [0, 0, 1, 1], [], []>} : vector<8x8xbf16>, vector<8x8xbf16>, vector<8x8xf32> -> vector<8x8xf32>
    %214 = arith.truncf %213 : vector<8x8xf32> to vector<8x8xbf16>
    %c2_78 = arith.constant 2 : index
    %c0_79 = arith.constant 0 : index
    %c0_80 = arith.constant 0 : index
    %215 = vector.load %arg11[%c2_78, %c0_79, %c0_80] : memref<4x32x8xbf16, #tpu.memory_space<vmem>>, vector<1x32x8xbf16>
    %216 = vector.shape_cast %215 : vector<1x32x8xbf16> to vector<32x8xbf16>
    %cst_81 = arith.constant dense<0.000000e+00> : vector<8x32xf32>
    %217 = tpu.matmul %214, %216, %cst_81 {dimension_numbers = #tpu.dot_dimension_numbers<[1], [1], [0], [0], [0, 0, 1, 0], [], []>} : vector<8x8xbf16>, vector<32x8xbf16>, vector<8x32xf32> -> vector<8x32xf32>
    %218 = arith.addf %196, %217 : vector<8x32xf32>
    %219 = vector.extract_strided_slice %149 {offsets = [0, 24], sizes = [8, 8], strides = [1, 1]} : vector<8x32xf32> to vector<8x8xf32>
    %220 = arith.truncf %219 : vector<8x8xf32> to vector<8x8xbf16>
    %221 = vector.extract_strided_slice %150 {offsets = [0, 24], sizes = [8, 8], strides = [1, 1]} : vector<8x32xbf16> to vector<8x8xbf16>
    %222 = vector.extract_strided_slice %151 {offsets = [0, 24], sizes = [8, 8], strides = [1, 1]} : vector<8x32xbf16> to vector<8x8xbf16>
    %cst_82 = arith.constant dense<0.000000e+00> : vector<8x8xf32>
    %223 = tpu.matmul %220, %221, %cst_82 {dimension_numbers = #tpu.dot_dimension_numbers<[1], [1], [0], [0], [0, 0, 1, 0], [], []>} : vector<8x8xbf16>, vector<8x8xbf16>, vector<8x8xf32> -> vector<8x8xf32>
    %cst_83 = arith.constant dense<0xFF800000> : vector<8xf32>
    %224 = vector.multi_reduction <maximumf>, %223, %cst_83 [1] : vector<8x8xf32> to vector<8xf32>
    %225 = vector.shape_cast %224 : vector<8xf32> to vector<8x1xf32>
    %226 = vector.broadcast %225 : vector<8x1xf32> to vector<8x8xf32>
    %227 = arith.subf %223, %226 : vector<8x8xf32>
    %228 = math.exp %227 : vector<8x8xf32>
    %cst_84 = arith.constant dense<0.000000e+00> : vector<8xf32>
    %229 = vector.multi_reduction <add>, %228, %cst_84 [1] : vector<8x8xf32> to vector<8xf32>
    %230 = vector.shape_cast %229 : vector<8xf32> to vector<8x1xf32>
    %231 = tpu.reciprocal %230 {approx = true} : vector<8x1xf32> -> vector<8x1xf32>
    %232 = vector.broadcast %231 : vector<8x1xf32> to vector<8x8xf32>
    %233 = arith.mulf %228, %232 : vector<8x8xf32>
    %234 = arith.truncf %233 : vector<8x8xf32> to vector<8x8xbf16>
    %cst_85 = arith.constant dense<0.000000e+00> : vector<8x8xf32>
    %235 = tpu.matmul %234, %222, %cst_85 {dimension_numbers = #tpu.dot_dimension_numbers<[1], [0], [0], [1], [0, 0, 1, 1], [], []>} : vector<8x8xbf16>, vector<8x8xbf16>, vector<8x8xf32> -> vector<8x8xf32>
    %236 = arith.truncf %235 : vector<8x8xf32> to vector<8x8xbf16>
    %c3_86 = arith.constant 3 : index
    %c0_87 = arith.constant 0 : index
    %c0_88 = arith.constant 0 : index
    %237 = vector.load %arg11[%c3_86, %c0_87, %c0_88] : memref<4x32x8xbf16, #tpu.memory_space<vmem>>, vector<1x32x8xbf16>
    %238 = vector.shape_cast %237 : vector<1x32x8xbf16> to vector<32x8xbf16>
    %cst_89 = arith.constant dense<0.000000e+00> : vector<8x32xf32>
    %239 = tpu.matmul %236, %238, %cst_89 {dimension_numbers = #tpu.dot_dimension_numbers<[1], [1], [0], [0], [0, 0, 1, 0], [], []>} : vector<8x8xbf16>, vector<32x8xbf16>, vector<8x32xf32> -> vector<8x32xf32>
    %240 = arith.addf %218, %239 : vector<8x32xf32>
    %c0_90 = arith.constant 0 : index
    %c0_91 = arith.constant 0 : index
    %241 = vector.load %arg12[%c0_90, %c0_91] : memref<1x32xf32, #tpu.memory_space<vmem>>, vector<1x32xf32>
    %242 = vector.broadcast %241 : vector<1x32xf32> to vector<8x32xf32>
    %243 = arith.addf %240, %242 : vector<8x32xf32>
    %c0_92 = arith.constant 0 : index
    %c0_93 = arith.constant 0 : index
    %244 = vector.load %arg13[%c0_92, %c0_93] : memref<1x32xf32, #tpu.memory_space<vmem>>, vector<1x32xf32>
    %c0_94 = arith.constant 0 : index
    %c0_95 = arith.constant 0 : index
    %245 = vector.load %arg14[%c0_94, %c0_95] : memref<1x32xf32, #tpu.memory_space<vmem>>, vector<1x32xf32>
    %246 = arith.addf %243, %139 : vector<8x32xf32>
    %cst_96 = arith.constant dense<0.000000e+00> : vector<8xf32>
    %247 = vector.multi_reduction <add>, %246, %cst_96 [1] : vector<8x32xf32> to vector<8xf32>
    %248 = vector.shape_cast %247 : vector<8xf32> to vector<8x1xf32>
    %cst_97 = arith.constant 3.200000e+01 : f32
    %249 = vector.broadcast %cst_97 : f32 to vector<8x1xf32>
    %250 = arith.divf %248, %249 : vector<8x1xf32>
    %251 = vector.broadcast %250 : vector<8x1xf32> to vector<8x32xf32>
    %252 = arith.subf %246, %251 : vector<8x32xf32>
    %253 = vector.broadcast %250 : vector<8x1xf32> to vector<8x32xf32>
    %254 = arith.subf %246, %253 : vector<8x32xf32>
    %255 = arith.mulf %252, %254 : vector<8x32xf32>
    %cst_98 = arith.constant dense<0.000000e+00> : vector<8xf32>
    %256 = vector.multi_reduction <add>, %255, %cst_98 [1] : vector<8x32xf32> to vector<8xf32>
    %257 = vector.shape_cast %256 : vector<8xf32> to vector<8x1xf32>
    %cst_99 = arith.constant 3.200000e+01 : f32
    %258 = vector.broadcast %cst_99 : f32 to vector<8x1xf32>
    %259 = arith.divf %257, %258 : vector<8x1xf32>
    %260 = vector.broadcast %250 : vector<8x1xf32> to vector<8x32xf32>
    %261 = arith.subf %246, %260 : vector<8x32xf32>
    %cst_100 = arith.constant 9.99999974E-6 : f32
    %262 = vector.broadcast %cst_100 : f32 to vector<8x1xf32>
    %263 = arith.addf %259, %262 : vector<8x1xf32>
    %264 = math.rsqrt %263 : vector<8x1xf32>
    %265 = vector.broadcast %264 : vector<8x1xf32> to vector<8x32xf32>
    %266 = arith.mulf %261, %265 : vector<8x32xf32>
    %267 = vector.broadcast %244 : vector<1x32xf32> to vector<8x32xf32>
    %268 = arith.mulf %266, %267 : vector<8x32xf32>
    %269 = vector.broadcast %245 : vector<1x32xf32> to vector<8x32xf32>
    %270 = arith.addf %268, %269 : vector<8x32xf32>
    %271 = arith.truncf %270 : vector<8x32xf32> to vector<8x32xbf16>
    %c0_101 = arith.constant 0 : index
    %c0_102 = arith.constant 0 : index
    %c0_103 = arith.constant 0 : index
    %272 = vector.load %arg15[%c0_101, %c0_102, %c0_103] : memref<1x8x32xbf16, #tpu.memory_space<vmem>>, vector<1x8x32xbf16>
    %273 = vector.shape_cast %272 : vector<1x8x32xbf16> to vector<8x32xbf16>
    %274 = vector.shape_cast %271 : vector<8x32xbf16> to vector<1x8x32xbf16>
    tpu.vector_store %arg15[%c0_101, %c0_102, %c0_103], %274 {strides = array<i32>} : memref<1x8x32xbf16, #tpu.memory_space<vmem>>, vector<1x8x32xbf16>,
    return
  }
  func.func @transform_0(%arg0: i32) -> (i32, i32, i32) {
    %c0_i32 = arith.constant 0 : i32
    %c0_i32_0 = arith.constant 0 : i32
    %c0_i32_1 = arith.constant 0 : i32
    return %arg0, %c0_i32, %c0_i32_0 : i32, i32, i32
  }
  func.func @transform_1(%arg0: i32) -> (i32, i32, i32) {
    %c0_i32 = arith.constant 0 : i32
    %c0_i32_0 = arith.constant 0 : i32
    %c0_i32_1 = arith.constant 0 : i32
    return %arg0, %c0_i32, %c0_i32_0 : i32, i32, i32
  }
  func.func @transform_2(%arg0: i32) -> (i32, i32) {
    %c0_i32 = arith.constant 0 : i32
    %c0_i32_0 = arith.constant 0 : i32
    %c0_i32_1 = arith.constant 0 : i32
    return %c0_i32, %c0_i32_0 : i32, i32
  }
  func.func @transform_3(%arg0: i32) -> (i32, i32) {
    %c0_i32 = arith.constant 0 : i32
    %c0_i32_0 = arith.constant 0 : i32
    %c0_i32_1 = arith.constant 0 : i32
    return %c0_i32, %c0_i32_0 : i32, i32
  }
  func.func @transform_4(%arg0: i32) -> (i32, i32, i32) {
    %c0_i32 = arith.constant 0 : i32
    %c0_i32_0 = arith.constant 0 : i32
    %c0_i32_1 = arith.constant 0 : i32
    %c0_i32_2 = arith.constant 0 : i32
    return %c0_i32, %c0_i32_0, %c0_i32_1 : i32, i32, i32
  }
  func.func @transform_5(%arg0: i32) -> (i32, i32) {
    %c0_i32 = arith.constant 0 : i32
    %c0_i32_0 = arith.constant 0 : i32
    %c0_i32_1 = arith.constant 0 : i32
    return %c0_i32, %c0_i32_0 : i32, i32
  }
  func.func @transform_6(%arg0: i32) -> (i32, i32) {
    %c0_i32 = arith.constant 0 : i32
    %c0_i32_0 = arith.constant 0 : i32
    %c0_i32_1 = arith.constant 0 : i32
    return %c0_i32, %c0_i32_0 : i32, i32
  }
  func.func @transform_7(%arg0: i32) -> (i32, i32) {
    %c0_i32 = arith.constant 0 : i32
    %c0_i32_0 = arith.constant 0 : i32
    %c0_i32_1 = arith.constant 0 : i32
    return %c0_i32, %c0_i32_0 : i32, i32
  }
  func.func @transform_8(%arg0: i32) -> (i32, i32) {
    %c0_i32 = arith.constant 0 : i32
    %c0_i32_0 = arith.constant 0 : i32
    %c0_i32_1 = arith.constant 0 : i32
    return %c0_i32, %c0_i32_0 : i32, i32
  }
  func.func @transform_9(%arg0: i32) -> (i32, i32) {
    %c0_i32 = arith.constant 0 : i32
    %c0_i32_0 = arith.constant 0 : i32
    %c0_i32_1 = arith.constant 0 : i32
    return %c0_i32, %c0_i32_0 : i32, i32
  }
  func.func @transform_10(%arg0: i32) -> (i32, i32, i32) {
    %c0_i32 = arith.constant 0 : i32
    %c0_i32_0 = arith.constant 0 : i32
    %c0_i32_1 = arith.constant 0 : i32
    %c0_i32_2 = arith.constant 0 : i32
    return %c0_i32, %c0_i32_0, %c0_i32_1 : i32, i32, i32
  }
  func.func @transform_11(%arg0: i32) -> (i32, i32) {
    %c0_i32 = arith.constant 0 : i32
    %c0_i32_0 = arith.constant 0 : i32
    %c0_i32_1 = arith.constant 0 : i32
    return %c0_i32, %c0_i32_0 : i32, i32
  }
  func.func @transform_12(%arg0: i32) -> (i32, i32) {
    %c0_i32 = arith.constant 0 : i32
    %c0_i32_0 = arith.constant 0 : i32
    %c0_i32_1 = arith.constant 0 : i32
    return %c0_i32, %c0_i32_0 : i32, i32
  }
  func.func @transform_13(%arg0: i32) -> (i32, i32) {
    %c0_i32 = arith.constant 0 : i32
    %c0_i32_0 = arith.constant 0 : i32
    %c0_i32_1 = arith.constant 0 : i32
    return %c0_i32, %c0_i32_0 : i32, i32
  }
  func.func @transform_14(%arg0: i32) -> (i32, i32, i32) {
    %c0_i32 = arith.constant 0 : i32
    %c0_i32_0 = arith.constant 0 : i32
    %c0_i32_1 = arith.constant 0 : i32
    return %arg0, %c0_i32, %c0_i32_0 : i32, i32, i32
  }
}

module attributes {stable_mosaic.version = 11 : i64} {
  func.func @_ffn_kernel(%arg0: i32, %arg1: memref<16x32xbf16, #tpu.memory_space<vmem>>, %arg2: memref<64x32xbf16, #tpu.memory_space<vmem>>, %arg3: memref<1x64xf32, #tpu.memory_space<vmem>>, %arg4: memref<32x64xbf16, #tpu.memory_space<vmem>>, %arg5: memref<1x32xf32, #tpu.memory_space<vmem>>, %arg6: memref<1x32xf32, #tpu.memory_space<vmem>>, %arg7: memref<1x32xf32, #tpu.memory_space<vmem>>, %arg8: memref<16x32xbf16, #tpu.memory_space<vmem>>) attributes {dimension_semantics = [#tpu.dimension_semantics<parallel>], iteration_bounds = array<i64: 1>, scalar_prefetch = 0 : i64, scratch_operands = 0 : i64, tpu.core_type = #tpu.core_type<tc>, window_params = [{transform_indices = @transform_0, window_bounds = array<i64: 16, 32>}, {pipeline_mode = #tpu.pipeline_mode<synchronous>, transform_indices = @transform_1, window_bounds = array<i64: 64, 32>}, {pipeline_mode = #tpu.pipeline_mode<synchronous>, transform_indices = @transform_2, window_bounds = array<i64: 1, 64>}, {pipeline_mode = #tpu.pipeline_mode<synchronous>, transform_indices = @transform_3, window_bounds = array<i64: 32, 64>}, {pipeline_mode = #tpu.pipeline_mode<synchronous>, transform_indices = @transform_4, window_bounds = array<i64: 1, 32>}, {pipeline_mode = #tpu.pipeline_mode<synchronous>, transform_indices = @transform_5, window_bounds = array<i64: 1, 32>}, {pipeline_mode = #tpu.pipeline_mode<synchronous>, transform_indices = @transform_6, window_bounds = array<i64: 1, 32>}, {transform_indices = @transform_7, window_bounds = array<i64: 16, 32>}]} {
    %c0 = arith.constant 0 : index
    %c0_0 = arith.constant 0 : index
    %0 = vector.load %arg1[%c0, %c0_0] : memref<16x32xbf16, #tpu.memory_space<vmem>>, vector<16x32xbf16>
    %1 = arith.extf %0 : vector<16x32xbf16> to vector<16x32xf32>
    %c0_1 = arith.constant 0 : index
    %c0_2 = arith.constant 0 : index
    %2 = vector.load %arg2[%c0_1, %c0_2] : memref<64x32xbf16, #tpu.memory_space<vmem>>, vector<64x32xbf16>
    %cst = arith.constant dense<0.000000e+00> : vector<16x64xf32>
    %3 = tpu.matmul %0, %2, %cst {dimension_numbers = #tpu.dot_dimension_numbers<[1], [1], [0], [0], [0, 0, 1, 0], [], []>} : vector<16x32xbf16>, vector<64x32xbf16>, vector<16x64xf32> -> vector<16x64xf32>
    %c0_3 = arith.constant 0 : index
    %c0_4 = arith.constant 0 : index
    %4 = vector.load %arg3[%c0_3, %c0_4] : memref<1x64xf32, #tpu.memory_space<vmem>>, vector<1x64xf32>
    %5 = vector.broadcast %4 : vector<1x64xf32> to vector<16x64xf32>
    %6 = arith.addf %3, %5 : vector<16x64xf32>
    %cst_5 = arith.constant 0.000000e+00 : f32
    %7 = vector.broadcast %cst_5 : f32 to vector<16x64xf32>
    %8 = arith.maximumf %6, %7 : vector<16x64xf32>
    %c0_6 = arith.constant 0 : index
    %c0_7 = arith.constant 0 : index
    %9 = vector.load %arg4[%c0_6, %c0_7] : memref<32x64xbf16, #tpu.memory_space<vmem>>, vector<32x64xbf16>
    %10 = arith.truncf %8 : vector<16x64xf32> to vector<16x64xbf16>
    %cst_8 = arith.constant dense<0.000000e+00> : vector<16x32xf32>
    %11 = tpu.matmul %10, %9, %cst_8 {dimension_numbers = #tpu.dot_dimension_numbers<[1], [1], [0], [0], [0, 0, 1, 0], [], []>} : vector<16x64xbf16>, vector<32x64xbf16>, vector<16x32xf32> -> vector<16x32xf32>
    %c0_9 = arith.constant 0 : index
    %c0_10 = arith.constant 0 : index
    %12 = vector.load %arg5[%c0_9, %c0_10] : memref<1x32xf32, #tpu.memory_space<vmem>>, vector<1x32xf32>
    %13 = vector.broadcast %12 : vector<1x32xf32> to vector<16x32xf32>
    %14 = arith.addf %11, %13 : vector<16x32xf32>
    %c0_11 = arith.constant 0 : index
    %c0_12 = arith.constant 0 : index
    %15 = vector.load %arg6[%c0_11, %c0_12] : memref<1x32xf32, #tpu.memory_space<vmem>>, vector<1x32xf32>
    %c0_13 = arith.constant 0 : index
    %c0_14 = arith.constant 0 : index
    %16 = vector.load %arg7[%c0_13, %c0_14] : memref<1x32xf32, #tpu.memory_space<vmem>>, vector<1x32xf32>
    %17 = arith.addf %14, %1 : vector<16x32xf32>
    %cst_15 = arith.constant dense<0.000000e+00> : vector<16xf32>
    %18 = vector.multi_reduction <add>, %17, %cst_15 [1] : vector<16x32xf32> to vector<16xf32>
    %19 = vector.shape_cast %18 : vector<16xf32> to vector<16x1xf32>
    %cst_16 = arith.constant 3.200000e+01 : f32
    %20 = vector.broadcast %cst_16 : f32 to vector<16x1xf32>
    %21 = arith.divf %19, %20 : vector<16x1xf32>
    %22 = vector.broadcast %21 : vector<16x1xf32> to vector<16x32xf32>
    %23 = arith.subf %17, %22 : vector<16x32xf32>
    %24 = vector.broadcast %21 : vector<16x1xf32> to vector<16x32xf32>
    %25 = arith.subf %17, %24 : vector<16x32xf32>
    %26 = arith.mulf %23, %25 : vector<16x32xf32>
    %cst_17 = arith.constant dense<0.000000e+00> : vector<16xf32>
    %27 = vector.multi_reduction <add>, %26, %cst_17 [1] : vector<16x32xf32> to vector<16xf32>
    %28 = vector.shape_cast %27 : vector<16xf32> to vector<16x1xf32>
    %cst_18 = arith.constant 3.200000e+01 : f32
    %29 = vector.broadcast %cst_18 : f32 to vector<16x1xf32>
    %30 = arith.divf %28, %29 : vector<16x1xf32>
    %31 = vector.broadcast %21 : vector<16x1xf32> to vector<16x32xf32>
    %32 = arith.subf %17, %31 : vector<16x32xf32>
    %cst_19 = arith.constant 9.99999974E-6 : f32
    %33 = vector.broadcast %cst_19 : f32 to vector<16x1xf32>
    %34 = arith.addf %30, %33 : vector<16x1xf32>
    %35 = math.rsqrt %34 : vector<16x1xf32>
    %36 = vector.broadcast %35 : vector<16x1xf32> to vector<16x32xf32>
    %37 = arith.mulf %32, %36 : vector<16x32xf32>
    %38 = vector.broadcast %15 : vector<1x32xf32> to vector<16x32xf32>
    %39 = arith.mulf %37, %38 : vector<16x32xf32>
    %40 = vector.broadcast %16 : vector<1x32xf32> to vector<16x32xf32>
    %41 = arith.addf %39, %40 : vector<16x32xf32>
    %42 = arith.truncf %41 : vector<16x32xf32> to vector<16x32xbf16>
    %c0_20 = arith.constant 0 : index
    %c0_21 = arith.constant 0 : index
    %43 = vector.load %arg8[%c0_20, %c0_21] : memref<16x32xbf16, #tpu.memory_space<vmem>>, vector<16x32xbf16>
    tpu.vector_store %arg8[%c0_20, %c0_21], %42 {strides = array<i32>} : memref<16x32xbf16, #tpu.memory_space<vmem>>, vector<16x32xbf16>,
    return
  }
  func.func @transform_0(%arg0: i32) -> (i32, i32) {
    %c0_i32 = arith.constant 0 : i32
    %c0_i32_0 = arith.constant 0 : i32
    return %arg0, %c0_i32 : i32, i32
  }
  func.func @transform_1(%arg0: i32) -> (i32, i32) {
    %c0_i32 = arith.constant 0 : i32
    %c0_i32_0 = arith.constant 0 : i32
    %c0_i32_1 = arith.constant 0 : i32
    return %c0_i32, %c0_i32_0 : i32, i32
  }
  func.func @transform_2(%arg0: i32) -> (i32, i32) {
    %c0_i32 = arith.constant 0 : i32
    %c0_i32_0 = arith.constant 0 : i32
    %c0_i32_1 = arith.constant 0 : i32
    return %c0_i32, %c0_i32_0 : i32, i32
  }
  func.func @transform_3(%arg0: i32) -> (i32, i32) {
    %c0_i32 = arith.constant 0 : i32
    %c0_i32_0 = arith.constant 0 : i32
    %c0_i32_1 = arith.constant 0 : i32
    return %c0_i32, %c0_i32_0 : i32, i32
  }
  func.func @transform_4(%arg0: i32) -> (i32, i32) {
    %c0_i32 = arith.constant 0 : i32
    %c0_i32_0 = arith.constant 0 : i32
    %c0_i32_1 = arith.constant 0 : i32
    return %c0_i32, %c0_i32_0 : i32, i32
  }
  func.func @transform_5(%arg0: i32) -> (i32, i32) {
    %c0_i32 = arith.constant 0 : i32
    %c0_i32_0 = arith.constant 0 : i32
    %c0_i32_1 = arith.constant 0 : i32
    return %c0_i32, %c0_i32_0 : i32, i32
  }
  func.func @transform_6(%arg0: i32) -> (i32, i32) {
    %c0_i32 = arith.constant 0 : i32
    %c0_i32_0 = arith.constant 0 : i32
    %c0_i32_1 = arith.constant 0 : i32
    return %c0_i32, %c0_i32_0 : i32, i32
  }
  func.func @transform_7(%arg0: i32) -> (i32, i32) {
    %c0_i32 = arith.constant 0 : i32
    %c0_i32_0 = arith.constant 0 : i32
    return %arg0, %c0_i32 : i32, i32
  }
}

module attributes {stable_mosaic.version = 11 : i64} {
  func.func @_ffn_kernel(%arg0: i32, %arg1: memref<16x32xbf16, #tpu.memory_space<vmem>>, %arg2: memref<64x32xbf16, #tpu.memory_space<vmem>>, %arg3: memref<1x64xf32, #tpu.memory_space<vmem>>, %arg4: memref<32x64xbf16, #tpu.memory_space<vmem>>, %arg5: memref<1x32xf32, #tpu.memory_space<vmem>>, %arg6: memref<1x32xf32, #tpu.memory_space<vmem>>, %arg7: memref<1x32xf32, #tpu.memory_space<vmem>>, %arg8: memref<16x32xf32, #tpu.memory_space<vmem>>) attributes {dimension_semantics = [#tpu.dimension_semantics<parallel>], iteration_bounds = array<i64: 1>, scalar_prefetch = 0 : i64, scratch_operands = 0 : i64, tpu.core_type = #tpu.core_type<tc>, window_params = [{transform_indices = @transform_0, window_bounds = array<i64: 16, 32>}, {pipeline_mode = #tpu.pipeline_mode<synchronous>, transform_indices = @transform_1, window_bounds = array<i64: 64, 32>}, {pipeline_mode = #tpu.pipeline_mode<synchronous>, transform_indices = @transform_2, window_bounds = array<i64: 1, 64>}, {pipeline_mode = #tpu.pipeline_mode<synchronous>, transform_indices = @transform_3, window_bounds = array<i64: 32, 64>}, {pipeline_mode = #tpu.pipeline_mode<synchronous>, transform_indices = @transform_4, window_bounds = array<i64: 1, 32>}, {pipeline_mode = #tpu.pipeline_mode<synchronous>, transform_indices = @transform_5, window_bounds = array<i64: 1, 32>}, {pipeline_mode = #tpu.pipeline_mode<synchronous>, transform_indices = @transform_6, window_bounds = array<i64: 1, 32>}, {transform_indices = @transform_7, window_bounds = array<i64: 16, 32>}]} {
    %c0 = arith.constant 0 : index
    %c0_0 = arith.constant 0 : index
    %0 = vector.load %arg1[%c0, %c0_0] : memref<16x32xbf16, #tpu.memory_space<vmem>>, vector<16x32xbf16>
    %1 = arith.extf %0 : vector<16x32xbf16> to vector<16x32xf32>
    %c0_1 = arith.constant 0 : index
    %c0_2 = arith.constant 0 : index
    %2 = vector.load %arg2[%c0_1, %c0_2] : memref<64x32xbf16, #tpu.memory_space<vmem>>, vector<64x32xbf16>
    %cst = arith.constant dense<0.000000e+00> : vector<16x64xf32>
    %3 = tpu.matmul %0, %2, %cst {dimension_numbers = #tpu.dot_dimension_numbers<[1], [1], [0], [0], [0, 0, 1, 0], [], []>} : vector<16x32xbf16>, vector<64x32xbf16>, vector<16x64xf32> -> vector<16x64xf32>
    %c0_3 = arith.constant 0 : index
    %c0_4 = arith.constant 0 : index
    %4 = vector.load %arg3[%c0_3, %c0_4] : memref<1x64xf32, #tpu.memory_space<vmem>>, vector<1x64xf32>
    %5 = vector.broadcast %4 : vector<1x64xf32> to vector<16x64xf32>
    %6 = arith.addf %3, %5 : vector<16x64xf32>
    %cst_5 = arith.constant 0.000000e+00 : f32
    %7 = vector.broadcast %cst_5 : f32 to vector<16x64xf32>
    %8 = arith.maximumf %6, %7 : vector<16x64xf32>
    %c0_6 = arith.constant 0 : index
    %c0_7 = arith.constant 0 : index
    %9 = vector.load %arg4[%c0_6, %c0_7] : memref<32x64xbf16, #tpu.memory_space<vmem>>, vector<32x64xbf16>
    %10 = arith.truncf %8 : vector<16x64xf32> to vector<16x64xbf16>
    %cst_8 = arith.constant dense<0.000000e+00> : vector<16x32xf32>
    %11 = tpu.matmul %10, %9, %cst_8 {dimension_numbers = #tpu.dot_dimension_numbers<[1], [1], [0], [0], [0, 0, 1, 0], [], []>} : vector<16x64xbf16>, vector<32x64xbf16>, vector<16x32xf32> -> vector<16x32xf32>
    %c0_9 = arith.constant 0 : index
    %c0_10 = arith.constant 0 : index
    %12 = vector.load %arg5[%c0_9, %c0_10] : memref<1x32xf32, #tpu.memory_space<vmem>>, vector<1x32xf32>
    %13 = vector.broadcast %12 : vector<1x32xf32> to vector<16x32xf32>
    %14 = arith.addf %11, %13 : vector<16x32xf32>
    %c0_11 = arith.constant 0 : index
    %c0_12 = arith.constant 0 : index
    %15 = vector.load %arg6[%c0_11, %c0_12] : memref<1x32xf32, #tpu.memory_space<vmem>>, vector<1x32xf32>
    %c0_13 = arith.constant 0 : index
    %c0_14 = arith.constant 0 : index
    %16 = vector.load %arg7[%c0_13, %c0_14] : memref<1x32xf32, #tpu.memory_space<vmem>>, vector<1x32xf32>
    %17 = arith.addf %14, %1 : vector<16x32xf32>
    %cst_15 = arith.constant dense<0.000000e+00> : vector<16xf32>
    %18 = vector.multi_reduction <add>, %17, %cst_15 [1] : vector<16x32xf32> to vector<16xf32>
    %19 = vector.shape_cast %18 : vector<16xf32> to vector<16x1xf32>
    %cst_16 = arith.constant 3.200000e+01 : f32
    %20 = vector.broadcast %cst_16 : f32 to vector<16x1xf32>
    %21 = arith.divf %19, %20 : vector<16x1xf32>
    %22 = vector.broadcast %21 : vector<16x1xf32> to vector<16x32xf32>
    %23 = arith.subf %17, %22 : vector<16x32xf32>
    %24 = vector.broadcast %21 : vector<16x1xf32> to vector<16x32xf32>
    %25 = arith.subf %17, %24 : vector<16x32xf32>
    %26 = arith.mulf %23, %25 : vector<16x32xf32>
    %cst_17 = arith.constant dense<0.000000e+00> : vector<16xf32>
    %27 = vector.multi_reduction <add>, %26, %cst_17 [1] : vector<16x32xf32> to vector<16xf32>
    %28 = vector.shape_cast %27 : vector<16xf32> to vector<16x1xf32>
    %cst_18 = arith.constant 3.200000e+01 : f32
    %29 = vector.broadcast %cst_18 : f32 to vector<16x1xf32>
    %30 = arith.divf %28, %29 : vector<16x1xf32>
    %31 = vector.broadcast %21 : vector<16x1xf32> to vector<16x32xf32>
    %32 = arith.subf %17, %31 : vector<16x32xf32>
    %cst_19 = arith.constant 9.99999974E-6 : f32
    %33 = vector.broadcast %cst_19 : f32 to vector<16x1xf32>
    %34 = arith.addf %30, %33 : vector<16x1xf32>
    %35 = math.rsqrt %34 : vector<16x1xf32>
    %36 = vector.broadcast %35 : vector<16x1xf32> to vector<16x32xf32>
    %37 = arith.mulf %32, %36 : vector<16x32xf32>
    %38 = vector.broadcast %15 : vector<1x32xf32> to vector<16x32xf32>
    %39 = arith.mulf %37, %38 : vector<16x32xf32>
    %40 = vector.broadcast %16 : vector<1x32xf32> to vector<16x32xf32>
    %41 = arith.addf %39, %40 : vector<16x32xf32>
    %c0_20 = arith.constant 0 : index
    %c0_21 = arith.constant 0 : index
    %42 = vector.load %arg8[%c0_20, %c0_21] : memref<16x32xf32, #tpu.memory_space<vmem>>, vector<16x32xf32>
    tpu.vector_store %arg8[%c0_20, %c0_21], %41 {strides = array<i32>} : memref<16x32xf32, #tpu.memory_space<vmem>>, vector<16x32xf32>,
    return
  }
  func.func @transform_0(%arg0: i32) -> (i32, i32) {
    %c0_i32 = arith.constant 0 : i32
    %c0_i32_0 = arith.constant 0 : i32
    return %arg0, %c0_i32 : i32, i32
  }
  func.func @transform_1(%arg0: i32) -> (i32, i32) {
    %c0_i32 = arith.constant 0 : i32
    %c0_i32_0 = arith.constant 0 : i32
    %c0_i32_1 = arith.constant 0 : i32
    return %c0_i32, %c0_i32_0 : i32, i32
  }
  func.func @transform_2(%arg0: i32) -> (i32, i32) {
    %c0_i32 = arith.constant 0 : i32
    %c0_i32_0 = arith.constant 0 : i32
    %c0_i32_1 = arith.constant 0 : i32
    return %c0_i32, %c0_i32_0 : i32, i32
  }
  func.func @transform_3(%arg0: i32) -> (i32, i32) {
    %c0_i32 = arith.constant 0 : i32
    %c0_i32_0 = arith.constant 0 : i32
    %c0_i32_1 = arith.constant 0 : i32
    return %c0_i32, %c0_i32_0 : i32, i32
  }
  func.func @transform_4(%arg0: i32) -> (i32, i32) {
    %c0_i32 = arith.constant 0 : i32
    %c0_i32_0 = arith.constant 0 : i32
    %c0_i32_1 = arith.constant 0 : i32
    return %c0_i32, %c0_i32_0 : i32, i32
  }
  func.func @transform_5(%arg0: i32) -> (i32, i32) {
    %c0_i32 = arith.constant 0 : i32
    %c0_i32_0 = arith.constant 0 : i32
    %c0_i32_1 = arith.constant 0 : i32
    return %c0_i32, %c0_i32_0 : i32, i32
  }
  func.func @transform_6(%arg0: i32) -> (i32, i32) {
    %c0_i32 = arith.constant 0 : i32
    %c0_i32_0 = arith.constant 0 : i32
    %c0_i32_1 = arith.constant 0 : i32
    return %c0_i32, %c0_i32_0 : i32, i32
  }
  func.func @transform_7(%arg0: i32) -> (i32, i32) {
    %c0_i32 = arith.constant 0 : i32
    %c0_i32_0 = arith.constant 0 : i32
    return %arg0, %c0_i32 : i32, i32
  }
}

module attributes {stable_mosaic.version = 11 : i64} {
  func.func @_attn_pair_kernel(%arg0: i32, %arg1: memref<1x8x32xbf16, #tpu.memory_space<vmem>>, %arg2: memref<1x8x64xbf16, #tpu.memory_space<vmem>>, %arg3: memref<96x32xbf16, #tpu.memory_space<vmem>>, %arg4: memref<1x96xf32, #tpu.memory_space<vmem>>, %arg5: memref<4x32x8xbf16, #tpu.memory_space<vmem>>, %arg6: memref<1x32xf32, #tpu.memory_space<vmem>>, %arg7: memref<1x32xf32, #tpu.memory_space<vmem>>, %arg8: memref<1x32xf32, #tpu.memory_space<vmem>>, %arg9: memref<32x32xbf16, #tpu.memory_space<vmem>>, %arg10: memref<1x32xf32, #tpu.memory_space<vmem>>, %arg11: memref<4x32x8xbf16, #tpu.memory_space<vmem>>, %arg12: memref<1x32xf32, #tpu.memory_space<vmem>>, %arg13: memref<1x32xf32, #tpu.memory_space<vmem>>, %arg14: memref<1x32xf32, #tpu.memory_space<vmem>>, %arg15: memref<1x8x32xbf16, #tpu.memory_space<vmem>>) attributes {dimension_semantics = [#tpu.dimension_semantics<parallel>], iteration_bounds = array<i64: 2>, scalar_prefetch = 0 : i64, scratch_operands = 0 : i64, tpu.core_type = #tpu.core_type<tc>, window_params = [{transform_indices = @transform_0, window_bounds = array<i64: 1, 8, 32>}, {transform_indices = @transform_1, window_bounds = array<i64: 1, 8, 64>}, {pipeline_mode = #tpu.pipeline_mode<synchronous>, transform_indices = @transform_2, window_bounds = array<i64: 96, 32>}, {pipeline_mode = #tpu.pipeline_mode<synchronous>, transform_indices = @transform_3, window_bounds = array<i64: 1, 96>}, {pipeline_mode = #tpu.pipeline_mode<synchronous>, transform_indices = @transform_4, window_bounds = array<i64: 4, 32, 8>}, {pipeline_mode = #tpu.pipeline_mode<synchronous>, transform_indices = @transform_5, window_bounds = array<i64: 1, 32>}, {pipeline_mode = #tpu.pipeline_mode<synchronous>, transform_indices = @transform_6, window_bounds = array<i64: 1, 32>}, {pipeline_mode = #tpu.pipeline_mode<synchronous>, transform_indices = @transform_7, window_bounds = array<i64: 1, 32>}, {pipeline_mode = #tpu.pipeline_mode<synchronous>, transform_indices = @transform_8, window_bounds = array<i64: 32, 32>}, {pipeline_mode = #tpu.pipeline_mode<synchronous>, transform_indices = @transform_9, window_bounds = array<i64: 1, 32>}, {pipeline_mode = #tpu.pipeline_mode<synchronous>, transform_indices = @transform_10, window_bounds = array<i64: 4, 32, 8>}, {pipeline_mode = #tpu.pipeline_mode<synchronous>, transform_indices = @transform_11, window_bounds = array<i64: 1, 32>}, {pipeline_mode = #tpu.pipeline_mode<synchronous>, transform_indices = @transform_12, window_bounds = array<i64: 1, 32>}, {pipeline_mode = #tpu.pipeline_mode<synchronous>, transform_indices = @transform_13, window_bounds = array<i64: 1, 32>}, {transform_indices = @transform_14, window_bounds = array<i64: 1, 8, 32>}]} {
    %c0 = arith.constant 0 : index
    %c0_0 = arith.constant 0 : index
    %c0_1 = arith.constant 0 : index
    %0 = vector.load %arg1[%c0, %c0_0, %c0_1] : memref<1x8x32xbf16, #tpu.memory_space<vmem>>, vector<1x8x32xbf16>
    %1 = vector.shape_cast %0 : vector<1x8x32xbf16> to vector<8x32xbf16>
    %2 = arith.extf %1 : vector<8x32xbf16> to vector<8x32xf32>
    %c0_2 = arith.constant 0 : index
    %c0_3 = arith.constant 0 : index
    %3 = vector.load %arg3[%c0_2, %c0_3] : memref<96x32xbf16, #tpu.memory_space<vmem>>, vector<96x32xbf16>
    %cst = arith.constant dense<0.000000e+00> : vector<8x96xf32>
    %4 = tpu.matmul %1, %3, %cst {dimension_numbers = #tpu.dot_dimension_numbers<[1], [1], [0], [0], [0, 0, 1, 0], [], []>} : vector<8x32xbf16>, vector<96x32xbf16>, vector<8x96xf32> -> vector<8x96xf32>
    %c0_4 = arith.constant 0 : index
    %c0_5 = arith.constant 0 : index
    %5 = vector.load %arg4[%c0_4, %c0_5] : memref<1x96xf32, #tpu.memory_space<vmem>>, vector<1x96xf32>
    %6 = vector.broadcast %5 : vector<1x96xf32> to vector<8x96xf32>
    %7 = arith.addf %4, %6 : vector<8x96xf32>
    %8 = vector.extract_strided_slice %7 {offsets = [0, 0], sizes = [8, 32], strides = [1, 1]} : vector<8x96xf32> to vector<8x32xf32>
    %cst_6 = arith.constant 0.353553385 : f32
    %9 = vector.broadcast %cst_6 : f32 to vector<8x32xf32>
    %10 = arith.mulf %8, %9 : vector<8x32xf32>
    %11 = vector.extract_strided_slice %7 {offsets = [0, 32], sizes = [8, 32], strides = [1, 1]} : vector<8x96xf32> to vector<8x32xf32>
    %12 = vector.extract_strided_slice %7 {offsets = [0, 64], sizes = [8, 32], strides = [1, 1]} : vector<8x96xf32> to vector<8x32xf32>
    %cst_7 = arith.constant 0.000000e+00 : f32
    %13 = vector.broadcast %cst_7 : f32 to vector<8x32xf32>
    %14 = vector.extract_strided_slice %10 {offsets = [0, 0], sizes = [8, 8], strides = [1, 1]} : vector<8x32xf32> to vector<8x8xf32>
    %15 = arith.truncf %14 : vector<8x8xf32> to vector<8x8xbf16>
    %16 = vector.extract_strided_slice %11 {offsets = [0, 0], sizes = [8, 8], strides = [1, 1]} : vector<8x32xf32> to vector<8x8xf32>
    %17 = arith.truncf %16 : vector<8x8xf32> to vector<8x8xbf16>
    %18 = vector.extract_strided_slice %12 {offsets = [0, 0], sizes = [8, 8], strides = [1, 1]} : vector<8x32xf32> to vector<8x8xf32>
    %19 = arith.truncf %18 : vector<8x8xf32> to vector<8x8xbf16>
    %cst_8 = arith.constant dense<0.000000e+00> : vector<8x8xf32>
    %20 = tpu.matmul %15, %17, %cst_8 {dimension_numbers = #tpu.dot_dimension_numbers<[1], [1], [0], [0], [0, 0, 1, 0], [], []>} : vector<8x8xbf16>, vector<8x8xbf16>, vector<8x8xf32> -> vector<8x8xf32>
    %cst_9 = arith.constant dense<0xFF800000> : vector<8xf32>
    %21 = vector.multi_reduction <maximumf>, %20, %cst_9 [1] : vector<8x8xf32> to vector<8xf32>
    %22 = vector.shape_cast %21 : vector<8xf32> to vector<8x1xf32>
    %23 = vector.broadcast %22 : vector<8x1xf32> to vector<8x8xf32>
    %24 = arith.subf %20, %23 : vector<8x8xf32>
    %25 = math.exp %24 : vector<8x8xf32>
    %cst_10 = arith.constant dense<0.000000e+00> : vector<8xf32>
    %26 = vector.multi_reduction <add>, %25, %cst_10 [1] : vector<8x8xf32> to vector<8xf32>
    %27 = vector.shape_cast %26 : vector<8xf32> to vector<8x1xf32>
    %28 = tpu.reciprocal %27 {approx = true} : vector<8x1xf32> -> vector<8x1xf32>
    %29 = vector.broadcast %28 : vector<8x1xf32> to vector<8x8xf32>
    %30 = arith.mulf %25, %29 : vector<8x8xf32>
    %31 = arith.truncf %30 : vector<8x8xf32> to vector<8x8xbf16>
    %cst_11 = arith.constant dense<0.000000e+00> : vector<8x8xf32>
    %32 = tpu.matmul %31, %19, %cst_11 {dimension_numbers = #tpu.dot_dimension_numbers<[1], [0], [0], [1], [0, 0, 1, 1], [], []>} : vector<8x8xbf16>, vector<8x8xbf16>, vector<8x8xf32> -> vector<8x8xf32>
    %33 = arith.truncf %32 : vector<8x8xf32> to vector<8x8xbf16>
    %c0_12 = arith.constant 0 : index
    %c0_13 = arith.constant 0 : index
    %c0_14 = arith.constant 0 : index
    %34 = vector.load %arg5[%c0_12, %c0_13, %c0_14] : memref<4x32x8xbf16, #tpu.memory_space<vmem>>, vector<1x32x8xbf16>
    %35 = vector.shape_cast %34 : vector<1x32x8xbf16> to vector<32x8xbf16>
    %cst_15 = arith.constant dense<0.000000e+00> : vector<8x32xf32>
    %36 = tpu.matmul %33, %35, %cst_15 {dimension_numbers = #tpu.dot_dimension_numbers<[1], [1], [0], [0], [0, 0, 1, 0], [], []>} : vector<8x8xbf16>, vector<32x8xbf16>, vector<8x32xf32> -> vector<8x32xf32>
    %37 = arith.addf %13, %36 : vector<8x32xf32>
    %38 = vector.extract_strided_slice %10 {offsets = [0, 8], sizes = [8, 8], strides = [1, 1]} : vector<8x32xf32> to vector<8x8xf32>
    %39 = arith.truncf %38 : vector<8x8xf32> to vector<8x8xbf16>
    %40 = vector.extract_strided_slice %11 {offsets = [0, 8], sizes = [8, 8], strides = [1, 1]} : vector<8x32xf32> to vector<8x8xf32>
    %41 = arith.truncf %40 : vector<8x8xf32> to vector<8x8xbf16>
    %42 = vector.extract_strided_slice %12 {offsets = [0, 8], sizes = [8, 8], strides = [1, 1]} : vector<8x32xf32> to vector<8x8xf32>
    %43 = arith.truncf %42 : vector<8x8xf32> to vector<8x8xbf16>
    %cst_16 = arith.constant dense<0.000000e+00> : vector<8x8xf32>
    %44 = tpu.matmul %39, %41, %cst_16 {dimension_numbers = #tpu.dot_dimension_numbers<[1], [1], [0], [0], [0, 0, 1, 0], [], []>} : vector<8x8xbf16>, vector<8x8xbf16>, vector<8x8xf32> -> vector<8x8xf32>
    %cst_17 = arith.constant dense<0xFF800000> : vector<8xf32>
    %45 = vector.multi_reduction <maximumf>, %44, %cst_17 [1] : vector<8x8xf32> to vector<8xf32>
    %46 = vector.shape_cast %45 : vector<8xf32> to vector<8x1xf32>
    %47 = vector.broadcast %46 : vector<8x1xf32> to vector<8x8xf32>
    %48 = arith.subf %44, %47 : vector<8x8xf32>
    %49 = math.exp %48 : vector<8x8xf32>
    %cst_18 = arith.constant dense<0.000000e+00> : vector<8xf32>
    %50 = vector.multi_reduction <add>, %49, %cst_18 [1] : vector<8x8xf32> to vector<8xf32>
    %51 = vector.shape_cast %50 : vector<8xf32> to vector<8x1xf32>
    %52 = tpu.reciprocal %51 {approx = true} : vector<8x1xf32> -> vector<8x1xf32>
    %53 = vector.broadcast %52 : vector<8x1xf32> to vector<8x8xf32>
    %54 = arith.mulf %49, %53 : vector<8x8xf32>
    %55 = arith.truncf %54 : vector<8x8xf32> to vector<8x8xbf16>
    %cst_19 = arith.constant dense<0.000000e+00> : vector<8x8xf32>
    %56 = tpu.matmul %55, %43, %cst_19 {dimension_numbers = #tpu.dot_dimension_numbers<[1], [0], [0], [1], [0, 0, 1, 1], [], []>} : vector<8x8xbf16>, vector<8x8xbf16>, vector<8x8xf32> -> vector<8x8xf32>
    %57 = arith.truncf %56 : vector<8x8xf32> to vector<8x8xbf16>
    %c1 = arith.constant 1 : index
    %c0_20 = arith.constant 0 : index
    %c0_21 = arith.constant 0 : index
    %58 = vector.load %arg5[%c1, %c0_20, %c0_21] : memref<4x32x8xbf16, #tpu.memory_space<vmem>>, vector<1x32x8xbf16>
    %59 = vector.shape_cast %58 : vector<1x32x8xbf16> to vector<32x8xbf16>
    %cst_22 = arith.constant dense<0.000000e+00> : vector<8x32xf32>
    %60 = tpu.matmul %57, %59, %cst_22 {dimension_numbers = #tpu.dot_dimension_numbers<[1], [1], [0], [0], [0, 0, 1, 0], [], []>} : vector<8x8xbf16>, vector<32x8xbf16>, vector<8x32xf32> -> vector<8x32xf32>
    %61 = arith.addf %37, %60 : vector<8x32xf32>
    %62 = vector.extract_strided_slice %10 {offsets = [0, 16], sizes = [8, 8], strides = [1, 1]} : vector<8x32xf32> to vector<8x8xf32>
    %63 = arith.truncf %62 : vector<8x8xf32> to vector<8x8xbf16>
    %64 = vector.extract_strided_slice %11 {offsets = [0, 16], sizes = [8, 8], strides = [1, 1]} : vector<8x32xf32> to vector<8x8xf32>
    %65 = arith.truncf %64 : vector<8x8xf32> to vector<8x8xbf16>
    %66 = vector.extract_strided_slice %12 {offsets = [0, 16], sizes = [8, 8], strides = [1, 1]} : vector<8x32xf32> to vector<8x8xf32>
    %67 = arith.truncf %66 : vector<8x8xf32> to vector<8x8xbf16>
    %cst_23 = arith.constant dense<0.000000e+00> : vector<8x8xf32>
    %68 = tpu.matmul %63, %65, %cst_23 {dimension_numbers = #tpu.dot_dimension_numbers<[1], [1], [0], [0], [0, 0, 1, 0], [], []>} : vector<8x8xbf16>, vector<8x8xbf16>, vector<8x8xf32> -> vector<8x8xf32>
    %cst_24 = arith.constant dense<0xFF800000> : vector<8xf32>
    %69 = vector.multi_reduction <maximumf>, %68, %cst_24 [1] : vector<8x8xf32> to vector<8xf32>
    %70 = vector.shape_cast %69 : vector<8xf32> to vector<8x1xf32>
    %71 = vector.broadcast %70 : vector<8x1xf32> to vector<8x8xf32>
    %72 = arith.subf %68, %71 : vector<8x8xf32>
    %73 = math.exp %72 : vector<8x8xf32>
    %cst_25 = arith.constant dense<0.000000e+00> : vector<8xf32>
    %74 = vector.multi_reduction <add>, %73, %cst_25 [1] : vector<8x8xf32> to vector<8xf32>
    %75 = vector.shape_cast %74 : vector<8xf32> to vector<8x1xf32>
    %76 = tpu.reciprocal %75 {approx = true} : vector<8x1xf32> -> vector<8x1xf32>
    %77 = vector.broadcast %76 : vector<8x1xf32> to vector<8x8xf32>
    %78 = arith.mulf %73, %77 : vector<8x8xf32>
    %79 = arith.truncf %78 : vector<8x8xf32> to vector<8x8xbf16>
    %cst_26 = arith.constant dense<0.000000e+00> : vector<8x8xf32>
    %80 = tpu.matmul %79, %67, %cst_26 {dimension_numbers = #tpu.dot_dimension_numbers<[1], [0], [0], [1], [0, 0, 1, 1], [], []>} : vector<8x8xbf16>, vector<8x8xbf16>, vector<8x8xf32> -> vector<8x8xf32>
    %81 = arith.truncf %80 : vector<8x8xf32> to vector<8x8xbf16>
    %c2 = arith.constant 2 : index
    %c0_27 = arith.constant 0 : index
    %c0_28 = arith.constant 0 : index
    %82 = vector.load %arg5[%c2, %c0_27, %c0_28] : memref<4x32x8xbf16, #tpu.memory_space<vmem>>, vector<1x32x8xbf16>
    %83 = vector.shape_cast %82 : vector<1x32x8xbf16> to vector<32x8xbf16>
    %cst_29 = arith.constant dense<0.000000e+00> : vector<8x32xf32>
    %84 = tpu.matmul %81, %83, %cst_29 {dimension_numbers = #tpu.dot_dimension_numbers<[1], [1], [0], [0], [0, 0, 1, 0], [], []>} : vector<8x8xbf16>, vector<32x8xbf16>, vector<8x32xf32> -> vector<8x32xf32>
    %85 = arith.addf %61, %84 : vector<8x32xf32>
    %86 = vector.extract_strided_slice %10 {offsets = [0, 24], sizes = [8, 8], strides = [1, 1]} : vector<8x32xf32> to vector<8x8xf32>
    %87 = arith.truncf %86 : vector<8x8xf32> to vector<8x8xbf16>
    %88 = vector.extract_strided_slice %11 {offsets = [0, 24], sizes = [8, 8], strides = [1, 1]} : vector<8x32xf32> to vector<8x8xf32>
    %89 = arith.truncf %88 : vector<8x8xf32> to vector<8x8xbf16>
    %90 = vector.extract_strided_slice %12 {offsets = [0, 24], sizes = [8, 8], strides = [1, 1]} : vector<8x32xf32> to vector<8x8xf32>
    %91 = arith.truncf %90 : vector<8x8xf32> to vector<8x8xbf16>
    %cst_30 = arith.constant dense<0.000000e+00> : vector<8x8xf32>
    %92 = tpu.matmul %87, %89, %cst_30 {dimension_numbers = #tpu.dot_dimension_numbers<[1], [1], [0], [0], [0, 0, 1, 0], [], []>} : vector<8x8xbf16>, vector<8x8xbf16>, vector<8x8xf32> -> vector<8x8xf32>
    %cst_31 = arith.constant dense<0xFF800000> : vector<8xf32>
    %93 = vector.multi_reduction <maximumf>, %92, %cst_31 [1] : vector<8x8xf32> to vector<8xf32>
    %94 = vector.shape_cast %93 : vector<8xf32> to vector<8x1xf32>
    %95 = vector.broadcast %94 : vector<8x1xf32> to vector<8x8xf32>
    %96 = arith.subf %92, %95 : vector<8x8xf32>
    %97 = math.exp %96 : vector<8x8xf32>
    %cst_32 = arith.constant dense<0.000000e+00> : vector<8xf32>
    %98 = vector.multi_reduction <add>, %97, %cst_32 [1] : vector<8x8xf32> to vector<8xf32>
    %99 = vector.shape_cast %98 : vector<8xf32> to vector<8x1xf32>
    %100 = tpu.reciprocal %99 {approx = true} : vector<8x1xf32> -> vector<8x1xf32>
    %101 = vector.broadcast %100 : vector<8x1xf32> to vector<8x8xf32>
    %102 = arith.mulf %97, %101 : vector<8x8xf32>
    %103 = arith.truncf %102 : vector<8x8xf32> to vector<8x8xbf16>
    %cst_33 = arith.constant dense<0.000000e+00> : vector<8x8xf32>
    %104 = tpu.matmul %103, %91, %cst_33 {dimension_numbers = #tpu.dot_dimension_numbers<[1], [0], [0], [1], [0, 0, 1, 1], [], []>} : vector<8x8xbf16>, vector<8x8xbf16>, vector<8x8xf32> -> vector<8x8xf32>
    %105 = arith.truncf %104 : vector<8x8xf32> to vector<8x8xbf16>
    %c3 = arith.constant 3 : index
    %c0_34 = arith.constant 0 : index
    %c0_35 = arith.constant 0 : index
    %106 = vector.load %arg5[%c3, %c0_34, %c0_35] : memref<4x32x8xbf16, #tpu.memory_space<vmem>>, vector<1x32x8xbf16>
    %107 = vector.shape_cast %106 : vector<1x32x8xbf16> to vector<32x8xbf16>
    %cst_36 = arith.constant dense<0.000000e+00> : vector<8x32xf32>
    %108 = tpu.matmul %105, %107, %cst_36 {dimension_numbers = #tpu.dot_dimension_numbers<[1], [1], [0], [0], [0, 0, 1, 0], [], []>} : vector<8x8xbf16>, vector<32x8xbf16>, vector<8x32xf32> -> vector<8x32xf32>
    %109 = arith.addf %85, %108 : vector<8x32xf32>
    %c0_37 = arith.constant 0 : index
    %c0_38 = arith.constant 0 : index
    %110 = vector.load %arg6[%c0_37, %c0_38] : memref<1x32xf32, #tpu.memory_space<vmem>>, vector<1x32xf32>
    %111 = vector.broadcast %110 : vector<1x32xf32> to vector<8x32xf32>
    %112 = arith.addf %109, %111 : vector<8x32xf32>
    %c0_39 = arith.constant 0 : index
    %c0_40 = arith.constant 0 : index
    %113 = vector.load %arg7[%c0_39, %c0_40] : memref<1x32xf32, #tpu.memory_space<vmem>>, vector<1x32xf32>
    %c0_41 = arith.constant 0 : index
    %c0_42 = arith.constant 0 : index
    %114 = vector.load %arg8[%c0_41, %c0_42] : memref<1x32xf32, #tpu.memory_space<vmem>>, vector<1x32xf32>
    %115 = arith.addf %112, %2 : vector<8x32xf32>
    %cst_43 = arith.constant dense<0.000000e+00> : vector<8xf32>
    %116 = vector.multi_reduction <add>, %115, %cst_43 [1] : vector<8x32xf32> to vector<8xf32>
    %117 = vector.shape_cast %116 : vector<8xf32> to vector<8x1xf32>
    %cst_44 = arith.constant 3.200000e+01 : f32
    %118 = vector.broadcast %cst_44 : f32 to vector<8x1xf32>
    %119 = arith.divf %117, %118 : vector<8x1xf32>
    %120 = vector.broadcast %119 : vector<8x1xf32> to vector<8x32xf32>
    %121 = arith.subf %115, %120 : vector<8x32xf32>
    %122 = vector.broadcast %119 : vector<8x1xf32> to vector<8x32xf32>
    %123 = arith.subf %115, %122 : vector<8x32xf32>
    %124 = arith.mulf %121, %123 : vector<8x32xf32>
    %cst_45 = arith.constant dense<0.000000e+00> : vector<8xf32>
    %125 = vector.multi_reduction <add>, %124, %cst_45 [1] : vector<8x32xf32> to vector<8xf32>
    %126 = vector.shape_cast %125 : vector<8xf32> to vector<8x1xf32>
    %cst_46 = arith.constant 3.200000e+01 : f32
    %127 = vector.broadcast %cst_46 : f32 to vector<8x1xf32>
    %128 = arith.divf %126, %127 : vector<8x1xf32>
    %129 = vector.broadcast %119 : vector<8x1xf32> to vector<8x32xf32>
    %130 = arith.subf %115, %129 : vector<8x32xf32>
    %cst_47 = arith.constant 9.99999974E-6 : f32
    %131 = vector.broadcast %cst_47 : f32 to vector<8x1xf32>
    %132 = arith.addf %128, %131 : vector<8x1xf32>
    %133 = math.rsqrt %132 : vector<8x1xf32>
    %134 = vector.broadcast %133 : vector<8x1xf32> to vector<8x32xf32>
    %135 = arith.mulf %130, %134 : vector<8x32xf32>
    %136 = vector.broadcast %113 : vector<1x32xf32> to vector<8x32xf32>
    %137 = arith.mulf %135, %136 : vector<8x32xf32>
    %138 = vector.broadcast %114 : vector<1x32xf32> to vector<8x32xf32>
    %139 = arith.addf %137, %138 : vector<8x32xf32>
    %c0_48 = arith.constant 0 : index
    %c0_49 = arith.constant 0 : index
    %c0_50 = arith.constant 0 : index
    %140 = vector.load %arg2[%c0_48, %c0_49, %c0_50] : memref<1x8x64xbf16, #tpu.memory_space<vmem>>, vector<1x8x64xbf16>
    %141 = vector.shape_cast %140 : vector<1x8x64xbf16> to vector<8x64xbf16>
    %c0_51 = arith.constant 0 : index
    %c0_52 = arith.constant 0 : index
    %142 = vector.load %arg9[%c0_51, %c0_52] : memref<32x32xbf16, #tpu.memory_space<vmem>>, vector<32x32xbf16>
    %143 = arith.truncf %139 : vector<8x32xf32> to vector<8x32xbf16>
    %cst_53 = arith.constant dense<0.000000e+00> : vector<8x32xf32>
    %144 = tpu.matmul %143, %142, %cst_53 {dimension_numbers = #tpu.dot_dimension_numbers<[1], [1], [0], [0], [0, 0, 1, 0], [], []>} : vector<8x32xbf16>, vector<32x32xbf16>, vector<8x32xf32> -> vector<8x32xf32>
    %c0_54 = arith.constant 0 : index
    %c0_55 = arith.constant 0 : index
    %145 = vector.load %arg10[%c0_54, %c0_55] : memref<1x32xf32, #tpu.memory_space<vmem>>, vector<1x32xf32>
    %146 = vector.broadcast %145 : vector<1x32xf32> to vector<8x32xf32>
    %147 = arith.addf %144, %146 : vector<8x32xf32>
    %cst_56 = arith.constant 0.353553385 : f32
    %148 = vector.broadcast %cst_56 : f32 to vector<8x32xf32>
    %149 = arith.mulf %147, %148 : vector<8x32xf32>
    %150 = vector.extract_strided_slice %141 {offsets = [0, 0], sizes = [8, 32], strides = [1, 1]} : vector<8x64xbf16> to vector<8x32xbf16>
    %151 = vector.extract_strided_slice %141 {offsets = [0, 32], sizes = [8, 32], strides = [1, 1]} : vector<8x64xbf16> to vector<8x32xbf16>
    %cst_57 = arith.constant 0.000000e+00 : f32
    %152 = vector.broadcast %cst_57 : f32 to vector<8x32xf32>
    %153 = vector.extract_strided_slice %149 {offsets = [0, 0], sizes = [8, 8], strides = [1, 1]} : vector<8x32xf32> to vector<8x8xf32>
    %154 = arith.truncf %153 : vector<8x8xf32> to vector<8x8xbf16>
    %155 = vector.extract_strided_slice %150 {offsets = [0, 0], sizes = [8, 8], strides = [1, 1]} : vector<8x32xbf16> to vector<8x8xbf16>
    %156 = vector.extract_strided_slice %151 {offsets = [0, 0], sizes = [8, 8], strides = [1, 1]} : vector<8x32xbf16> to vector<8x8xbf16>
    %cst_58 = arith.constant dense<0.000000e+00> : vector<8x8xf32>
    %157 = tpu.matmul %154, %155, %cst_58 {dimension_numbers = #tpu.dot_dimension_numbers<[1], [1], [0], [0], [0, 0, 1, 0], [], []>} : vector<8x8xbf16>, vector<8x8xbf16>, vector<8x8xf32> -> vector<8x8xf32>
    %cst_59 = arith.constant dense<0xFF800000> : vector<8xf32>
    %158 = vector.multi_reduction <maximumf>, %157, %cst_59 [1] : vector<8x8xf32> to vector<8xf32>
    %159 = vector.shape_cast %158 : vector<8xf32> to vector<8x1xf32>
    %160 = vector.broadcast %159 : vector<8x1xf32> to vector<8x8xf32>
    %161 = arith.subf %157, %160 : vector<8x8xf32>
    %162 = math.exp %161 : vector<8x8xf32>
    %cst_60 = arith.constant dense<0.000000e+00> : vector<8xf32>
    %163 = vector.multi_reduction <add>, %162, %cst_60 [1] : vector<8x8xf32> to vector<8xf32>
    %164 = vector.shape_cast %163 : vector<8xf32> to vector<8x1xf32>
    %165 = tpu.reciprocal %164 {approx = true} : vector<8x1xf32> -> vector<8x1xf32>
    %166 = vector.broadcast %165 : vector<8x1xf32> to vector<8x8xf32>
    %167 = arith.mulf %162, %166 : vector<8x8xf32>
    %168 = arith.truncf %167 : vector<8x8xf32> to vector<8x8xbf16>
    %cst_61 = arith.constant dense<0.000000e+00> : vector<8x8xf32>
    %169 = tpu.matmul %168, %156, %cst_61 {dimension_numbers = #tpu.dot_dimension_numbers<[1], [0], [0], [1], [0, 0, 1, 1], [], []>} : vector<8x8xbf16>, vector<8x8xbf16>, vector<8x8xf32> -> vector<8x8xf32>
    %170 = arith.truncf %169 : vector<8x8xf32> to vector<8x8xbf16>
    %c0_62 = arith.constant 0 : index
    %c0_63 = arith.constant 0 : index
    %c0_64 = arith.constant 0 : index
    %171 = vector.load %arg11[%c0_62, %c0_63, %c0_64] : memref<4x32x8xbf16, #tpu.memory_space<vmem>>, vector<1x32x8xbf16>
    %172 = vector.shape_cast %171 : vector<1x32x8xbf16> to vector<32x8xbf16>
    %cst_65 = arith.constant dense<0.000000e+00> : vector<8x32xf32>
    %173 = tpu.matmul %170, %172, %cst_65 {dimension_numbers = #tpu.dot_dimension_numbers<[1], [1], [0], [0], [0, 0, 1, 0], [], []>} : vector<8x8xbf16>, vector<32x8xbf16>, vector<8x32xf32> -> vector<8x32xf32>
    %174 = arith.addf %152, %173 : vector<8x32xf32>
    %175 = vector.extract_strided_slice %149 {offsets = [0, 8], sizes = [8, 8], strides = [1, 1]} : vector<8x32xf32> to vector<8x8xf32>
    %176 = arith.truncf %175 : vector<8x8xf32> to vector<8x8xbf16>
    %177 = vector.extract_strided_slice %150 {offsets = [0, 8], sizes = [8, 8], strides = [1, 1]} : vector<8x32xbf16> to vector<8x8xbf16>
    %178 = vector.extract_strided_slice %151 {offsets = [0, 8], sizes = [8, 8], strides = [1, 1]} : vector<8x32xbf16> to vector<8x8xbf16>
    %cst_66 = arith.constant dense<0.000000e+00> : vector<8x8xf32>
    %179 = tpu.matmul %176, %177, %cst_66 {dimension_numbers = #tpu.dot_dimension_numbers<[1], [1], [0], [0], [0, 0, 1, 0], [], []>} : vector<8x8xbf16>, vector<8x8xbf16>, vector<8x8xf32> -> vector<8x8xf32>
    %cst_67 = arith.constant dense<0xFF800000> : vector<8xf32>
    %180 = vector.multi_reduction <maximumf>, %179, %cst_67 [1] : vector<8x8xf32> to vector<8xf32>
    %181 = vector.shape_cast %180 : vector<8xf32> to vector<8x1xf32>
    %182 = vector.broadcast %181 : vector<8x1xf32> to vector<8x8xf32>
    %183 = arith.subf %179, %182 : vector<8x8xf32>
    %184 = math.exp %183 : vector<8x8xf32>
    %cst_68 = arith.constant dense<0.000000e+00> : vector<8xf32>
    %185 = vector.multi_reduction <add>, %184, %cst_68 [1] : vector<8x8xf32> to vector<8xf32>
    %186 = vector.shape_cast %185 : vector<8xf32> to vector<8x1xf32>
    %187 = tpu.reciprocal %186 {approx = true} : vector<8x1xf32> -> vector<8x1xf32>
    %188 = vector.broadcast %187 : vector<8x1xf32> to vector<8x8xf32>
    %189 = arith.mulf %184, %188 : vector<8x8xf32>
    %190 = arith.truncf %189 : vector<8x8xf32> to vector<8x8xbf16>
    %cst_69 = arith.constant dense<0.000000e+00> : vector<8x8xf32>
    %191 = tpu.matmul %190, %178, %cst_69 {dimension_numbers = #tpu.dot_dimension_numbers<[1], [0], [0], [1], [0, 0, 1, 1], [], []>} : vector<8x8xbf16>, vector<8x8xbf16>, vector<8x8xf32> -> vector<8x8xf32>
    %192 = arith.truncf %191 : vector<8x8xf32> to vector<8x8xbf16>
    %c1_70 = arith.constant 1 : index
    %c0_71 = arith.constant 0 : index
    %c0_72 = arith.constant 0 : index
    %193 = vector.load %arg11[%c1_70, %c0_71, %c0_72] : memref<4x32x8xbf16, #tpu.memory_space<vmem>>, vector<1x32x8xbf16>
    %194 = vector.shape_cast %193 : vector<1x32x8xbf16> to vector<32x8xbf16>
    %cst_73 = arith.constant dense<0.000000e+00> : vector<8x32xf32>
    %195 = tpu.matmul %192, %194, %cst_73 {dimension_numbers = #tpu.dot_dimension_numbers<[1], [1], [0], [0], [0, 0, 1, 0], [], []>} : vector<8x8xbf16>, vector<32x8xbf16>, vector<8x32xf32> -> vector<8x32xf32>
    %196 = arith.addf %174, %195 : vector<8x32xf32>
    %197 = vector.extract_strided_slice %149 {offsets = [0, 16], sizes = [8, 8], strides = [1, 1]} : vector<8x32xf32> to vector<8x8xf32>
    %198 = arith.truncf %197 : vector<8x8xf32> to vector<8x8xbf16>
    %199 = vector.extract_strided_slice %150 {offsets = [0, 16], sizes = [8, 8], strides = [1, 1]} : vector<8x32xbf16> to vector<8x8xbf16>
    %200 = vector.extract_strided_slice %151 {offsets = [0, 16], sizes = [8, 8], strides = [1, 1]} : vector<8x32xbf16> to vector<8x8xbf16>
    %cst_74 = arith.constant dense<0.000000e+00> : vector<8x8xf32>
    %201 = tpu.matmul %198, %199, %cst_74 {dimension_numbers = #tpu.dot_dimension_numbers<[1], [1], [0], [0], [0, 0, 1, 0], [], []>} : vector<8x8xbf16>, vector<8x8xbf16>, vector<8x8xf32> -> vector<8x8xf32>
    %cst_75 = arith.constant dense<0xFF800000> : vector<8xf32>
    %202 = vector.multi_reduction <maximumf>, %201, %cst_75 [1] : vector<8x8xf32> to vector<8xf32>
    %203 = vector.shape_cast %202 : vector<8xf32> to vector<8x1xf32>
    %204 = vector.broadcast %203 : vector<8x1xf32> to vector<8x8xf32>
    %205 = arith.subf %201, %204 : vector<8x8xf32>
    %206 = math.exp %205 : vector<8x8xf32>
    %cst_76 = arith.constant dense<0.000000e+00> : vector<8xf32>
    %207 = vector.multi_reduction <add>, %206, %cst_76 [1] : vector<8x8xf32> to vector<8xf32>
    %208 = vector.shape_cast %207 : vector<8xf32> to vector<8x1xf32>
    %209 = tpu.reciprocal %208 {approx = true} : vector<8x1xf32> -> vector<8x1xf32>
    %210 = vector.broadcast %209 : vector<8x1xf32> to vector<8x8xf32>
    %211 = arith.mulf %206, %210 : vector<8x8xf32>
    %212 = arith.truncf %211 : vector<8x8xf32> to vector<8x8xbf16>
    %cst_77 = arith.constant dense<0.000000e+00> : vector<8x8xf32>
    %213 = tpu.matmul %212, %200, %cst_77 {dimension_numbers = #tpu.dot_dimension_numbers<[1], [0], [0], [1], [0, 0, 1, 1], [], []>} : vector<8x8xbf16>, vector<8x8xbf16>, vector<8x8xf32> -> vector<8x8xf32>
    %214 = arith.truncf %213 : vector<8x8xf32> to vector<8x8xbf16>
    %c2_78 = arith.constant 2 : index
    %c0_79 = arith.constant 0 : index
    %c0_80 = arith.constant 0 : index
    %215 = vector.load %arg11[%c2_78, %c0_79, %c0_80] : memref<4x32x8xbf16, #tpu.memory_space<vmem>>, vector<1x32x8xbf16>
    %216 = vector.shape_cast %215 : vector<1x32x8xbf16> to vector<32x8xbf16>
    %cst_81 = arith.constant dense<0.000000e+00> : vector<8x32xf32>
    %217 = tpu.matmul %214, %216, %cst_81 {dimension_numbers = #tpu.dot_dimension_numbers<[1], [1], [0], [0], [0, 0, 1, 0], [], []>} : vector<8x8xbf16>, vector<32x8xbf16>, vector<8x32xf32> -> vector<8x32xf32>
    %218 = arith.addf %196, %217 : vector<8x32xf32>
    %219 = vector.extract_strided_slice %149 {offsets = [0, 24], sizes = [8, 8], strides = [1, 1]} : vector<8x32xf32> to vector<8x8xf32>
    %220 = arith.truncf %219 : vector<8x8xf32> to vector<8x8xbf16>
    %221 = vector.extract_strided_slice %150 {offsets = [0, 24], sizes = [8, 8], strides = [1, 1]} : vector<8x32xbf16> to vector<8x8xbf16>
    %222 = vector.extract_strided_slice %151 {offsets = [0, 24], sizes = [8, 8], strides = [1, 1]} : vector<8x32xbf16> to vector<8x8xbf16>
    %cst_82 = arith.constant dense<0.000000e+00> : vector<8x8xf32>
    %223 = tpu.matmul %220, %221, %cst_82 {dimension_numbers = #tpu.dot_dimension_numbers<[1], [1], [0], [0], [0, 0, 1, 0], [], []>} : vector<8x8xbf16>, vector<8x8xbf16>, vector<8x8xf32> -> vector<8x8xf32>
    %cst_83 = arith.constant dense<0xFF800000> : vector<8xf32>
    %224 = vector.multi_reduction <maximumf>, %223, %cst_83 [1] : vector<8x8xf32> to vector<8xf32>
    %225 = vector.shape_cast %224 : vector<8xf32> to vector<8x1xf32>
    %226 = vector.broadcast %225 : vector<8x1xf32> to vector<8x8xf32>
    %227 = arith.subf %223, %226 : vector<8x8xf32>
    %228 = math.exp %227 : vector<8x8xf32>
    %cst_84 = arith.constant dense<0.000000e+00> : vector<8xf32>
    %229 = vector.multi_reduction <add>, %228, %cst_84 [1] : vector<8x8xf32> to vector<8xf32>
    %230 = vector.shape_cast %229 : vector<8xf32> to vector<8x1xf32>
    %231 = tpu.reciprocal %230 {approx = true} : vector<8x1xf32> -> vector<8x1xf32>
    %232 = vector.broadcast %231 : vector<8x1xf32> to vector<8x8xf32>
    %233 = arith.mulf %228, %232 : vector<8x8xf32>
    %234 = arith.truncf %233 : vector<8x8xf32> to vector<8x8xbf16>
    %cst_85 = arith.constant dense<0.000000e+00> : vector<8x8xf32>
    %235 = tpu.matmul %234, %222, %cst_85 {dimension_numbers = #tpu.dot_dimension_numbers<[1], [0], [0], [1], [0, 0, 1, 1], [], []>} : vector<8x8xbf16>, vector<8x8xbf16>, vector<8x8xf32> -> vector<8x8xf32>
    %236 = arith.truncf %235 : vector<8x8xf32> to vector<8x8xbf16>
    %c3_86 = arith.constant 3 : index
    %c0_87 = arith.constant 0 : index
    %c0_88 = arith.constant 0 : index
    %237 = vector.load %arg11[%c3_86, %c0_87, %c0_88] : memref<4x32x8xbf16, #tpu.memory_space<vmem>>, vector<1x32x8xbf16>
    %238 = vector.shape_cast %237 : vector<1x32x8xbf16> to vector<32x8xbf16>
    %cst_89 = arith.constant dense<0.000000e+00> : vector<8x32xf32>
    %239 = tpu.matmul %236, %238, %cst_89 {dimension_numbers = #tpu.dot_dimension_numbers<[1], [1], [0], [0], [0, 0, 1, 0], [], []>} : vector<8x8xbf16>, vector<32x8xbf16>, vector<8x32xf32> -> vector<8x32xf32>
    %240 = arith.addf %218, %239 : vector<8x32xf32>
    %c0_90 = arith.constant 0 : index
    %c0_91 = arith.constant 0 : index
    %241 = vector.load %arg12[%c0_90, %c0_91] : memref<1x32xf32, #tpu.memory_space<vmem>>, vector<1x32xf32>
    %242 = vector.broadcast %241 : vector<1x32xf32> to vector<8x32xf32>
    %243 = arith.addf %240, %242 : vector<8x32xf32>
    %c0_92 = arith.constant 0 : index
    %c0_93 = arith.constant 0 : index
    %244 = vector.load %arg13[%c0_92, %c0_93] : memref<1x32xf32, #tpu.memory_space<vmem>>, vector<1x32xf32>
    %c0_94 = arith.constant 0 : index
    %c0_95 = arith.constant 0 : index
    %245 = vector.load %arg14[%c0_94, %c0_95] : memref<1x32xf32, #tpu.memory_space<vmem>>, vector<1x32xf32>
    %246 = arith.addf %243, %139 : vector<8x32xf32>
    %cst_96 = arith.constant dense<0.000000e+00> : vector<8xf32>
    %247 = vector.multi_reduction <add>, %246, %cst_96 [1] : vector<8x32xf32> to vector<8xf32>
    %248 = vector.shape_cast %247 : vector<8xf32> to vector<8x1xf32>
    %cst_97 = arith.constant 3.200000e+01 : f32
    %249 = vector.broadcast %cst_97 : f32 to vector<8x1xf32>
    %250 = arith.divf %248, %249 : vector<8x1xf32>
    %251 = vector.broadcast %250 : vector<8x1xf32> to vector<8x32xf32>
    %252 = arith.subf %246, %251 : vector<8x32xf32>
    %253 = vector.broadcast %250 : vector<8x1xf32> to vector<8x32xf32>
    %254 = arith.subf %246, %253 : vector<8x32xf32>
    %255 = arith.mulf %252, %254 : vector<8x32xf32>
    %cst_98 = arith.constant dense<0.000000e+00> : vector<8xf32>
    %256 = vector.multi_reduction <add>, %255, %cst_98 [1] : vector<8x32xf32> to vector<8xf32>
    %257 = vector.shape_cast %256 : vector<8xf32> to vector<8x1xf32>
    %cst_99 = arith.constant 3.200000e+01 : f32
    %258 = vector.broadcast %cst_99 : f32 to vector<8x1xf32>
    %259 = arith.divf %257, %258 : vector<8x1xf32>
    %260 = vector.broadcast %250 : vector<8x1xf32> to vector<8x32xf32>
    %261 = arith.subf %246, %260 : vector<8x32xf32>
    %cst_100 = arith.constant 9.99999974E-6 : f32
    %262 = vector.broadcast %cst_100 : f32 to vector<8x1xf32>
    %263 = arith.addf %259, %262 : vector<8x1xf32>
    %264 = math.rsqrt %263 : vector<8x1xf32>
    %265 = vector.broadcast %264 : vector<8x1xf32> to vector<8x32xf32>
    %266 = arith.mulf %261, %265 : vector<8x32xf32>
    %267 = vector.broadcast %244 : vector<1x32xf32> to vector<8x32xf32>
    %268 = arith.mulf %266, %267 : vector<8x32xf32>
    %269 = vector.broadcast %245 : vector<1x32xf32> to vector<8x32xf32>
    %270 = arith.addf %268, %269 : vector<8x32xf32>
    %271 = arith.truncf %270 : vector<8x32xf32> to vector<8x32xbf16>
    %c0_101 = arith.constant 0 : index
    %c0_102 = arith.constant 0 : index
    %c0_103 = arith.constant 0 : index
    %272 = vector.load %arg15[%c0_101, %c0_102, %c0_103] : memref<1x8x32xbf16, #tpu.memory_space<vmem>>, vector<1x8x32xbf16>
    %273 = vector.shape_cast %272 : vector<1x8x32xbf16> to vector<8x32xbf16>
    %274 = vector.shape_cast %271 : vector<8x32xbf16> to vector<1x8x32xbf16>
    tpu.vector_store %arg15[%c0_101, %c0_102, %c0_103], %274 {strides = array<i32>} : memref<1x8x32xbf16, #tpu.memory_space<vmem>>, vector<1x8x32xbf16>,
    return
  }
  func.func @transform_0(%arg0: i32) -> (i32, i32, i32) {
    %c0_i32 = arith.constant 0 : i32
    %c0_i32_0 = arith.constant 0 : i32
    %c0_i32_1 = arith.constant 0 : i32
    return %arg0, %c0_i32, %c0_i32_0 : i32, i32, i32
  }
  func.func @transform_1(%arg0: i32) -> (i32, i32, i32) {
    %c0_i32 = arith.constant 0 : i32
    %c0_i32_0 = arith.constant 0 : i32
    %c0_i32_1 = arith.constant 0 : i32
    return %arg0, %c0_i32, %c0_i32_0 : i32, i32, i32
  }
  func.func @transform_2(%arg0: i32) -> (i32, i32) {
    %c0_i32 = arith.constant 0 : i32
    %c0_i32_0 = arith.constant 0 : i32
    %c0_i32_1 = arith.constant 0 : i32
    return %c0_i32, %c0_i32_0 : i32, i32
  }
  func.func @transform_3(%arg0: i32) -> (i32, i32) {
    %c0_i32 = arith.constant 0 : i32
    %c0_i32_0 = arith.constant 0 : i32
    %c0_i32_1 = arith.constant 0 : i32
    return %c0_i32, %c0_i32_0 : i32, i32
  }
  func.func @transform_4(%arg0: i32) -> (i32, i32, i32) {
    %c0_i32 = arith.constant 0 : i32
    %c0_i32_0 = arith.constant 0 : i32
    %c0_i32_1 = arith.constant 0 : i32
    %c0_i32_2 = arith.constant 0 : i32
    return %c0_i32, %c0_i32_0, %c0_i32_1 : i32, i32, i32
  }
  func.func @transform_5(%arg0: i32) -> (i32, i32) {
    %c0_i32 = arith.constant 0 : i32
    %c0_i32_0 = arith.constant 0 : i32
    %c0_i32_1 = arith.constant 0 : i32
    return %c0_i32, %c0_i32_0 : i32, i32
  }
  func.func @transform_6(%arg0: i32) -> (i32, i32) {
    %c0_i32 = arith.constant 0 : i32
    %c0_i32_0 = arith.constant 0 : i32
    %c0_i32_1 = arith.constant 0 : i32
    return %c0_i32, %c0_i32_0 : i32, i32
  }
  func.func @transform_7(%arg0: i32) -> (i32, i32) {
    %c0_i32 = arith.constant 0 : i32
    %c0_i32_0 = arith.constant 0 : i32
    %c0_i32_1 = arith.constant 0 : i32
    return %c0_i32, %c0_i32_0 : i32, i32
  }
  func.func @transform_8(%arg0: i32) -> (i32, i32) {
    %c0_i32 = arith.constant 0 : i32
    %c0_i32_0 = arith.constant 0 : i32
    %c0_i32_1 = arith.constant 0 : i32
    return %c0_i32, %c0_i32_0 : i32, i32
  }
  func.func @transform_9(%arg0: i32) -> (i32, i32) {
    %c0_i32 = arith.constant 0 : i32
    %c0_i32_0 = arith.constant 0 : i32
    %c0_i32_1 = arith.constant 0 : i32
    return %c0_i32, %c0_i32_0 : i32, i32
  }
  func.func @transform_10(%arg0: i32) -> (i32, i32, i32) {
    %c0_i32 = arith.constant 0 : i32
    %c0_i32_0 = arith.constant 0 : i32
    %c0_i32_1 = arith.constant 0 : i32
    %c0_i32_2 = arith.constant 0 : i32
    return %c0_i32, %c0_i32_0, %c0_i32_1 : i32, i32, i32
  }
  func.func @transform_11(%arg0: i32) -> (i32, i32) {
    %c0_i32 = arith.constant 0 : i32
    %c0_i32_0 = arith.constant 0 : i32
    %c0_i32_1 = arith.constant 0 : i32
    return %c0_i32, %c0_i32_0 : i32, i32
  }
  func.func @transform_12(%arg0: i32) -> (i32, i32) {
    %c0_i32 = arith.constant 0 : i32
    %c0_i32_0 = arith.constant 0 : i32
    %c0_i32_1 = arith.constant 0 : i32
    return %c0_i32, %c0_i32_0 : i32, i32
  }
  func.func @transform_13(%arg0: i32) -> (i32, i32) {
    %c0_i32 = arith.constant 0 : i32
    %c0_i32_0 = arith.constant 0 : i32
    %c0_i32_1 = arith.constant 0 : i32
    return %c0_i32, %c0_i32_0 : i32, i32
  }
  func.func @transform_14(%arg0: i32) -> (i32, i32, i32) {
    %c0_i32 = arith.constant 0 : i32
    %c0_i32_0 = arith.constant 0 : i32
    %c0_i32_1 = arith.constant 0 : i32
    return %arg0, %c0_i32, %c0_i32_0 : i32, i32, i32
  }
}

module attributes {stable_mosaic.version = 11 : i64} {
  func.func @_ffn_kernel(%arg0: i32, %arg1: memref<16x32xbf16, #tpu.memory_space<vmem>>, %arg2: memref<64x32xbf16, #tpu.memory_space<vmem>>, %arg3: memref<1x64xf32, #tpu.memory_space<vmem>>, %arg4: memref<32x64xbf16, #tpu.memory_space<vmem>>, %arg5: memref<1x32xf32, #tpu.memory_space<vmem>>, %arg6: memref<1x32xf32, #tpu.memory_space<vmem>>, %arg7: memref<1x32xf32, #tpu.memory_space<vmem>>, %arg8: memref<16x32xf32, #tpu.memory_space<vmem>>) attributes {dimension_semantics = [#tpu.dimension_semantics<parallel>], iteration_bounds = array<i64: 1>, scalar_prefetch = 0 : i64, scratch_operands = 0 : i64, tpu.core_type = #tpu.core_type<tc>, window_params = [{transform_indices = @transform_0, window_bounds = array<i64: 16, 32>}, {pipeline_mode = #tpu.pipeline_mode<synchronous>, transform_indices = @transform_1, window_bounds = array<i64: 64, 32>}, {pipeline_mode = #tpu.pipeline_mode<synchronous>, transform_indices = @transform_2, window_bounds = array<i64: 1, 64>}, {pipeline_mode = #tpu.pipeline_mode<synchronous>, transform_indices = @transform_3, window_bounds = array<i64: 32, 64>}, {pipeline_mode = #tpu.pipeline_mode<synchronous>, transform_indices = @transform_4, window_bounds = array<i64: 1, 32>}, {pipeline_mode = #tpu.pipeline_mode<synchronous>, transform_indices = @transform_5, window_bounds = array<i64: 1, 32>}, {pipeline_mode = #tpu.pipeline_mode<synchronous>, transform_indices = @transform_6, window_bounds = array<i64: 1, 32>}, {transform_indices = @transform_7, window_bounds = array<i64: 16, 32>}]} {
    %c0 = arith.constant 0 : index
    %c0_0 = arith.constant 0 : index
    %0 = vector.load %arg1[%c0, %c0_0] : memref<16x32xbf16, #tpu.memory_space<vmem>>, vector<16x32xbf16>
    %1 = arith.extf %0 : vector<16x32xbf16> to vector<16x32xf32>
    %c0_1 = arith.constant 0 : index
    %c0_2 = arith.constant 0 : index
    %2 = vector.load %arg2[%c0_1, %c0_2] : memref<64x32xbf16, #tpu.memory_space<vmem>>, vector<64x32xbf16>
    %cst = arith.constant dense<0.000000e+00> : vector<16x64xf32>
    %3 = tpu.matmul %0, %2, %cst {dimension_numbers = #tpu.dot_dimension_numbers<[1], [1], [0], [0], [0, 0, 1, 0], [], []>} : vector<16x32xbf16>, vector<64x32xbf16>, vector<16x64xf32> -> vector<16x64xf32>
    %c0_3 = arith.constant 0 : index
    %c0_4 = arith.constant 0 : index
    %4 = vector.load %arg3[%c0_3, %c0_4] : memref<1x64xf32, #tpu.memory_space<vmem>>, vector<1x64xf32>
    %5 = vector.broadcast %4 : vector<1x64xf32> to vector<16x64xf32>
    %6 = arith.addf %3, %5 : vector<16x64xf32>
    %cst_5 = arith.constant 0.000000e+00 : f32
    %7 = vector.broadcast %cst_5 : f32 to vector<16x64xf32>
    %8 = arith.maximumf %6, %7 : vector<16x64xf32>
    %c0_6 = arith.constant 0 : index
    %c0_7 = arith.constant 0 : index
    %9 = vector.load %arg4[%c0_6, %c0_7] : memref<32x64xbf16, #tpu.memory_space<vmem>>, vector<32x64xbf16>
    %10 = arith.truncf %8 : vector<16x64xf32> to vector<16x64xbf16>
    %cst_8 = arith.constant dense<0.000000e+00> : vector<16x32xf32>
    %11 = tpu.matmul %10, %9, %cst_8 {dimension_numbers = #tpu.dot_dimension_numbers<[1], [1], [0], [0], [0, 0, 1, 0], [], []>} : vector<16x64xbf16>, vector<32x64xbf16>, vector<16x32xf32> -> vector<16x32xf32>
    %c0_9 = arith.constant 0 : index
    %c0_10 = arith.constant 0 : index
    %12 = vector.load %arg5[%c0_9, %c0_10] : memref<1x32xf32, #tpu.memory_space<vmem>>, vector<1x32xf32>
    %13 = vector.broadcast %12 : vector<1x32xf32> to vector<16x32xf32>
    %14 = arith.addf %11, %13 : vector<16x32xf32>
    %c0_11 = arith.constant 0 : index
    %c0_12 = arith.constant 0 : index
    %15 = vector.load %arg6[%c0_11, %c0_12] : memref<1x32xf32, #tpu.memory_space<vmem>>, vector<1x32xf32>
    %c0_13 = arith.constant 0 : index
    %c0_14 = arith.constant 0 : index
    %16 = vector.load %arg7[%c0_13, %c0_14] : memref<1x32xf32, #tpu.memory_space<vmem>>, vector<1x32xf32>
    %17 = arith.addf %14, %1 : vector<16x32xf32>
    %cst_15 = arith.constant dense<0.000000e+00> : vector<16xf32>
    %18 = vector.multi_reduction <add>, %17, %cst_15 [1] : vector<16x32xf32> to vector<16xf32>
    %19 = vector.shape_cast %18 : vector<16xf32> to vector<16x1xf32>
    %cst_16 = arith.constant 3.200000e+01 : f32
    %20 = vector.broadcast %cst_16 : f32 to vector<16x1xf32>
    %21 = arith.divf %19, %20 : vector<16x1xf32>
    %22 = vector.broadcast %21 : vector<16x1xf32> to vector<16x32xf32>
    %23 = arith.subf %17, %22 : vector<16x32xf32>
    %24 = vector.broadcast %21 : vector<16x1xf32> to vector<16x32xf32>
    %25 = arith.subf %17, %24 : vector<16x32xf32>
    %26 = arith.mulf %23, %25 : vector<16x32xf32>
    %cst_17 = arith.constant dense<0.000000e+00> : vector<16xf32>
    %27 = vector.multi_reduction <add>, %26, %cst_17 [1] : vector<16x32xf32> to vector<16xf32>
    %28 = vector.shape_cast %27 : vector<16xf32> to vector<16x1xf32>
    %cst_18 = arith.constant 3.200000e+01 : f32
    %29 = vector.broadcast %cst_18 : f32 to vector<16x1xf32>
    %30 = arith.divf %28, %29 : vector<16x1xf32>
    %31 = vector.broadcast %21 : vector<16x1xf32> to vector<16x32xf32>
    %32 = arith.subf %17, %31 : vector<16x32xf32>
    %cst_19 = arith.constant 9.99999974E-6 : f32
    %33 = vector.broadcast %cst_19 : f32 to vector<16x1xf32>
    %34 = arith.addf %30, %33 : vector<16x1xf32>
    %35 = math.rsqrt %34 : vector<16x1xf32>
    %36 = vector.broadcast %35 : vector<16x1xf32> to vector<16x32xf32>
    %37 = arith.mulf %32, %36 : vector<16x32xf32>
    %38 = vector.broadcast %15 : vector<1x32xf32> to vector<16x32xf32>
    %39 = arith.mulf %37, %38 : vector<16x32xf32>
    %40 = vector.broadcast %16 : vector<1x32xf32> to vector<16x32xf32>
    %41 = arith.addf %39, %40 : vector<16x32xf32>
    %c0_20 = arith.constant 0 : index
    %c0_21 = arith.constant 0 : index
    %42 = vector.load %arg8[%c0_20, %c0_21] : memref<16x32xf32, #tpu.memory_space<vmem>>, vector<16x32xf32>
    tpu.vector_store %arg8[%c0_20, %c0_21], %41 {strides = array<i32>} : memref<16x32xf32, #tpu.memory_space<vmem>>, vector<16x32xf32>,
    return
  }
  func.func @transform_0(%arg0: i32) -> (i32, i32) {
    %c0_i32 = arith.constant 0 : i32
    %c0_i32_0 = arith.constant 0 : i32
    return %arg0, %c0_i32 : i32, i32
  }
  func.func @transform_1(%arg0: i32) -> (i32, i32) {
    %c0_i32 = arith.constant 0 : i32
    %c0_i32_0 = arith.constant 0 : i32
    %c0_i32_1 = arith.constant 0 : i32
    return %c0_i32, %c0_i32_0 : i32, i32
  }
  func.func @transform_2(%arg0: i32) -> (i32, i32) {
    %c0_i32 = arith.constant 0 : i32
    %c0_i32_0 = arith.constant 0 : i32
    %c0_i32_1 = arith.constant 0 : i32
    return %c0_i32, %c0_i32_0 : i32, i32
  }
  func.func @transform_3(%arg0: i32) -> (i32, i32) {
    %c0_i32 = arith.constant 0 : i32
    %c0_i32_0 = arith.constant 0 : i32
    %c0_i32_1 = arith.constant 0 : i32
    return %c0_i32, %c0_i32_0 : i32, i32
  }
  func.func @transform_4(%arg0: i32) -> (i32, i32) {
    %c0_i32 = arith.constant 0 : i32
    %c0_i32_0 = arith.constant 0 : i32
    %c0_i32_1 = arith.constant 0 : i32
    return %c0_i32, %c0_i32_0 : i32, i32
  }
  func.func @transform_5(%arg0: i32) -> (i32, i32) {
    %c0_i32 = arith.constant 0 : i32
    %c0_i32_0 = arith.constant 0 : i32
    %c0_i32_1 = arith.constant 0 : i32
    return %c0_i32, %c0_i32_0 : i32, i32
  }
  func.func @transform_6(%arg0: i32) -> (i32, i32) {
    %c0_i32 = arith.constant 0 : i32
    %c0_i32_0 = arith.constant 0 : i32
    %c0_i32_1 = arith.constant 0 : i32
    return %c0_i32, %c0_i32_0 : i32, i32
  }
  func.func @transform_7(%arg0: i32) -> (i32, i32) {
    %c0_i32 = arith.constant 0 : i32
    %c0_i32_0 = arith.constant 0 : i32
    return %arg0, %c0_i32 : i32, i32
  }
}

module attributes {stable_mosaic.version = 11 : i64} {
  func.func @_ffn_kernel(%arg0: i32, %arg1: memref<16x32xbf16, #tpu.memory_space<vmem>>, %arg2: memref<64x32xbf16, #tpu.memory_space<vmem>>, %arg3: memref<1x64xf32, #tpu.memory_space<vmem>>, %arg4: memref<32x64xbf16, #tpu.memory_space<vmem>>, %arg5: memref<1x32xf32, #tpu.memory_space<vmem>>, %arg6: memref<1x32xf32, #tpu.memory_space<vmem>>, %arg7: memref<1x32xf32, #tpu.memory_space<vmem>>, %arg8: memref<16x32xbf16, #tpu.memory_space<vmem>>) attributes {dimension_semantics = [#tpu.dimension_semantics<parallel>], iteration_bounds = array<i64: 1>, scalar_prefetch = 0 : i64, scratch_operands = 0 : i64, tpu.core_type = #tpu.core_type<tc>, window_params = [{transform_indices = @transform_0, window_bounds = array<i64: 16, 32>}, {pipeline_mode = #tpu.pipeline_mode<synchronous>, transform_indices = @transform_1, window_bounds = array<i64: 64, 32>}, {pipeline_mode = #tpu.pipeline_mode<synchronous>, transform_indices = @transform_2, window_bounds = array<i64: 1, 64>}, {pipeline_mode = #tpu.pipeline_mode<synchronous>, transform_indices = @transform_3, window_bounds = array<i64: 32, 64>}, {pipeline_mode = #tpu.pipeline_mode<synchronous>, transform_indices = @transform_4, window_bounds = array<i64: 1, 32>}, {pipeline_mode = #tpu.pipeline_mode<synchronous>, transform_indices = @transform_5, window_bounds = array<i64: 1, 32>}, {pipeline_mode = #tpu.pipeline_mode<synchronous>, transform_indices = @transform_6, window_bounds = array<i64: 1, 32>}, {transform_indices = @transform_7, window_bounds = array<i64: 16, 32>}]} {
    %c0 = arith.constant 0 : index
    %c0_0 = arith.constant 0 : index
    %0 = vector.load %arg1[%c0, %c0_0] : memref<16x32xbf16, #tpu.memory_space<vmem>>, vector<16x32xbf16>
    %1 = arith.extf %0 : vector<16x32xbf16> to vector<16x32xf32>
    %c0_1 = arith.constant 0 : index
    %c0_2 = arith.constant 0 : index
    %2 = vector.load %arg2[%c0_1, %c0_2] : memref<64x32xbf16, #tpu.memory_space<vmem>>, vector<64x32xbf16>
    %cst = arith.constant dense<0.000000e+00> : vector<16x64xf32>
    %3 = tpu.matmul %0, %2, %cst {dimension_numbers = #tpu.dot_dimension_numbers<[1], [1], [0], [0], [0, 0, 1, 0], [], []>} : vector<16x32xbf16>, vector<64x32xbf16>, vector<16x64xf32> -> vector<16x64xf32>
    %c0_3 = arith.constant 0 : index
    %c0_4 = arith.constant 0 : index
    %4 = vector.load %arg3[%c0_3, %c0_4] : memref<1x64xf32, #tpu.memory_space<vmem>>, vector<1x64xf32>
    %5 = vector.broadcast %4 : vector<1x64xf32> to vector<16x64xf32>
    %6 = arith.addf %3, %5 : vector<16x64xf32>
    %cst_5 = arith.constant 0.000000e+00 : f32
    %7 = vector.broadcast %cst_5 : f32 to vector<16x64xf32>
    %8 = arith.maximumf %6, %7 : vector<16x64xf32>
    %c0_6 = arith.constant 0 : index
    %c0_7 = arith.constant 0 : index
    %9 = vector.load %arg4[%c0_6, %c0_7] : memref<32x64xbf16, #tpu.memory_space<vmem>>, vector<32x64xbf16>
    %10 = arith.truncf %8 : vector<16x64xf32> to vector<16x64xbf16>
    %cst_8 = arith.constant dense<0.000000e+00> : vector<16x32xf32>
    %11 = tpu.matmul %10, %9, %cst_8 {dimension_numbers = #tpu.dot_dimension_numbers<[1], [1], [0], [0], [0, 0, 1, 0], [], []>} : vector<16x64xbf16>, vector<32x64xbf16>, vector<16x32xf32> -> vector<16x32xf32>
    %c0_9 = arith.constant 0 : index
    %c0_10 = arith.constant 0 : index
    %12 = vector.load %arg5[%c0_9, %c0_10] : memref<1x32xf32, #tpu.memory_space<vmem>>, vector<1x32xf32>
    %13 = vector.broadcast %12 : vector<1x32xf32> to vector<16x32xf32>
    %14 = arith.addf %11, %13 : vector<16x32xf32>
    %c0_11 = arith.constant 0 : index
    %c0_12 = arith.constant 0 : index
    %15 = vector.load %arg6[%c0_11, %c0_12] : memref<1x32xf32, #tpu.memory_space<vmem>>, vector<1x32xf32>
    %c0_13 = arith.constant 0 : index
    %c0_14 = arith.constant 0 : index
    %16 = vector.load %arg7[%c0_13, %c0_14] : memref<1x32xf32, #tpu.memory_space<vmem>>, vector<1x32xf32>
    %17 = arith.addf %14, %1 : vector<16x32xf32>
    %cst_15 = arith.constant dense<0.000000e+00> : vector<16xf32>
    %18 = vector.multi_reduction <add>, %17, %cst_15 [1] : vector<16x32xf32> to vector<16xf32>
    %19 = vector.shape_cast %18 : vector<16xf32> to vector<16x1xf32>
    %cst_16 = arith.constant 3.200000e+01 : f32
    %20 = vector.broadcast %cst_16 : f32 to vector<16x1xf32>
    %21 = arith.divf %19, %20 : vector<16x1xf32>
    %22 = vector.broadcast %21 : vector<16x1xf32> to vector<16x32xf32>
    %23 = arith.subf %17, %22 : vector<16x32xf32>
    %24 = vector.broadcast %21 : vector<16x1xf32> to vector<16x32xf32>
    %25 = arith.subf %17, %24 : vector<16x32xf32>
    %26 = arith.mulf %23, %25 : vector<16x32xf32>
    %cst_17 = arith.constant dense<0.000000e+00> : vector<16xf32>
    %27 = vector.multi_reduction <add>, %26, %cst_17 [1] : vector<16x32xf32> to vector<16xf32>
    %28 = vector.shape_cast %27 : vector<16xf32> to vector<16x1xf32>
    %cst_18 = arith.constant 3.200000e+01 : f32
    %29 = vector.broadcast %cst_18 : f32 to vector<16x1xf32>
    %30 = arith.divf %28, %29 : vector<16x1xf32>
    %31 = vector.broadcast %21 : vector<16x1xf32> to vector<16x32xf32>
    %32 = arith.subf %17, %31 : vector<16x32xf32>
    %cst_19 = arith.constant 9.99999974E-6 : f32
    %33 = vector.broadcast %cst_19 : f32 to vector<16x1xf32>
    %34 = arith.addf %30, %33 : vector<16x1xf32>
    %35 = math.rsqrt %34 : vector<16x1xf32>
    %36 = vector.broadcast %35 : vector<16x1xf32> to vector<16x32xf32>
    %37 = arith.mulf %32, %36 : vector<16x32xf32>
    %38 = vector.broadcast %15 : vector<1x32xf32> to vector<16x32xf32>
    %39 = arith.mulf %37, %38 : vector<16x32xf32>
    %40 = vector.broadcast %16 : vector<1x32xf32> to vector<16x32xf32>
    %41 = arith.addf %39, %40 : vector<16x32xf32>
    %42 = arith.truncf %41 : vector<16x32xf32> to vector<16x32xbf16>
    %c0_20 = arith.constant 0 : index
    %c0_21 = arith.constant 0 : index
    %43 = vector.load %arg8[%c0_20, %c0_21] : memref<16x32xbf16, #tpu.memory_space<vmem>>, vector<16x32xbf16>
    tpu.vector_store %arg8[%c0_20, %c0_21], %42 {strides = array<i32>} : memref<16x32xbf16, #tpu.memory_space<vmem>>, vector<16x32xbf16>,
    return
  }
  func.func @transform_0(%arg0: i32) -> (i32, i32) {
    %c0_i32 = arith.constant 0 : i32
    %c0_i32_0 = arith.constant 0 : i32
    return %arg0, %c0_i32 : i32, i32
  }
  func.func @transform_1(%arg0: i32) -> (i32, i32) {
    %c0_i32 = arith.constant 0 : i32
    %c0_i32_0 = arith.constant 0 : i32
    %c0_i32_1 = arith.constant 0 : i32
    return %c0_i32, %c0_i32_0 : i32, i32
  }
  func.func @transform_2(%arg0: i32) -> (i32, i32) {
    %c0_i32 = arith.constant 0 : i32
    %c0_i32_0 = arith.constant 0 : i32
    %c0_i32_1 = arith.constant 0 : i32
    return %c0_i32, %c0_i32_0 : i32, i32
  }
  func.func @transform_3(%arg0: i32) -> (i32, i32) {
    %c0_i32 = arith.constant 0 : i32
    %c0_i32_0 = arith.constant 0 : i32
    %c0_i32_1 = arith.constant 0 : i32
    return %c0_i32, %c0_i32_0 : i32, i32
  }
  func.func @transform_4(%arg0: i32) -> (i32, i32) {
    %c0_i32 = arith.constant 0 : i32
    %c0_i32_0 = arith.constant 0 : i32
    %c0_i32_1 = arith.constant 0 : i32
    return %c0_i32, %c0_i32_0 : i32, i32
  }
  func.func @transform_5(%arg0: i32) -> (i32, i32) {
    %c0_i32 = arith.constant 0 : i32
    %c0_i32_0 = arith.constant 0 : i32
    %c0_i32_1 = arith.constant 0 : i32
    return %c0_i32, %c0_i32_0 : i32, i32
  }
  func.func @transform_6(%arg0: i32) -> (i32, i32) {
    %c0_i32 = arith.constant 0 : i32
    %c0_i32_0 = arith.constant 0 : i32
    %c0_i32_1 = arith.constant 0 : i32
    return %c0_i32, %c0_i32_0 : i32, i32
  }
  func.func @transform_7(%arg0: i32) -> (i32, i32) {
    %c0_i32 = arith.constant 0 : i32
    %c0_i32_0 = arith.constant 0 : i32
    return %arg0, %c0_i32 : i32, i32
  }
}

module attributes {stable_mosaic.version = 11 : i64} {
  func.func @_kv_proj_kernel(%arg0: i32, %arg1: memref<16x32xbf16, #tpu.memory_space<vmem>>, %arg2: memref<64x32xbf16, #tpu.memory_space<vmem>>, %arg3: memref<1x64xf32, #tpu.memory_space<vmem>>, %arg4: memref<16x64xbf16, #tpu.memory_space<vmem>>) attributes {dimension_semantics = [#tpu.dimension_semantics<parallel>], iteration_bounds = array<i64: 1>, scalar_prefetch = 0 : i64, scratch_operands = 0 : i64, tpu.core_type = #tpu.core_type<tc>, window_params = [{transform_indices = @transform_0, window_bounds = array<i64: 16, 32>}, {pipeline_mode = #tpu.pipeline_mode<synchronous>, transform_indices = @transform_1, window_bounds = array<i64: 64, 32>}, {pipeline_mode = #tpu.pipeline_mode<synchronous>, transform_indices = @transform_2, window_bounds = array<i64: 1, 64>}, {transform_indices = @transform_3, window_bounds = array<i64: 16, 64>}]} {
    %c0 = arith.constant 0 : index
    %c0_0 = arith.constant 0 : index
    %0 = vector.load %arg1[%c0, %c0_0] : memref<16x32xbf16, #tpu.memory_space<vmem>>, vector<16x32xbf16>
    %c0_1 = arith.constant 0 : index
    %c0_2 = arith.constant 0 : index
    %1 = vector.load %arg2[%c0_1, %c0_2] : memref<64x32xbf16, #tpu.memory_space<vmem>>, vector<64x32xbf16>
    %cst = arith.constant dense<0.000000e+00> : vector<16x64xf32>
    %2 = tpu.matmul %0, %1, %cst {dimension_numbers = #tpu.dot_dimension_numbers<[1], [1], [0], [0], [0, 0, 1, 0], [], []>} : vector<16x32xbf16>, vector<64x32xbf16>, vector<16x64xf32> -> vector<16x64xf32>
    %c0_3 = arith.constant 0 : index
    %c0_4 = arith.constant 0 : index
    %3 = vector.load %arg3[%c0_3, %c0_4] : memref<1x64xf32, #tpu.memory_space<vmem>>, vector<1x64xf32>
    %4 = vector.broadcast %3 : vector<1x64xf32> to vector<16x64xf32>
    %5 = arith.addf %2, %4 : vector<16x64xf32>
    %6 = arith.truncf %5 : vector<16x64xf32> to vector<16x64xbf16>
    %c0_5 = arith.constant 0 : index
    %c0_6 = arith.constant 0 : index
    %7 = vector.load %arg4[%c0_5, %c0_6] : memref<16x64xbf16, #tpu.memory_space<vmem>>, vector<16x64xbf16>
    tpu.vector_store %arg4[%c0_5, %c0_6], %6 {strides = array<i32>} : memref<16x64xbf16, #tpu.memory_space<vmem>>, vector<16x64xbf16>,
    return
  }
  func.func @transform_0(%arg0: i32) -> (i32, i32) {
    %c0_i32 = arith.constant 0 : i32
    %c0_i32_0 = arith.constant 0 : i32
    return %arg0, %c0_i32 : i32, i32
  }
  func.func @transform_1(%arg0: i32) -> (i32, i32) {
    %c0_i32 = arith.constant 0 : i32
    %c0_i32_0 = arith.constant 0 : i32
    %c0_i32_1 = arith.constant 0 : i32
    return %c0_i32, %c0_i32_0 : i32, i32
  }
  func.func @transform_2(%arg0: i32) -> (i32, i32) {
    %c0_i32 = arith.constant 0 : i32
    %c0_i32_0 = arith.constant 0 : i32
    %c0_i32_1 = arith.constant 0 : i32
    return %c0_i32, %c0_i32_0 : i32, i32
  }
  func.func @transform_3(%arg0: i32) -> (i32, i32) {
    %c0_i32 = arith.constant 0 : i32
    %c0_i32_0 = arith.constant 0 : i32
    return %arg0, %c0_i32 : i32, i32
  }
}

</mosaic_0001>

<llo_original>
// kernel: _lambda_.5
$region0: #{_lambda_.5}
  #allocation0 [shape = 'u32[]', space=smem, size = 0x4, offset = 0x4, fixed_abs, tag = 'smem constant byte address 0x4 - core index']
  #allocation1 [shape = 'u32[144,128]{1,0:T(1,128)}', space=vmem, size = 0x12000, scoped, tag = 'internal scratch']
  %s0 = inlined_call_operand.vmem [shape: bf16[16,32], index: 0, kind: input, shape index: {}]
  %s1 = inlined_call_operand.vmem [shape: bf16[64,32], index: 1, kind: input, shape index: {}]
  %s2 = inlined_call_operand.vmem [shape: f32[1,64], index: 2, kind: input, shape index: {}]
  %s3 = inlined_call_operand.vmem [shape: bf16[16,64], index: 3, kind: output, shape index: {}]
  %s4 = sld [smem:[#allocation0]]
  $region22: #{_lambda_.5} parent=0
    _
  %s6 = ssub.s32 1, %s4
  %s7 = scalar_select 0, %s6, %s4
  // Predicated region
  $region2: #{_lambda_.5} parent=0 // pred_check
    _
  $region3: #{_lambda_.5} parent=0 // pred_check_branch
    %9 = sbr.rel (0) target = $region5
  $region4: #{_lambda_.5} parent=0 // pred_region
    _
  $region5: #{_lambda_.5} parent=0 // pred_fallthru
    _
  // Predicated region
  $region6: #{_lambda_.5} parent=0 // pred_check
    _
  $region7: #{_lambda_.5} parent=0 // pred_check_branch
    %11 = sbr.rel (0) target = $region9
  $region8: #{_lambda_.5} parent=0 // pred_region
    _
  $region9: #{_lambda_.5} parent=0 // pred_fallthru
    _
  // Predicated region
  $region10: #{_lambda_.5} parent=0 // pred_check
    _
  $region11: #{_lambda_.5} parent=0 // pred_check_branch
    %13 = sbr.rel (0) target = $region13
  $region12: #{_lambda_.5} parent=0 // pred_region
    _
  $region13: #{_lambda_.5} parent=0 // pred_fallthru
    _
  %v15 = vld [vmem:[%s0] sm:$0xf]
  %v16 = vld [vmem:[%s0 + $0x4] sm:$0xf]
  %v17 = vld [vmem:[%s1] sm:$0xf]
  %v18 = vld [vmem:[%s1 + $0x4] sm:$0xf]
  %v19 = vld [vmem:[%s1 + $0x8] sm:$0xf]
  %v20 = vld [vmem:[%s1 + $0xc] sm:$0xf]
  %v21 = vld [vmem:[%s1 + $0x10] sm:$0xf]
  %v22 = vld [vmem:[%s1 + $0x14] sm:$0xf]
  %v23 = vld [vmem:[%s1 + $0x18] sm:$0xf]
  %v24 = vld [vmem:[%s1 + $0x1c] sm:$0xf]
  %v25 = vld [vmem:[%s2] sm:$0x1]
  %v27 = vlaneseq
  %v28 = vshrl.u32 %v27, 7
  %v29 = vsub.s32 0, %v28
  %v30 = vrot.slane %v25, %v29
  %v34 = vunpack.c.l.b16 %v15
  %v35 = vunpack.c.l.b16 %v16
  %v36 = vpack.c.b16 %v35, %v34
  %v45 = vunpack.c.l.b16 %v17
  %v46 = vunpack.c.l.b16 %v18
  %v47 = vunpack.c.l.b16 %v19
  %v48 = vunpack.c.l.b16 %v20
  %v49 = vunpack.c.l.b16 %v21
  %v50 = vunpack.c.l.b16 %v22
  %v51 = vunpack.c.l.b16 %v23
  %v52 = vunpack.c.l.b16 %v24
  %v53 = vpack.c.b16 %v46, %v45
  %v54 = vpack.c.b16 %v48, %v47
  %v55 = vpack.c.b16 %v50, %v49
  %v56 = vpack.c.b16 %v52, %v51
  %vm57 = vcmask 261120
  %v59 = vsel %vm57, %v36, 0
  %v62 = vsel %vm57, %v53, 0
  %v65 = vsel %vm57, %v54, 0
  %v68 = vsel %vm57, %v55, 0
  %v71 = vsel %vm57, %v56, 0
  %73 = vmatprep.subr.bf16.mxu0 0
  %74 = vmatpush1.bf16.xpose.msra.mxu0 0
  %75 = vmatprep.subr.bf16.mxu0 0
  %76 = vmatpush1.bf16.xpose.msra.mxu0 0
  %77 = vmatprep.subr.bf16.mxu0 0
  %78 = vmatpush1.bf16.xpose.msra.mxu0 0
  %79 = vmatprep.subr.bf16.mxu0 0
  %80 = vmatpush1.bf16.xpose.msra.mxu0 0
  %81 = vmatprep.subr.bf16.mxu0 0
  %82 = vmatpush1.bf16.xpose.msra.mxu0 %v71
  %83 = vmatprep.subr.bf16.mxu0 0
  %84 = vmatpush1.bf16.xpose.msra.mxu0 %v68
  %85 = vmatprep.subr.bf16.mxu0 0
  %86 = vmatpush1.bf16.xpose.msra.mxu0 %v65
  %87 = vmatprep.subr.bf16.mxu0 0
  %88 = vmatpush1.bf16.xpose.msra.mxu0 %v62
  %89 = vmatprep.subr.bf16.mxu0 0
  %90 = vmatpush2.bf16.xpose.msra.mxu0 0
  %91 = vmatprep.subr.bf16.mxu0 0
  %92 = vmatpush2.bf16.xpose.msra.mxu0 0
  %93 = vmatprep.subr.bf16.mxu0 0
  %94 = vmatpush2.bf16.xpose.msra.mxu0 0
  %95 = vmatprep.subr.bf16.mxu0 0
  %96 = vmatpush2.bf16.xpose.msra.mxu0 0
  %97 = vmatprep.subr.bf16.mxu0 0
  %98 = vmatpush2.bf16.xpose.msra.mxu0 0
  %99 = vmatprep.subr.bf16.mxu0 0
  %100 = vmatpush2.bf16.xpose.msra.mxu0 0
  %101 = vmatprep.subr.bf16.mxu0 0
  %102 = vmatpush2.bf16.xpose.msra.mxu0 0
  %103 = vmatprep.subr.bf16.mxu0 0
  %104 = vmatpush2.bf16.xpose.msra.mxu0 0
  %105 = vmatprep.mubr.bf16.mxu0 0
  %106 = vmatmul.mubr.bf16.gmra.mxu0 %v59
  %v107 = vpop.f32.mrf.mxu0
  %v108 = vadd.f32 %v30, %v107
  %v109 = vpop.f32.mrf.mxu0
  %v110 = vpop.f32.mrf.mxu0
  %v111 = vadd.f32 %v30, %v110
  %v112 = vpop.f32.mrf.mxu0
  %113 = vdwg.mxu0
  %v114 = vpack.c.bf16 %v111, %v108
  %v116 = vunpack.c.l.b16 %v114
  %v117 = vunpack.c.h.b16 %v114
  %v118 = vpack.c.b16 %v116, %v116
  %v119 = vpack.c.b16 %v117, %v117
  %vm122 = vcmask 519168
  %123 = vst.msk [vmem:[%s3] sm:$0xf] %vm122, %v118
  %124 = vst.msk [vmem:[%s3 + $0x4] sm:$0xf] %vm122, %v119
  // Predicated region
  $region14: #{_lambda_.5} parent=0 // pred_check
    _
  $region15: #{_lambda_.5} parent=0 // pred_check_branch
    %126 = sbr.rel (0) target = $region17
  $region16: #{_lambda_.5} parent=0 // pred_region
    _
  $region17: #{_lambda_.5} parent=0 // pred_fallthru
    _
  // Predicated region
  $region18: #{_lambda_.5} parent=0 // pred_check
    _
  $region19: #{_lambda_.5} parent=0 // pred_check_branch
    %128 = sbr.rel (0) target = $region21
  $region20: #{_lambda_.5} parent=0 // pred_region
    _
  $region21: #{_lambda_.5} parent=0 // pred_fallthru
    _

// kernel: _lambda_.7
$region0: #{_lambda_.7}
  #allocation0 [shape = 'u32[]', space=smem, size = 0x4, offset = 0x4, fixed_abs, tag = 'smem constant byte address 0x4 - core index']
  #allocation1 [shape = 'u32[144,128]{1,0:T(1,128)}', space=vmem, size = 0x12000, scoped, tag = 'internal scratch']
  %s0 = inlined_call_operand.vmem [shape: bf16[16,32], index: 0, kind: input, shape index: {}]
  %s1 = inlined_call_operand.vmem [shape: bf16[64,32], index: 1, kind: input, shape index: {}]
  %s2 = inlined_call_operand.vmem [shape: f32[1,64], index: 2, kind: input, shape index: {}]
  %s3 = inlined_call_operand.vmem [shape: bf16[32,64], index: 3, kind: input, shape index: {}]
  %s4 = inlined_call_operand.vmem [shape: f32[1,32], index: 4, kind: input, shape index: {}]
  %s5 = inlined_call_operand.vmem [shape: f32[1,32], index: 5, kind: input, shape index: {}]
  %s6 = inlined_call_operand.vmem [shape: f32[1,32], index: 6, kind: input, shape index: {}]
  %s7 = inlined_call_operand.vmem [shape: bf16[16,32], index: 7, kind: output, shape index: {}]
  %s8 = sld [smem:[#allocation0]]
  $region38: #{_lambda_.7} parent=0
    _
  %s10 = ssub.s32 1, %s8
  %s11 = scalar_select 0, %s10, %s8
  // Predicated region
  $region2: #{_lambda_.7} parent=0 // pred_check
    _
  $region3: #{_lambda_.7} parent=0 // pred_check_branch
    %13 = sbr.rel (0) target = $region5
  $region4: #{_lambda_.7} parent=0 // pred_region
    _
  $region5: #{_lambda_.7} parent=0 // pred_fallthru
    _
  // Predicated region
  $region6: #{_lambda_.7} parent=0 // pred_check
    _
  $region7: #{_lambda_.7} parent=0 // pred_check_branch
    %15 = sbr.rel (0) target = $region9
  $region8: #{_lambda_.7} parent=0 // pred_region
    _
  $region9: #{_lambda_.7} parent=0 // pred_fallthru
    _
  // Predicated region
  $region10: #{_lambda_.7} parent=0 // pred_check
    _
  $region11: #{_lambda_.7} parent=0 // pred_check_branch
    %17 = sbr.rel (0) target = $region13
  $region12: #{_lambda_.7} parent=0 // pred_region
    _
  $region13: #{_lambda_.7} parent=0 // pred_fallthru
    _
  // Predicated region
  $region14: #{_lambda_.7} parent=0 // pred_check
    _
  $region15: #{_lambda_.7} parent=0 // pred_check_branch
    %19 = sbr.rel (0) target = $region17
  $region16: #{_lambda_.7} parent=0 // pred_region
    _
  $region17: #{_lambda_.7} parent=0 // pred_fallthru
    _
  // Predicated region
  $region18: #{_lambda_.7} parent=0 // pred_check
    _
  $region19: #{_lambda_.7} parent=0 // pred_check_branch
    %21 = sbr.rel (0) target = $region21
  $region20: #{_lambda_.7} parent=0 // pred_region
    _
  $region21: #{_lambda_.7} parent=0 // pred_fallthru
    _
  // Predicated region
  $region22: #{_lambda_.7} parent=0 // pred_check
    _
  $region23: #{_lambda_.7} parent=0 // pred_check_branch
    %23 = sbr.rel (0) target = $region25
  $region24: #{_lambda_.7} parent=0 // pred_region
    _
  $region25: #{_lambda_.7} parent=0 // pred_fallthru
    _
  // Predicated region
  $region26: #{_lambda_.7} parent=0 // pred_check
    _
  $region27: #{_lambda_.7} parent=0 // pred_check_branch
    %25 = sbr.rel (0) target = $region29
  $region28: #{_lambda_.7} parent=0 // pred_region
    _
  $region29: #{_lambda_.7} parent=0 // pred_fallthru
    _
  %v27 = vld [vmem:[%s0] sm:$0xf]
  %v28 = vld [vmem:[%s0 + $0x4] sm:$0xf]
  %v29 = vunpack.c.l.bf16 %v27
  %v30 = vunpack.c.l.bf16 %v28
  %v31 = vld [vmem:[%s1] sm:$0xf]
  %v32 = vld [vmem:[%s1 + $0x4] sm:$0xf]
  %v33 = vld [vmem:[%s1 + $0x8] sm:$0xf]
  %v34 = vld [vmem:[%s1 + $0xc] sm:$0xf]
  %v35 = vld [vmem:[%s1 + $0x10] sm:$0xf]
  %v36 = vld [vmem:[%s1 + $0x14] sm:$0xf]
  %v37 = vld [vmem:[%s1 + $0x18] sm:$0xf]
  %v38 = vld [vmem:[%s1 + $0x1c] sm:$0xf]
  %v39 = vld [vmem:[%s2] sm:$0x1]
  %v41 = vlaneseq
  %v42 = vshrl.u32 %v41, 7
  %v43 = vsub.s32 0, %v42
  %v44 = vrot.slane %v39, %v43
  %v48 = vunpack.c.l.b16 %v27
  %v49 = vunpack.c.l.b16 %v28
  %v50 = vpack.c.b16 %v49, %v48
  %v59 = vunpack.c.l.b16 %v31
  %v60 = vunpack.c.l.b16 %v32
  %v61 = vunpack.c.l.b16 %v33
  %v62 = vunpack.c.l.b16 %v34
  %v63 = vunpack.c.l.b16 %v35
  %v64 = vunpack.c.l.b16 %v36
  %v65 = vunpack.c.l.b16 %v37
  %v66 = vunpack.c.l.b16 %v38
  %v67 = vpack.c.b16 %v60, %v59
  %v68 = vpack.c.b16 %v62, %v61
  %v69 = vpack.c.b16 %v64, %v63
  %v70 = vpack.c.b16 %v66, %v65
  %vm71 = vcmask 261120
  %v73 = vsel %vm71, %v50, 0
  %v76 = vsel %vm71, %v67, 0
  %v79 = vsel %vm71, %v68, 0
  %v82 = vsel %vm71, %v69, 0
  %v85 = vsel %vm71, %v70, 0
  %87 = vmatprep.subr.bf16.mxu0 0
  %88 = vmatpush1.bf16.xpose.msra.mxu0 0
  %89 = vmatprep.subr.bf16.mxu0 0
  %90 = vmatpush1.bf16.xpose.msra.mxu0 0
  %91 = vmatprep.subr.bf16.mxu0 0
  %92 = vmatpush1.bf16.xpose.msra.mxu0 0
  %93 = vmatprep.subr.bf16.mxu0 0
  %94 = vmatpush1.bf16.xpose.msra.mxu0 0
  %95 = vmatprep.subr.bf16.mxu0 0
  %96 = vmatpush1.bf16.xpose.msra.mxu0 %v85
  %97 = vmatprep.subr.bf16.mxu0 0
  %98 = vmatpush1.bf16.xpose.msra.mxu0 %v82
  %99 = vmatprep.subr.bf16.mxu0 0
  %100 = vmatpush1.bf16.xpose.msra.mxu0 %v79
  %101 = vmatprep.subr.bf16.mxu0 0
  %102 = vmatpush1.bf16.xpose.msra.mxu0 %v76
  %103 = vmatprep.subr.bf16.mxu0 0
  %104 = vmatpush2.bf16.xpose.msra.mxu0 0
  %105 = vmatprep.subr.bf16.mxu0 0
  %106 = vmatpush2.bf16.xpose.msra.mxu0 0
  %107 = vmatprep.subr.bf16.mxu0 0
  %108 = vmatpush2.bf16.xpose.msra.mxu0 0
  %109 = vmatprep.subr.bf16.mxu0 0
  %110 = vmatpush2.bf16.xpose.msra.mxu0 0
  %111 = vmatprep.subr.bf16.mxu0 0
  %112 = vmatpush2.bf16.xpose.msra.mxu0 0
  %113 = vmatprep.subr.bf16.mxu0 0
  %114 = vmatpush2.bf16.xpose.msra.mxu0 0
  %115 = vmatprep.subr.bf16.mxu0 0
  %116 = vmatpush2.bf16.xpose.msra.mxu0 0
  %117 = vmatprep.subr.bf16.mxu0 0
  %118 = vmatpush2.bf16.xpose.msra.mxu0 0
  %119 = vmatprep.mubr.bf16.mxu0 0
  %120 = vmatmul.mubr.bf16.gmra.mxu0 %v73
  %v121 = vpop.f32.mrf.mxu0
  %v122 = vadd.f32 %v44, %v121
  %v123 = vpop.f32.mrf.mxu0
  %v124 = vpop.f32.mrf.mxu0
  %v125 = vadd.f32 %v44, %v124
  %v126 = vpop.f32.mrf.mxu0
  %127 = vdwg.mxu0
  %v128 = vmax.f32 %v122, 0.0
  %v129 = vmax.f32 %v125, 0.0
  %v130 = vld [vmem:[%s3] sm:$0xf]
  %v131 = vld [vmem:[%s3 + $0x4] sm:$0xf]
  %v132 = vld [vmem:[%s3 + $0x8] sm:$0xf]
  %v133 = vld [vmem:[%s3 + $0xc] sm:$0xf]
  %v134 = vpack.c.bf16 %v129, %v128
  %v135 = vld [vmem:[%s4] sm:$0x1]
  %v137 = vlaneseq
  %v138 = vshrl.u32 %v137, 7
  %v139 = vsub.s32 0, %v138
  %v140 = vrot.slane %v135, %v139
  %v146 = vunpack.c.l.b16 %v130
  %v147 = vunpack.c.l.b16 %v131
  %v148 = vunpack.c.l.b16 %v132
  %v149 = vunpack.c.l.b16 %v133
  %v150 = vpack.c.b16 %v147, %v146
  %v151 = vpack.c.b16 %v149, %v148
  %vm152 = vcmask 523264
  %v154 = vsel %vm152, %v134, 0
  %v157 = vsel %vm152, %v150, 0
  %v160 = vsel %vm152, %v151, 0
  %162 = vmatprep.subr.bf16.mxu0 0
  %163 = vmatpush1.bf16.xpose.msra.mxu0 0
  %164 = vmatprep.subr.bf16.mxu0 0
  %165 = vmatpush1.bf16.xpose.msra.mxu0 0
  %166 = vmatprep.subr.bf16.mxu0 0
  %167 = vmatpush1.bf16.xpose.msra.mxu0 0
  %168 = vmatprep.subr.bf16.mxu0 0
  %169 = vmatpush1.bf16.xpose.msra.mxu0 0
  %170 = vmatprep.subr.bf16.mxu0 0
  %171 = vmatpush1.bf16.xpose.msra.mxu0 0
  %172 = vmatprep.subr.bf16.mxu0 0
  %173 = vmatpush1.bf16.xpose.msra.mxu0 0
  %174 = vmatprep.subr.bf16.mxu0 0
  %175 = vmatpush1.bf16.xpose.msra.mxu0 %v160
  %176 = vmatprep.subr.bf16.mxu0 0
  %177 = vmatpush1.bf16.xpose.msra.mxu0 %v157
  %178 = vmatprep.subr.bf16.mxu0 0
  %179 = vmatpush2.bf16.xpose.msra.mxu0 0
  %180 = vmatprep.subr.bf16.mxu0 0
  %181 = vmatpush2.bf16.xpose.msra.mxu0 0
  %182 = vmatprep.subr.bf16.mxu0 0
  %183 = vmatpush2.bf16.xpose.msra.mxu0 0
  %184 = vmatprep.subr.bf16.mxu0 0
  %185 = vmatpush2.bf16.xpose.msra.mxu0 0
  %186 = vmatprep.subr.bf16.mxu0 0
  %187 = vmatpush2.bf16.xpose.msra.mxu0 0
  %188 = vmatprep.subr.bf16.mxu0 0
  %189 = vmatpush2.bf16.xpose.msra.mxu0 0
  %190 = vmatprep.subr.bf16.mxu0 0
  %191 = vmatpush2.bf16.xpose.msra.mxu0 0
  %192 = vmatprep.subr.bf16.mxu0 0
  %193 = vmatpush2.bf16.xpose.msra.mxu0 0
  %194 = vmatprep.mubr.bf16.mxu0 0
  %195 = vmatmul.mubr.bf16.gmra.mxu0 %v154
  %v196 = vpop.f32.mrf.mxu0
  %v197 = vadd.f32 %v140, %v196
  %v198 = vpop.f32.mrf.mxu0
  %v199 = vpop.f32.mrf.mxu0
  %v200 = vadd.f32 %v140, %v199
  %v201 = vpop.f32.mrf.mxu0
  %202 = vdwg.mxu0
  %v203 = vld [vmem:[%s5] sm:$0x1]
  %v204 = vld [vmem:[%s6] sm:$0x1]
  %v205 = vadd.f32 %v197, %v29
  %v206 = vadd.f32 %v200, %v30
  %v207 = vsel %vm71, %v205, 0.0
  %208 = vadd.xlane.f32.xlu0 %v207
  %v209 = vpop.xlane.xlu0 %208
  %v210 = vsel %vm71, %v206, 0.0
  %211 = vadd.xlane.f32.xlu0 %v210
  %v212 = vpop.xlane.xlu0 %211
  %v213 = vrcp.pop 32.0
  %v214 = vmul.f32 %v209, %v213
  %v215 = vmul.f32 %v212, %v213
  %v216 = vsub.f32 %v205, %v214
  %v217 = vsub.f32 %v206, %v215
  %v218 = vmul.f32 %v216, %v216
  %v219 = vmul.f32 %v217, %v217
  %v220 = vsel %vm71, %v218, 0.0
  %221 = vadd.xlane.f32.xlu0 %v220
  %v222 = vpop.xlane.xlu0 %221
  %v223 = vsel %vm71, %v219, 0.0
  %224 = vadd.xlane.f32.xlu0 %v223
  %v225 = vpop.xlane.xlu0 %224
  %v226 = vmul.f32 %v222, %v213
  %v227 = vmul.f32 %v225, %v213
  %v228 = vadd.f32 %v226, 1e-05
  %v229 = vadd.f32 %v227, 1e-05
  %v230 = vrsqrt.pop %v228
  %v231 = vrsqrt.pop %v229
  %v232 = vmul.f32 %v216, %v230
  %v233 = vmul.f32 %v217, %v231
  %v235 = vlaneseq
  %v236 = vshrl.u32 %v235, 7
  %v237 = vsub.s32 0, %v236
  %v238 = vrot.slane %v203, %v237
  %v240 = vmul.f32 %v232, %v238
  %v241 = vmul.f32 %v233, %v238
  %v243 = vlaneseq
  %v244 = vshrl.u32 %v243, 7
  %v245 = vsub.s32 0, %v244
  %v246 = vrot.slane %v204, %v245
  %v248 = vadd.f32 %v240, %v246
  %v249 = vadd.f32 %v241, %v246
  %v250 = vpack.c.bf16 %v249, %v248
  %v252 = vunpack.c.l.b16 %v250
  %v253 = vunpack.c.h.b16 %v250
  %v254 = vpack.c.b16 %v252, %v252
  %v255 = vpack.c.b16 %v253, %v253
  %vm258 = vcmask 257024
  %259 = vst.msk [vmem:[%s7] sm:$0xf] %vm258, %v254
  %260 = vst.msk [vmem:[%s7 + $0x4] sm:$0xf] %vm258, %v255
  // Predicated region
  $region30: #{_lambda_.7} parent=0 // pred_check
    _
  $region31: #{_lambda_.7} parent=0 // pred_check_branch
    %262 = sbr.rel (0) target = $region33
  $region32: #{_lambda_.7} parent=0 // pred_region
    _
  $region33: #{_lambda_.7} parent=0 // pred_fallthru
    _
  // Predicated region
  $region34: #{_lambda_.7} parent=0 // pred_check
    _
  $region35: #{_lambda_.7} parent=0 // pred_check_branch
    %264 = sbr.rel (0) target = $region37
  $region36: #{_lambda_.7} parent=0 // pred_region
    _
  $region37: #{_lambda_.7} parent=0 // pred_fallthru
    _

// kernel: _lambda_.9
$region0: #{_lambda_.9}
  #allocation0 [shape = 'u32[]', space=smem, size = 0x4, offset = 0x4, fixed_abs, tag = 'smem constant byte address 0x4 - core index']
  #allocation1 [shape = 'u32[144,128]{1,0:T(1,128)}', space=vmem, size = 0x12000, scoped, tag = 'internal scratch']
  %s0 = inlined_call_operand.vmem [shape: bf16[16,32], index: 0, kind: input, shape index: {}]
  %s1 = inlined_call_operand.vmem [shape: bf16[64,32], index: 1, kind: input, shape index: {}]
  %s2 = inlined_call_operand.vmem [shape: f32[1,64], index: 2, kind: input, shape index: {}]
  %s3 = inlined_call_operand.vmem [shape: bf16[32,64], index: 3, kind: input, shape index: {}]
  %s4 = inlined_call_operand.vmem [shape: f32[1,32], index: 4, kind: input, shape index: {}]
  %s5 = inlined_call_operand.vmem [shape: f32[1,32], index: 5, kind: input, shape index: {}]
  %s6 = inlined_call_operand.vmem [shape: f32[1,32], index: 6, kind: input, shape index: {}]
  %s7 = inlined_call_operand.vmem [shape: f32[16,32], index: 7, kind: output, shape index: {}]
  %s8 = sld [smem:[#allocation0]]
  $region38: #{_lambda_.9} parent=0
    _
  %s10 = ssub.s32 1, %s8
  %s11 = scalar_select 0, %s10, %s8
  // Predicated region
  $region2: #{_lambda_.9} parent=0 // pred_check
    _
  $region3: #{_lambda_.9} parent=0 // pred_check_branch
    %13 = sbr.rel (0) target = $region5
  $region4: #{_lambda_.9} parent=0 // pred_region
    _
  $region5: #{_lambda_.9} parent=0 // pred_fallthru
    _
  // Predicated region
  $region6: #{_lambda_.9} parent=0 // pred_check
    _
  $region7: #{_lambda_.9} parent=0 // pred_check_branch
    %15 = sbr.rel (0) target = $region9
  $region8: #{_lambda_.9} parent=0 // pred_region
    _
  $region9: #{_lambda_.9} parent=0 // pred_fallthru
    _
  // Predicated region
  $region10: #{_lambda_.9} parent=0 // pred_check
    _
  $region11: #{_lambda_.9} parent=0 // pred_check_branch
    %17 = sbr.rel (0) target = $region13
  $region12: #{_lambda_.9} parent=0 // pred_region
    _
  $region13: #{_lambda_.9} parent=0 // pred_fallthru
    _
  // Predicated region
  $region14: #{_lambda_.9} parent=0 // pred_check
    _
  $region15: #{_lambda_.9} parent=0 // pred_check_branch
    %19 = sbr.rel (0) target = $region17
  $region16: #{_lambda_.9} parent=0 // pred_region
    _
  $region17: #{_lambda_.9} parent=0 // pred_fallthru
    _
  // Predicated region
  $region18: #{_lambda_.9} parent=0 // pred_check
    _
  $region19: #{_lambda_.9} parent=0 // pred_check_branch
    %21 = sbr.rel (0) target = $region21
  $region20: #{_lambda_.9} parent=0 // pred_region
    _
  $region21: #{_lambda_.9} parent=0 // pred_fallthru
    _
  // Predicated region
  $region22: #{_lambda_.9} parent=0 // pred_check
    _
  $region23: #{_lambda_.9} parent=0 // pred_check_branch
    %23 = sbr.rel (0) target = $region25
  $region24: #{_lambda_.9} parent=0 // pred_region
    _
  $region25: #{_lambda_.9} parent=0 // pred_fallthru
    _
  // Predicated region
  $region26: #{_lambda_.9} parent=0 // pred_check
    _
  $region27: #{_lambda_.9} parent=0 // pred_check_branch
    %25 = sbr.rel (0) target = $region29
  $region28: #{_lambda_.9} parent=0 // pred_region
    _
  $region29: #{_lambda_.9} parent=0 // pred_fallthru
    _
  %v27 = vld [vmem:[%s0] sm:$0xf]
  %v28 = vld [vmem:[%s0 + $0x4] sm:$0xf]
  %v29 = vunpack.c.l.bf16 %v27
  %v30 = vunpack.c.l.bf16 %v28
  %v31 = vld [vmem:[%s1] sm:$0xf]
  %v32 = vld [vmem:[%s1 + $0x4] sm:$0xf]
  %v33 = vld [vmem:[%s1 + $0x8] sm:$0xf]
  %v34 = vld [vmem:[%s1 + $0xc] sm:$0xf]
  %v35 = vld [vmem:[%s1 + $0x10] sm:$0xf]
  %v36 = vld [vmem:[%s1 + $0x14] sm:$0xf]
  %v37 = vld [vmem:[%s1 + $0x18] sm:$0xf]
  %v38 = vld [vmem:[%s1 + $0x1c] sm:$0xf]
  %v39 = vld [vmem:[%s2] sm:$0x1]
  %v41 = vlaneseq
  %v42 = vshrl.u32 %v41, 7
  %v43 = vsub.s32 0, %v42
  %v44 = vrot.slane %v39, %v43
  %v48 = vunpack.c.l.b16 %v27
  %v49 = vunpack.c.l.b16 %v28
  %v50 = vpack.c.b16 %v49, %v48
  %v59 = vunpack.c.l.b16 %v31
  %v60 = vunpack.c.l.b16 %v32
  %v61 = vunpack.c.l.b16 %v33
  %v62 = vunpack.c.l.b16 %v34
  %v63 = vunpack.c.l.b16 %v35
  %v64 = vunpack.c.l.b16 %v36
  %v65 = vunpack.c.l.b16 %v37
  %v66 = vunpack.c.l.b16 %v38
  %v67 = vpack.c.b16 %v60, %v59
  %v68 = vpack.c.b16 %v62, %v61
  %v69 = vpack.c.b16 %v64, %v63
  %v70 = vpack.c.b16 %v66, %v65
  %vm71 = vcmask 261120
  %v73 = vsel %vm71, %v50, 0
  %v76 = vsel %vm71, %v67, 0
  %v79 = vsel %vm71, %v68, 0
  %v82 = vsel %vm71, %v69, 0
  %v85 = vsel %vm71, %v70, 0
  %87 = vmatprep.subr.bf16.mxu0 0
  %88 = vmatpush1.bf16.xpose.msra.mxu0 0
  %89 = vmatprep.subr.bf16.mxu0 0
  %90 = vmatpush1.bf16.xpose.msra.mxu0 0
  %91 = vmatprep.subr.bf16.mxu0 0
  %92 = vmatpush1.bf16.xpose.msra.mxu0 0
  %93 = vmatprep.subr.bf16.mxu0 0
  %94 = vmatpush1.bf16.xpose.msra.mxu0 0
  %95 = vmatprep.subr.bf16.mxu0 0
  %96 = vmatpush1.bf16.xpose.msra.mxu0 %v85
  %97 = vmatprep.subr.bf16.mxu0 0
  %98 = vmatpush1.bf16.xpose.msra.mxu0 %v82
  %99 = vmatprep.subr.bf16.mxu0 0
  %100 = vmatpush1.bf16.xpose.msra.mxu0 %v79
  %101 = vmatprep.subr.bf16.mxu0 0
  %102 = vmatpush1.bf16.xpose.msra.mxu0 %v76
  %103 = vmatprep.subr.bf16.mxu0 0
  %104 = vmatpush2.bf16.xpose.msra.mxu0 0
  %105 = vmatprep.subr.bf16.mxu0 0
  %106 = vmatpush2.bf16.xpose.msra.mxu0 0
  %107 = vmatprep.subr.bf16.mxu0 0
  %108 = vmatpush2.bf16.xpose.msra.mxu0 0
  %109 = vmatprep.subr.bf16.mxu0 0
  %110 = vmatpush2.bf16.xpose.msra.mxu0 0
  %111 = vmatprep.subr.bf16.mxu0 0
  %112 = vmatpush2.bf16.xpose.msra.mxu0 0
  %113 = vmatprep.subr.bf16.mxu0 0
  %114 = vmatpush2.bf16.xpose.msra.mxu0 0
  %115 = vmatprep.subr.bf16.mxu0 0
  %116 = vmatpush2.bf16.xpose.msra.mxu0 0
  %117 = vmatprep.subr.bf16.mxu0 0
  %118 = vmatpush2.bf16.xpose.msra.mxu0 0
  %119 = vmatprep.mubr.bf16.mxu0 0
  %120 = vmatmul.mubr.bf16.gmra.mxu0 %v73
  %v121 = vpop.f32.mrf.mxu0
  %v122 = vadd.f32 %v44, %v121
  %v123 = vpop.f32.mrf.mxu0
  %v124 = vpop.f32.mrf.mxu0
  %v125 = vadd.f32 %v44, %v124
  %v126 = vpop.f32.mrf.mxu0
  %127 = vdwg.mxu0
  %v128 = vmax.f32 %v122, 0.0
  %v129 = vmax.f32 %v125, 0.0
  %v130 = vld [vmem:[%s3] sm:$0xf]
  %v131 = vld [vmem:[%s3 + $0x4] sm:$0xf]
  %v132 = vld [vmem:[%s3 + $0x8] sm:$0xf]
  %v133 = vld [vmem:[%s3 + $0xc] sm:$0xf]
  %v134 = vpack.c.bf16 %v129, %v128
  %v135 = vld [vmem:[%s4] sm:$0x1]
  %v137 = vlaneseq
  %v138 = vshrl.u32 %v137, 7
  %v139 = vsub.s32 0, %v138
  %v140 = vrot.slane %v135, %v139
  %v146 = vunpack.c.l.b16 %v130
  %v147 = vunpack.c.l.b16 %v131
  %v148 = vunpack.c.l.b16 %v132
  %v149 = vunpack.c.l.b16 %v133
  %v150 = vpack.c.b16 %v147, %v146
  %v151 = vpack.c.b16 %v149, %v148
  %vm152 = vcmask 523264
  %v154 = vsel %vm152, %v134, 0
  %v157 = vsel %vm152, %v150, 0
  %v160 = vsel %vm152, %v151, 0
  %162 = vmatprep.subr.bf16.mxu0 0
  %163 = vmatpush1.bf16.xpose.msra.mxu0 0
  %164 = vmatprep.subr.bf16.mxu0 0
  %165 = vmatpush1.bf16.xpose.msra.mxu0 0
  %166 = vmatprep.subr.bf16.mxu0 0
  %167 = vmatpush1.bf16.xpose.msra.mxu0 0
  %168 = vmatprep.subr.bf16.mxu0 0
  %169 = vmatpush1.bf16.xpose.msra.mxu0 0
  %170 = vmatprep.subr.bf16.mxu0 0
  %171 = vmatpush1.bf16.xpose.msra.mxu0 0
  %172 = vmatprep.subr.bf16.mxu0 0
  %173 = vmatpush1.bf16.xpose.msra.mxu0 0
  %174 = vmatprep.subr.bf16.mxu0 0
  %175 = vmatpush1.bf16.xpose.msra.mxu0 %v160
  %176 = vmatprep.subr.bf16.mxu0 0
  %177 = vmatpush1.bf16.xpose.msra.mxu0 %v157
  %178 = vmatprep.subr.bf16.mxu0 0
  %179 = vmatpush2.bf16.xpose.msra.mxu0 0
  %180 = vmatprep.subr.bf16.mxu0 0
  %181 = vmatpush2.bf16.xpose.msra.mxu0 0
  %182 = vmatprep.subr.bf16.mxu0 0
  %183 = vmatpush2.bf16.xpose.msra.mxu0 0
  %184 = vmatprep.subr.bf16.mxu0 0
  %185 = vmatpush2.bf16.xpose.msra.mxu0 0
  %186 = vmatprep.subr.bf16.mxu0 0
  %187 = vmatpush2.bf16.xpose.msra.mxu0 0
  %188 = vmatprep.subr.bf16.mxu0 0
  %189 = vmatpush2.bf16.xpose.msra.mxu0 0
  %190 = vmatprep.subr.bf16.mxu0 0
  %191 = vmatpush2.bf16.xpose.msra.mxu0 0
  %192 = vmatprep.subr.bf16.mxu0 0
  %193 = vmatpush2.bf16.xpose.msra.mxu0 0
  %194 = vmatprep.mubr.bf16.mxu0 0
  %195 = vmatmul.mubr.bf16.gmra.mxu0 %v154
  %v196 = vpop.f32.mrf.mxu0
  %v197 = vadd.f32 %v140, %v196
  %v198 = vpop.f32.mrf.mxu0
  %v199 = vpop.f32.mrf.mxu0
  %v200 = vadd.f32 %v140, %v199
  %v201 = vpop.f32.mrf.mxu0
  %202 = vdwg.mxu0
  %v203 = vld [vmem:[%s5] sm:$0x1]
  %v204 = vld [vmem:[%s6] sm:$0x1]
  %v205 = vadd.f32 %v197, %v29
  %v206 = vadd.f32 %v200, %v30
  %v207 = vsel %vm71, %v205, 0.0
  %208 = vadd.xlane.f32.xlu0 %v207
  %v209 = vpop.xlane.xlu0 %208
  %v210 = vsel %vm71, %v206, 0.0
  %211 = vadd.xlane.f32.xlu0 %v210
  %v212 = vpop.xlane.xlu0 %211
  %v213 = vrcp.pop 32.0
  %v214 = vmul.f32 %v209, %v213
  %v215 = vmul.f32 %v212, %v213
  %v216 = vsub.f32 %v205, %v214
  %v217 = vsub.f32 %v206, %v215
  %v218 = vmul.f32 %v216, %v216
  %v219 = vmul.f32 %v217, %v217
  %v220 = vsel %vm71, %v218, 0.0
  %221 = vadd.xlane.f32.xlu0 %v220
  %v222 = vpop.xlane.xlu0 %221
  %v223 = vsel %vm71, %v219, 0.0
  %224 = vadd.xlane.f32.xlu0 %v223
  %v225 = vpop.xlane.xlu0 %224
  %v226 = vmul.f32 %v222, %v213
  %v227 = vmul.f32 %v225, %v213
  %v228 = vadd.f32 %v226, 1e-05
  %v229 = vadd.f32 %v227, 1e-05
  %v230 = vrsqrt.pop %v228
  %v231 = vrsqrt.pop %v229
  %v232 = vmul.f32 %v216, %v230
  %v233 = vmul.f32 %v217, %v231
  %v235 = vlaneseq
  %v236 = vshrl.u32 %v235, 7
  %v237 = vsub.s32 0, %v236
  %v238 = vrot.slane %v203, %v237
  %v240 = vmul.f32 %v232, %v238
  %v241 = vmul.f32 %v233, %v238
  %v243 = vlaneseq
  %v244 = vshrl.u32 %v243, 7
  %v245 = vsub.s32 0, %v244
  %v246 = vrot.slane %v204, %v245
  %v248 = vadd.f32 %v240, %v246
  %v249 = vadd.f32 %v241, %v246
  %250 = vst.msk [vmem:[%s7] sm:$0xff] %vm71, %v248
  %251 = vst.msk [vmem:[%s7 + $0x8] sm:$0xff] %vm71, %v249
  // Predicated region
  $region30: #{_lambda_.9} parent=0 // pred_check
    _
  $region31: #{_lambda_.9} parent=0 // pred_check_branch
    %253 = sbr.rel (0) target = $region33
  $region32: #{_lambda_.9} parent=0 // pred_region
    _
  $region33: #{_lambda_.9} parent=0 // pred_fallthru
    _
  // Predicated region
  $region34: #{_lambda_.9} parent=0 // pred_check
    _
  $region35: #{_lambda_.9} parent=0 // pred_check_branch
    %255 = sbr.rel (0) target = $region37
  $region36: #{_lambda_.9} parent=0 // pred_region
    _
  $region37: #{_lambda_.9} parent=0 // pred_fallthru
    _

// kernel: _lambda_.6
$region0: #{_lambda_.6}
  #allocation0 [shape = 'u32[]', space=smem, size = 0x4, offset = 0x4, fixed_abs, tag = 'smem constant byte address 0x4 - core index']
  #allocation1 [shape = 'u32[144,128]{1,0:T(1,128)}', space=vmem, size = 0x12000, scoped, tag = 'internal scratch']
  %s0 = inlined_call_operand.vmem [shape: bf16[2,8,32], index: 0, kind: input, shape index: {}]
  %s1 = inlined_call_operand.vmem [shape: bf16[2,8,64], index: 1, kind: input, shape index: {}]
  %s2 = inlined_call_operand.vmem [shape: bf16[96,32], index: 2, kind: input, shape index: {}]
  %s3 = inlined_call_operand.vmem [shape: f32[1,96], index: 3, kind: input, shape index: {}]
  %s4 = inlined_call_operand.vmem [shape: bf16[4,32,8], index: 4, kind: input, shape index: {}]
  %s5 = inlined_call_operand.vmem [shape: f32[1,32], index: 5, kind: input, shape index: {}]
  %s6 = inlined_call_operand.vmem [shape: f32[1,32], index: 6, kind: input, shape index: {}]
  %s7 = inlined_call_operand.vmem [shape: f32[1,32], index: 7, kind: input, shape index: {}]
  %s8 = inlined_call_operand.vmem [shape: bf16[32,32], index: 8, kind: input, shape index: {}]
  %s9 = inlined_call_operand.vmem [shape: f32[1,32], index: 9, kind: input, shape index: {}]
  %s10 = inlined_call_operand.vmem [shape: bf16[4,32,8], index: 10, kind: input, shape index: {}]
  %s11 = inlined_call_operand.vmem [shape: f32[1,32], index: 11, kind: input, shape index: {}]
  %s12 = inlined_call_operand.vmem [shape: f32[1,32], index: 12, kind: input, shape index: {}]
  %s13 = inlined_call_operand.vmem [shape: f32[1,32], index: 13, kind: input, shape index: {}]
  %s14 = inlined_call_operand.vmem [shape: bf16[2,8,32], index: 14, kind: output, shape index: {}]
  %s15 = sld [smem:[#allocation0]]
  $region89: #{_lambda_.6} parent=0
    _
  %s17 = ssub.s32 1, %s15
  %s18 = scalar_select 0, %s17, %s15
  loop: start=0, step=1, limit=4
  $region2: #{_lambda_.6} parent=0 // loop_pre_header
    _
  $region3: #{_lambda_.6} parent=0 // loop_header
    %s20 = sphi 0, %s24
    %p21 = scmp.ge.s32.totalorder %s20, 4
    %s30 = sphi 0, %s32
    %s33 = sphi 0, %s30
    %s34 = sphi 0, %s33
    %s50 = sphi 0, %s34
    %s56 = sphi 0, %s58
    %s59 = sphi 0, %s56
    %s60 = sphi 0, %s59
    %s76 = sphi 0, %s60
    %s80 = sphi 0, %s80
    %s82 = sphi 0, %s80
    %s83 = sphi 0, %s82
    %s97 = sphi 0, %s83
    %s101 = sphi 0, %s101
    %s103 = sphi 0, %s101
    %s104 = sphi 0, %s103
    %s118 = sphi 0, %s104
    %s122 = sphi 0, %s122
    %s124 = sphi 0, %s122
    %s125 = sphi 0, %s124
    %s139 = sphi 0, %s125
    %s143 = sphi 0, %s143
    %s145 = sphi 0, %s143
    %s146 = sphi 0, %s145
    %s160 = sphi 0, %s146
    %s164 = sphi 0, %s164
    %s166 = sphi 0, %s164
    %s167 = sphi 0, %s166
    %s181 = sphi 0, %s167
    %s185 = sphi 0, %s185
    %s187 = sphi 0, %s185
    %s188 = sphi 0, %s187
    %s202 = sphi 0, %s188
    %s206 = sphi 0, %s206
    %s208 = sphi 0, %s206
    %s209 = sphi 0, %s208
    %s223 = sphi 0, %s209
    %s227 = sphi 0, %s227
    %s229 = sphi 0, %s227
    %s230 = sphi 0, %s229
    %s244 = sphi 0, %s230
    %s248 = sphi 0, %s248
    %s250 = sphi 0, %s248
    %s251 = sphi 0, %s250
    %s265 = sphi 0, %s251
    %s269 = sphi 0, %s269
    %s271 = sphi 0, %s269
    %s272 = sphi 0, %s271
    %s286 = sphi 0, %s272
    %s290 = sphi 0, %s290
    %s292 = sphi 0, %s290
    %s293 = sphi 0, %s292
    %s307 = sphi 0, %s293
    %s311 = sphi 0, %s311
    %s313 = sphi 0, %s311
    %s314 = sphi 0, %s313
    %s328 = sphi 0, %s314
    %s334 = sphi 0, %s336
    %s337 = sphi 0, %s334
    %s338 = sphi 0, %s337
    %s354 = sphi 0, %s338
  $region4: #{_lambda_.6} parent=0 // loop_header_branch
    %23 = sbr.rel (%p21) target = $region8
  $region5: #{_lambda_.6} parent=0 // loop_body
    %s25 = ssub.s32 %s20, 1
    %s26 = ssub.s32 %s20, 2
    %s27 = sadd.s32 %s20, 1
    %s28 = ssub.s32 %s20, %s27
    %p29 = scmp.eq.s32.totalorder %s28, 0
    %s31 = sadd.s32 %s30, 1
    %s32 = scalar_select %p29, %s30, %s31
    %p35 = pneg %p29
    %p36 = scmp.eq.s32.totalorder %s20, 1
    %p37 = por %p35, %p36
    %p38 = scmp.ne.s32.totalorder %s30, %s33
    %p39 = scmp.eq.s32.totalorder %s20, 0
    %p40 = por %p38, %p39
    %p41 = scmp.ne.s32.totalorder %s30, %s33
    %p42 = scmp.eq.s32.totalorder %s25, 1
    %p43 = por %p41, %p42
    %p44 = scmp.ne.s32.totalorder %s33, %s34
    %p45 = scmp.eq.s32.totalorder %s25, 0
    %p46 = por %p44, %p45
    %p47 = scmp.ne.s32.totalorder %s33, %s34
    %p48 = scmp.eq.s32.totalorder %s26, 1
    %p49 = por %p47, %p48
    %p51 = scmp.ne.s32.totalorder %s34, %s50
    %p52 = scmp.eq.s32.totalorder %s26, 0
    %p53 = por %p51, %p52
    %s54 = ssub.s32 %s20, %s27
    %p55 = scmp.eq.s32.totalorder %s54, 0
    %s57 = sadd.s32 %s56, 1
    %s58 = scalar_select %p55, %s56, %s57
    %p61 = pneg %p55
    %p62 = scmp.eq.s32.totalorder %s20, 1
    %p63 = por %p61, %p62
    %p64 = scmp.ne.s32.totalorder %s56, %s59
    %p65 = scmp.eq.s32.totalorder %s20, 0
    %p66 = por %p64, %p65
    %p67 = scmp.ne.s32.totalorder %s56, %s59
    %p68 = scmp.eq.s32.totalorder %s25, 1
    %p69 = por %p67, %p68
    %p70 = scmp.ne.s32.totalorder %s59, %s60
    %p71 = scmp.eq.s32.totalorder %s25, 0
    %p72 = por %p70, %p71
    %p73 = scmp.ne.s32.totalorder %s59, %s60
    %p74 = scmp.eq.s32.totalorder %s26, 1
    %p75 = por %p73, %p74
    %p77 = scmp.ne.s32.totalorder %s60, %s76
    %p78 = scmp.eq.s32.totalorder %s26, 0
    %p79 = por %p77, %p78
    %s81 = sadd.s32 %s80, 1
    %p84 = scmp.eq.s32.totalorder %s20, 1
    %p85 = scmp.ne.s32.totalorder %s80, %s82
    %p86 = scmp.eq.s32.totalorder %s20, 0
    %p87 = por %p85, %p86
    %p88 = scmp.ne.s32.totalorder %s80, %s82
    %p89 = scmp.eq.s32.totalorder %s25, 1
    %p90 = por %p88, %p89
    %p91 = scmp.ne.s32.totalorder %s82, %s83
    %p92 = scmp.eq.s32.totalorder %s25, 0
    %p93 = por %p91, %p92
    %p94 = scmp.ne.s32.totalorder %s82, %s83
    %p95 = scmp.eq.s32.totalorder %s26, 1
    %p96 = por %p94, %p95
    %p98 = scmp.ne.s32.totalorder %s83, %s97
    %p99 = scmp.eq.s32.totalorder %s26, 0
    %p100 = por %p98, %p99
    %s102 = sadd.s32 %s101, 1
    %p105 = scmp.eq.s32.totalorder %s20, 1
    %p106 = scmp.ne.s32.totalorder %s101, %s103
    %p107 = scmp.eq.s32.totalorder %s20, 0
    %p108 = por %p106, %p107
    %p109 = scmp.ne.s32.totalorder %s101, %s103
    %p110 = scmp.eq.s32.totalorder %s25, 1
    %p111 = por %p109, %p110
    %p112 = scmp.ne.s32.totalorder %s103, %s104
    %p113 = scmp.eq.s32.totalorder %s25, 0
    %p114 = por %p112, %p113
    %p115 = scmp.ne.s32.totalorder %s103, %s104
    %p116 = scmp.eq.s32.totalorder %s26, 1
    %p117 = por %p115, %p116
    %p119 = scmp.ne.s32.totalorder %s104, %s118
    %p120 = scmp.eq.s32.totalorder %s26, 0
    %p121 = por %p119, %p120
    %s123 = sadd.s32 %s122, 1
    %p126 = scmp.eq.s32.totalorder %s20, 1
    %p127 = scmp.ne.s32.totalorder %s122, %s124
    %p128 = scmp.eq.s32.totalorder %s20, 0
    %p129 = por %p127, %p128
    %p130 = scmp.ne.s32.totalorder %s122, %s124
    %p131 = scmp.eq.s32.totalorder %s25, 1
    %p132 = por %p130, %p131
    %p133 = scmp.ne.s32.totalorder %s124, %s125
    %p134 = scmp.eq.s32.totalorder %s25, 0
    %p135 = por %p133, %p134
    %p136 = scmp.ne.s32.totalorder %s124, %s125
    %p137 = scmp.eq.s32.totalorder %s26, 1
    %p138 = por %p136, %p137
    %p140 = scmp.ne.s32.totalorder %s125, %s139
    %p141 = scmp.eq.s32.totalorder %s26, 0
    %p142 = por %p140, %p141
    %s144 = sadd.s32 %s143, 1
    %p147 = scmp.eq.s32.totalorder %s20, 1
    %p148 = scmp.ne.s32.totalorder %s143, %s145
    %p149 = scmp.eq.s32.totalorder %s20, 0
    %p150 = por %p148, %p149
    %p151 = scmp.ne.s32.totalorder %s143, %s145
    %p152 = scmp.eq.s32.totalorder %s25, 1
    %p153 = por %p151, %p152
    %p154 = scmp.ne.s32.totalorder %s145, %s146
    %p155 = scmp.eq.s32.totalorder %s25, 0
    %p156 = por %p154, %p155
    %p157 = scmp.ne.s32.totalorder %s145, %s146
    %p158 = scmp.eq.s32.totalorder %s26, 1
    %p159 = por %p157, %p158
    %p161 = scmp.ne.s32.totalorder %s146, %s160
    %p162 = scmp.eq.s32.totalorder %s26, 0
    %p163 = por %p161, %p162
    %s165 = sadd.s32 %s164, 1
    %p168 = scmp.eq.s32.totalorder %s20, 1
    %p169 = scmp.ne.s32.totalorder %s164, %s166
    %p170 = scmp.eq.s32.totalorder %s20, 0
    %p171 = por %p169, %p170
    %p172 = scmp.ne.s32.totalorder %s164, %s166
    %p173 = scmp.eq.s32.totalorder %s25, 1
    %p174 = por %p172, %p173
    %p175 = scmp.ne.s32.totalorder %s166, %s167
    %p176 = scmp.eq.s32.totalorder %s25, 0
    %p177 = por %p175, %p176
    %p178 = scmp.ne.s32.totalorder %s166, %s167
    %p179 = scmp.eq.s32.totalorder %s26, 1
    %p180 = por %p178, %p179
    %p182 = scmp.ne.s32.totalorder %s167, %s181
    %p183 = scmp.eq.s32.totalorder %s26, 0
    %p184 = por %p182, %p183
    %s186 = sadd.s32 %s185, 1
    %p189 = scmp.eq.s32.totalorder %s20, 1
    %p190 = scmp.ne.s32.totalorder %s185, %s187
    %p191 = scmp.eq.s32.totalorder %s20, 0
    %p192 = por %p190, %p191
    %p193 = scmp.ne.s32.totalorder %s185, %s187
    %p194 = scmp.eq.s32.totalorder %s25, 1
    %p195 = por %p193, %p194
    %p196 = scmp.ne.s32.totalorder %s187, %s188
    %p197 = scmp.eq.s32.totalorder %s25, 0
    %p198 = por %p196, %p197
    %p199 = scmp.ne.s32.totalorder %s187, %s188
    %p200 = scmp.eq.s32.totalorder %s26, 1
    %p201 = por %p199, %p200
    %p203 = scmp.ne.s32.totalorder %s188, %s202
    %p204 = scmp.eq.s32.totalorder %s26, 0
    %p205 = por %p203, %p204
    %s207 = sadd.s32 %s206, 1
    %p210 = scmp.eq.s32.totalorder %s20, 1
    %p211 = scmp.ne.s32.totalorder %s206, %s208
    %p212 = scmp.eq.s32.totalorder %s20, 0
    %p213 = por %p211, %p212
    %p214 = scmp.ne.s32.totalorder %s206, %s208
    %p215 = scmp.eq.s32.totalorder %s25, 1
    %p216 = por %p214, %p215
    %p217 = scmp.ne.s32.totalorder %s208, %s209
    %p218 = scmp.eq.s32.totalorder %s25, 0
    %p219 = por %p217, %p218
    %p220 = scmp.ne.s32.totalorder %s208, %s209
    %p221 = scmp.eq.s32.totalorder %s26, 1
    %p222 = por %p220, %p221
    %p224 = scmp.ne.s32.totalorder %s209, %s223
    %p225 = scmp.eq.s32.totalorder %s26, 0
    %p226 = por %p224, %p225
    %s228 = sadd.s32 %s227, 1
    %p231 = scmp.eq.s32.totalorder %s20, 1
    %p232 = scmp.ne.s32.totalorder %s227, %s229
    %p233 = scmp.eq.s32.totalorder %s20, 0
    %p234 = por %p232, %p233
    %p235 = scmp.ne.s32.totalorder %s227, %s229
    %p236 = scmp.eq.s32.totalorder %s25, 1
    %p237 = por %p235, %p236
    %p238 = scmp.ne.s32.totalorder %s229, %s230
    %p239 = scmp.eq.s32.totalorder %s25, 0
    %p240 = por %p238, %p239
    %p241 = scmp.ne.s32.totalorder %s229, %s230
    %p242 = scmp.eq.s32.totalorder %s26, 1
    %p243 = por %p241, %p242
    %p245 = scmp.ne.s32.totalorder %s230, %s244
    %p246 = scmp.eq.s32.totalorder %s26, 0
    %p247 = por %p245, %p246
    %s249 = sadd.s32 %s248, 1
    %p252 = scmp.eq.s32.totalorder %s20, 1
    %p253 = scmp.ne.s32.totalorder %s248, %s250
    %p254 = scmp.eq.s32.totalorder %s20, 0
    %p255 = por %p253, %p254
    %p256 = scmp.ne.s32.totalorder %s248, %s250
    %p257 = scmp.eq.s32.totalorder %s25, 1
    %p258 = por %p256, %p257
    %p259 = scmp.ne.s32.totalorder %s250, %s251
    %p260 = scmp.eq.s32.totalorder %s25, 0
    %p261 = por %p259, %p260
    %p262 = scmp.ne.s32.totalorder %s250, %s251
    %p263 = scmp.eq.s32.totalorder %s26, 1
    %p264 = por %p262, %p263
    %p266 = scmp.ne.s32.totalorder %s251, %s265
    %p267 = scmp.eq.s32.totalorder %s26, 0
    %p268 = por %p266, %p267
    %s270 = sadd.s32 %s269, 1
    %p273 = scmp.eq.s32.totalorder %s20, 1
    %p274 = scmp.ne.s32.totalorder %s269, %s271
    %p275 = scmp.eq.s32.totalorder %s20, 0
    %p276 = por %p274, %p275
    %p277 = scmp.ne.s32.totalorder %s269, %s271
    %p278 = scmp.eq.s32.totalorder %s25, 1
    %p279 = por %p277, %p278
    %p280 = scmp.ne.s32.totalorder %s271, %s272
    %p281 = scmp.eq.s32.totalorder %s25, 0
    %p282 = por %p280, %p281
    %p283 = scmp.ne.s32.totalorder %s271, %s272
    %p284 = scmp.eq.s32.totalorder %s26, 1
    %p285 = por %p283, %p284
    %p287 = scmp.ne.s32.totalorder %s272, %s286
    %p288 = scmp.eq.s32.totalorder %s26, 0
    %p289 = por %p287, %p288
    %s291 = sadd.s32 %s290, 1
    %p294 = scmp.eq.s32.totalorder %s20, 1
    %p295 = scmp.ne.s32.totalorder %s290, %s292
    %p296 = scmp.eq.s32.totalorder %s20, 0
    %p297 = por %p295, %p296
    %p298 = scmp.ne.s32.totalorder %s290, %s292
    %p299 = scmp.eq.s32.totalorder %s25, 1
    %p300 = por %p298, %p299
    %p301 = scmp.ne.s32.totalorder %s292, %s293
    %p302 = scmp.eq.s32.totalorder %s25, 0
    %p303 = por %p301, %p302
    %p304 = scmp.ne.s32.totalorder %s292, %s293
    %p305 = scmp.eq.s32.totalorder %s26, 1
    %p306 = por %p304, %p305
    %p308 = scmp.ne.s32.totalorder %s293, %s307
    %p309 = scmp.eq.s32.totalorder %s26, 0
    %p310 = por %p308, %p309
    %s312 = sadd.s32 %s311, 1
    %p315 = scmp.eq.s32.totalorder %s20, 1
    %p316 = scmp.ne.s32.totalorder %s311, %s313
    %p317 = scmp.eq.s32.totalorder %s20, 0
    %p318 = por %p316, %p317
    %p319 = scmp.ne.s32.totalorder %s311, %s313
    %p320 = scmp.eq.s32.totalorder %s25, 1
    %p321 = por %p319, %p320
    %p322 = scmp.ne.s32.totalorder %s313, %s314
    %p323 = scmp.eq.s32.totalorder %s25, 0
    %p324 = por %p322, %p323
    %p325 = scmp.ne.s32.totalorder %s313, %s314
    %p326 = scmp.eq.s32.totalorder %s26, 1
    %p327 = por %p325, %p326
    %p329 = scmp.ne.s32.totalorder %s314, %s328
    %p330 = scmp.eq.s32.totalorder %s26, 0
    %p331 = por %p329, %p330
    %s332 = ssub.s32 %s20, %s27
    %p333 = scmp.eq.s32.totalorder %s332, 0
    %s335 = sadd.s32 %s334, 1
    %s336 = scalar_select %p333, %s334, %s335
    %p339 = pneg %p333
    %p340 = scmp.eq.s32.totalorder %s20, 1
    %p341 = por %p339, %p340
    %p342 = scmp.ne.s32.totalorder %s334, %s337
    %p343 = scmp.eq.s32.totalorder %s20, 0
    %p344 = por %p342, %p343
    %p345 = scmp.ne.s32.totalorder %s334, %s337
    %p346 = scmp.eq.s32.totalorder %s25, 1
    %p347 = por %p345, %p346
    %p348 = scmp.ne.s32.totalorder %s337, %s338
    %p349 = scmp.eq.s32.totalorder %s25, 0
    %p350 = por %p348, %p349
    %p351 = scmp.ne.s32.totalorder %s337, %s338
    %p352 = scmp.eq.s32.totalorder %s26, 1
    %p353 = por %p351, %p352
    %p355 = scmp.ne.s32.totalorder %s338, %s354
    %p356 = scmp.eq.s32.totalorder %s26, 0
    %p357 = por %p355, %p356
    %p358 = scmp.le.s32.totalorder 1, %s20
    %p359 = scmp.lt.s32.totalorder %s20, 3
    %p360 = pnand %p358, %p359
    %p361 = pneg %p360
    // Predicated region
    $region9: #{_lambda_.6} parent=5 // pred_check
      _
    $region10: #{_lambda_.6} parent=5 // pred_check_branch
      %363 = sbr.rel (%p360) target = $region12
    $region11: #{_lambda_.6} parent=5 // pred_region
      %s364 = ssub.s32 %s20, 1
      // Predicated region
      $region13: #{_lambda_.6} parent=11 // pred_check
        %p365 = pneg %p93
      $region14: #{_lambda_.6} parent=11 // pred_check_branch
        %367 = sbr.rel (%p365) target = $region16
      $region15: #{_lambda_.6} parent=11 // pred_region
        _
      $region16: #{_lambda_.6} parent=11 // pred_fallthru
        _
      // Predicated region
      $region17: #{_lambda_.6} parent=11 // pred_check
        %p368 = pneg %p114
      $region18: #{_lambda_.6} parent=11 // pred_check_branch
        %370 = sbr.rel (%p368) target = $region20
      $region19: #{_lambda_.6} parent=11 // pred_region
        _
      $region20: #{_lambda_.6} parent=11 // pred_fallthru
        _
      // Predicated region
      $region21: #{_lambda_.6} parent=11 // pred_check
        %p371 = pneg %p135
      $region22: #{_lambda_.6} parent=11 // pred_check_branch
        %373 = sbr.rel (%p371) target = $region24
      $region23: #{_lambda_.6} parent=11 // pred_region
        _
      $region24: #{_lambda_.6} parent=11 // pred_fallthru
        _
      // Predicated region
      $region25: #{_lambda_.6} parent=11 // pred_check
        %p374 = pneg %p156
      $region26: #{_lambda_.6} parent=11 // pred_check_branch
        %376 = sbr.rel (%p374) target = $region28
      $region27: #{_lambda_.6} parent=11 // pred_region
        _
      $region28: #{_lambda_.6} parent=11 // pred_fallthru
        _
      // Predicated region
      $region29: #{_lambda_.6} parent=11 // pred_check
        %p377 = pneg %p177
      $region30: #{_lambda_.6} parent=11 // pred_check_branch
        %379 = sbr.rel (%p377) target = $region32
      $region31: #{_lambda_.6} parent=11 // pred_region
        _
      $region32: #{_lambda_.6} parent=11 // pred_fallthru
        _
      // Predicated region
      $region33: #{_lambda_.6} parent=11 // pred_check
        %p380 = pneg %p198
      $region34: #{_lambda_.6} parent=11 // pred_check_branch
        %382 = sbr.rel (%p380) target = $region36
      $region35: #{_lambda_.6} parent=11 // pred_region
        _
      $region36: #{_lambda_.6} parent=11 // pred_fallthru
        _
      // Predicated region
      $region37: #{_lambda_.6} parent=11 // pred_check
        %p383 = pneg %p219
      $region38: #{_lambda_.6} parent=11 // pred_check_branch
        %385 = sbr.rel (%p383) target = $region40
      $region39: #{_lambda_.6} parent=11 // pred_region
        _
      $region40: #{_lambda_.6} parent=11 // pred_fallthru
        _
      // Predicated region
      $region41: #{_lambda_.6} parent=11 // pred_check
        %p386 = pneg %p240
      $region42: #{_lambda_.6} parent=11 // pred_check_branch
        %388 = sbr.rel (%p386) target = $region44
      $region43: #{_lambda_.6} parent=11 // pred_region
        _
      $region44: #{_lambda_.6} parent=11 // pred_fallthru
        _
      // Predicated region
      $region45: #{_lambda_.6} parent=11 // pred_check
        %p389 = pneg %p261
      $region46: #{_lambda_.6} parent=11 // pred_check_branch
        %391 = sbr.rel (%p389) target = $region48
      $region47: #{_lambda_.6} parent=11 // pred_region
        _
      $region48: #{_lambda_.6} parent=11 // pred_fallthru
        _
      // Predicated region
      $region49: #{_lambda_.6} parent=11 // pred_check
        %p392 = pneg %p282
      $region50: #{_lambda_.6} parent=11 // pred_check_branch
        %394 = sbr.rel (%p392) target = $region52
      $region51: #{_lambda_.6} parent=11 // pred_region
        _
      $region52: #{_lambda_.6} parent=11 // pred_fallthru
        _
      // Predicated region
      $region53: #{_lambda_.6} parent=11 // pred_check
        %p395 = pneg %p303
      $region54: #{_lambda_.6} parent=11 // pred_check_branch
        %397 = sbr.rel (%p395) target = $region56
      $region55: #{_lambda_.6} parent=11 // pred_region
        _
      $region56: #{_lambda_.6} parent=11 // pred_fallthru
        _
      // Predicated region
      $region57: #{_lambda_.6} parent=11 // pred_check
        %p398 = pneg %p324
      $region58: #{_lambda_.6} parent=11 // pred_check_branch
        %400 = sbr.rel (%p398) target = $region60
      $region59: #{_lambda_.6} parent=11 // pred_region
        _
      $region60: #{_lambda_.6} parent=11 // pred_fallthru
        _
    $region12: #{_lambda_.6} parent=5 // pred_fallthru
      _
    %p401 = scmp.lt.s32.totalorder %s20, 2
    // Predicated region
    $region61: #{_lambda_.6} parent=5 // pred_check
      %p402 = pneg %p401
    $region62: #{_lambda_.6} parent=5 // pred_check_branch
      %404 = sbr.rel (%p402) target = $region64
    $region63: #{_lambda_.6} parent=5 // pred_region
      // Predicated region
      $region65: #{_lambda_.6} parent=63 // pred_check
        %p405 = pneg %p40
      $region66: #{_lambda_.6} parent=63 // pred_check_branch
        %407 = sbr.rel (%p405) target = $region68
      $region67: #{_lambda_.6} parent=63 // pred_region
        %p408 = scmp.lt.s32.totalorder %s20, 1
        %s409 = scalar_select %p408, %s20, 1
        %s410 = smul.addr %s409, 4
        %s411 = scalar_lea.vmem %s0, %s410
      $region68: #{_lambda_.6} parent=63 // pred_fallthru
        _
      // Predicated region
      $region69: #{_lambda_.6} parent=63 // pred_check
        %p412 = pneg %p66
      $region70: #{_lambda_.6} parent=63 // pred_check_branch
        %414 = sbr.rel (%p412) target = $region72
      $region71: #{_lambda_.6} parent=63 // pred_region
        %p415 = scmp.lt.s32.totalorder %s20, 1
        %s416 = scalar_select %p415, %s20, 1
        %s417 = smul.addr %s416, 4
        %s418 = scalar_lea.vmem %s1, %s417
      $region72: #{_lambda_.6} parent=63 // pred_fallthru
        _
    $region64: #{_lambda_.6} parent=5 // pred_fallthru
      _
    %p419 = scmp.le.s32.totalorder 1, %s20
    %p420 = scmp.lt.s32.totalorder %s20, 3
    %p421 = pnand %p419, %p420
    %p422 = pneg %p421
    // Predicated region
    $region73: #{_lambda_.6} parent=5 // pred_check
      _
    $region74: #{_lambda_.6} parent=5 // pred_check_branch
      %424 = sbr.rel (%p421) target = $region76
    $region75: #{_lambda_.6} parent=5 // pred_region
      %s425 = ssub.s32 %s20, 1
      %p426 = scmp.lt.s32.totalorder %s25, 1
      %s427 = scalar_select %p426, %s25, 1
      %s428 = smul.addr %s427, 4
      %s429 = scalar_lea.vmem %s0, %s428
      %p430 = pneg %p46
      %p431 = pneg %p43
      %p432 = scmp.lt.s32.totalorder %s25, 1
      %s433 = scalar_select %p432, %s25, 1
      %s434 = smul.addr %s433, 4
      %s435 = scalar_lea.vmem %s1, %s434
      %p436 = pneg %p72
      %p437 = pneg %p69
      %p438 = pneg %p93
      %p439 = pneg %p90
      %p440 = pneg %p114
      %p441 = pneg %p111
      %p442 = pneg %p135
      %p443 = pneg %p132
      %p444 = pneg %p156
      %p445 = pneg %p153
      %p446 = pneg %p177
      %p447 = pneg %p174
      %p448 = pneg %p198
      %p449 = pneg %p195
      %p450 = pneg %p219
      %p451 = pneg %p216
      %p452 = pneg %p240
      %p453 = pneg %p237
      %p454 = pneg %p261
      %p455 = pneg %p258
      %p456 = pneg %p282
      %p457 = pneg %p279
      %p458 = pneg %p303
      %p459 = pneg %p300
      %p460 = pneg %p324
      %p461 = pneg %p321
      %p462 = pneg %p350
      %p463 = pneg %p347
      %p464 = scmp.lt.s32.totalorder %s25, 1
      %s465 = scalar_select %p464, %s25, 1
      %s466 = smul.addr %s465, 4
      %s467 = scalar_lea.vmem %s14, %s466
      %p468 = scmp.lt.s32.totalorder %s25, 1
      %s469 = scalar_select %p468, %s25, 1
      %s470 = smul.addr %s469, 4
      %s471 = scalar_lea.vmem %s0, %s470
      %p472 = scmp.lt.s32.totalorder %s25, 1
      %s473 = scalar_select %p472, %s25, 1
      %s474 = smul.addr %s473, 4
      %s475 = scalar_lea.vmem %s1, %s474
      %p476 = scmp.lt.s32.totalorder %s25, 1
      %s477 = scalar_select %p476, %s25, 1
      %s478 = smul.addr %s477, 4
      %s479 = scalar_lea.vmem %s14, %s478
      %v481 = vld [vmem:[%s471] sm:$0xf]
      %v482 = vunpack.c.l.bf16 %v481
      %v483 = vld [vmem:[%s2] sm:$0xf]
      %v484 = vld [vmem:[%s2 + $0x4] sm:$0xf]
      %v485 = vld [vmem:[%s2 + $0x8] sm:$0xf]
      %v486 = vld [vmem:[%s2 + $0xc] sm:$0xf]
      %v487 = vld [vmem:[%s2 + $0x10] sm:$0xf]
      %v488 = vld [vmem:[%s2 + $0x14] sm:$0xf]
      %v489 = vld [vmem:[%s2 + $0x18] sm:$0xf]
      %v490 = vld [vmem:[%s2 + $0x1c] sm:$0xf]
      %v491 = vld [vmem:[%s2 + $0x20] sm:$0xf]
      %v492 = vld [vmem:[%s2 + $0x24] sm:$0xf]
      %v493 = vld [vmem:[%s2 + $0x28] sm:$0xf]
      %v494 = vld [vmem:[%s2 + $0x2c] sm:$0xf]
      %v495 = vld [vmem:[%s3] sm:$0x1]
      %v497 = vlaneseq
      %v498 = vshrl.u32 %v497, 7
      %v499 = vsub.s32 0, %v498
      %v500 = vrot.slane %v495, %v499
      %v514 = vunpack.c.l.b16 %v483
      %v515 = vunpack.c.l.b16 %v484
      %v516 = vunpack.c.l.b16 %v485
      %v517 = vunpack.c.l.b16 %v486
      %v518 = vunpack.c.l.b16 %v487
      %v519 = vunpack.c.l.b16 %v488
      %v520 = vunpack.c.l.b16 %v489
      %v521 = vunpack.c.l.b16 %v490
      %v522 = vunpack.c.l.b16 %v491
      %v523 = vunpack.c.l.b16 %v492
      %v524 = vunpack.c.l.b16 %v493
      %v525 = vunpack.c.l.b16 %v494
      %v526 = vpack.c.b16 %v515, %v514
      %v527 = vpack.c.b16 %v517, %v516
      %v528 = vpack.c.b16 %v519, %v518
      %v529 = vpack.c.b16 %v521, %v520
      %v530 = vpack.c.b16 %v523, %v522
      %v531 = vpack.c.b16 %v525, %v524
      %vm532 = vcmask 261120
      %v534 = vsel %vm532, %v481, 0
      %v537 = vsel %vm532, %v526, 0
      %v540 = vsel %vm532, %v527, 0
      %v543 = vsel %vm532, %v528, 0
      %v546 = vsel %vm532, %v529, 0
      %v549 = vsel %vm532, %v530, 0
      %v552 = vsel %vm532, %v531, 0
      %554 = vmatprep.subr.bf16.mxu0 0
      %555 = vmatpush1.bf16.xpose.msra.mxu0 0
      %556 = vmatprep.subr.bf16.mxu0 0
      %557 = vmatpush1.bf16.xpose.msra.mxu0 0
      %558 = vmatprep.subr.bf16.mxu0 0
      %559 = vmatpush1.bf16.xpose.msra.mxu0 %v552
      %560 = vmatprep.subr.bf16.mxu0 0
      %561 = vmatpush1.bf16.xpose.msra.mxu0 %v549
      %562 = vmatprep.subr.bf16.mxu0 0
      %563 = vmatpush1.bf16.xpose.msra.mxu0 %v546
      %564 = vmatprep.subr.bf16.mxu0 0
      %565 = vmatpush1.bf16.xpose.msra.mxu0 %v543
      %566 = vmatprep.subr.bf16.mxu0 0
      %567 = vmatpush1.bf16.xpose.msra.mxu0 %v540
      %568 = vmatprep.subr.bf16.mxu0 0
      %569 = vmatpush1.bf16.xpose.msra.mxu0 %v537
      %570 = vmatprep.subr.bf16.mxu0 0
      %571 = vmatpush2.bf16.xpose.msra.mxu0 0
      %572 = vmatprep.subr.bf16.mxu0 0
      %573 = vmatpush2.bf16.xpose.msra.mxu0 0
      %574 = vmatprep.subr.bf16.mxu0 0
      %575 = vmatpush2.bf16.xpose.msra.mxu0 0
      %576 = vmatprep.subr.bf16.mxu0 0
      %577 = vmatpush2.bf16.xpose.msra.mxu0 0
      %578 = vmatprep.subr.bf16.mxu0 0
      %579 = vmatpush2.bf16.xpose.msra.mxu0 0
      %580 = vmatprep.subr.bf16.mxu0 0
      %581 = vmatpush2.bf16.xpose.msra.mxu0 0
      %582 = vmatprep.subr.bf16.mxu0 0
      %583 = vmatpush2.bf16.xpose.msra.mxu0 0
      %584 = vmatprep.subr.bf16.mxu0 0
      %585 = vmatpush2.bf16.xpose.msra.mxu0 0
      %586 = vmatprep.mubr.bf16.mxu0 0
      %587 = vmatmul.mubr.bf16.gmra.mxu0 %v534
      %v588 = vpop.f32.mrf.mxu0
      %v589 = vadd.f32 %v500, %v588
      %v590 = vpop.f32.mrf.mxu0
      %v591 = vpop.f32.mrf.mxu0
      %v592 = vpop.f32.mrf.mxu0
      %593 = vdwg.mxu0
      %v594 = vmul.f32 %v589, 0.35355338
      %v595 = vpack.c.bf16 %v594, %v594
      %v596 = vpack.c.bf16 %v589, %v589
      %598 = vrot.lane.b32.xlu0 %v596, 96
      %v599 = vpop.permute.xlu0 %598
      %vm600 = vcmask 64512
      %v602 = vsel %vm600, %v595, 0
      %v605 = vsel %vm600, %v599, 0
      %607 = vmatprep.subr.bf16.mxu0 0
      %608 = vmatpush1.bf16.xpose.msra.mxu0 0
      %609 = vmatprep.subr.bf16.mxu0 0
      %610 = vmatpush1.bf16.xpose.msra.mxu0 0
      %611 = vmatprep.subr.bf16.mxu0 0
      %612 = vmatpush1.bf16.xpose.msra.mxu0 0
      %613 = vmatprep.subr.bf16.mxu0 0
      %614 = vmatpush1.bf16.xpose.msra.mxu0 0
      %615 = vmatprep.subr.bf16.mxu0 0
      %616 = vmatpush1.bf16.xpose.msra.mxu0 0
      %617 = vmatprep.subr.bf16.mxu0 0
      %618 = vmatpush1.bf16.xpose.msra.mxu0 0
      %619 = vmatprep.subr.bf16.mxu0 0
      %620 = vmatpush1.bf16.xpose.msra.mxu0 0
      %621 = vmatprep.subr.bf16.mxu0 0
      %622 = vmatpush1.bf16.xpose.msra.mxu0 %v605
      %623 = vmatprep.subr.bf16.mxu0 0
      %624 = vmatpush2.bf16.xpose.msra.mxu0 0
      %625 = vmatprep.subr.bf16.mxu0 0
      %626 = vmatpush2.bf16.xpose.msra.mxu0 0
      %627 = vmatprep.subr.bf16.mxu0 0
      %628 = vmatpush2.bf16.xpose.msra.mxu0 0
      %629 = vmatprep.subr.bf16.mxu0 0
      %630 = vmatpush2.bf16.xpose.msra.mxu0 0
      %631 = vmatprep.subr.bf16.mxu0 0
      %632 = vmatpush2.bf16.xpose.msra.mxu0 0
      %633 = vmatprep.subr.bf16.mxu0 0
      %634 = vmatpush2.bf16.xpose.msra.mxu0 0
      %635 = vmatprep.subr.bf16.mxu0 0
      %636 = vmatpush2.bf16.xpose.msra.mxu0 0
      %637 = vmatprep.subr.bf16.mxu0 0
      %638 = vmatpush2.bf16.xpose.msra.mxu0 0
      %639 = vmatprep.mubr.bf16.mxu0 0
      %640 = vmatmul.mubr.bf16.gmra.mxu0 %v602
      %v641 = vpop.f32.mrf.mxu0
      %v642 = vadd.f32 0.0, %v641
      %v643 = vpop.f32.mrf.mxu0
      %v644 = vpop.f32.mrf.mxu0
      %v645 = vpop.f32.mrf.mxu0
      %646 = vdwg.mxu0
      %v647 = vsel %vm600, %v642, -inf
      %648 = vmax.xlane.f32.xlu0 %v647
      %v649 = vpop.xlane.xlu0 %648
      %v650 = vsub.f32 %v642, %v649
      %v651 = vmul.f32 %v650, 1.442695
      %v652 = vpow.pop %v651
      %v653 = vsel %vm600, %v652, 0.0
      %654 = vadd.xlane.f32.xlu0 %v653
      %v655 = vpop.xlane.xlu0 %654
      %v656 = vrcp.pop %v655
      %v657 = vmul.f32 %v652, %v656
      %v658 = vpack.c.bf16 %v657, %v657
      %659 = vrot.lane.b32.xlu0 %v596, 64
      %v660 = vpop.permute.xlu0 %659
      %v662 = vsel %vm600, %v658, 0
      %vm664 = vcmask 1043456
      %v666 = vsel %vm664, %v660, 0
      %668 = vmatprep.subr.bf16.mxu0 0
      %669 = vmatpush1.bf16.msra.mxu0 0
      %670 = vmatprep.subr.bf16.mxu0 0
      %671 = vmatpush1.bf16.msra.mxu0 0
      %672 = vmatprep.subr.bf16.mxu0 0
      %673 = vmatpush1.bf16.msra.mxu0 0
      %674 = vmatprep.subr.bf16.mxu0 0
      %675 = vmatpush1.bf16.msra.mxu0 0
      %676 = vmatprep.subr.bf16.mxu0 0
      %677 = vmatpush1.bf16.msra.mxu0 0
      %678 = vmatprep.subr.bf16.mxu0 0
      %679 = vmatpush1.bf16.msra.mxu0 0
      %680 = vmatprep.subr.bf16.mxu0 0
      %681 = vmatpush1.bf16.msra.mxu0 0
      %682 = vmatprep.subr.bf16.mxu0 0
      %683 = vmatpush1.bf16.msra.mxu0 %v666
      %684 = vmatprep.subr.bf16.mxu0 0
      %685 = vmatpush2.bf16.msra.mxu0 0
      %686 = vmatprep.subr.bf16.mxu0 0
      %687 = vmatpush2.bf16.msra.mxu0 0
      %688 = vmatprep.subr.bf16.mxu0 0
      %689 = vmatpush2.bf16.msra.mxu0 0
      %690 = vmatprep.subr.bf16.mxu0 0
      %691 = vmatpush2.bf16.msra.mxu0 0
      %692 = vmatprep.subr.bf16.mxu0 0
      %693 = vmatpush2.bf16.msra.mxu0 0
      %694 = vmatprep.subr.bf16.mxu0 0
      %695 = vmatpush2.bf16.msra.mxu0 0
      %696 = vmatprep.subr.bf16.mxu0 0
      %697 = vmatpush2.bf16.msra.mxu0 0
      %698 = vmatprep.subr.bf16.mxu0 0
      %699 = vmatpush2.bf16.msra.mxu0 0
      %700 = vmatprep.mubr.bf16.mxu0 0
      %701 = vmatmul.mubr.bf16.gmra.mxu0 %v662
      %v702 = vpop.f32.mrf.mxu0
      %v703 = vadd.f32 0.0, %v702
      %v704 = vpop.f32.mrf.mxu0
      %v705 = vpop.f32.mrf.mxu0
      %v706 = vpop.f32.mrf.mxu0
      %707 = vdwg.mxu0
      %v708 = vpack.c.bf16 %v703, %v703
      %v709 = vld [vmem:[%s4] sm:$0xf]
      %v710 = vld [vmem:[%s4 + $0x4] sm:$0xf]
      %v711 = vld [vmem:[%s4 + $0x8] sm:$0xf]
      %v712 = vld [vmem:[%s4 + $0xc] sm:$0xf]
      %714 = vrot.lane.b32.xlu0 %v595, 120
      %v715 = vpop.permute.xlu0 %714
      %716 = vrot.lane.b32.xlu0 %v596, 88
      %v717 = vpop.permute.xlu0 %716
      %v719 = vsel %vm600, %v715, 0
      %v722 = vsel %vm600, %v717, 0
      %724 = vmatprep.subr.bf16.mxu0 0
      %725 = vmatpush1.bf16.xpose.msra.mxu0 0
      %726 = vmatprep.subr.bf16.mxu0 0
      %727 = vmatpush1.bf16.xpose.msra.mxu0 0
      %728 = vmatprep.subr.bf16.mxu0 0
      %729 = vmatpush1.bf16.xpose.msra.mxu0 0
      %730 = vmatprep.subr.bf16.mxu0 0
      %731 = vmatpush1.bf16.xpose.msra.mxu0 0
      %732 = vmatprep.subr.bf16.mxu0 0
      %733 = vmatpush1.bf16.xpose.msra.mxu0 0
      %734 = vmatprep.subr.bf16.mxu0 0
      %735 = vmatpush1.bf16.xpose.msra.mxu0 0
      %736 = vmatprep.subr.bf16.mxu0 0
      %737 = vmatpush1.bf16.xpose.msra.mxu0 0
      %738 = vmatprep.subr.bf16.mxu0 0
      %739 = vmatpush1.bf16.xpose.msra.mxu0 %v722
      %740 = vmatprep.subr.bf16.mxu0 0
      %741 = vmatpush2.bf16.xpose.msra.mxu0 0
      %742 = vmatprep.subr.bf16.mxu0 0
      %743 = vmatpush2.bf16.xpose.msra.mxu0 0
      %744 = vmatprep.subr.bf16.mxu0 0
      %745 = vmatpush2.bf16.xpose.msra.mxu0 0
      %746 = vmatprep.subr.bf16.mxu0 0
      %747 = vmatpush2.bf16.xpose.msra.mxu0 0
      %748 = vmatprep.subr.bf16.mxu0 0
      %749 = vmatpush2.bf16.xpose.msra.mxu0 0
      %750 = vmatprep.subr.bf16.mxu0 0
      %751 = vmatpush2.bf16.xpose.msra.mxu0 0
      %752 = vmatprep.subr.bf16.mxu0 0
      %753 = vmatpush2.bf16.xpose.msra.mxu0 0
      %754 = vmatprep.subr.bf16.mxu0 0
      %755 = vmatpush2.bf16.xpose.msra.mxu0 0
      %756 = vmatprep.mubr.bf16.mxu0 0
      %757 = vmatmul.mubr.bf16.gmra.mxu0 %v719
      %v758 = vpop.f32.mrf.mxu0
      %v759 = vadd.f32 0.0, %v758
      %v760 = vpop.f32.mrf.mxu0
      %v761 = vpop.f32.mrf.mxu0
      %v762 = vpop.f32.mrf.mxu0
      %763 = vdwg.mxu0
      %v764 = vsel %vm600, %v759, -inf
      %765 = vmax.xlane.f32.xlu0 %v764
      %v766 = vpop.xlane.xlu0 %765
      %v767 = vsub.f32 %v759, %v766
      %v768 = vmul.f32 %v767, 1.442695
      %v769 = vpow.pop %v768
      %v770 = vsel %vm600, %v769, 0.0
      %771 = vadd.xlane.f32.xlu0 %v770
      %v772 = vpop.xlane.xlu0 %771
      %v773 = vrcp.pop %v772
      %v774 = vmul.f32 %v769, %v773
      %v775 = vpack.c.bf16 %v774, %v774
      %776 = vrot.lane.b32.xlu0 %v596, 56
      %v777 = vpop.permute.xlu0 %776
      %v779 = vsel %vm600, %v775, 0
      %v782 = vsel %vm664, %v777, 0
      %784 = vmatprep.subr.bf16.mxu0 0
      %785 = vmatpush1.bf16.msra.mxu0 0
      %786 = vmatprep.subr.bf16.mxu0 0
      %787 = vmatpush1.bf16.msra.mxu0 0
      %788 = vmatprep.subr.bf16.mxu0 0
      %789 = vmatpush1.bf16.msra.mxu0 0
      %790 = vmatprep.subr.bf16.mxu0 0
      %791 = vmatpush1.bf16.msra.mxu0 0
      %792 = vmatprep.subr.bf16.mxu0 0
      %793 = vmatpush1.bf16.msra.mxu0 0
      %794 = vmatprep.subr.bf16.mxu0 0
      %795 = vmatpush1.bf16.msra.mxu0 0
      %796 = vmatprep.subr.bf16.mxu0 0
      %797 = vmatpush1.bf16.msra.mxu0 0
      %798 = vmatprep.subr.bf16.mxu0 0
      %799 = vmatpush1.bf16.msra.mxu0 %v782
      %800 = vmatprep.subr.bf16.mxu0 0
      %801 = vmatpush2.bf16.msra.mxu0 0
      %802 = vmatprep.subr.bf16.mxu0 0
      %803 = vmatpush2.bf16.msra.mxu0 0
      %804 = vmatprep.subr.bf16.mxu0 0
      %805 = vmatpush2.bf16.msra.mxu0 0
      %806 = vmatprep.subr.bf16.mxu0 0
      %807 = vmatpush2.bf16.msra.mxu0 0
      %808 = vmatprep.subr.bf16.mxu0 0
      %809 = vmatpush2.bf16.msra.mxu0 0
      %810 = vmatprep.subr.bf16.mxu0 0
      %811 = vmatpush2.bf16.msra.mxu0 0
      %812 = vmatprep.subr.bf16.mxu0 0
      %813 = vmatpush2.bf16.msra.mxu0 0
      %814 = vmatprep.subr.bf16.mxu0 0
      %815 = vmatpush2.bf16.msra.mxu0 0
      %816 = vmatprep.mubr.bf16.mxu0 0
      %817 = vmatmul.mubr.bf16.gmra.mxu0 %v779
      %v818 = vpop.f32.mrf.mxu0
      %v819 = vadd.f32 0.0, %v818
      %v820 = vpop.f32.mrf.mxu0
      %v821 = vpop.f32.mrf.mxu0
      %v822 = vpop.f32.mrf.mxu0
      %823 = vdwg.mxu0
      %v824 = vpack.c.bf16 %v819, %v819
      %s825 = scalar_lea.vmem %s4, 16
      %v826 = vld [vmem:[%s825] sm:$0xf]
      %v827 = vld [vmem:[%s825 + $0x4] sm:$0xf]
      %v828 = vld [vmem:[%s825 + $0x8] sm:$0xf]
      %v829 = vld [vmem:[%s825 + $0xc] sm:$0xf]
      %v834 = vunpack.c.l.b16 %v826
      %v835 = vunpack.c.l.b16 %v827
      %v836 = vunpack.c.l.b16 %v828
      %v837 = vunpack.c.l.b16 %v829
      %v838 = vpack.c.b16 %v835, %v834
      %v839 = vpack.c.b16 %v837, %v836
      %v841 = vsel %vm600, %v824, 0
      %v844 = vsel %vm600, %v838, 0
      %v847 = vsel %vm600, %v839, 0
      %849 = vmatprep.subr.bf16.mxu0 0
      %850 = vmatpush1.bf16.xpose.msra.mxu0 0
      %851 = vmatprep.subr.bf16.mxu0 0
      %852 = vmatpush1.bf16.xpose.msra.mxu0 0
      %853 = vmatprep.subr.bf16.mxu0 0
      %854 = vmatpush1.bf16.xpose.msra.mxu0 0
      %855 = vmatprep.subr.bf16.mxu0 0
      %856 = vmatpush1.bf16.xpose.msra.mxu0 0
      %857 = vmatprep.subr.bf16.mxu0 0
      %858 = vmatpush1.bf16.xpose.msra.mxu0 0
      %859 = vmatprep.subr.bf16.mxu0 0
      %860 = vmatpush1.bf16.xpose.msra.mxu0 0
      %861 = vmatprep.subr.bf16.mxu0 0
      %862 = vmatpush1.bf16.xpose.msra.mxu0 %v847
      %863 = vmatprep.subr.bf16.mxu0 0
      %864 = vmatpush1.bf16.xpose.msra.mxu0 %v844
      %865 = vmatprep.subr.bf16.mxu0 0
      %866 = vmatpush2.bf16.xpose.msra.mxu0 0
      %867 = vmatprep.subr.bf16.mxu0 0
      %868 = vmatpush2.bf16.xpose.msra.mxu0 0
      %869 = vmatprep.subr.bf16.mxu0 0
      %870 = vmatpush2.bf16.xpose.msra.mxu0 0
      %871 = vmatprep.subr.bf16.mxu0 0
      %872 = vmatpush2.bf16.xpose.msra.mxu0 0
      %873 = vmatprep.subr.bf16.mxu0 0
      %874 = vmatpush2.bf16.xpose.msra.mxu0 0
      %875 = vmatprep.subr.bf16.mxu0 0
      %876 = vmatpush2.bf16.xpose.msra.mxu0 0
      %877 = vmatprep.subr.bf16.mxu0 0
      %878 = vmatpush2.bf16.xpose.msra.mxu0 0
      %879 = vmatprep.subr.bf16.mxu0 0
      %880 = vmatpush2.bf16.xpose.msra.mxu0 0
      %881 = vmatprep.mubr.bf16.mxu0 0
      %882 = vmatmul.mubr.bf16.gmra.mxu0 %v841
      %v883 = vpop.f32.mrf.mxu0
      %v884 = vadd.f32 0.0, %v883
      %v885 = vpop.f32.mrf.mxu0
      %v886 = vpop.f32.mrf.mxu0
      %v887 = vpop.f32.mrf.mxu0
      %888 = vdwg.mxu0
      %v893 = vunpack.c.l.b16 %v709
      %v894 = vunpack.c.l.b16 %v710
      %v895 = vunpack.c.l.b16 %v711
      %v896 = vunpack.c.l.b16 %v712
      %v897 = vpack.c.b16 %v894, %v893
      %v898 = vpack.c.b16 %v896, %v895
      %v900 = vsel %vm600, %v708, 0
      %v903 = vsel %vm600, %v897, 0
      %v906 = vsel %vm600, %v898, 0
      %908 = vmatprep.subr.bf16.mxu0 0
      %909 = vmatpush1.bf16.xpose.msra.mxu0 0
      %910 = vmatprep.subr.bf16.mxu0 0
      %911 = vmatpush1.bf16.xpose.msra.mxu0 0
      %912 = vmatprep.subr.bf16.mxu0 0
      %913 = vmatpush1.bf16.xpose.msra.mxu0 0
      %914 = vmatprep.subr.bf16.mxu0 0
      %915 = vmatpush1.bf16.xpose.msra.mxu0 0
      %916 = vmatprep.subr.bf16.mxu0 0
      %917 = vmatpush1.bf16.xpose.msra.mxu0 0
      %918 = vmatprep.subr.bf16.mxu0 0
      %919 = vmatpush1.bf16.xpose.msra.mxu0 0
      %920 = vmatprep.subr.bf16.mxu0 0
      %921 = vmatpush1.bf16.xpose.msra.mxu0 %v906
      %922 = vmatprep.subr.bf16.mxu0 0
      %923 = vmatpush1.bf16.xpose.msra.mxu0 %v903
      %924 = vmatprep.subr.bf16.mxu0 0
      %925 = vmatpush2.bf16.xpose.msra.mxu0 0
      %926 = vmatprep.subr.bf16.mxu0 0
      %927 = vmatpush2.bf16.xpose.msra.mxu0 0
      %928 = vmatprep.subr.bf16.mxu0 0
      %929 = vmatpush2.bf16.xpose.msra.mxu0 0
      %930 = vmatprep.subr.bf16.mxu0 0
      %931 = vmatpush2.bf16.xpose.msra.mxu0 0
      %932 = vmatprep.subr.bf16.mxu0 0
      %933 = vmatpush2.bf16.xpose.msra.mxu0 0
      %934 = vmatprep.subr.bf16.mxu0 0
      %935 = vmatpush2.bf16.xpose.msra.mxu0 0
      %936 = vmatprep.subr.bf16.mxu0 0
      %937 = vmatpush2.bf16.xpose.msra.mxu0 0
      %938 = vmatprep.subr.bf16.mxu0 0
      %939 = vmatpush2.bf16.xpose.msra.mxu0 0
      %940 = vmatprep.mubr.bf16.mxu0 0
      %941 = vmatmul.mubr.bf16.gmra.mxu0 %v900
      %v942 = vpop.f32.mrf.mxu0
      %v943 = vadd.f32 %v884, %v942
      %v944 = vpop.f32.mrf.mxu0
      %v945 = vpop.f32.mrf.mxu0
      %v946 = vpop.f32.mrf.mxu0
      %947 = vdwg.mxu0
      %948 = vrot.lane.b32.xlu0 %v595, 112
      %v949 = vpop.permute.xlu0 %948
      %950 = vrot.lane.b32.xlu0 %v596, 80
      %v951 = vpop.permute.xlu0 %950
      %v953 = vsel %vm600, %v949, 0
      %v956 = vsel %vm600, %v951, 0
      %958 = vmatprep.subr.bf16.mxu0 0
      %959 = vmatpush1.bf16.xpose.msra.mxu0 0
      %960 = vmatprep.subr.bf16.mxu0 0
      %961 = vmatpush1.bf16.xpose.msra.mxu0 0
      %962 = vmatprep.subr.bf16.mxu0 0
      %963 = vmatpush1.bf16.xpose.msra.mxu0 0
      %964 = vmatprep.subr.bf16.mxu0 0
      %965 = vmatpush1.bf16.xpose.msra.mxu0 0
      %966 = vmatprep.subr.bf16.mxu0 0
      %967 = vmatpush1.bf16.xpose.msra.mxu0 0
      %968 = vmatprep.subr.bf16.mxu0 0
      %969 = vmatpush1.bf16.xpose.msra.mxu0 0
      %970 = vmatprep.subr.bf16.mxu0 0
      %971 = vmatpush1.bf16.xpose.msra.mxu0 0
      %972 = vmatprep.subr.bf16.mxu0 0
      %973 = vmatpush1.bf16.xpose.msra.mxu0 %v956
      %974 = vmatprep.subr.bf16.mxu0 0
      %975 = vmatpush2.bf16.xpose.msra.mxu0 0
      %976 = vmatprep.subr.bf16.mxu0 0
      %977 = vmatpush2.bf16.xpose.msra.mxu0 0
      %978 = vmatprep.subr.bf16.mxu0 0
      %979 = vmatpush2.bf16.xpose.msra.mxu0 0
      %980 = vmatprep.subr.bf16.mxu0 0
      %981 = vmatpush2.bf16.xpose.msra.mxu0 0
      %982 = vmatprep.subr.bf16.mxu0 0
      %983 = vmatpush2.bf16.xpose.msra.mxu0 0
      %984 = vmatprep.subr.bf16.mxu0 0
      %985 = vmatpush2.bf16.xpose.msra.mxu0 0
      %986 = vmatprep.subr.bf16.mxu0 0
      %987 = vmatpush2.bf16.xpose.msra.mxu0 0
      %988 = vmatprep.subr.bf16.mxu0 0
      %989 = vmatpush2.bf16.xpose.msra.mxu0 0
      %990 = vmatprep.mubr.bf16.mxu0 0
      %991 = vmatmul.mubr.bf16.gmra.mxu0 %v953
      %v992 = vpop.f32.mrf.mxu0
      %v993 = vadd.f32 0.0, %v992
      %v994 = vpop.f32.mrf.mxu0
      %v995 = vpop.f32.mrf.mxu0
      %v996 = vpop.f32.mrf.mxu0
      %997 = vdwg.mxu0
      %v998 = vsel %vm600, %v993, -inf
      %999 = vmax.xlane.f32.xlu0 %v998
      %v1000 = vpop.xlane.xlu0 %999
      %v1001 = vsub.f32 %v993, %v1000
      %v1002 = vmul.f32 %v1001, 1.442695
      %v1003 = vpow.pop %v1002
      %v1004 = vsel %vm600, %v1003, 0.0
      %1005 = vadd.xlane.f32.xlu0 %v1004
      %v1006 = vpop.xlane.xlu0 %1005
      %v1007 = vrcp.pop %v1006
      %v1008 = vmul.f32 %v1003, %v1007
      %v1009 = vpack.c.bf16 %v1008, %v1008
      %1010 = vrot.lane.b32.xlu0 %v596, 48
      %v1011 = vpop.permute.xlu0 %1010
      %v1013 = vsel %vm600, %v1009, 0
      %v1016 = vsel %vm664, %v1011, 0
      %1018 = vmatprep.subr.bf16.mxu0 0
      %1019 = vmatpush1.bf16.msra.mxu0 0
      %1020 = vmatprep.subr.bf16.mxu0 0
      %1021 = vmatpush1.bf16.msra.mxu0 0
      %1022 = vmatprep.subr.bf16.mxu0 0
      %1023 = vmatpush1.bf16.msra.mxu0 0
      %1024 = vmatprep.subr.bf16.mxu0 0
      %1025 = vmatpush1.bf16.msra.mxu0 0
      %1026 = vmatprep.subr.bf16.mxu0 0
      %1027 = vmatpush1.bf16.msra.mxu0 0
      %1028 = vmatprep.subr.bf16.mxu0 0
      %1029 = vmatpush1.bf16.msra.mxu0 0
      %1030 = vmatprep.subr.bf16.mxu0 0
      %1031 = vmatpush1.bf16.msra.mxu0 0
      %1032 = vmatprep.subr.bf16.mxu0 0
      %1033 = vmatpush1.bf16.msra.mxu0 %v1016
      %1034 = vmatprep.subr.bf16.mxu0 0
      %1035 = vmatpush2.bf16.msra.mxu0 0
      %1036 = vmatprep.subr.bf16.mxu0 0
      %1037 = vmatpush2.bf16.msra.mxu0 0
      %1038 = vmatprep.subr.bf16.mxu0 0
      %1039 = vmatpush2.bf16.msra.mxu0 0
      %1040 = vmatprep.subr.bf16.mxu0 0
      %1041 = vmatpush2.bf16.msra.mxu0 0
      %1042 = vmatprep.subr.bf16.mxu0 0
      %1043 = vmatpush2.bf16.msra.mxu0 0
      %1044 = vmatprep.subr.bf16.mxu0 0
      %1045 = vmatpush2.bf16.msra.mxu0 0
      %1046 = vmatprep.subr.bf16.mxu0 0
      %1047 = vmatpush2.bf16.msra.mxu0 0
      %1048 = vmatprep.subr.bf16.mxu0 0
      %1049 = vmatpush2.bf16.msra.mxu0 0
      %1050 = vmatprep.mubr.bf16.mxu0 0
      %1051 = vmatmul.mubr.bf16.gmra.mxu0 %v1013
      %v1052 = vpop.f32.mrf.mxu0
      %v1053 = vadd.f32 0.0, %v1052
      %v1054 = vpop.f32.mrf.mxu0
      %v1055 = vpop.f32.mrf.mxu0
      %v1056 = vpop.f32.mrf.mxu0
      %1057 = vdwg.mxu0
      %v1058 = vpack.c.bf16 %v1053, %v1053
      %s1059 = scalar_lea.vmem %s4, 32
      %v1060 = vld [vmem:[%s1059] sm:$0xf]
      %v1061 = vld [vmem:[%s1059 + $0x4] sm:$0xf]
      %v1062 = vld [vmem:[%s1059 + $0x8] sm:$0xf]
      %v1063 = vld [vmem:[%s1059 + $0xc] sm:$0xf]
      %v1068 = vunpack.c.l.b16 %v1060
      %v1069 = vunpack.c.l.b16 %v1061
      %v1070 = vunpack.c.l.b16 %v1062
      %v1071 = vunpack.c.l.b16 %v1063
      %v1072 = vpack.c.b16 %v1069, %v1068
      %v1073 = vpack.c.b16 %v1071, %v1070
      %v1075 = vsel %vm600, %v1058, 0
      %v1078 = vsel %vm600, %v1072, 0
      %v1081 = vsel %vm600, %v1073, 0
      %1083 = vmatprep.subr.bf16.mxu0 0
      %1084 = vmatpush1.bf16.xpose.msra.mxu0 0
      %1085 = vmatprep.subr.bf16.mxu0 0
      %1086 = vmatpush1.bf16.xpose.msra.mxu0 0
      %1087 = vmatprep.subr.bf16.mxu0 0
      %1088 = vmatpush1.bf16.xpose.msra.mxu0 0
      %1089 = vmatprep.subr.bf16.mxu0 0
      %1090 = vmatpush1.bf16.xpose.msra.mxu0 0
      %1091 = vmatprep.subr.bf16.mxu0 0
      %1092 = vmatpush1.bf16.xpose.msra.mxu0 0
      %1093 = vmatprep.subr.bf16.mxu0 0
      %1094 = vmatpush1.bf16.xpose.msra.mxu0 0
      %1095 = vmatprep.subr.bf16.mxu0 0
      %1096 = vmatpush1.bf16.xpose.msra.mxu0 %v1081
      %1097 = vmatprep.subr.bf16.mxu0 0
      %1098 = vmatpush1.bf16.xpose.msra.mxu0 %v1078
      %1099 = vmatprep.subr.bf16.mxu0 0
      %1100 = vmatpush2.bf16.xpose.msra.mxu0 0
      %1101 = vmatprep.subr.bf16.mxu0 0
      %1102 = vmatpush2.bf16.xpose.msra.mxu0 0
      %1103 = vmatprep.subr.bf16.mxu0 0
      %1104 = vmatpush2.bf16.xpose.msra.mxu0 0
      %1105 = vmatprep.subr.bf16.mxu0 0
      %1106 = vmatpush2.bf16.xpose.msra.mxu0 0
      %1107 = vmatprep.subr.bf16.mxu0 0
      %1108 = vmatpush2.bf16.xpose.msra.mxu0 0
      %1109 = vmatprep.subr.bf16.mxu0 0
      %1110 = vmatpush2.bf16.xpose.msra.mxu0 0
      %1111 = vmatprep.subr.bf16.mxu0 0
      %1112 = vmatpush2.bf16.xpose.msra.mxu0 0
      %1113 = vmatprep.subr.bf16.mxu0 0
      %1114 = vmatpush2.bf16.xpose.msra.mxu0 0
      %1115 = vmatprep.mubr.bf16.mxu0 0
      %1116 = vmatmul.mubr.bf16.gmra.mxu0 %v1075
      %v1117 = vpop.f32.mrf.mxu0
      %v1118 = vadd.f32 0.0, %v1117
      %v1119 = vpop.f32.mrf.mxu0
      %v1120 = vpop.f32.mrf.mxu0
      %v1121 = vpop.f32.mrf.mxu0
      %1122 = vdwg.mxu0
      %v1123 = vadd.f32 %v943, %v1118
      %1124 = vrot.lane.b32.xlu0 %v595, 104
      %v1125 = vpop.permute.xlu0 %1124
      %1126 = vrot.lane.b32.xlu0 %v596, 72
      %v1127 = vpop.permute.xlu0 %1126
      %v1129 = vsel %vm600, %v1125, 0
      %v1132 = vsel %vm600, %v1127, 0
      %1134 = vmatprep.subr.bf16.mxu0 0
      %1135 = vmatpush1.bf16.xpose.msra.mxu0 0
      %1136 = vmatprep.subr.bf16.mxu0 0
      %1137 = vmatpush1.bf16.xpose.msra.mxu0 0
      %1138 = vmatprep.subr.bf16.mxu0 0
      %1139 = vmatpush1.bf16.xpose.msra.mxu0 0
      %1140 = vmatprep.subr.bf16.mxu0 0
      %1141 = vmatpush1.bf16.xpose.msra.mxu0 0
      %1142 = vmatprep.subr.bf16.mxu0 0
      %1143 = vmatpush1.bf16.xpose.msra.mxu0 0
      %1144 = vmatprep.subr.bf16.mxu0 0
      %1145 = vmatpush1.bf16.xpose.msra.mxu0 0
      %1146 = vmatprep.subr.bf16.mxu0 0
      %1147 = vmatpush1.bf16.xpose.msra.mxu0 0
      %1148 = vmatprep.subr.bf16.mxu0 0
      %1149 = vmatpush1.bf16.xpose.msra.mxu0 %v1132
      %1150 = vmatprep.subr.bf16.mxu0 0
      %1151 = vmatpush2.bf16.xpose.msra.mxu0 0
      %1152 = vmatprep.subr.bf16.mxu0 0
      %1153 = vmatpush2.bf16.xpose.msra.mxu0 0
      %1154 = vmatprep.subr.bf16.mxu0 0
      %1155 = vmatpush2.bf16.xpose.msra.mxu0 0
      %1156 = vmatprep.subr.bf16.mxu0 0
      %1157 = vmatpush2.bf16.xpose.msra.mxu0 0
      %1158 = vmatprep.subr.bf16.mxu0 0
      %1159 = vmatpush2.bf16.xpose.msra.mxu0 0
      %1160 = vmatprep.subr.bf16.mxu0 0
      %1161 = vmatpush2.bf16.xpose.msra.mxu0 0
      %1162 = vmatprep.subr.bf16.mxu0 0
      %1163 = vmatpush2.bf16.xpose.msra.mxu0 0
      %1164 = vmatprep.subr.bf16.mxu0 0
      %1165 = vmatpush2.bf16.xpose.msra.mxu0 0
      %1166 = vmatprep.mubr.bf16.mxu0 0
      %1167 = vmatmul.mubr.bf16.gmra.mxu0 %v1129
      %v1168 = vpop.f32.mrf.mxu0
      %v1169 = vadd.f32 0.0, %v1168
      %v1170 = vpop.f32.mrf.mxu0
      %v1171 = vpop.f32.mrf.mxu0
      %v1172 = vpop.f32.mrf.mxu0
      %1173 = vdwg.mxu0
      %v1174 = vsel %vm600, %v1169, -inf
      %1175 = vmax.xlane.f32.xlu0 %v1174
      %v1176 = vpop.xlane.xlu0 %1175
      %v1177 = vsub.f32 %v1169, %v1176
      %v1178 = vmul.f32 %v1177, 1.442695
      %v1179 = vpow.pop %v1178
      %v1180 = vsel %vm600, %v1179, 0.0
      %1181 = vadd.xlane.f32.xlu0 %v1180
      %v1182 = vpop.xlane.xlu0 %1181
      %v1183 = vrcp.pop %v1182
      %v1184 = vmul.f32 %v1179, %v1183
      %v1185 = vpack.c.bf16 %v1184, %v1184
      %1186 = vrot.lane.b32.xlu0 %v596, 40
      %v1187 = vpop.permute.xlu0 %1186
      %v1189 = vsel %vm600, %v1185, 0
      %v1192 = vsel %vm664, %v1187, 0
      %1194 = vmatprep.subr.bf16.mxu0 0
      %1195 = vmatpush1.bf16.msra.mxu0 0
      %1196 = vmatprep.subr.bf16.mxu0 0
      %1197 = vmatpush1.bf16.msra.mxu0 0
      %1198 = vmatprep.subr.bf16.mxu0 0
      %1199 = vmatpush1.bf16.msra.mxu0 0
      %1200 = vmatprep.subr.bf16.mxu0 0
      %1201 = vmatpush1.bf16.msra.mxu0 0
      %1202 = vmatprep.subr.bf16.mxu0 0
      %1203 = vmatpush1.bf16.msra.mxu0 0
      %1204 = vmatprep.subr.bf16.mxu0 0
      %1205 = vmatpush1.bf16.msra.mxu0 0
      %1206 = vmatprep.subr.bf16.mxu0 0
      %1207 = vmatpush1.bf16.msra.mxu0 0
      %1208 = vmatprep.subr.bf16.mxu0 0
      %1209 = vmatpush1.bf16.msra.mxu0 %v1192
      %1210 = vmatprep.subr.bf16.mxu0 0
      %1211 = vmatpush2.bf16.msra.mxu0 0
      %1212 = vmatprep.subr.bf16.mxu0 0
      %1213 = vmatpush2.bf16.msra.mxu0 0
      %1214 = vmatprep.subr.bf16.mxu0 0
      %1215 = vmatpush2.bf16.msra.mxu0 0
      %1216 = vmatprep.subr.bf16.mxu0 0
      %1217 = vmatpush2.bf16.msra.mxu0 0
      %1218 = vmatprep.subr.bf16.mxu0 0
      %1219 = vmatpush2.bf16.msra.mxu0 0
      %1220 = vmatprep.subr.bf16.mxu0 0
      %1221 = vmatpush2.bf16.msra.mxu0 0
      %1222 = vmatprep.subr.bf16.mxu0 0
      %1223 = vmatpush2.bf16.msra.mxu0 0
      %1224 = vmatprep.subr.bf16.mxu0 0
      %1225 = vmatpush2.bf16.msra.mxu0 0
      %1226 = vmatprep.mubr.bf16.mxu0 0
      %1227 = vmatmul.mubr.bf16.gmra.mxu0 %v1189
      %v1228 = vpop.f32.mrf.mxu0
      %v1229 = vadd.f32 0.0, %v1228
      %v1230 = vpop.f32.mrf.mxu0
      %v1231 = vpop.f32.mrf.mxu0
      %v1232 = vpop.f32.mrf.mxu0
      %1233 = vdwg.mxu0
      %v1234 = vpack.c.bf16 %v1229, %v1229
      %s1235 = scalar_lea.vmem %s4, 48
      %v1236 = vld [vmem:[%s1235] sm:$0xf]
      %v1237 = vld [vmem:[%s1235 + $0x4] sm:$0xf]
      %v1238 = vld [vmem:[%s1235 + $0x8] sm:$0xf]
      %v1239 = vld [vmem:[%s1235 + $0xc] sm:$0xf]
      %v1244 = vunpack.c.l.b16 %v1236
      %v1245 = vunpack.c.l.b16 %v1237
      %v1246 = vunpack.c.l.b16 %v1238
      %v1247 = vunpack.c.l.b16 %v1239
      %v1248 = vpack.c.b16 %v1245, %v1244
      %v1249 = vpack.c.b16 %v1247, %v1246
      %v1251 = vsel %vm600, %v1234, 0
      %v1254 = vsel %vm600, %v1248, 0
      %v1257 = vsel %vm600, %v1249, 0
      %1259 = vmatprep.subr.bf16.mxu0 0
      %1260 = vmatpush1.bf16.xpose.msra.mxu0 0
      %1261 = vmatprep.subr.bf16.mxu0 0
      %1262 = vmatpush1.bf16.xpose.msra.mxu0 0
      %1263 = vmatprep.subr.bf16.mxu0 0
      %1264 = vmatpush1.bf16.xpose.msra.mxu0 0
      %1265 = vmatprep.subr.bf16.mxu0 0
      %1266 = vmatpush1.bf16.xpose.msra.mxu0 0
      %1267 = vmatprep.subr.bf16.mxu0 0
      %1268 = vmatpush1.bf16.xpose.msra.mxu0 0
      %1269 = vmatprep.subr.bf16.mxu0 0
      %1270 = vmatpush1.bf16.xpose.msra.mxu0 0
      %1271 = vmatprep.subr.bf16.mxu0 0
      %1272 = vmatpush1.bf16.xpose.msra.mxu0 %v1257
      %1273 = vmatprep.subr.bf16.mxu0 0
      %1274 = vmatpush1.bf16.xpose.msra.mxu0 %v1254
      %1275 = vmatprep.subr.bf16.mxu0 0
      %1276 = vmatpush2.bf16.xpose.msra.mxu0 0
      %1277 = vmatprep.subr.bf16.mxu0 0
      %1278 = vmatpush2.bf16.xpose.msra.mxu0 0
      %1279 = vmatprep.subr.bf16.mxu0 0
      %1280 = vmatpush2.bf16.xpose.msra.mxu0 0
      %1281 = vmatprep.subr.bf16.mxu0 0
      %1282 = vmatpush2.bf16.xpose.msra.mxu0 0
      %1283 = vmatprep.subr.bf16.mxu0 0
      %1284 = vmatpush2.bf16.xpose.msra.mxu0 0
      %1285 = vmatprep.subr.bf16.mxu0 0
      %1286 = vmatpush2.bf16.xpose.msra.mxu0 0
      %1287 = vmatprep.subr.bf16.mxu0 0
      %1288 = vmatpush2.bf16.xpose.msra.mxu0 0
      %1289 = vmatprep.subr.bf16.mxu0 0
      %1290 = vmatpush2.bf16.xpose.msra.mxu0 0
      %1291 = vmatprep.mubr.bf16.mxu0 0
      %1292 = vmatmul.mubr.bf16.gmra.mxu0 %v1251
      %v1293 = vpop.f32.mrf.mxu0
      %v1294 = vadd.f32 0.0, %v1293
      %v1295 = vpop.f32.mrf.mxu0
      %v1296 = vpop.f32.mrf.mxu0
      %v1297 = vpop.f32.mrf.mxu0
      %1298 = vdwg.mxu0
      %v1299 = vadd.f32 %v1123, %v1294
      %v1300 = vld [vmem:[%s5] sm:$0x1]
      %v1302 = vlaneseq
      %v1303 = vshrl.u32 %v1302, 7
      %v1304 = vsub.s32 0, %v1303
      %v1305 = vrot.slane %v1300, %v1304
      %v1307 = vadd.f32 %v1299, %v1305
      %v1308 = vld [vmem:[%s6] sm:$0x1]
      %v1309 = vld [vmem:[%s7] sm:$0x1]
      %v1310 = vadd.f32 %v1307, %v482
      %v1311 = vsel %vm532, %v1310, 0.0
      %1312 = vadd.xlane.f32.xlu0 %v1311
      %v1313 = vpop.xlane.xlu0 %1312
      %v1314 = vrcp.pop 32.0
      %v1315 = vmul.f32 %v1313, %v1314
      %v1316 = vsub.f32 %v1310, %v1315
      %v1317 = vmul.f32 %v1316, %v1316
      %v1318 = vsel %vm532, %v1317, 0.0
      %1319 = vadd.xlane.f32.xlu0 %v1318
      %v1320 = vpop.xlane.xlu0 %1319
      %v1321 = vmul.f32 %v1320, %v1314
      %v1322 = vadd.f32 %v1321, 1e-05
      %v1323 = vrsqrt.pop %v1322
      %v1324 = vmul.f32 %v1316, %v1323
      %v1326 = vlaneseq
      %v1327 = vshrl.u32 %v1326, 7
      %v1328 = vsub.s32 0, %v1327
      %v1329 = vrot.slane %v1308, %v1328
      %v1331 = vmul.f32 %v1324, %v1329
      %v1333 = vlaneseq
      %v1334 = vshrl.u32 %v1333, 7
      %v1335 = vsub.s32 0, %v1334
      %v1336 = vrot.slane %v1309, %v1335
      %v1338 = vadd.f32 %v1331, %v1336
      %v1339 = vld [vmem:[%s475] sm:$0xf]
      %v1340 = vld [vmem:[%s8] sm:$0xf]
      %v1341 = vld [vmem:[%s8 + $0x4] sm:$0xf]
      %v1342 = vld [vmem:[%s8 + $0x8] sm:$0xf]
      %v1343 = vld [vmem:[%s8 + $0xc] sm:$0xf]
      %v1344 = vpack.c.bf16 %v1338, %v1338
      %v1345 = vld [vmem:[%s9] sm:$0x1]
      %v1347 = vlaneseq
      %v1348 = vshrl.u32 %v1347, 7
      %v1349 = vsub.s32 0, %v1348
      %v1350 = vrot.slane %v1345, %v1349
      %v1356 = vunpack.c.l.b16 %v1340
      %v1357 = vunpack.c.l.b16 %v1341
      %v1358 = vunpack.c.l.b16 %v1342
      %v1359 = vunpack.c.l.b16 %v1343
      %v1360 = vpack.c.b16 %v1357, %v1356
      %v1361 = vpack.c.b16 %v1359, %v1358
      %v1363 = vsel %vm532, %v1344, 0
      %v1366 = vsel %vm532, %v1360, 0
      %v1369 = vsel %vm532, %v1361, 0
      %1371 = vmatprep.subr.bf16.mxu0 0
      %1372 = vmatpush1.bf16.xpose.msra.mxu0 0
      %1373 = vmatprep.subr.bf16.mxu0 0
      %1374 = vmatpush1.bf16.xpose.msra.mxu0 0
      %1375 = vmatprep.subr.bf16.mxu0 0
      %1376 = vmatpush1.bf16.xpose.msra.mxu0 0
      %1377 = vmatprep.subr.bf16.mxu0 0
      %1378 = vmatpush1.bf16.xpose.msra.mxu0 0
      %1379 = vmatprep.subr.bf16.mxu0 0
      %1380 = vmatpush1.bf16.xpose.msra.mxu0 0
      %1381 = vmatprep.subr.bf16.mxu0 0
      %1382 = vmatpush1.bf16.xpose.msra.mxu0 0
      %1383 = vmatprep.subr.bf16.mxu0 0
      %1384 = vmatpush1.bf16.xpose.msra.mxu0 %v1369
      %1385 = vmatprep.subr.bf16.mxu0 0
      %1386 = vmatpush1.bf16.xpose.msra.mxu0 %v1366
      %1387 = vmatprep.subr.bf16.mxu0 0
      %1388 = vmatpush2.bf16.xpose.msra.mxu0 0
      %1389 = vmatprep.subr.bf16.mxu0 0
      %1390 = vmatpush2.bf16.xpose.msra.mxu0 0
      %1391 = vmatprep.subr.bf16.mxu0 0
      %1392 = vmatpush2.bf16.xpose.msra.mxu0 0
      %1393 = vmatprep.subr.bf16.mxu0 0
      %1394 = vmatpush2.bf16.xpose.msra.mxu0 0
      %1395 = vmatprep.subr.bf16.mxu0 0
      %1396 = vmatpush2.bf16.xpose.msra.mxu0 0
      %1397 = vmatprep.subr.bf16.mxu0 0
      %1398 = vmatpush2.bf16.xpose.msra.mxu0 0
      %1399 = vmatprep.subr.bf16.mxu0 0
      %1400 = vmatpush2.bf16.xpose.msra.mxu0 0
      %1401 = vmatprep.subr.bf16.mxu0 0
      %1402 = vmatpush2.bf16.xpose.msra.mxu0 0
      %1403 = vmatprep.mubr.bf16.mxu0 0
      %1404 = vmatmul.mubr.bf16.gmra.mxu0 %v1363
      %v1405 = vpop.f32.mrf.mxu0
      %v1406 = vadd.f32 %v1350, %v1405
      %v1407 = vpop.f32.mrf.mxu0
      %v1408 = vpop.f32.mrf.mxu0
      %v1409 = vpop.f32.mrf.mxu0
      %1410 = vdwg.mxu0
      %v1411 = vmul.f32 %v1406, 0.35355338
      %v1412 = vpack.c.bf16 %v1411, %v1411
      %v1414 = vsel %vm600, %v1412, 0
      %v1417 = vsel %vm600, %v1339, 0
      %1419 = vmatprep.subr.bf16.mxu0 0
      %1420 = vmatpush1.bf16.xpose.msra.mxu0 0
      %1421 = vmatprep.subr.bf16.mxu0 0
      %1422 = vmatpush1.bf16.xpose.msra.mxu0 0
      %1423 = vmatprep.subr.bf16.mxu0 0
      %1424 = vmatpush1.bf16.xpose.msra.mxu0 0
      %1425 = vmatprep.subr.bf16.mxu0 0
      %1426 = vmatpush1.bf16.xpose.msra.mxu0 0
      %1427 = vmatprep.subr.bf16.mxu0 0
      %1428 = vmatpush1.bf16.xpose.msra.mxu0 0
      %1429 = vmatprep.subr.bf16.mxu0 0
      %1430 = vmatpush1.bf16.xpose.msra.mxu0 0
      %1431 = vmatprep.subr.bf16.mxu0 0
      %1432 = vmatpush1.bf16.xpose.msra.mxu0 0
      %1433 = vmatprep.subr.bf16.mxu0 0
      %1434 = vmatpush1.bf16.xpose.msra.mxu0 %v1417
      %1435 = vmatprep.subr.bf16.mxu0 0
      %1436 = vmatpush2.bf16.xpose.msra.mxu0 0
      %1437 = vmatprep.subr.bf16.mxu0 0
      %1438 = vmatpush2.bf16.xpose.msra.mxu0 0
      %1439 = vmatprep.subr.bf16.mxu0 0
      %1440 = vmatpush2.bf16.xpose.msra.mxu0 0
      %1441 = vmatprep.subr.bf16.mxu0 0
      %1442 = vmatpush2.bf16.xpose.msra.mxu0 0
      %1443 = vmatprep.subr.bf16.mxu0 0
      %1444 = vmatpush2.bf16.xpose.msra.mxu0 0
      %1445 = vmatprep.subr.bf16.mxu0 0
      %1446 = vmatpush2.bf16.xpose.msra.mxu0 0
      %1447 = vmatprep.subr.bf16.mxu0 0
      %1448 = vmatpush2.bf16.xpose.msra.mxu0 0
      %1449 = vmatprep.subr.bf16.mxu0 0
      %1450 = vmatpush2.bf16.xpose.msra.mxu0 0
      %1451 = vmatprep.mubr.bf16.mxu0 0
      %1452 = vmatmul.mubr.bf16.gmra.mxu0 %v1414
      %v1453 = vpop.f32.mrf.mxu0
      %v1454 = vadd.f32 0.0, %v1453
      %v1455 = vpop.f32.mrf.mxu0
      %v1456 = vpop.f32.mrf.mxu0
      %v1457 = vpop.f32.mrf.mxu0
      %1458 = vdwg.mxu0
      %v1459 = vsel %vm600, %v1454, -inf
      %1460 = vmax.xlane.f32.xlu0 %v1459
      %v1461 = vpop.xlane.xlu0 %1460
      %v1462 = vsub.f32 %v1454, %v1461
      %v1463 = vmul.f32 %v1462, 1.442695
      %v1464 = vpow.pop %v1463
      %v1465 = vsel %vm600, %v1464, 0.0
      %1466 = vadd.xlane.f32.xlu0 %v1465
      %v1467 = vpop.xlane.xlu0 %1466
      %v1468 = vrcp.pop %v1467
      %v1469 = vmul.f32 %v1464, %v1468
      %v1470 = vpack.c.bf16 %v1469, %v1469
      %v1472 = vunpack.c.l.b16 %v1339
      %v1473 = vpack.c.b16 %v1472, %v1472
      %1474 = vrot.lane.b32.xlu0 %v1473, 96
      %v1475 = vpop.permute.xlu0 %1474
      %v1477 = vsel %vm600, %v1470, 0
      %v1480 = vsel %vm664, %v1475, 0
      %1482 = vmatprep.subr.bf16.mxu0 0
      %1483 = vmatpush1.bf16.msra.mxu0 0
      %1484 = vmatprep.subr.bf16.mxu0 0
      %1485 = vmatpush1.bf16.msra.mxu0 0
      %1486 = vmatprep.subr.bf16.mxu0 0
      %1487 = vmatpush1.bf16.msra.mxu0 0
      %1488 = vmatprep.subr.bf16.mxu0 0
      %1489 = vmatpush1.bf16.msra.mxu0 0
      %1490 = vmatprep.subr.bf16.mxu0 0
      %1491 = vmatpush1.bf16.msra.mxu0 0
      %1492 = vmatprep.subr.bf16.mxu0 0
      %1493 = vmatpush1.bf16.msra.mxu0 0
      %1494 = vmatprep.subr.bf16.mxu0 0
      %1495 = vmatpush1.bf16.msra.mxu0 0
      %1496 = vmatprep.subr.bf16.mxu0 0
      %1497 = vmatpush1.bf16.msra.mxu0 %v1480
      %1498 = vmatprep.subr.bf16.mxu0 0
      %1499 = vmatpush2.bf16.msra.mxu0 0
      %1500 = vmatprep.subr.bf16.mxu0 0
      %1501 = vmatpush2.bf16.msra.mxu0 0
      %1502 = vmatprep.subr.bf16.mxu0 0
      %1503 = vmatpush2.bf16.msra.mxu0 0
      %1504 = vmatprep.subr.bf16.mxu0 0
      %1505 = vmatpush2.bf16.msra.mxu0 0
      %1506 = vmatprep.subr.bf16.mxu0 0
      %1507 = vmatpush2.bf16.msra.mxu0 0
      %1508 = vmatprep.subr.bf16.mxu0 0
      %1509 = vmatpush2.bf16.msra.mxu0 0
      %1510 = vmatprep.subr.bf16.mxu0 0
      %1511 = vmatpush2.bf16.msra.mxu0 0
      %1512 = vmatprep.subr.bf16.mxu0 0
      %1513 = vmatpush2.bf16.msra.mxu0 0
      %1514 = vmatprep.mubr.bf16.mxu0 0
      %1515 = vmatmul.mubr.bf16.gmra.mxu0 %v1477
      %v1516 = vpop.f32.mrf.mxu0
      %v1517 = vadd.f32 0.0, %v1516
      %v1518 = vpop.f32.mrf.mxu0
      %v1519 = vpop.f32.mrf.mxu0
      %v1520 = vpop.f32.mrf.mxu0
      %1521 = vdwg.mxu0
      %v1522 = vpack.c.bf16 %v1517, %v1517
      %v1523 = vld [vmem:[%s10] sm:$0xf]
      %v1524 = vld [vmem:[%s10 + $0x4] sm:$0xf]
      %v1525 = vld [vmem:[%s10 + $0x8] sm:$0xf]
      %v1526 = vld [vmem:[%s10 + $0xc] sm:$0xf]
      %1528 = vrot.lane.b32.xlu0 %v1412, 120
      %v1529 = vpop.permute.xlu0 %1528
      %1530 = vrot.lane.b32.xlu0 %v1473, 120
      %v1531 = vpop.permute.xlu0 %1530
      %v1533 = vsel %vm600, %v1529, 0
      %v1536 = vsel %vm600, %v1531, 0
      %1538 = vmatprep.subr.bf16.mxu0 0
      %1539 = vmatpush1.bf16.xpose.msra.mxu0 0
      %1540 = vmatprep.subr.bf16.mxu0 0
      %1541 = vmatpush1.bf16.xpose.msra.mxu0 0
      %1542 = vmatprep.subr.bf16.mxu0 0
      %1543 = vmatpush1.bf16.xpose.msra.mxu0 0
      %1544 = vmatprep.subr.bf16.mxu0 0
      %1545 = vmatpush1.bf16.xpose.msra.mxu0 0
      %1546 = vmatprep.subr.bf16.mxu0 0
      %1547 = vmatpush1.bf16.xpose.msra.mxu0 0
      %1548 = vmatprep.subr.bf16.mxu0 0
      %1549 = vmatpush1.bf16.xpose.msra.mxu0 0
      %1550 = vmatprep.subr.bf16.mxu0 0
      %1551 = vmatpush1.bf16.xpose.msra.mxu0 0
      %1552 = vmatprep.subr.bf16.mxu0 0
      %1553 = vmatpush1.bf16.xpose.msra.mxu0 %v1536
      %1554 = vmatprep.subr.bf16.mxu0 0
      %1555 = vmatpush2.bf16.xpose.msra.mxu0 0
      %1556 = vmatprep.subr.bf16.mxu0 0
      %1557 = vmatpush2.bf16.xpose.msra.mxu0 0
      %1558 = vmatprep.subr.bf16.mxu0 0
      %1559 = vmatpush2.bf16.xpose.msra.mxu0 0
      %1560 = vmatprep.subr.bf16.mxu0 0
      %1561 = vmatpush2.bf16.xpose.msra.mxu0 0
      %1562 = vmatprep.subr.bf16.mxu0 0
      %1563 = vmatpush2.bf16.xpose.msra.mxu0 0
      %1564 = vmatprep.subr.bf16.mxu0 0
      %1565 = vmatpush2.bf16.xpose.msra.mxu0 0
      %1566 = vmatprep.subr.bf16.mxu0 0
      %1567 = vmatpush2.bf16.xpose.msra.mxu0 0
      %1568 = vmatprep.subr.bf16.mxu0 0
      %1569 = vmatpush2.bf16.xpose.msra.mxu0 0
      %1570 = vmatprep.mubr.bf16.mxu0 0
      %1571 = vmatmul.mubr.bf16.gmra.mxu0 %v1533
      %v1572 = vpop.f32.mrf.mxu0
      %v1573 = vadd.f32 0.0, %v1572
      %v1574 = vpop.f32.mrf.mxu0
      %v1575 = vpop.f32.mrf.mxu0
      %v1576 = vpop.f32.mrf.mxu0
      %1577 = vdwg.mxu0
      %v1578 = vsel %vm600, %v1573, -inf
      %1579 = vmax.xlane.f32.xlu0 %v1578
      %v1580 = vpop.xlane.xlu0 %1579
      %v1581 = vsub.f32 %v1573, %v1580
      %v1582 = vmul.f32 %v1581, 1.442695
      %v1583 = vpow.pop %v1582
      %v1584 = vsel %vm600, %v1583, 0.0
      %1585 = vadd.xlane.f32.xlu0 %v1584
      %v1586 = vpop.xlane.xlu0 %1585
      %v1587 = vrcp.pop %v1586
      %v1588 = vmul.f32 %v1583, %v1587
      %v1589 = vpack.c.bf16 %v1588, %v1588
      %1590 = vrot.lane.b32.xlu0 %v1473, 88
      %v1591 = vpop.permute.xlu0 %1590
      %v1593 = vsel %vm600, %v1589, 0
      %v1596 = vsel %vm664, %v1591, 0
      %1598 = vmatprep.subr.bf16.mxu0 0
      %1599 = vmatpush1.bf16.msra.mxu0 0
      %1600 = vmatprep.subr.bf16.mxu0 0
      %1601 = vmatpush1.bf16.msra.mxu0 0
      %1602 = vmatprep.subr.bf16.mxu0 0
      %1603 = vmatpush1.bf16.msra.mxu0 0
      %1604 = vmatprep.subr.bf16.mxu0 0
      %1605 = vmatpush1.bf16.msra.mxu0 0
      %1606 = vmatprep.subr.bf16.mxu0 0
      %1607 = vmatpush1.bf16.msra.mxu0 0
      %1608 = vmatprep.subr.bf16.mxu0 0
      %1609 = vmatpush1.bf16.msra.mxu0 0
      %1610 = vmatprep.subr.bf16.mxu0 0
      %1611 = vmatpush1.bf16.msra.mxu0 0
      %1612 = vmatprep.subr.bf16.mxu0 0
      %1613 = vmatpush1.bf16.msra.mxu0 %v1596
      %1614 = vmatprep.subr.bf16.mxu0 0
      %1615 = vmatpush2.bf16.msra.mxu0 0
      %1616 = vmatprep.subr.bf16.mxu0 0
      %1617 = vmatpush2.bf16.msra.mxu0 0
      %1618 = vmatprep.subr.bf16.mxu0 0
      %1619 = vmatpush2.bf16.msra.mxu0 0
      %1620 = vmatprep.subr.bf16.mxu0 0
      %1621 = vmatpush2.bf16.msra.mxu0 0
      %1622 = vmatprep.subr.bf16.mxu0 0
      %1623 = vmatpush2.bf16.msra.mxu0 0
      %1624 = vmatprep.subr.bf16.mxu0 0
      %1625 = vmatpush2.bf16.msra.mxu0 0
      %1626 = vmatprep.subr.bf16.mxu0 0
      %1627 = vmatpush2.bf16.msra.mxu0 0
      %1628 = vmatprep.subr.bf16.mxu0 0
      %1629 = vmatpush2.bf16.msra.mxu0 0
      %1630 = vmatprep.mubr.bf16.mxu0 0
      %1631 = vmatmul.mubr.bf16.gmra.mxu0 %v1593
      %v1632 = vpop.f32.mrf.mxu0
      %v1633 = vadd.f32 0.0, %v1632
      %v1634 = vpop.f32.mrf.mxu0
      %v1635 = vpop.f32.mrf.mxu0
      %v1636 = vpop.f32.mrf.mxu0
      %1637 = vdwg.mxu0
      %v1638 = vpack.c.bf16 %v1633, %v1633
      %s1639 = scalar_lea.vmem %s10, 16
      %v1640 = vld [vmem:[%s1639] sm:$0xf]
      %v1641 = vld [vmem:[%s1639 + $0x4] sm:$0xf]
      %v1642 = vld [vmem:[%s1639 + $0x8] sm:$0xf]
      %v1643 = vld [vmem:[%s1639 + $0xc] sm:$0xf]
      %v1648 = vunpack.c.l.b16 %v1640
      %v1649 = vunpack.c.l.b16 %v1641
      %v1650 = vunpack.c.l.b16 %v1642
      %v1651 = vunpack.c.l.b16 %v1643
      %v1652 = vpack.c.b16 %v1649, %v1648
      %v1653 = vpack.c.b16 %v1651, %v1650
      %v1655 = vsel %vm600, %v1638, 0
      %v1658 = vsel %vm600, %v1652, 0
      %v1661 = vsel %vm600, %v1653, 0
      %1663 = vmatprep.subr.bf16.mxu0 0
      %1664 = vmatpush1.bf16.xpose.msra.mxu0 0
      %1665 = vmatprep.subr.bf16.mxu0 0
      %1666 = vmatpush1.bf16.xpose.msra.mxu0 0
      %1667 = vmatprep.subr.bf16.mxu0 0
      %1668 = vmatpush1.bf16.xpose.msra.mxu0 0
      %1669 = vmatprep.subr.bf16.mxu0 0
      %1670 = vmatpush1.bf16.xpose.msra.mxu0 0
      %1671 = vmatprep.subr.bf16.mxu0 0
      %1672 = vmatpush1.bf16.xpose.msra.mxu0 0
      %1673 = vmatprep.subr.bf16.mxu0 0
      %1674 = vmatpush1.bf16.xpose.msra.mxu0 0
      %1675 = vmatprep.subr.bf16.mxu0 0
      %1676 = vmatpush1.bf16.xpose.msra.mxu0 %v1661
      %1677 = vmatprep.subr.bf16.mxu0 0
      %1678 = vmatpush1.bf16.xpose.msra.mxu0 %v1658
      %1679 = vmatprep.subr.bf16.mxu0 0
      %1680 = vmatpush2.bf16.xpose.msra.mxu0 0
      %1681 = vmatprep.subr.bf16.mxu0 0
      %1682 = vmatpush2.bf16.xpose.msra.mxu0 0
      %1683 = vmatprep.subr.bf16.mxu0 0
      %1684 = vmatpush2.bf16.xpose.msra.mxu0 0
      %1685 = vmatprep.subr.bf16.mxu0 0
      %1686 = vmatpush2.bf16.xpose.msra.mxu0 0
      %1687 = vmatprep.subr.bf16.mxu0 0
      %1688 = vmatpush2.bf16.xpose.msra.mxu0 0
      %1689 = vmatprep.subr.bf16.mxu0 0
      %1690 = vmatpush2.bf16.xpose.msra.mxu0 0
      %1691 = vmatprep.subr.bf16.mxu0 0
      %1692 = vmatpush2.bf16.xpose.msra.mxu0 0
      %1693 = vmatprep.subr.bf16.mxu0 0
      %1694 = vmatpush2.bf16.xpose.msra.mxu0 0
      %1695 = vmatprep.mubr.bf16.mxu0 0
      %1696 = vmatmul.mubr.bf16.gmra.mxu0 %v1655
      %v1697 = vpop.f32.mrf.mxu0
      %v1698 = vadd.f32 0.0, %v1697
      %v1699 = vpop.f32.mrf.mxu0
      %v1700 = vpop.f32.mrf.mxu0
      %v1701 = vpop.f32.mrf.mxu0
      %1702 = vdwg.mxu0
      %v1707 = vunpack.c.l.b16 %v1523
      %v1708 = vunpack.c.l.b16 %v1524
      %v1709 = vunpack.c.l.b16 %v1525
      %v1710 = vunpack.c.l.b16 %v1526
      %v1711 = vpack.c.b16 %v1708, %v1707
      %v1712 = vpack.c.b16 %v1710, %v1709
      %v1714 = vsel %vm600, %v1522, 0
      %v1717 = vsel %vm600, %v1711, 0
      %v1720 = vsel %vm600, %v1712, 0
      %1722 = vmatprep.subr.bf16.mxu0 0
      %1723 = vmatpush1.bf16.xpose.msra.mxu0 0
      %1724 = vmatprep.subr.bf16.mxu0 0
      %1725 = vmatpush1.bf16.xpose.msra.mxu0 0
      %1726 = vmatprep.subr.bf16.mxu0 0
      %1727 = vmatpush1.bf16.xpose.msra.mxu0 0
      %1728 = vmatprep.subr.bf16.mxu0 0
      %1729 = vmatpush1.bf16.xpose.msra.mxu0 0
      %1730 = vmatprep.subr.bf16.mxu0 0
      %1731 = vmatpush1.bf16.xpose.msra.mxu0 0
      %1732 = vmatprep.subr.bf16.mxu0 0
      %1733 = vmatpush1.bf16.xpose.msra.mxu0 0
      %1734 = vmatprep.subr.bf16.mxu0 0
      %1735 = vmatpush1.bf16.xpose.msra.mxu0 %v1720
      %1736 = vmatprep.subr.bf16.mxu0 0
      %1737 = vmatpush1.bf16.xpose.msra.mxu0 %v1717
      %1738 = vmatprep.subr.bf16.mxu0 0
      %1739 = vmatpush2.bf16.xpose.msra.mxu0 0
      %1740 = vmatprep.subr.bf16.mxu0 0
      %1741 = vmatpush2.bf16.xpose.msra.mxu0 0
      %1742 = vmatprep.subr.bf16.mxu0 0
      %1743 = vmatpush2.bf16.xpose.msra.mxu0 0
      %1744 = vmatprep.subr.bf16.mxu0 0
      %1745 = vmatpush2.bf16.xpose.msra.mxu0 0
      %1746 = vmatprep.subr.bf16.mxu0 0
      %1747 = vmatpush2.bf16.xpose.msra.mxu0 0
      %1748 = vmatprep.subr.bf16.mxu0 0
      %1749 = vmatpush2.bf16.xpose.msra.mxu0 0
      %1750 = vmatprep.subr.bf16.mxu0 0
      %1751 = vmatpush2.bf16.xpose.msra.mxu0 0
      %1752 = vmatprep.subr.bf16.mxu0 0
      %1753 = vmatpush2.bf16.xpose.msra.mxu0 0
      %1754 = vmatprep.mubr.bf16.mxu0 0
      %1755 = vmatmul.mubr.bf16.gmra.mxu0 %v1714
      %v1756 = vpop.f32.mrf.mxu0
      %v1757 = vadd.f32 %v1698, %v1756
      %v1758 = vpop.f32.mrf.mxu0
      %v1759 = vpop.f32.mrf.mxu0
      %v1760 = vpop.f32.mrf.mxu0
      %1761 = vdwg.mxu0
      %1762 = vrot.lane.b32.xlu0 %v1412, 112
      %v1763 = vpop.permute.xlu0 %1762
      %1764 = vrot.lane.b32.xlu0 %v1473, 112
      %v1765 = vpop.permute.xlu0 %1764
      %v1767 = vsel %vm600, %v1763, 0
      %v1770 = vsel %vm600, %v1765, 0
      %1772 = vmatprep.subr.bf16.mxu0 0
      %1773 = vmatpush1.bf16.xpose.msra.mxu0 0
      %1774 = vmatprep.subr.bf16.mxu0 0
      %1775 = vmatpush1.bf16.xpose.msra.mxu0 0
      %1776 = vmatprep.subr.bf16.mxu0 0
      %1777 = vmatpush1.bf16.xpose.msra.mxu0 0
      %1778 = vmatprep.subr.bf16.mxu0 0
      %1779 = vmatpush1.bf16.xpose.msra.mxu0 0
      %1780 = vmatprep.subr.bf16.mxu0 0
      %1781 = vmatpush1.bf16.xpose.msra.mxu0 0
      %1782 = vmatprep.subr.bf16.mxu0 0
      %1783 = vmatpush1.bf16.xpose.msra.mxu0 0
      %1784 = vmatprep.subr.bf16.mxu0 0
      %1785 = vmatpush1.bf16.xpose.msra.mxu0 0
      %1786 = vmatprep.subr.bf16.mxu0 0
      %1787 = vmatpush1.bf16.xpose.msra.mxu0 %v1770
      %1788 = vmatprep.subr.bf16.mxu0 0
      %1789 = vmatpush2.bf16.xpose.msra.mxu0 0
      %1790 = vmatprep.subr.bf16.mxu0 0
      %1791 = vmatpush2.bf16.xpose.msra.mxu0 0
      %1792 = vmatprep.subr.bf16.mxu0 0
      %1793 = vmatpush2.bf16.xpose.msra.mxu0 0
      %1794 = vmatprep.subr.bf16.mxu0 0
      %1795 = vmatpush2.bf16.xpose.msra.mxu0 0
      %1796 = vmatprep.subr.bf16.mxu0 0
      %1797 = vmatpush2.bf16.xpose.msra.mxu0 0
      %1798 = vmatprep.subr.bf16.mxu0 0
      %1799 = vmatpush2.bf16.xpose.msra.mxu0 0
      %1800 = vmatprep.subr.bf16.mxu0 0
      %1801 = vmatpush2.bf16.xpose.msra.mxu0 0
      %1802 = vmatprep.subr.bf16.mxu0 0
      %1803 = vmatpush2.bf16.xpose.msra.mxu0 0
      %1804 = vmatprep.mubr.bf16.mxu0 0
      %1805 = vmatmul.mubr.bf16.gmra.mxu0 %v1767
      %v1806 = vpop.f32.mrf.mxu0
      %v1807 = vadd.f32 0.0, %v1806
      %v1808 = vpop.f32.mrf.mxu0
      %v1809 = vpop.f32.mrf.mxu0
      %v1810 = vpop.f32.mrf.mxu0
      %1811 = vdwg.mxu0
      %v1812 = vsel %vm600, %v1807, -inf
      %1813 = vmax.xlane.f32.xlu0 %v1812
      %v1814 = vpop.xlane.xlu0 %1813
      %v1815 = vsub.f32 %v1807, %v1814
      %v1816 = vmul.f32 %v1815, 1.442695
      %v1817 = vpow.pop %v1816
      %v1818 = vsel %vm600, %v1817, 0.0
      %1819 = vadd.xlane.f32.xlu0 %v1818
      %v1820 = vpop.xlane.xlu0 %1819
      %v1821 = vrcp.pop %v1820
      %v1822 = vmul.f32 %v1817, %v1821
      %v1823 = vpack.c.bf16 %v1822, %v1822
      %1824 = vrot.lane.b32.xlu0 %v1473, 80
      %v1825 = vpop.permute.xlu0 %1824
      %v1827 = vsel %vm600, %v1823, 0
      %v1830 = vsel %vm664, %v1825, 0
      %1832 = vmatprep.subr.bf16.mxu0 0
      %1833 = vmatpush1.bf16.msra.mxu0 0
      %1834 = vmatprep.subr.bf16.mxu0 0
      %1835 = vmatpush1.bf16.msra.mxu0 0
      %1836 = vmatprep.subr.bf16.mxu0 0
      %1837 = vmatpush1.bf16.msra.mxu0 0
      %1838 = vmatprep.subr.bf16.mxu0 0
      %1839 = vmatpush1.bf16.msra.mxu0 0
      %1840 = vmatprep.subr.bf16.mxu0 0
      %1841 = vmatpush1.bf16.msra.mxu0 0
      %1842 = vmatprep.subr.bf16.mxu0 0
      %1843 = vmatpush1.bf16.msra.mxu0 0
      %1844 = vmatprep.subr.bf16.mxu0 0
      %1845 = vmatpush1.bf16.msra.mxu0 0
      %1846 = vmatprep.subr.bf16.mxu0 0
      %1847 = vmatpush1.bf16.msra.mxu0 %v1830
      %1848 = vmatprep.subr.bf16.mxu0 0
      %1849 = vmatpush2.bf16.msra.mxu0 0
      %1850 = vmatprep.subr.bf16.mxu0 0
      %1851 = vmatpush2.bf16.msra.mxu0 0
      %1852 = vmatprep.subr.bf16.mxu0 0
      %1853 = vmatpush2.bf16.msra.mxu0 0
      %1854 = vmatprep.subr.bf16.mxu0 0
      %1855 = vmatpush2.bf16.msra.mxu0 0
      %1856 = vmatprep.subr.bf16.mxu0 0
      %1857 = vmatpush2.bf16.msra.mxu0 0
      %1858 = vmatprep.subr.bf16.mxu0 0
      %1859 = vmatpush2.bf16.msra.mxu0 0
      %1860 = vmatprep.subr.bf16.mxu0 0
      %1861 = vmatpush2.bf16.msra.mxu0 0
      %1862 = vmatprep.subr.bf16.mxu0 0
      %1863 = vmatpush2.bf16.msra.mxu0 0
      %1864 = vmatprep.mubr.bf16.mxu0 0
      %1865 = vmatmul.mubr.bf16.gmra.mxu0 %v1827
      %v1866 = vpop.f32.mrf.mxu0
      %v1867 = vadd.f32 0.0, %v1866
      %v1868 = vpop.f32.mrf.mxu0
      %v1869 = vpop.f32.mrf.mxu0
      %v1870 = vpop.f32.mrf.mxu0
      %1871 = vdwg.mxu0
      %v1872 = vpack.c.bf16 %v1867, %v1867
      %s1873 = scalar_lea.vmem %s10, 32
      %v1874 = vld [vmem:[%s1873] sm:$0xf]
      %v1875 = vld [vmem:[%s1873 + $0x4] sm:$0xf]
      %v1876 = vld [vmem:[%s1873 + $0x8] sm:$0xf]
      %v1877 = vld [vmem:[%s1873 + $0xc] sm:$0xf]
      %v1882 = vunpack.c.l.b16 %v1874
      %v1883 = vunpack.c.l.b16 %v1875
      %v1884 = vunpack.c.l.b16 %v1876
      %v1885 = vunpack.c.l.b16 %v1877
      %v1886 = vpack.c.b16 %v1883, %v1882
      %v1887 = vpack.c.b16 %v1885, %v1884
      %v1889 = vsel %vm600, %v1872, 0
      %v1892 = vsel %vm600, %v1886, 0
      %v1895 = vsel %vm600, %v1887, 0
      %1897 = vmatprep.subr.bf16.mxu0 0
      %1898 = vmatpush1.bf16.xpose.msra.mxu0 0
      %1899 = vmatprep.subr.bf16.mxu0 0
      %1900 = vmatpush1.bf16.xpose.msra.mxu0 0
      %1901 = vmatprep.subr.bf16.mxu0 0
      %1902 = vmatpush1.bf16.xpose.msra.mxu0 0
      %1903 = vmatprep.subr.bf16.mxu0 0
      %1904 = vmatpush1.bf16.xpose.msra.mxu0 0
      %1905 = vmatprep.subr.bf16.mxu0 0
      %1906 = vmatpush1.bf16.xpose.msra.mxu0 0
      %1907 = vmatprep.subr.bf16.mxu0 0
      %1908 = vmatpush1.bf16.xpose.msra.mxu0 0
      %1909 = vmatprep.subr.bf16.mxu0 0
      %1910 = vmatpush1.bf16.xpose.msra.mxu0 %v1895
      %1911 = vmatprep.subr.bf16.mxu0 0
      %1912 = vmatpush1.bf16.xpose.msra.mxu0 %v1892
      %1913 = vmatprep.subr.bf16.mxu0 0
      %1914 = vmatpush2.bf16.xpose.msra.mxu0 0
      %1915 = vmatprep.subr.bf16.mxu0 0
      %1916 = vmatpush2.bf16.xpose.msra.mxu0 0
      %1917 = vmatprep.subr.bf16.mxu0 0
      %1918 = vmatpush2.bf16.xpose.msra.mxu0 0
      %1919 = vmatprep.subr.bf16.mxu0 0
      %1920 = vmatpush2.bf16.xpose.msra.mxu0 0
      %1921 = vmatprep.subr.bf16.mxu0 0
      %1922 = vmatpush2.bf16.xpose.msra.mxu0 0
      %1923 = vmatprep.subr.bf16.mxu0 0
      %1924 = vmatpush2.bf16.xpose.msra.mxu0 0
      %1925 = vmatprep.subr.bf16.mxu0 0
      %1926 = vmatpush2.bf16.xpose.msra.mxu0 0
      %1927 = vmatprep.subr.bf16.mxu0 0
      %1928 = vmatpush2.bf16.xpose.msra.mxu0 0
      %1929 = vmatprep.mubr.bf16.mxu0 0
      %1930 = vmatmul.mubr.bf16.gmra.mxu0 %v1889
      %v1931 = vpop.f32.mrf.mxu0
      %v1932 = vadd.f32 0.0, %v1931
      %v1933 = vpop.f32.mrf.mxu0
      %v1934 = vpop.f32.mrf.mxu0
      %v1935 = vpop.f32.mrf.mxu0
      %1936 = vdwg.mxu0
      %v1937 = vadd.f32 %v1757, %v1932
      %1938 = vrot.lane.b32.xlu0 %v1412, 104
      %v1939 = vpop.permute.xlu0 %1938
      %1940 = vrot.lane.b32.xlu0 %v1473, 104
      %v1941 = vpop.permute.xlu0 %1940
      %v1943 = vsel %vm600, %v1939, 0
      %v1946 = vsel %vm600, %v1941, 0
      %1948 = vmatprep.subr.bf16.mxu0 0
      %1949 = vmatpush1.bf16.xpose.msra.mxu0 0
      %1950 = vmatprep.subr.bf16.mxu0 0
      %1951 = vmatpush1.bf16.xpose.msra.mxu0 0
      %1952 = vmatprep.subr.bf16.mxu0 0
      %1953 = vmatpush1.bf16.xpose.msra.mxu0 0
      %1954 = vmatprep.subr.bf16.mxu0 0
      %1955 = vmatpush1.bf16.xpose.msra.mxu0 0
      %1956 = vmatprep.subr.bf16.mxu0 0
      %1957 = vmatpush1.bf16.xpose.msra.mxu0 0
      %1958 = vmatprep.subr.bf16.mxu0 0
      %1959 = vmatpush1.bf16.xpose.msra.mxu0 0
      %1960 = vmatprep.subr.bf16.mxu0 0
      %1961 = vmatpush1.bf16.xpose.msra.mxu0 0
      %1962 = vmatprep.subr.bf16.mxu0 0
      %1963 = vmatpush1.bf16.xpose.msra.mxu0 %v1946
      %1964 = vmatprep.subr.bf16.mxu0 0
      %1965 = vmatpush2.bf16.xpose.msra.mxu0 0
      %1966 = vmatprep.subr.bf16.mxu0 0
      %1967 = vmatpush2.bf16.xpose.msra.mxu0 0
      %1968 = vmatprep.subr.bf16.mxu0 0
      %1969 = vmatpush2.bf16.xpose.msra.mxu0 0
      %1970 = vmatprep.subr.bf16.mxu0 0
      %1971 = vmatpush2.bf16.xpose.msra.mxu0 0
      %1972 = vmatprep.subr.bf16.mxu0 0
      %1973 = vmatpush2.bf16.xpose.msra.mxu0 0
      %1974 = vmatprep.subr.bf16.mxu0 0
      %1975 = vmatpush2.bf16.xpose.msra.mxu0 0
      %1976 = vmatprep.subr.bf16.mxu0 0
      %1977 = vmatpush2.bf16.xpose.msra.mxu0 0
      %1978 = vmatprep.subr.bf16.mxu0 0
      %1979 = vmatpush2.bf16.xpose.msra.mxu0 0
      %1980 = vmatprep.mubr.bf16.mxu0 0
      %1981 = vmatmul.mubr.bf16.gmra.mxu0 %v1943
      %v1982 = vpop.f32.mrf.mxu0
      %v1983 = vadd.f32 0.0, %v1982
      %v1984 = vpop.f32.mrf.mxu0
      %v1985 = vpop.f32.mrf.mxu0
      %v1986 = vpop.f32.mrf.mxu0
      %1987 = vdwg.mxu0
      %v1988 = vsel %vm600, %v1983, -inf
      %1989 = vmax.xlane.f32.xlu0 %v1988
      %v1990 = vpop.xlane.xlu0 %1989
      %v1991 = vsub.f32 %v1983, %v1990
      %v1992 = vmul.f32 %v1991, 1.442695
      %v1993 = vpow.pop %v1992
      %v1994 = vsel %vm600, %v1993, 0.0
      %1995 = vadd.xlane.f32.xlu0 %v1994
      %v1996 = vpop.xlane.xlu0 %1995
      %v1997 = vrcp.pop %v1996
      %v1998 = vmul.f32 %v1993, %v1997
      %v1999 = vpack.c.bf16 %v1998, %v1998
      %2000 = vrot.lane.b32.xlu0 %v1473, 72
      %v2001 = vpop.permute.xlu0 %2000
      %v2003 = vsel %vm600, %v1999, 0
      %v2006 = vsel %vm664, %v2001, 0
      %2008 = vmatprep.subr.bf16.mxu0 0
      %2009 = vmatpush1.bf16.msra.mxu0 0
      %2010 = vmatprep.subr.bf16.mxu0 0
      %2011 = vmatpush1.bf16.msra.mxu0 0
      %2012 = vmatprep.subr.bf16.mxu0 0
      %2013 = vmatpush1.bf16.msra.mxu0 0
      %2014 = vmatprep.subr.bf16.mxu0 0
      %2015 = vmatpush1.bf16.msra.mxu0 0
      %2016 = vmatprep.subr.bf16.mxu0 0
      %2017 = vmatpush1.bf16.msra.mxu0 0
      %2018 = vmatprep.subr.bf16.mxu0 0
      %2019 = vmatpush1.bf16.msra.mxu0 0
      %2020 = vmatprep.subr.bf16.mxu0 0
      %2021 = vmatpush1.bf16.msra.mxu0 0
      %2022 = vmatprep.subr.bf16.mxu0 0
      %2023 = vmatpush1.bf16.msra.mxu0 %v2006
      %2024 = vmatprep.subr.bf16.mxu0 0
      %2025 = vmatpush2.bf16.msra.mxu0 0
      %2026 = vmatprep.subr.bf16.mxu0 0
      %2027 = vmatpush2.bf16.msra.mxu0 0
      %2028 = vmatprep.subr.bf16.mxu0 0
      %2029 = vmatpush2.bf16.msra.mxu0 0
      %2030 = vmatprep.subr.bf16.mxu0 0
      %2031 = vmatpush2.bf16.msra.mxu0 0
      %2032 = vmatprep.subr.bf16.mxu0 0
      %2033 = vmatpush2.bf16.msra.mxu0 0
      %2034 = vmatprep.subr.bf16.mxu0 0
      %2035 = vmatpush2.bf16.msra.mxu0 0
      %2036 = vmatprep.subr.bf16.mxu0 0
      %2037 = vmatpush2.bf16.msra.mxu0 0
      %2038 = vmatprep.subr.bf16.mxu0 0
      %2039 = vmatpush2.bf16.msra.mxu0 0
      %2040 = vmatprep.mubr.bf16.mxu0 0
      %2041 = vmatmul.mubr.bf16.gmra.mxu0 %v2003
      %v2042 = vpop.f32.mrf.mxu0
      %v2043 = vadd.f32 0.0, %v2042
      %v2044 = vpop.f32.mrf.mxu0
      %v2045 = vpop.f32.mrf.mxu0
      %v2046 = vpop.f32.mrf.mxu0
      %2047 = vdwg.mxu0
      %v2048 = vpack.c.bf16 %v2043, %v2043
      %s2049 = scalar_lea.vmem %s10, 48
      %v2050 = vld [vmem:[%s2049] sm:$0xf]
      %v2051 = vld [vmem:[%s2049 + $0x4] sm:$0xf]
      %v2052 = vld [vmem:[%s2049 + $0x8] sm:$0xf]
      %v2053 = vld [vmem:[%s2049 + $0xc] sm:$0xf]
      %v2058 = vunpack.c.l.b16 %v2050
      %v2059 = vunpack.c.l.b16 %v2051
      %v2060 = vunpack.c.l.b16 %v2052
      %v2061 = vunpack.c.l.b16 %v2053
      %v2062 = vpack.c.b16 %v2059, %v2058
      %v2063 = vpack.c.b16 %v2061, %v2060
      %v2065 = vsel %vm600, %v2048, 0
      %v2068 = vsel %vm600, %v2062, 0
      %v2071 = vsel %vm600, %v2063, 0
      %2073 = vmatprep.subr.bf16.mxu0 0
      %2074 = vmatpush1.bf16.xpose.msra.mxu0 0
      %2075 = vmatprep.subr.bf16.mxu0 0
      %2076 = vmatpush1.bf16.xpose.msra.mxu0 0
      %2077 = vmatprep.subr.bf16.mxu0 0
      %2078 = vmatpush1.bf16.xpose.msra.mxu0 0
      %2079 = vmatprep.subr.bf16.mxu0 0
      %2080 = vmatpush1.bf16.xpose.msra.mxu0 0
      %2081 = vmatprep.subr.bf16.mxu0 0
      %2082 = vmatpush1.bf16.xpose.msra.mxu0 0
      %2083 = vmatprep.subr.bf16.mxu0 0
      %2084 = vmatpush1.bf16.xpose.msra.mxu0 0
      %2085 = vmatprep.subr.bf16.mxu0 0
      %2086 = vmatpush1.bf16.xpose.msra.mxu0 %v2071
      %2087 = vmatprep.subr.bf16.mxu0 0
      %2088 = vmatpush1.bf16.xpose.msra.mxu0 %v2068
      %2089 = vmatprep.subr.bf16.mxu0 0
      %2090 = vmatpush2.bf16.xpose.msra.mxu0 0
      %2091 = vmatprep.subr.bf16.mxu0 0
      %2092 = vmatpush2.bf16.xpose.msra.mxu0 0
      %2093 = vmatprep.subr.bf16.mxu0 0
      %2094 = vmatpush2.bf16.xpose.msra.mxu0 0
      %2095 = vmatprep.subr.bf16.mxu0 0
      %2096 = vmatpush2.bf16.xpose.msra.mxu0 0
      %2097 = vmatprep.subr.bf16.mxu0 0
      %2098 = vmatpush2.bf16.xpose.msra.mxu0 0
      %2099 = vmatprep.subr.bf16.mxu0 0
      %2100 = vmatpush2.bf16.xpose.msra.mxu0 0
      %2101 = vmatprep.subr.bf16.mxu0 0
      %2102 = vmatpush2.bf16.xpose.msra.mxu0 0
      %2103 = vmatprep.subr.bf16.mxu0 0
      %2104 = vmatpush2.bf16.xpose.msra.mxu0 0
      %2105 = vmatprep.mubr.bf16.mxu0 0
      %2106 = vmatmul.mubr.bf16.gmra.mxu0 %v2065
      %v2107 = vpop.f32.mrf.mxu0
      %v2108 = vadd.f32 0.0, %v2107
      %v2109 = vpop.f32.mrf.mxu0
      %v2110 = vpop.f32.mrf.mxu0
      %v2111 = vpop.f32.mrf.mxu0
      %2112 = vdwg.mxu0
      %v2113 = vadd.f32 %v1937, %v2108
      %v2114 = vld [vmem:[%s11] sm:$0x1]
      %v2116 = vlaneseq
      %v2117 = vshrl.u32 %v2116, 7
      %v2118 = vsub.s32 0, %v2117
      %v2119 = vrot.slane %v2114, %v2118
      %v2121 = vadd.f32 %v2113, %v2119
      %v2122 = vld [vmem:[%s12] sm:$0x1]
      %v2123 = vld [vmem:[%s13] sm:$0x1]
      %v2124 = vadd.f32 %v2121, %v1338
      %v2125 = vsel %vm532, %v2124, 0.0
      %2126 = vadd.xlane.f32.xlu0 %v2125
      %v2127 = vpop.xlane.xlu0 %2126
      %v2128 = vmul.f32 %v2127, %v1314
      %v2129 = vsub.f32 %v2124, %v2128
      %v2130 = vmul.f32 %v2129, %v2129
      %v2131 = vsel %vm532, %v2130, 0.0
      %2132 = vadd.xlane.f32.xlu0 %v2131
      %v2133 = vpop.xlane.xlu0 %2132
      %v2134 = vmul.f32 %v2133, %v1314
      %v2135 = vadd.f32 %v2134, 1e-05
      %v2136 = vrsqrt.pop %v2135
      %v2137 = vmul.f32 %v2129, %v2136
      %v2139 = vlaneseq
      %v2140 = vshrl.u32 %v2139, 7
      %v2141 = vsub.s32 0, %v2140
      %v2142 = vrot.slane %v2122, %v2141
      %v2144 = vmul.f32 %v2137, %v2142
      %v2146 = vlaneseq
      %v2147 = vshrl.u32 %v2146, 7
      %v2148 = vsub.s32 0, %v2147
      %v2149 = vrot.slane %v2123, %v2148
      %v2151 = vadd.f32 %v2144, %v2149
      %v2152 = vpack.c.bf16 %v2151, %v2151
      %vm2153 = vcmask 257024
      %2154 = vst.msk [vmem:[%s479] sm:$0xf] %vm2153, %v2152
      %p2155 = scmp.lt.s32.totalorder %s25, 1
      %s2156 = scalar_select %p2155, %s25, 1
      %s2157 = smul.addr %s2156, 4
      %s2158 = scalar_lea.vmem %s14, %s2157
      // Predicated region
      $region77: #{_lambda_.6} parent=75 // pred_check
        %p2159 = pneg %p347
      $region78: #{_lambda_.6} parent=75 // pred_check_branch
        %2161 = sbr.rel (%p2159) target = $region80
      $region79: #{_lambda_.6} parent=75 // pred_region
        _
      $region80: #{_lambda_.6} parent=75 // pred_fallthru
        _
    $region76: #{_lambda_.6} parent=5 // pred_fallthru
      _
    %p2162 = scmp.le.s32.totalorder 2, %s20
    // Predicated region
    $region81: #{_lambda_.6} parent=5 // pred_check
      %p2163 = pneg %p2162
    $region82: #{_lambda_.6} parent=5 // pred_check_branch
      %2165 = sbr.rel (%p2163) target = $region84
    $region83: #{_lambda_.6} parent=5 // pred_region
      %s2166 = ssub.s32 %s20, 2
      // Predicated region
      $region85: #{_lambda_.6} parent=83 // pred_check
        %p2167 = pneg %p353
      $region86: #{_lambda_.6} parent=83 // pred_check_branch
        %2169 = sbr.rel (%p2167) target = $region88
      $region87: #{_lambda_.6} parent=83 // pred_region
        %p2170 = scmp.lt.s32.totalorder %s26, 1
        %s2171 = scalar_select %p2170, %s26, 1
        %s2172 = smul.addr %s2171, 4
        %s2173 = scalar_lea.vmem %s14, %s2172
      $region88: #{_lambda_.6} parent=83 // pred_fallthru
        _
    $region84: #{_lambda_.6} parent=5 // pred_fallthru
      _
  $region6: #{_lambda_.6} parent=0 // loop_footer
    %s24 = sadd.s32 1, %s20
  $region7: #{_lambda_.6} parent=0 // loop_footer_branch
    %19 = sbr.rel target = $region3
  $region8: #{_lambda_.6} parent=0 // loop_exit
    _

// kernel: _lambda_.7
$region0: #{_lambda_.7}
  #allocation0 [shape = 'u32[]', space=smem, size = 0x4, offset = 0x4, fixed_abs, tag = 'smem constant byte address 0x4 - core index']
  #allocation1 [shape = 'u32[144,128]{1,0:T(1,128)}', space=vmem, size = 0x12000, scoped, tag = 'internal scratch']
  %s0 = inlined_call_operand.vmem [shape: bf16[16,32], index: 0, kind: input, shape index: {}]
  %s1 = inlined_call_operand.vmem [shape: bf16[64,32], index: 1, kind: input, shape index: {}]
  %s2 = inlined_call_operand.vmem [shape: f32[1,64], index: 2, kind: input, shape index: {}]
  %s3 = inlined_call_operand.vmem [shape: bf16[32,64], index: 3, kind: input, shape index: {}]
  %s4 = inlined_call_operand.vmem [shape: f32[1,32], index: 4, kind: input, shape index: {}]
  %s5 = inlined_call_operand.vmem [shape: f32[1,32], index: 5, kind: input, shape index: {}]
  %s6 = inlined_call_operand.vmem [shape: f32[1,32], index: 6, kind: input, shape index: {}]
  %s7 = inlined_call_operand.vmem [shape: bf16[16,32], index: 7, kind: output, shape index: {}]
  %s8 = sld [smem:[#allocation0]]
  $region38: #{_lambda_.7} parent=0
    _
  %s10 = ssub.s32 1, %s8
  %s11 = scalar_select 0, %s10, %s8
  // Predicated region
  $region2: #{_lambda_.7} parent=0 // pred_check
    _
  $region3: #{_lambda_.7} parent=0 // pred_check_branch
    %13 = sbr.rel (0) target = $region5
  $region4: #{_lambda_.7} parent=0 // pred_region
    _
  $region5: #{_lambda_.7} parent=0 // pred_fallthru
    _
  // Predicated region
  $region6: #{_lambda_.7} parent=0 // pred_check
    _
  $region7: #{_lambda_.7} parent=0 // pred_check_branch
    %15 = sbr.rel (0) target = $region9
  $region8: #{_lambda_.7} parent=0 // pred_region
    _
  $region9: #{_lambda_.7} parent=0 // pred_fallthru
    _
  // Predicated region
  $region10: #{_lambda_.7} parent=0 // pred_check
    _
  $region11: #{_lambda_.7} parent=0 // pred_check_branch
    %17 = sbr.rel (0) target = $region13
  $region12: #{_lambda_.7} parent=0 // pred_region
    _
  $region13: #{_lambda_.7} parent=0 // pred_fallthru
    _
  // Predicated region
  $region14: #{_lambda_.7} parent=0 // pred_check
    _
  $region15: #{_lambda_.7} parent=0 // pred_check_branch
    %19 = sbr.rel (0) target = $region17
  $region16: #{_lambda_.7} parent=0 // pred_region
    _
  $region17: #{_lambda_.7} parent=0 // pred_fallthru
    _
  // Predicated region
  $region18: #{_lambda_.7} parent=0 // pred_check
    _
  $region19: #{_lambda_.7} parent=0 // pred_check_branch
    %21 = sbr.rel (0) target = $region21
  $region20: #{_lambda_.7} parent=0 // pred_region
    _
  $region21: #{_lambda_.7} parent=0 // pred_fallthru
    _
  // Predicated region
  $region22: #{_lambda_.7} parent=0 // pred_check
    _
  $region23: #{_lambda_.7} parent=0 // pred_check_branch
    %23 = sbr.rel (0) target = $region25
  $region24: #{_lambda_.7} parent=0 // pred_region
    _
  $region25: #{_lambda_.7} parent=0 // pred_fallthru
    _
  // Predicated region
  $region26: #{_lambda_.7} parent=0 // pred_check
    _
  $region27: #{_lambda_.7} parent=0 // pred_check_branch
    %25 = sbr.rel (0) target = $region29
  $region28: #{_lambda_.7} parent=0 // pred_region
    _
  $region29: #{_lambda_.7} parent=0 // pred_fallthru
    _
  %v27 = vld [vmem:[%s0] sm:$0xf]
  %v28 = vld [vmem:[%s0 + $0x4] sm:$0xf]
  %v29 = vunpack.c.l.bf16 %v27
  %v30 = vunpack.c.l.bf16 %v28
  %v31 = vld [vmem:[%s1] sm:$0xf]
  %v32 = vld [vmem:[%s1 + $0x4] sm:$0xf]
  %v33 = vld [vmem:[%s1 + $0x8] sm:$0xf]
  %v34 = vld [vmem:[%s1 + $0xc] sm:$0xf]
  %v35 = vld [vmem:[%s1 + $0x10] sm:$0xf]
  %v36 = vld [vmem:[%s1 + $0x14] sm:$0xf]
  %v37 = vld [vmem:[%s1 + $0x18] sm:$0xf]
  %v38 = vld [vmem:[%s1 + $0x1c] sm:$0xf]
  %v39 = vld [vmem:[%s2] sm:$0x1]
  %v41 = vlaneseq
  %v42 = vshrl.u32 %v41, 7
  %v43 = vsub.s32 0, %v42
  %v44 = vrot.slane %v39, %v43
  %v48 = vunpack.c.l.b16 %v27
  %v49 = vunpack.c.l.b16 %v28
  %v50 = vpack.c.b16 %v49, %v48
  %v59 = vunpack.c.l.b16 %v31
  %v60 = vunpack.c.l.b16 %v32
  %v61 = vunpack.c.l.b16 %v33
  %v62 = vunpack.c.l.b16 %v34
  %v63 = vunpack.c.l.b16 %v35
  %v64 = vunpack.c.l.b16 %v36
  %v65 = vunpack.c.l.b16 %v37
  %v66 = vunpack.c.l.b16 %v38
  %v67 = vpack.c.b16 %v60, %v59
  %v68 = vpack.c.b16 %v62, %v61
  %v69 = vpack.c.b16 %v64, %v63
  %v70 = vpack.c.b16 %v66, %v65
  %vm71 = vcmask 261120
  %v73 = vsel %vm71, %v50, 0
  %v76 = vsel %vm71, %v67, 0
  %v79 = vsel %vm71, %v68, 0
  %v82 = vsel %vm71, %v69, 0
  %v85 = vsel %vm71, %v70, 0
  %87 = vmatprep.subr.bf16.mxu0 0
  %88 = vmatpush1.bf16.xpose.msra.mxu0 0
  %89 = vmatprep.subr.bf16.mxu0 0
  %90 = vmatpush1.bf16.xpose.msra.mxu0 0
  %91 = vmatprep.subr.bf16.mxu0 0
  %92 = vmatpush1.bf16.xpose.msra.mxu0 0
  %93 = vmatprep.subr.bf16.mxu0 0
  %94 = vmatpush1.bf16.xpose.msra.mxu0 0
  %95 = vmatprep.subr.bf16.mxu0 0
  %96 = vmatpush1.bf16.xpose.msra.mxu0 %v85
  %97 = vmatprep.subr.bf16.mxu0 0
  %98 = vmatpush1.bf16.xpose.msra.mxu0 %v82
  %99 = vmatprep.subr.bf16.mxu0 0
  %100 = vmatpush1.bf16.xpose.msra.mxu0 %v79
  %101 = vmatprep.subr.bf16.mxu0 0
  %102 = vmatpush1.bf16.xpose.msra.mxu0 %v76
  %103 = vmatprep.subr.bf16.mxu0 0
  %104 = vmatpush2.bf16.xpose.msra.mxu0 0
  %105 = vmatprep.subr.bf16.mxu0 0
  %106 = vmatpush2.bf16.xpose.msra.mxu0 0
  %107 = vmatprep.subr.bf16.mxu0 0
  %108 = vmatpush2.bf16.xpose.msra.mxu0 0
  %109 = vmatprep.subr.bf16.mxu0 0
  %110 = vmatpush2.bf16.xpose.msra.mxu0 0
  %111 = vmatprep.subr.bf16.mxu0 0
  %112 = vmatpush2.bf16.xpose.msra.mxu0 0
  %113 = vmatprep.subr.bf16.mxu0 0
  %114 = vmatpush2.bf16.xpose.msra.mxu0 0
  %115 = vmatprep.subr.bf16.mxu0 0
  %116 = vmatpush2.bf16.xpose.msra.mxu0 0
  %117 = vmatprep.subr.bf16.mxu0 0
  %118 = vmatpush2.bf16.xpose.msra.mxu0 0
  %119 = vmatprep.mubr.bf16.mxu0 0
  %120 = vmatmul.mubr.bf16.gmra.mxu0 %v73
  %v121 = vpop.f32.mrf.mxu0
  %v122 = vadd.f32 %v44, %v121
  %v123 = vpop.f32.mrf.mxu0
  %v124 = vpop.f32.mrf.mxu0
  %v125 = vadd.f32 %v44, %v124
  %v126 = vpop.f32.mrf.mxu0
  %127 = vdwg.mxu0
  %v128 = vmax.f32 %v122, 0.0
  %v129 = vmax.f32 %v125, 0.0
  %v130 = vld [vmem:[%s3] sm:$0xf]
  %v131 = vld [vmem:[%s3 + $0x4] sm:$0xf]
  %v132 = vld [vmem:[%s3 + $0x8] sm:$0xf]
  %v133 = vld [vmem:[%s3 + $0xc] sm:$0xf]
  %v134 = vpack.c.bf16 %v129, %v128
  %v135 = vld [vmem:[%s4] sm:$0x1]
  %v137 = vlaneseq
  %v138 = vshrl.u32 %v137, 7
  %v139 = vsub.s32 0, %v138
  %v140 = vrot.slane %v135, %v139
  %v146 = vunpack.c.l.b16 %v130
  %v147 = vunpack.c.l.b16 %v131
  %v148 = vunpack.c.l.b16 %v132
  %v149 = vunpack.c.l.b16 %v133
  %v150 = vpack.c.b16 %v147, %v146
  %v151 = vpack.c.b16 %v149, %v148
  %vm152 = vcmask 523264
  %v154 = vsel %vm152, %v134, 0
  %v157 = vsel %vm152, %v150, 0
  %v160 = vsel %vm152, %v151, 0
  %162 = vmatprep.subr.bf16.mxu0 0
  %163 = vmatpush1.bf16.xpose.msra.mxu0 0
  %164 = vmatprep.subr.bf16.mxu0 0
  %165 = vmatpush1.bf16.xpose.msra.mxu0 0
  %166 = vmatprep.subr.bf16.mxu0 0
  %167 = vmatpush1.bf16.xpose.msra.mxu0 0
  %168 = vmatprep.subr.bf16.mxu0 0
  %169 = vmatpush1.bf16.xpose.msra.mxu0 0
  %170 = vmatprep.subr.bf16.mxu0 0
  %171 = vmatpush1.bf16.xpose.msra.mxu0 0
  %172 = vmatprep.subr.bf16.mxu0 0
  %173 = vmatpush1.bf16.xpose.msra.mxu0 0
  %174 = vmatprep.subr.bf16.mxu0 0
  %175 = vmatpush1.bf16.xpose.msra.mxu0 %v160
  %176 = vmatprep.subr.bf16.mxu0 0
  %177 = vmatpush1.bf16.xpose.msra.mxu0 %v157
  %178 = vmatprep.subr.bf16.mxu0 0
  %179 = vmatpush2.bf16.xpose.msra.mxu0 0
  %180 = vmatprep.subr.bf16.mxu0 0
  %181 = vmatpush2.bf16.xpose.msra.mxu0 0
  %182 = vmatprep.subr.bf16.mxu0 0
  %183 = vmatpush2.bf16.xpose.msra.mxu0 0
  %184 = vmatprep.subr.bf16.mxu0 0
  %185 = vmatpush2.bf16.xpose.msra.mxu0 0
  %186 = vmatprep.subr.bf16.mxu0 0
  %187 = vmatpush2.bf16.xpose.msra.mxu0 0
  %188 = vmatprep.subr.bf16.mxu0 0
  %189 = vmatpush2.bf16.xpose.msra.mxu0 0
  %190 = vmatprep.subr.bf16.mxu0 0
  %191 = vmatpush2.bf16.xpose.msra.mxu0 0
  %192 = vmatprep.subr.bf16.mxu0 0
  %193 = vmatpush2.bf16.xpose.msra.mxu0 0
  %194 = vmatprep.mubr.bf16.mxu0 0
  %195 = vmatmul.mubr.bf16.gmra.mxu0 %v154
  %v196 = vpop.f32.mrf.mxu0
  %v197 = vadd.f32 %v140, %v196
  %v198 = vpop.f32.mrf.mxu0
  %v199 = vpop.f32.mrf.mxu0
  %v200 = vadd.f32 %v140, %v199
  %v201 = vpop.f32.mrf.mxu0
  %202 = vdwg.mxu0
  %v203 = vld [vmem:[%s5] sm:$0x1]
  %v204 = vld [vmem:[%s6] sm:$0x1]
  %v205 = vadd.f32 %v197, %v29
  %v206 = vadd.f32 %v200, %v30
  %v207 = vsel %vm71, %v205, 0.0
  %208 = vadd.xlane.f32.xlu0 %v207
  %v209 = vpop.xlane.xlu0 %208
  %v210 = vsel %vm71, %v206, 0.0
  %211 = vadd.xlane.f32.xlu0 %v210
  %v212 = vpop.xlane.xlu0 %211
  %v213 = vrcp.pop 32.0
  %v214 = vmul.f32 %v209, %v213
  %v215 = vmul.f32 %v212, %v213
  %v216 = vsub.f32 %v205, %v214
  %v217 = vsub.f32 %v206, %v215
  %v218 = vmul.f32 %v216, %v216
  %v219 = vmul.f32 %v217, %v217
  %v220 = vsel %vm71, %v218, 0.0
  %221 = vadd.xlane.f32.xlu0 %v220
  %v222 = vpop.xlane.xlu0 %221
  %v223 = vsel %vm71, %v219, 0.0
  %224 = vadd.xlane.f32.xlu0 %v223
  %v225 = vpop.xlane.xlu0 %224
  %v226 = vmul.f32 %v222, %v213
  %v227 = vmul.f32 %v225, %v213
  %v228 = vadd.f32 %v226, 1e-05
  %v229 = vadd.f32 %v227, 1e-05
  %v230 = vrsqrt.pop %v228
  %v231 = vrsqrt.pop %v229
  %v232 = vmul.f32 %v216, %v230
  %v233 = vmul.f32 %v217, %v231
  %v235 = vlaneseq
  %v236 = vshrl.u32 %v235, 7
  %v237 = vsub.s32 0, %v236
  %v238 = vrot.slane %v203, %v237
  %v240 = vmul.f32 %v232, %v238
  %v241 = vmul.f32 %v233, %v238
  %v243 = vlaneseq
  %v244 = vshrl.u32 %v243, 7
  %v245 = vsub.s32 0, %v244
  %v246 = vrot.slane %v204, %v245
  %v248 = vadd.f32 %v240, %v246
  %v249 = vadd.f32 %v241, %v246
  %v250 = vpack.c.bf16 %v249, %v248
  %v252 = vunpack.c.l.b16 %v250
  %v253 = vunpack.c.h.b16 %v250
  %v254 = vpack.c.b16 %v252, %v252
  %v255 = vpack.c.b16 %v253, %v253
  %vm258 = vcmask 257024
  %259 = vst.msk [vmem:[%s7] sm:$0xf] %vm258, %v254
  %260 = vst.msk [vmem:[%s7 + $0x4] sm:$0xf] %vm258, %v255
  // Predicated region
  $region30: #{_lambda_.7} parent=0 // pred_check
    _
  $region31: #{_lambda_.7} parent=0 // pred_check_branch
    %262 = sbr.rel (0) target = $region33
  $region32: #{_lambda_.7} parent=0 // pred_region
    _
  $region33: #{_lambda_.7} parent=0 // pred_fallthru
    _
  // Predicated region
  $region34: #{_lambda_.7} parent=0 // pred_check
    _
  $region35: #{_lambda_.7} parent=0 // pred_check_branch
    %264 = sbr.rel (0) target = $region37
  $region36: #{_lambda_.7} parent=0 // pred_region
    _
  $region37: #{_lambda_.7} parent=0 // pred_fallthru
    _

// kernel: _lambda_.5
$region0: #{_lambda_.5}
  #allocation0 [shape = 'u32[]', space=smem, size = 0x4, offset = 0x4, fixed_abs, tag = 'smem constant byte address 0x4 - core index']
  #allocation1 [shape = 'u32[144,128]{1,0:T(1,128)}', space=vmem, size = 0x12000, scoped, tag = 'internal scratch']
  %s0 = inlined_call_operand.vmem [shape: bf16[16,32], index: 0, kind: input, shape index: {}]
  %s1 = inlined_call_operand.vmem [shape: bf16[64,32], index: 1, kind: input, shape index: {}]
  %s2 = inlined_call_operand.vmem [shape: f32[1,64], index: 2, kind: input, shape index: {}]
  %s3 = inlined_call_operand.vmem [shape: bf16[16,64], index: 3, kind: output, shape index: {}]
  %s4 = sld [smem:[#allocation0]]
  $region22: #{_lambda_.5} parent=0
    _
  %s6 = ssub.s32 1, %s4
  %s7 = scalar_select 0, %s6, %s4
  // Predicated region
  $region2: #{_lambda_.5} parent=0 // pred_check
    _
  $region3: #{_lambda_.5} parent=0 // pred_check_branch
    %9 = sbr.rel (0) target = $region5
  $region4: #{_lambda_.5} parent=0 // pred_region
    _
  $region5: #{_lambda_.5} parent=0 // pred_fallthru
    _
  // Predicated region
  $region6: #{_lambda_.5} parent=0 // pred_check
    _
  $region7: #{_lambda_.5} parent=0 // pred_check_branch
    %11 = sbr.rel (0) target = $region9
  $region8: #{_lambda_.5} parent=0 // pred_region
    _
  $region9: #{_lambda_.5} parent=0 // pred_fallthru
    _
  // Predicated region
  $region10: #{_lambda_.5} parent=0 // pred_check
    _
  $region11: #{_lambda_.5} parent=0 // pred_check_branch
    %13 = sbr.rel (0) target = $region13
  $region12: #{_lambda_.5} parent=0 // pred_region
    _
  $region13: #{_lambda_.5} parent=0 // pred_fallthru
    _
  %v15 = vld [vmem:[%s0] sm:$0xf]
  %v16 = vld [vmem:[%s0 + $0x4] sm:$0xf]
  %v17 = vld [vmem:[%s1] sm:$0xf]
  %v18 = vld [vmem:[%s1 + $0x4] sm:$0xf]
  %v19 = vld [vmem:[%s1 + $0x8] sm:$0xf]
  %v20 = vld [vmem:[%s1 + $0xc] sm:$0xf]
  %v21 = vld [vmem:[%s1 + $0x10] sm:$0xf]
  %v22 = vld [vmem:[%s1 + $0x14] sm:$0xf]
  %v23 = vld [vmem:[%s1 + $0x18] sm:$0xf]
  %v24 = vld [vmem:[%s1 + $0x1c] sm:$0xf]
  %v25 = vld [vmem:[%s2] sm:$0x1]
  %v27 = vlaneseq
  %v28 = vshrl.u32 %v27, 7
  %v29 = vsub.s32 0, %v28
  %v30 = vrot.slane %v25, %v29
  %v34 = vunpack.c.l.b16 %v15
  %v35 = vunpack.c.l.b16 %v16
  %v36 = vpack.c.b16 %v35, %v34
  %v45 = vunpack.c.l.b16 %v17
  %v46 = vunpack.c.l.b16 %v18
  %v47 = vunpack.c.l.b16 %v19
  %v48 = vunpack.c.l.b16 %v20
  %v49 = vunpack.c.l.b16 %v21
  %v50 = vunpack.c.l.b16 %v22
  %v51 = vunpack.c.l.b16 %v23
  %v52 = vunpack.c.l.b16 %v24
  %v53 = vpack.c.b16 %v46, %v45
  %v54 = vpack.c.b16 %v48, %v47
  %v55 = vpack.c.b16 %v50, %v49
  %v56 = vpack.c.b16 %v52, %v51
  %vm57 = vcmask 261120
  %v59 = vsel %vm57, %v36, 0
  %v62 = vsel %vm57, %v53, 0
  %v65 = vsel %vm57, %v54, 0
  %v68 = vsel %vm57, %v55, 0
  %v71 = vsel %vm57, %v56, 0
  %73 = vmatprep.subr.bf16.mxu0 0
  %74 = vmatpush1.bf16.xpose.msra.mxu0 0
  %75 = vmatprep.subr.bf16.mxu0 0
  %76 = vmatpush1.bf16.xpose.msra.mxu0 0
  %77 = vmatprep.subr.bf16.mxu0 0
  %78 = vmatpush1.bf16.xpose.msra.mxu0 0
  %79 = vmatprep.subr.bf16.mxu0 0
  %80 = vmatpush1.bf16.xpose.msra.mxu0 0
  %81 = vmatprep.subr.bf16.mxu0 0
  %82 = vmatpush1.bf16.xpose.msra.mxu0 %v71
  %83 = vmatprep.subr.bf16.mxu0 0
  %84 = vmatpush1.bf16.xpose.msra.mxu0 %v68
  %85 = vmatprep.subr.bf16.mxu0 0
  %86 = vmatpush1.bf16.xpose.msra.mxu0 %v65
  %87 = vmatprep.subr.bf16.mxu0 0
  %88 = vmatpush1.bf16.xpose.msra.mxu0 %v62
  %89 = vmatprep.subr.bf16.mxu0 0
  %90 = vmatpush2.bf16.xpose.msra.mxu0 0
  %91 = vmatprep.subr.bf16.mxu0 0
  %92 = vmatpush2.bf16.xpose.msra.mxu0 0
  %93 = vmatprep.subr.bf16.mxu0 0
  %94 = vmatpush2.bf16.xpose.msra.mxu0 0
  %95 = vmatprep.subr.bf16.mxu0 0
  %96 = vmatpush2.bf16.xpose.msra.mxu0 0
  %97 = vmatprep.subr.bf16.mxu0 0
  %98 = vmatpush2.bf16.xpose.msra.mxu0 0
  %99 = vmatprep.subr.bf16.mxu0 0
  %100 = vmatpush2.bf16.xpose.msra.mxu0 0
  %101 = vmatprep.subr.bf16.mxu0 0
  %102 = vmatpush2.bf16.xpose.msra.mxu0 0
  %103 = vmatprep.subr.bf16.mxu0 0
  %104 = vmatpush2.bf16.xpose.msra.mxu0 0
  %105 = vmatprep.mubr.bf16.mxu0 0
  %106 = vmatmul.mubr.bf16.gmra.mxu0 %v59
  %v107 = vpop.f32.mrf.mxu0
  %v108 = vadd.f32 %v30, %v107
  %v109 = vpop.f32.mrf.mxu0
  %v110 = vpop.f32.mrf.mxu0
  %v111 = vadd.f32 %v30, %v110
  %v112 = vpop.f32.mrf.mxu0
  %113 = vdwg.mxu0
  %v114 = vpack.c.bf16 %v111, %v108
  %v116 = vunpack.c.l.b16 %v114
  %v117 = vunpack.c.h.b16 %v114
  %v118 = vpack.c.b16 %v116, %v116
  %v119 = vpack.c.b16 %v117, %v117
  %vm122 = vcmask 519168
  %123 = vst.msk [vmem:[%s3] sm:$0xf] %vm122, %v118
  %124 = vst.msk [vmem:[%s3 + $0x4] sm:$0xf] %vm122, %v119
  // Predicated region
  $region14: #{_lambda_.5} parent=0 // pred_check
    _
  $region15: #{_lambda_.5} parent=0 // pred_check_branch
    %126 = sbr.rel (0) target = $region17
  $region16: #{_lambda_.5} parent=0 // pred_region
    _
  $region17: #{_lambda_.5} parent=0 // pred_fallthru
    _
  // Predicated region
  $region18: #{_lambda_.5} parent=0 // pred_check
    _
  $region19: #{_lambda_.5} parent=0 // pred_check_branch
    %128 = sbr.rel (0) target = $region21
  $region20: #{_lambda_.5} parent=0 // pred_region
    _
  $region21: #{_lambda_.5} parent=0 // pred_fallthru
    _

// kernel: _lambda_.9
$region0: #{_lambda_.9}
  #allocation0 [shape = 'u32[]', space=smem, size = 0x4, offset = 0x4, fixed_abs, tag = 'smem constant byte address 0x4 - core index']
  #allocation1 [shape = 'u32[144,128]{1,0:T(1,128)}', space=vmem, size = 0x12000, scoped, tag = 'internal scratch']
  %s0 = inlined_call_operand.vmem [shape: bf16[16,32], index: 0, kind: input, shape index: {}]
  %s1 = inlined_call_operand.vmem [shape: bf16[64,32], index: 1, kind: input, shape index: {}]
  %s2 = inlined_call_operand.vmem [shape: f32[1,64], index: 2, kind: input, shape index: {}]
  %s3 = inlined_call_operand.vmem [shape: bf16[32,64], index: 3, kind: input, shape index: {}]
  %s4 = inlined_call_operand.vmem [shape: f32[1,32], index: 4, kind: input, shape index: {}]
  %s5 = inlined_call_operand.vmem [shape: f32[1,32], index: 5, kind: input, shape index: {}]
  %s6 = inlined_call_operand.vmem [shape: f32[1,32], index: 6, kind: input, shape index: {}]
  %s7 = inlined_call_operand.vmem [shape: f32[16,32], index: 7, kind: output, shape index: {}]
  %s8 = sld [smem:[#allocation0]]
  $region38: #{_lambda_.9} parent=0
    _
  %s10 = ssub.s32 1, %s8
  %s11 = scalar_select 0, %s10, %s8
  // Predicated region
  $region2: #{_lambda_.9} parent=0 // pred_check
    _
  $region3: #{_lambda_.9} parent=0 // pred_check_branch
    %13 = sbr.rel (0) target = $region5
  $region4: #{_lambda_.9} parent=0 // pred_region
    _
  $region5: #{_lambda_.9} parent=0 // pred_fallthru
    _
  // Predicated region
  $region6: #{_lambda_.9} parent=0 // pred_check
    _
  $region7: #{_lambda_.9} parent=0 // pred_check_branch
    %15 = sbr.rel (0) target = $region9
  $region8: #{_lambda_.9} parent=0 // pred_region
    _
  $region9: #{_lambda_.9} parent=0 // pred_fallthru
    _
  // Predicated region
  $region10: #{_lambda_.9} parent=0 // pred_check
    _
  $region11: #{_lambda_.9} parent=0 // pred_check_branch
    %17 = sbr.rel (0) target = $region13
  $region12: #{_lambda_.9} parent=0 // pred_region
    _
  $region13: #{_lambda_.9} parent=0 // pred_fallthru
    _
  // Predicated region
  $region14: #{_lambda_.9} parent=0 // pred_check
    _
  $region15: #{_lambda_.9} parent=0 // pred_check_branch
    %19 = sbr.rel (0) target = $region17
  $region16: #{_lambda_.9} parent=0 // pred_region
    _
  $region17: #{_lambda_.9} parent=0 // pred_fallthru
    _
  // Predicated region
  $region18: #{_lambda_.9} parent=0 // pred_check
    _
  $region19: #{_lambda_.9} parent=0 // pred_check_branch
    %21 = sbr.rel (0) target = $region21
  $region20: #{_lambda_.9} parent=0 // pred_region
    _
  $region21: #{_lambda_.9} parent=0 // pred_fallthru
    _
  // Predicated region
  $region22: #{_lambda_.9} parent=0 // pred_check
    _
  $region23: #{_lambda_.9} parent=0 // pred_check_branch
    %23 = sbr.rel (0) target = $region25
  $region24: #{_lambda_.9} parent=0 // pred_region
    _
  $region25: #{_lambda_.9} parent=0 // pred_fallthru
    _
  // Predicated region
  $region26: #{_lambda_.9} parent=0 // pred_check
    _
  $region27: #{_lambda_.9} parent=0 // pred_check_branch
    %25 = sbr.rel (0) target = $region29
  $region28: #{_lambda_.9} parent=0 // pred_region
    _
  $region29: #{_lambda_.9} parent=0 // pred_fallthru
    _
  %v27 = vld [vmem:[%s0] sm:$0xf]
  %v28 = vld [vmem:[%s0 + $0x4] sm:$0xf]
  %v29 = vunpack.c.l.bf16 %v27
  %v30 = vunpack.c.l.bf16 %v28
  %v31 = vld [vmem:[%s1] sm:$0xf]
  %v32 = vld [vmem:[%s1 + $0x4] sm:$0xf]
  %v33 = vld [vmem:[%s1 + $0x8] sm:$0xf]
  %v34 = vld [vmem:[%s1 + $0xc] sm:$0xf]
  %v35 = vld [vmem:[%s1 + $0x10] sm:$0xf]
  %v36 = vld [vmem:[%s1 + $0x14] sm:$0xf]
  %v37 = vld [vmem:[%s1 + $0x18] sm:$0xf]
  %v38 = vld [vmem:[%s1 + $0x1c] sm:$0xf]
  %v39 = vld [vmem:[%s2] sm:$0x1]
  %v41 = vlaneseq
  %v42 = vshrl.u32 %v41, 7
  %v43 = vsub.s32 0, %v42
  %v44 = vrot.slane %v39, %v43
  %v48 = vunpack.c.l.b16 %v27
  %v49 = vunpack.c.l.b16 %v28
  %v50 = vpack.c.b16 %v49, %v48
  %v59 = vunpack.c.l.b16 %v31
  %v60 = vunpack.c.l.b16 %v32
  %v61 = vunpack.c.l.b16 %v33
  %v62 = vunpack.c.l.b16 %v34
  %v63 = vunpack.c.l.b16 %v35
  %v64 = vunpack.c.l.b16 %v36
  %v65 = vunpack.c.l.b16 %v37
  %v66 = vunpack.c.l.b16 %v38
  %v67 = vpack.c.b16 %v60, %v59
  %v68 = vpack.c.b16 %v62, %v61
  %v69 = vpack.c.b16 %v64, %v63
  %v70 = vpack.c.b16 %v66, %v65
  %vm71 = vcmask 261120
  %v73 = vsel %vm71, %v50, 0
  %v76 = vsel %vm71, %v67, 0
  %v79 = vsel %vm71, %v68, 0
  %v82 = vsel %vm71, %v69, 0
  %v85 = vsel %vm71, %v70, 0
  %87 = vmatprep.subr.bf16.mxu0 0
  %88 = vmatpush1.bf16.xpose.msra.mxu0 0
  %89 = vmatprep.subr.bf16.mxu0 0
  %90 = vmatpush1.bf16.xpose.msra.mxu0 0
  %91 = vmatprep.subr.bf16.mxu0 0
  %92 = vmatpush1.bf16.xpose.msra.mxu0 0
  %93 = vmatprep.subr.bf16.mxu0 0
  %94 = vmatpush1.bf16.xpose.msra.mxu0 0
  %95 = vmatprep.subr.bf16.mxu0 0
  %96 = vmatpush1.bf16.xpose.msra.mxu0 %v85
  %97 = vmatprep.subr.bf16.mxu0 0
  %98 = vmatpush1.bf16.xpose.msra.mxu0 %v82
  %99 = vmatprep.subr.bf16.mxu0 0
  %100 = vmatpush1.bf16.xpose.msra.mxu0 %v79
  %101 = vmatprep.subr.bf16.mxu0 0
  %102 = vmatpush1.bf16.xpose.msra.mxu0 %v76
  %103 = vmatprep.subr.bf16.mxu0 0
  %104 = vmatpush2.bf16.xpose.msra.mxu0 0
  %105 = vmatprep.subr.bf16.mxu0 0
  %106 = vmatpush2.bf16.xpose.msra.mxu0 0
  %107 = vmatprep.subr.bf16.mxu0 0
  %108 = vmatpush2.bf16.xpose.msra.mxu0 0
  %109 = vmatprep.subr.bf16.mxu0 0
  %110 = vmatpush2.bf16.xpose.msra.mxu0 0
  %111 = vmatprep.subr.bf16.mxu0 0
  %112 = vmatpush2.bf16.xpose.msra.mxu0 0
  %113 = vmatprep.subr.bf16.mxu0 0
  %114 = vmatpush2.bf16.xpose.msra.mxu0 0
  %115 = vmatprep.subr.bf16.mxu0 0
  %116 = vmatpush2.bf16.xpose.msra.mxu0 0
  %117 = vmatprep.subr.bf16.mxu0 0
  %118 = vmatpush2.bf16.xpose.msra.mxu0 0
  %119 = vmatprep.mubr.bf16.mxu0 0
  %120 = vmatmul.mubr.bf16.gmra.mxu0 %v73
  %v121 = vpop.f32.mrf.mxu0
  %v122 = vadd.f32 %v44, %v121
  %v123 = vpop.f32.mrf.mxu0
  %v124 = vpop.f32.mrf.mxu0
  %v125 = vadd.f32 %v44, %v124
  %v126 = vpop.f32.mrf.mxu0
  %127 = vdwg.mxu0
  %v128 = vmax.f32 %v122, 0.0
  %v129 = vmax.f32 %v125, 0.0
  %v130 = vld [vmem:[%s3] sm:$0xf]
  %v131 = vld [vmem:[%s3 + $0x4] sm:$0xf]
  %v132 = vld [vmem:[%s3 + $0x8] sm:$0xf]
  %v133 = vld [vmem:[%s3 + $0xc] sm:$0xf]
  %v134 = vpack.c.bf16 %v129, %v128
  %v135 = vld [vmem:[%s4] sm:$0x1]
  %v137 = vlaneseq
  %v138 = vshrl.u32 %v137, 7
  %v139 = vsub.s32 0, %v138
  %v140 = vrot.slane %v135, %v139
  %v146 = vunpack.c.l.b16 %v130
  %v147 = vunpack.c.l.b16 %v131
  %v148 = vunpack.c.l.b16 %v132
  %v149 = vunpack.c.l.b16 %v133
  %v150 = vpack.c.b16 %v147, %v146
  %v151 = vpack.c.b16 %v149, %v148
  %vm152 = vcmask 523264
  %v154 = vsel %vm152, %v134, 0
  %v157 = vsel %vm152, %v150, 0
  %v160 = vsel %vm152, %v151, 0
  %162 = vmatprep.subr.bf16.mxu0 0
  %163 = vmatpush1.bf16.xpose.msra.mxu0 0
  %164 = vmatprep.subr.bf16.mxu0 0
  %165 = vmatpush1.bf16.xpose.msra.mxu0 0
  %166 = vmatprep.subr.bf16.mxu0 0
  %167 = vmatpush1.bf16.xpose.msra.mxu0 0
  %168 = vmatprep.subr.bf16.mxu0 0
  %169 = vmatpush1.bf16.xpose.msra.mxu0 0
  %170 = vmatprep.subr.bf16.mxu0 0
  %171 = vmatpush1.bf16.xpose.msra.mxu0 0
  %172 = vmatprep.subr.bf16.mxu0 0
  %173 = vmatpush1.bf16.xpose.msra.mxu0 0
  %174 = vmatprep.subr.bf16.mxu0 0
  %175 = vmatpush1.bf16.xpose.msra.mxu0 %v160
  %176 = vmatprep.subr.bf16.mxu0 0
  %177 = vmatpush1.bf16.xpose.msra.mxu0 %v157
  %178 = vmatprep.subr.bf16.mxu0 0
  %179 = vmatpush2.bf16.xpose.msra.mxu0 0
  %180 = vmatprep.subr.bf16.mxu0 0
  %181 = vmatpush2.bf16.xpose.msra.mxu0 0
  %182 = vmatprep.subr.bf16.mxu0 0
  %183 = vmatpush2.bf16.xpose.msra.mxu0 0
  %184 = vmatprep.subr.bf16.mxu0 0
  %185 = vmatpush2.bf16.xpose.msra.mxu0 0
  %186 = vmatprep.subr.bf16.mxu0 0
  %187 = vmatpush2.bf16.xpose.msra.mxu0 0
  %188 = vmatprep.subr.bf16.mxu0 0
  %189 = vmatpush2.bf16.xpose.msra.mxu0 0
  %190 = vmatprep.subr.bf16.mxu0 0
  %191 = vmatpush2.bf16.xpose.msra.mxu0 0
  %192 = vmatprep.subr.bf16.mxu0 0
  %193 = vmatpush2.bf16.xpose.msra.mxu0 0
  %194 = vmatprep.mubr.bf16.mxu0 0
  %195 = vmatmul.mubr.bf16.gmra.mxu0 %v154
  %v196 = vpop.f32.mrf.mxu0
  %v197 = vadd.f32 %v140, %v196
  %v198 = vpop.f32.mrf.mxu0
  %v199 = vpop.f32.mrf.mxu0
  %v200 = vadd.f32 %v140, %v199
  %v201 = vpop.f32.mrf.mxu0
  %202 = vdwg.mxu0
  %v203 = vld [vmem:[%s5] sm:$0x1]
  %v204 = vld [vmem:[%s6] sm:$0x1]
  %v205 = vadd.f32 %v197, %v29
  %v206 = vadd.f32 %v200, %v30
  %v207 = vsel %vm71, %v205, 0.0
  %208 = vadd.xlane.f32.xlu0 %v207
  %v209 = vpop.xlane.xlu0 %208
  %v210 = vsel %vm71, %v206, 0.0
  %211 = vadd.xlane.f32.xlu0 %v210
  %v212 = vpop.xlane.xlu0 %211
  %v213 = vrcp.pop 32.0
  %v214 = vmul.f32 %v209, %v213
  %v215 = vmul.f32 %v212, %v213
  %v216 = vsub.f32 %v205, %v214
  %v217 = vsub.f32 %v206, %v215
  %v218 = vmul.f32 %v216, %v216
  %v219 = vmul.f32 %v217, %v217
  %v220 = vsel %vm71, %v218, 0.0
  %221 = vadd.xlane.f32.xlu0 %v220
  %v222 = vpop.xlane.xlu0 %221
  %v223 = vsel %vm71, %v219, 0.0
  %224 = vadd.xlane.f32.xlu0 %v223
  %v225 = vpop.xlane.xlu0 %224
  %v226 = vmul.f32 %v222, %v213
  %v227 = vmul.f32 %v225, %v213
  %v228 = vadd.f32 %v226, 1e-05
  %v229 = vadd.f32 %v227, 1e-05
  %v230 = vrsqrt.pop %v228
  %v231 = vrsqrt.pop %v229
  %v232 = vmul.f32 %v216, %v230
  %v233 = vmul.f32 %v217, %v231
  %v235 = vlaneseq
  %v236 = vshrl.u32 %v235, 7
  %v237 = vsub.s32 0, %v236
  %v238 = vrot.slane %v203, %v237
  %v240 = vmul.f32 %v232, %v238
  %v241 = vmul.f32 %v233, %v238
  %v243 = vlaneseq
  %v244 = vshrl.u32 %v243, 7
  %v245 = vsub.s32 0, %v244
  %v246 = vrot.slane %v204, %v245
  %v248 = vadd.f32 %v240, %v246
  %v249 = vadd.f32 %v241, %v246
  %250 = vst.msk [vmem:[%s7] sm:$0xff] %vm71, %v248
  %251 = vst.msk [vmem:[%s7 + $0x8] sm:$0xff] %vm71, %v249
  // Predicated region
  $region30: #{_lambda_.9} parent=0 // pred_check
    _
  $region31: #{_lambda_.9} parent=0 // pred_check_branch
    %253 = sbr.rel (0) target = $region33
  $region32: #{_lambda_.9} parent=0 // pred_region
    _
  $region33: #{_lambda_.9} parent=0 // pred_fallthru
    _
  // Predicated region
  $region34: #{_lambda_.9} parent=0 // pred_check
    _
  $region35: #{_lambda_.9} parent=0 // pred_check_branch
    %255 = sbr.rel (0) target = $region37
  $region36: #{_lambda_.9} parent=0 // pred_region
    _
  $region37: #{_lambda_.9} parent=0 // pred_fallthru
    _

// kernel: _lambda_.6
$region0: #{_lambda_.6}
  #allocation0 [shape = 'u32[]', space=smem, size = 0x4, offset = 0x4, fixed_abs, tag = 'smem constant byte address 0x4 - core index']
  #allocation1 [shape = 'u32[144,128]{1,0:T(1,128)}', space=vmem, size = 0x12000, scoped, tag = 'internal scratch']
  %s0 = inlined_call_operand.vmem [shape: bf16[2,8,32], index: 0, kind: input, shape index: {}]
  %s1 = inlined_call_operand.vmem [shape: bf16[2,8,64], index: 1, kind: input, shape index: {}]
  %s2 = inlined_call_operand.vmem [shape: bf16[96,32], index: 2, kind: input, shape index: {}]
  %s3 = inlined_call_operand.vmem [shape: f32[1,96], index: 3, kind: input, shape index: {}]
  %s4 = inlined_call_operand.vmem [shape: bf16[4,32,8], index: 4, kind: input, shape index: {}]
  %s5 = inlined_call_operand.vmem [shape: f32[1,32], index: 5, kind: input, shape index: {}]
  %s6 = inlined_call_operand.vmem [shape: f32[1,32], index: 6, kind: input, shape index: {}]
  %s7 = inlined_call_operand.vmem [shape: f32[1,32], index: 7, kind: input, shape index: {}]
  %s8 = inlined_call_operand.vmem [shape: bf16[32,32], index: 8, kind: input, shape index: {}]
  %s9 = inlined_call_operand.vmem [shape: f32[1,32], index: 9, kind: input, shape index: {}]
  %s10 = inlined_call_operand.vmem [shape: bf16[4,32,8], index: 10, kind: input, shape index: {}]
  %s11 = inlined_call_operand.vmem [shape: f32[1,32], index: 11, kind: input, shape index: {}]
  %s12 = inlined_call_operand.vmem [shape: f32[1,32], index: 12, kind: input, shape index: {}]
  %s13 = inlined_call_operand.vmem [shape: f32[1,32], index: 13, kind: input, shape index: {}]
  %s14 = inlined_call_operand.vmem [shape: bf16[2,8,32], index: 14, kind: output, shape index: {}]
  %s15 = sld [smem:[#allocation0]]
  $region89: #{_lambda_.6} parent=0
    _
  %s17 = ssub.s32 1, %s15
  %s18 = scalar_select 0, %s17, %s15
  loop: start=0, step=1, limit=4
  $region2: #{_lambda_.6} parent=0 // loop_pre_header
    _
  $region3: #{_lambda_.6} parent=0 // loop_header
    %s20 = sphi 0, %s24
    %p21 = scmp.ge.s32.totalorder %s20, 4
    %s30 = sphi 0, %s32
    %s33 = sphi 0, %s30
    %s34 = sphi 0, %s33
    %s50 = sphi 0, %s34
    %s56 = sphi 0, %s58
    %s59 = sphi 0, %s56
    %s60 = sphi 0, %s59
    %s76 = sphi 0, %s60
    %s80 = sphi 0, %s80
    %s82 = sphi 0, %s80
    %s83 = sphi 0, %s82
    %s97 = sphi 0, %s83
    %s101 = sphi 0, %s101
    %s103 = sphi 0, %s101
    %s104 = sphi 0, %s103
    %s118 = sphi 0, %s104
    %s122 = sphi 0, %s122
    %s124 = sphi 0, %s122
    %s125 = sphi 0, %s124
    %s139 = sphi 0, %s125
    %s143 = sphi 0, %s143
    %s145 = sphi 0, %s143
    %s146 = sphi 0, %s145
    %s160 = sphi 0, %s146
    %s164 = sphi 0, %s164
    %s166 = sphi 0, %s164
    %s167 = sphi 0, %s166
    %s181 = sphi 0, %s167
    %s185 = sphi 0, %s185
    %s187 = sphi 0, %s185
    %s188 = sphi 0, %s187
    %s202 = sphi 0, %s188
    %s206 = sphi 0, %s206
    %s208 = sphi 0, %s206
    %s209 = sphi 0, %s208
    %s223 = sphi 0, %s209
    %s227 = sphi 0, %s227
    %s229 = sphi 0, %s227
    %s230 = sphi 0, %s229
    %s244 = sphi 0, %s230
    %s248 = sphi 0, %s248
    %s250 = sphi 0, %s248
    %s251 = sphi 0, %s250
    %s265 = sphi 0, %s251
    %s269 = sphi 0, %s269
    %s271 = sphi 0, %s269
    %s272 = sphi 0, %s271
    %s286 = sphi 0, %s272
    %s290 = sphi 0, %s290
    %s292 = sphi 0, %s290
    %s293 = sphi 0, %s292
    %s307 = sphi 0, %s293
    %s311 = sphi 0, %s311
    %s313 = sphi 0, %s311
    %s314 = sphi 0, %s313
    %s328 = sphi 0, %s314
    %s334 = sphi 0, %s336
    %s337 = sphi 0, %s334
    %s338 = sphi 0, %s337
    %s354 = sphi 0, %s338
  $region4: #{_lambda_.6} parent=0 // loop_header_branch
    %23 = sbr.rel (%p21) target = $region8
  $region5: #{_lambda_.6} parent=0 // loop_body
    %s25 = ssub.s32 %s20, 1
    %s26 = ssub.s32 %s20, 2
    %s27 = sadd.s32 %s20, 1
    %s28 = ssub.s32 %s20, %s27
    %p29 = scmp.eq.s32.totalorder %s28, 0
    %s31 = sadd.s32 %s30, 1
    %s32 = scalar_select %p29, %s30, %s31
    %p35 = pneg %p29
    %p36 = scmp.eq.s32.totalorder %s20, 1
    %p37 = por %p35, %p36
    %p38 = scmp.ne.s32.totalorder %s30, %s33
    %p39 = scmp.eq.s32.totalorder %s20, 0
    %p40 = por %p38, %p39
    %p41 = scmp.ne.s32.totalorder %s30, %s33
    %p42 = scmp.eq.s32.totalorder %s25, 1
    %p43 = por %p41, %p42
    %p44 = scmp.ne.s32.totalorder %s33, %s34
    %p45 = scmp.eq.s32.totalorder %s25, 0
    %p46 = por %p44, %p45
    %p47 = scmp.ne.s32.totalorder %s33, %s34
    %p48 = scmp.eq.s32.totalorder %s26, 1
    %p49 = por %p47, %p48
    %p51 = scmp.ne.s32.totalorder %s34, %s50
    %p52 = scmp.eq.s32.totalorder %s26, 0
    %p53 = por %p51, %p52
    %s54 = ssub.s32 %s20, %s27
    %p55 = scmp.eq.s32.totalorder %s54, 0
    %s57 = sadd.s32 %s56, 1
    %s58 = scalar_select %p55, %s56, %s57
    %p61 = pneg %p55
    %p62 = scmp.eq.s32.totalorder %s20, 1
    %p63 = por %p61, %p62
    %p64 = scmp.ne.s32.totalorder %s56, %s59
    %p65 = scmp.eq.s32.totalorder %s20, 0
    %p66 = por %p64, %p65
    %p67 = scmp.ne.s32.totalorder %s56, %s59
    %p68 = scmp.eq.s32.totalorder %s25, 1
    %p69 = por %p67, %p68
    %p70 = scmp.ne.s32.totalorder %s59, %s60
    %p71 = scmp.eq.s32.totalorder %s25, 0
    %p72 = por %p70, %p71
    %p73 = scmp.ne.s32.totalorder %s59, %s60
    %p74 = scmp.eq.s32.totalorder %s26, 1
    %p75 = por %p73, %p74
    %p77 = scmp.ne.s32.totalorder %s60, %s76
    %p78 = scmp.eq.s32.totalorder %s26, 0
    %p79 = por %p77, %p78
    %s81 = sadd.s32 %s80, 1
    %p84 = scmp.eq.s32.totalorder %s20, 1
    %p85 = scmp.ne.s32.totalorder %s80, %s82
    %p86 = scmp.eq.s32.totalorder %s20, 0
    %p87 = por %p85, %p86
    %p88 = scmp.ne.s32.totalorder %s80, %s82
    %p89 = scmp.eq.s32.totalorder %s25, 1
    %p90 = por %p88, %p89
    %p91 = scmp.ne.s32.totalorder %s82, %s83
    %p92 = scmp.eq.s32.totalorder %s25, 0
    %p93 = por %p91, %p92
    %p94 = scmp.ne.s32.totalorder %s82, %s83
    %p95 = scmp.eq.s32.totalorder %s26, 1
    %p96 = por %p94, %p95
    %p98 = scmp.ne.s32.totalorder %s83, %s97
    %p99 = scmp.eq.s32.totalorder %s26, 0
    %p100 = por %p98, %p99
    %s102 = sadd.s32 %s101, 1
    %p105 = scmp.eq.s32.totalorder %s20, 1
    %p106 = scmp.ne.s32.totalorder %s101, %s103
    %p107 = scmp.eq.s32.totalorder %s20, 0
    %p108 = por %p106, %p107
    %p109 = scmp.ne.s32.totalorder %s101, %s103
    %p110 = scmp.eq.s32.totalorder %s25, 1
    %p111 = por %p109, %p110
    %p112 = scmp.ne.s32.totalorder %s103, %s104
    %p113 = scmp.eq.s32.totalorder %s25, 0
    %p114 = por %p112, %p113
    %p115 = scmp.ne.s32.totalorder %s103, %s104
    %p116 = scmp.eq.s32.totalorder %s26, 1
    %p117 = por %p115, %p116
    %p119 = scmp.ne.s32.totalorder %s104, %s118
    %p120 = scmp.eq.s32.totalorder %s26, 0
    %p121 = por %p119, %p120
    %s123 = sadd.s32 %s122, 1
    %p126 = scmp.eq.s32.totalorder %s20, 1
    %p127 = scmp.ne.s32.totalorder %s122, %s124
    %p128 = scmp.eq.s32.totalorder %s20, 0
    %p129 = por %p127, %p128
    %p130 = scmp.ne.s32.totalorder %s122, %s124
    %p131 = scmp.eq.s32.totalorder %s25, 1
    %p132 = por %p130, %p131
    %p133 = scmp.ne.s32.totalorder %s124, %s125
    %p134 = scmp.eq.s32.totalorder %s25, 0
    %p135 = por %p133, %p134
    %p136 = scmp.ne.s32.totalorder %s124, %s125
    %p137 = scmp.eq.s32.totalorder %s26, 1
    %p138 = por %p136, %p137
    %p140 = scmp.ne.s32.totalorder %s125, %s139
    %p141 = scmp.eq.s32.totalorder %s26, 0
    %p142 = por %p140, %p141
    %s144 = sadd.s32 %s143, 1
    %p147 = scmp.eq.s32.totalorder %s20, 1
    %p148 = scmp.ne.s32.totalorder %s143, %s145
    %p149 = scmp.eq.s32.totalorder %s20, 0
    %p150 = por %p148, %p149
    %p151 = scmp.ne.s32.totalorder %s143, %s145
    %p152 = scmp.eq.s32.totalorder %s25, 1
    %p153 = por %p151, %p152
    %p154 = scmp.ne.s32.totalorder %s145, %s146
    %p155 = scmp.eq.s32.totalorder %s25, 0
    %p156 = por %p154, %p155
    %p157 = scmp.ne.s32.totalorder %s145, %s146
    %p158 = scmp.eq.s32.totalorder %s26, 1
    %p159 = por %p157, %p158
    %p161 = scmp.ne.s32.totalorder %s146, %s160
    %p162 = scmp.eq.s32.totalorder %s26, 0
    %p163 = por %p161, %p162
    %s165 = sadd.s32 %s164, 1
    %p168 = scmp.eq.s32.totalorder %s20, 1
    %p169 = scmp.ne.s32.totalorder %s164, %s166
    %p170 = scmp.eq.s32.totalorder %s20, 0
    %p171 = por %p169, %p170
    %p172 = scmp.ne.s32.totalorder %s164, %s166
    %p173 = scmp.eq.s32.totalorder %s25, 1
    %p174 = por %p172, %p173
    %p175 = scmp.ne.s32.totalorder %s166, %s167
    %p176 = scmp.eq.s32.totalorder %s25, 0
    %p177 = por %p175, %p176
    %p178 = scmp.ne.s32.totalorder %s166, %s167
    %p179 = scmp.eq.s32.totalorder %s26, 1
    %p180 = por %p178, %p179
    %p182 = scmp.ne.s32.totalorder %s167, %s181
    %p183 = scmp.eq.s32.totalorder %s26, 0
    %p184 = por %p182, %p183
    %s186 = sadd.s32 %s185, 1
    %p189 = scmp.eq.s32.totalorder %s20, 1
    %p190 = scmp.ne.s32.totalorder %s185, %s187
    %p191 = scmp.eq.s32.totalorder %s20, 0
    %p192 = por %p190, %p191
    %p193 = scmp.ne.s32.totalorder %s185, %s187
    %p194 = scmp.eq.s32.totalorder %s25, 1
    %p195 = por %p193, %p194
    %p196 = scmp.ne.s32.totalorder %s187, %s188
    %p197 = scmp.eq.s32.totalorder %s25, 0
    %p198 = por %p196, %p197
    %p199 = scmp.ne.s32.totalorder %s187, %s188
    %p200 = scmp.eq.s32.totalorder %s26, 1
    %p201 = por %p199, %p200
    %p203 = scmp.ne.s32.totalorder %s188, %s202
    %p204 = scmp.eq.s32.totalorder %s26, 0
    %p205 = por %p203, %p204
    %s207 = sadd.s32 %s206, 1
    %p210 = scmp.eq.s32.totalorder %s20, 1
    %p211 = scmp.ne.s32.totalorder %s206, %s208
    %p212 = scmp.eq.s32.totalorder %s20, 0
    %p213 = por %p211, %p212
    %p214 = scmp.ne.s32.totalorder %s206, %s208
    %p215 = scmp.eq.s32.totalorder %s25, 1
    %p216 = por %p214, %p215
    %p217 = scmp.ne.s32.totalorder %s208, %s209
    %p218 = scmp.eq.s32.totalorder %s25, 0
    %p219 = por %p217, %p218
    %p220 = scmp.ne.s32.totalorder %s208, %s209
    %p221 = scmp.eq.s32.totalorder %s26, 1
    %p222 = por %p220, %p221
    %p224 = scmp.ne.s32.totalorder %s209, %s223
    %p225 = scmp.eq.s32.totalorder %s26, 0
    %p226 = por %p224, %p225
    %s228 = sadd.s32 %s227, 1
    %p231 = scmp.eq.s32.totalorder %s20, 1
    %p232 = scmp.ne.s32.totalorder %s227, %s229
    %p233 = scmp.eq.s32.totalorder %s20, 0
    %p234 = por %p232, %p233
    %p235 = scmp.ne.s32.totalorder %s227, %s229
    %p236 = scmp.eq.s32.totalorder %s25, 1
    %p237 = por %p235, %p236
    %p238 = scmp.ne.s32.totalorder %s229, %s230
    %p239 = scmp.eq.s32.totalorder %s25, 0
    %p240 = por %p238, %p239
    %p241 = scmp.ne.s32.totalorder %s229, %s230
    %p242 = scmp.eq.s32.totalorder %s26, 1
    %p243 = por %p241, %p242
    %p245 = scmp.ne.s32.totalorder %s230, %s244
    %p246 = scmp.eq.s32.totalorder %s26, 0
    %p247 = por %p245, %p246
    %s249 = sadd.s32 %s248, 1
    %p252 = scmp.eq.s32.totalorder %s20, 1
    %p253 = scmp.ne.s32.totalorder %s248, %s250
    %p254 = scmp.eq.s32.totalorder %s20, 0
    %p255 = por %p253, %p254
    %p256 = scmp.ne.s32.totalorder %s248, %s250
    %p257 = scmp.eq.s32.totalorder %s25, 1
    %p258 = por %p256, %p257
    %p259 = scmp.ne.s32.totalorder %s250, %s251
    %p260 = scmp.eq.s32.totalorder %s25, 0
    %p261 = por %p259, %p260
    %p262 = scmp.ne.s32.totalorder %s250, %s251
    %p263 = scmp.eq.s32.totalorder %s26, 1
    %p264 = por %p262, %p263
    %p266 = scmp.ne.s32.totalorder %s251, %s265
    %p267 = scmp.eq.s32.totalorder %s26, 0
    %p268 = por %p266, %p267
    %s270 = sadd.s32 %s269, 1
    %p273 = scmp.eq.s32.totalorder %s20, 1
    %p274 = scmp.ne.s32.totalorder %s269, %s271
    %p275 = scmp.eq.s32.totalorder %s20, 0
    %p276 = por %p274, %p275
    %p277 = scmp.ne.s32.totalorder %s269, %s271
    %p278 = scmp.eq.s32.totalorder %s25, 1
    %p279 = por %p277, %p278
    %p280 = scmp.ne.s32.totalorder %s271, %s272
    %p281 = scmp.eq.s32.totalorder %s25, 0
    %p282 = por %p280, %p281
    %p283 = scmp.ne.s32.totalorder %s271, %s272
    %p284 = scmp.eq.s32.totalorder %s26, 1
    %p285 = por %p283, %p284
    %p287 = scmp.ne.s32.totalorder %s272, %s286
    %p288 = scmp.eq.s32.totalorder %s26, 0
    %p289 = por %p287, %p288
    %s291 = sadd.s32 %s290, 1
    %p294 = scmp.eq.s32.totalorder %s20, 1
    %p295 = scmp.ne.s32.totalorder %s290, %s292
    %p296 = scmp.eq.s32.totalorder %s20, 0
    %p297 = por %p295, %p296
    %p298 = scmp.ne.s32.totalorder %s290, %s292
    %p299 = scmp.eq.s32.totalorder %s25, 1
    %p300 = por %p298, %p299
    %p301 = scmp.ne.s32.totalorder %s292, %s293
    %p302 = scmp.eq.s32.totalorder %s25, 0
    %p303 = por %p301, %p302
    %p304 = scmp.ne.s32.totalorder %s292, %s293
    %p305 = scmp.eq.s32.totalorder %s26, 1
    %p306 = por %p304, %p305
    %p308 = scmp.ne.s32.totalorder %s293, %s307
    %p309 = scmp.eq.s32.totalorder %s26, 0
    %p310 = por %p308, %p309
    %s312 = sadd.s32 %s311, 1
    %p315 = scmp.eq.s32.totalorder %s20, 1
    %p316 = scmp.ne.s32.totalorder %s311, %s313
    %p317 = scmp.eq.s32.totalorder %s20, 0
    %p318 = por %p316, %p317
    %p319 = scmp.ne.s32.totalorder %s311, %s313
    %p320 = scmp.eq.s32.totalorder %s25, 1
    %p321 = por %p319, %p320
    %p322 = scmp.ne.s32.totalorder %s313, %s314
    %p323 = scmp.eq.s32.totalorder %s25, 0
    %p324 = por %p322, %p323
    %p325 = scmp.ne.s32.totalorder %s313, %s314
    %p326 = scmp.eq.s32.totalorder %s26, 1
    %p327 = por %p325, %p326
    %p329 = scmp.ne.s32.totalorder %s314, %s328
    %p330 = scmp.eq.s32.totalorder %s26, 0
    %p331 = por %p329, %p330
    %s332 = ssub.s32 %s20, %s27
    %p333 = scmp.eq.s32.totalorder %s332, 0
    %s335 = sadd.s32 %s334, 1
    %s336 = scalar_select %p333, %s334, %s335
    %p339 = pneg %p333
    %p340 = scmp.eq.s32.totalorder %s20, 1
    %p341 = por %p339, %p340
    %p342 = scmp.ne.s32.totalorder %s334, %s337
    %p343 = scmp.eq.s32.totalorder %s20, 0
    %p344 = por %p342, %p343
    %p345 = scmp.ne.s32.totalorder %s334, %s337
    %p346 = scmp.eq.s32.totalorder %s25, 1
    %p347 = por %p345, %p346
    %p348 = scmp.ne.s32.totalorder %s337, %s338
    %p349 = scmp.eq.s32.totalorder %s25, 0
    %p350 = por %p348, %p349
    %p351 = scmp.ne.s32.totalorder %s337, %s338
    %p352 = scmp.eq.s32.totalorder %s26, 1
    %p353 = por %p351, %p352
    %p355 = scmp.ne.s32.totalorder %s338, %s354
    %p356 = scmp.eq.s32.totalorder %s26, 0
    %p357 = por %p355, %p356
    %p358 = scmp.le.s32.totalorder 1, %s20
    %p359 = scmp.lt.s32.totalorder %s20, 3
    %p360 = pnand %p358, %p359
    %p361 = pneg %p360
    // Predicated region
    $region9: #{_lambda_.6} parent=5 // pred_check
      _
    $region10: #{_lambda_.6} parent=5 // pred_check_branch
      %363 = sbr.rel (%p360) target = $region12
    $region11: #{_lambda_.6} parent=5 // pred_region
      %s364 = ssub.s32 %s20, 1
      // Predicated region
      $region13: #{_lambda_.6} parent=11 // pred_check
        %p365 = pneg %p93
      $region14: #{_lambda_.6} parent=11 // pred_check_branch
        %367 = sbr.rel (%p365) target = $region16
      $region15: #{_lambda_.6} parent=11 // pred_region
        _
      $region16: #{_lambda_.6} parent=11 // pred_fallthru
        _
      // Predicated region
      $region17: #{_lambda_.6} parent=11 // pred_check
        %p368 = pneg %p114
      $region18: #{_lambda_.6} parent=11 // pred_check_branch
        %370 = sbr.rel (%p368) target = $region20
      $region19: #{_lambda_.6} parent=11 // pred_region
        _
      $region20: #{_lambda_.6} parent=11 // pred_fallthru
        _
      // Predicated region
      $region21: #{_lambda_.6} parent=11 // pred_check
        %p371 = pneg %p135
      $region22: #{_lambda_.6} parent=11 // pred_check_branch
        %373 = sbr.rel (%p371) target = $region24
      $region23: #{_lambda_.6} parent=11 // pred_region
        _
      $region24: #{_lambda_.6} parent=11 // pred_fallthru
        _
      // Predicated region
      $region25: #{_lambda_.6} parent=11 // pred_check
        %p374 = pneg %p156
      $region26: #{_lambda_.6} parent=11 // pred_check_branch
        %376 = sbr.rel (%p374) target = $region28
      $region27: #{_lambda_.6} parent=11 // pred_region
        _
      $region28: #{_lambda_.6} parent=11 // pred_fallthru
        _
      // Predicated region
      $region29: #{_lambda_.6} parent=11 // pred_check
        %p377 = pneg %p177
      $region30: #{_lambda_.6} parent=11 // pred_check_branch
        %379 = sbr.rel (%p377) target = $region32
      $region31: #{_lambda_.6} parent=11 // pred_region
        _
      $region32: #{_lambda_.6} parent=11 // pred_fallthru
        _
      // Predicated region
      $region33: #{_lambda_.6} parent=11 // pred_check
        %p380 = pneg %p198
      $region34: #{_lambda_.6} parent=11 // pred_check_branch
        %382 = sbr.rel (%p380) target = $region36
      $region35: #{_lambda_.6} parent=11 // pred_region
        _
      $region36: #{_lambda_.6} parent=11 // pred_fallthru
        _
      // Predicated region
      $region37: #{_lambda_.6} parent=11 // pred_check
        %p383 = pneg %p219
      $region38: #{_lambda_.6} parent=11 // pred_check_branch
        %385 = sbr.rel (%p383) target = $region40
      $region39: #{_lambda_.6} parent=11 // pred_region
        _
      $region40: #{_lambda_.6} parent=11 // pred_fallthru
        _
      // Predicated region
      $region41: #{_lambda_.6} parent=11 // pred_check
        %p386 = pneg %p240
      $region42: #{_lambda_.6} parent=11 // pred_check_branch
        %388 = sbr.rel (%p386) target = $region44
      $region43: #{_lambda_.6} parent=11 // pred_region
        _
      $region44: #{_lambda_.6} parent=11 // pred_fallthru
        _
      // Predicated region
      $region45: #{_lambda_.6} parent=11 // pred_check
        %p389 = pneg %p261
      $region46: #{_lambda_.6} parent=11 // pred_check_branch
        %391 = sbr.rel (%p389) target = $region48
      $region47: #{_lambda_.6} parent=11 // pred_region
        _
      $region48: #{_lambda_.6} parent=11 // pred_fallthru
        _
      // Predicated region
      $region49: #{_lambda_.6} parent=11 // pred_check
        %p392 = pneg %p282
      $region50: #{_lambda_.6} parent=11 // pred_check_branch
        %394 = sbr.rel (%p392) target = $region52
      $region51: #{_lambda_.6} parent=11 // pred_region
        _
      $region52: #{_lambda_.6} parent=11 // pred_fallthru
        _
      // Predicated region
      $region53: #{_lambda_.6} parent=11 // pred_check
        %p395 = pneg %p303
      $region54: #{_lambda_.6} parent=11 // pred_check_branch
        %397 = sbr.rel (%p395) target = $region56
      $region55: #{_lambda_.6} parent=11 // pred_region
        _
      $region56: #{_lambda_.6} parent=11 // pred_fallthru
        _
      // Predicated region
      $region57: #{_lambda_.6} parent=11 // pred_check
        %p398 = pneg %p324
      $region58: #{_lambda_.6} parent=11 // pred_check_branch
        %400 = sbr.rel (%p398) target = $region60
      $region59: #{_lambda_.6} parent=11 // pred_region
        _
      $region60: #{_lambda_.6} parent=11 // pred_fallthru
        _
    $region12: #{_lambda_.6} parent=5 // pred_fallthru
      _
    %p401 = scmp.lt.s32.totalorder %s20, 2
    // Predicated region
    $region61: #{_lambda_.6} parent=5 // pred_check
      %p402 = pneg %p401
    $region62: #{_lambda_.6} parent=5 // pred_check_branch
      %404 = sbr.rel (%p402) target = $region64
    $region63: #{_lambda_.6} parent=5 // pred_region
      // Predicated region
      $region65: #{_lambda_.6} parent=63 // pred_check
        %p405 = pneg %p40
      $region66: #{_lambda_.6} parent=63 // pred_check_branch
        %407 = sbr.rel (%p405) target = $region68
      $region67: #{_lambda_.6} parent=63 // pred_region
        %p408 = scmp.lt.s32.totalorder %s20, 1
        %s409 = scalar_select %p408, %s20, 1
        %s410 = smul.addr %s409, 4
        %s411 = scalar_lea.vmem %s0, %s410
      $region68: #{_lambda_.6} parent=63 // pred_fallthru
        _
      // Predicated region
      $region69: #{_lambda_.6} parent=63 // pred_check
        %p412 = pneg %p66
      $region70: #{_lambda_.6} parent=63 // pred_check_branch
        %414 = sbr.rel (%p412) target = $region72
      $region71: #{_lambda_.6} parent=63 // pred_region
        %p415 = scmp.lt.s32.totalorder %s20, 1
        %s416 = scalar_select %p415, %s20, 1
        %s417 = smul.addr %s416, 4
        %s418 = scalar_lea.vmem %s1, %s417
      $region72: #{_lambda_.6} parent=63 // pred_fallthru
        _
    $region64: #{_lambda_.6} parent=5 // pred_fallthru
      _
    %p419 = scmp.le.s32.totalorder 1, %s20
    %p420 = scmp.lt.s32.totalorder %s20, 3
    %p421 = pnand %p419, %p420
    %p422 = pneg %p421
    // Predicated region
    $region73: #{_lambda_.6} parent=5 // pred_check
      _
    $region74: #{_lambda_.6} parent=5 // pred_check_branch
      %424 = sbr.rel (%p421) target = $region76
    $region75: #{_lambda_.6} parent=5 // pred_region
      %s425 = ssub.s32 %s20, 1
      %p426 = scmp.lt.s32.totalorder %s25, 1
      %s427 = scalar_select %p426, %s25, 1
      %s428 = smul.addr %s427, 4
      %s429 = scalar_lea.vmem %s0, %s428
      %p430 = pneg %p46
      %p431 = pneg %p43
      %p432 = scmp.lt.s32.totalorder %s25, 1
      %s433 = scalar_select %p432, %s25, 1
      %s434 = smul.addr %s433, 4
      %s435 = scalar_lea.vmem %s1, %s434
      %p436 = pneg %p72
      %p437 = pneg %p69
      %p438 = pneg %p93
      %p439 = pneg %p90
      %p440 = pneg %p114
      %p441 = pneg %p111
      %p442 = pneg %p135
      %p443 = pneg %p132
      %p444 = pneg %p156
      %p445 = pneg %p153
      %p446 = pneg %p177
      %p447 = pneg %p174
      %p448 = pneg %p198
      %p449 = pneg %p195
      %p450 = pneg %p219
      %p451 = pneg %p216
      %p452 = pneg %p240
      %p453 = pneg %p237
      %p454 = pneg %p261
      %p455 = pneg %p258
      %p456 = pneg %p282
      %p457 = pneg %p279
      %p458 = pneg %p303
      %p459 = pneg %p300
      %p460 = pneg %p324
      %p461 = pneg %p321
      %p462 = pneg %p350
      %p463 = pneg %p347
      %p464 = scmp.lt.s32.totalorder %s25, 1
      %s465 = scalar_select %p464, %s25, 1
      %s466 = smul.addr %s465, 4
      %s467 = scalar_lea.vmem %s14, %s466
      %p468 = scmp.lt.s32.totalorder %s25, 1
      %s469 = scalar_select %p468, %s25, 1
      %s470 = smul.addr %s469, 4
      %s471 = scalar_lea.vmem %s0, %s470
      %p472 = scmp.lt.s32.totalorder %s25, 1
      %s473 = scalar_select %p472, %s25, 1
      %s474 = smul.addr %s473, 4
      %s475 = scalar_lea.vmem %s1, %s474
      %p476 = scmp.lt.s32.totalorder %s25, 1
      %s477 = scalar_select %p476, %s25, 1
      %s478 = smul.addr %s477, 4
      %s479 = scalar_lea.vmem %s14, %s478
      %v481 = vld [vmem:[%s471] sm:$0xf]
      %v482 = vunpack.c.l.bf16 %v481
      %v483 = vld [vmem:[%s2] sm:$0xf]
      %v484 = vld [vmem:[%s2 + $0x4] sm:$0xf]
      %v485 = vld [vmem:[%s2 + $0x8] sm:$0xf]
      %v486 = vld [vmem:[%s2 + $0xc] sm:$0xf]
      %v487 = vld [vmem:[%s2 + $0x10] sm:$0xf]
      %v488 = vld [vmem:[%s2 + $0x14] sm:$0xf]
      %v489 = vld [vmem:[%s2 + $0x18] sm:$0xf]
      %v490 = vld [vmem:[%s2 + $0x1c] sm:$0xf]
      %v491 = vld [vmem:[%s2 + $0x20] sm:$0xf]
      %v492 = vld [vmem:[%s2 + $0x24] sm:$0xf]
      %v493 = vld [vmem:[%s2 + $0x28] sm:$0xf]
      %v494 = vld [vmem:[%s2 + $0x2c] sm:$0xf]
      %v495 = vld [vmem:[%s3] sm:$0x1]
      %v497 = vlaneseq
      %v498 = vshrl.u32 %v497, 7
      %v499 = vsub.s32 0, %v498
      %v500 = vrot.slane %v495, %v499
      %v514 = vunpack.c.l.b16 %v483
      %v515 = vunpack.c.l.b16 %v484
      %v516 = vunpack.c.l.b16 %v485
      %v517 = vunpack.c.l.b16 %v486
      %v518 = vunpack.c.l.b16 %v487
      %v519 = vunpack.c.l.b16 %v488
      %v520 = vunpack.c.l.b16 %v489
      %v521 = vunpack.c.l.b16 %v490
      %v522 = vunpack.c.l.b16 %v491
      %v523 = vunpack.c.l.b16 %v492
      %v524 = vunpack.c.l.b16 %v493
      %v525 = vunpack.c.l.b16 %v494
      %v526 = vpack.c.b16 %v515, %v514
      %v527 = vpack.c.b16 %v517, %v516
      %v528 = vpack.c.b16 %v519, %v518
      %v529 = vpack.c.b16 %v521, %v520
      %v530 = vpack.c.b16 %v523, %v522
      %v531 = vpack.c.b16 %v525, %v524
      %vm532 = vcmask 261120
      %v534 = vsel %vm532, %v481, 0
      %v537 = vsel %vm532, %v526, 0
      %v540 = vsel %vm532, %v527, 0
      %v543 = vsel %vm532, %v528, 0
      %v546 = vsel %vm532, %v529, 0
      %v549 = vsel %vm532, %v530, 0
      %v552 = vsel %vm532, %v531, 0
      %554 = vmatprep.subr.bf16.mxu0 0
      %555 = vmatpush1.bf16.xpose.msra.mxu0 0
      %556 = vmatprep.subr.bf16.mxu0 0
      %557 = vmatpush1.bf16.xpose.msra.mxu0 0
      %558 = vmatprep.subr.bf16.mxu0 0
      %559 = vmatpush1.bf16.xpose.msra.mxu0 %v552
      %560 = vmatprep.subr.bf16.mxu0 0
      %561 = vmatpush1.bf16.xpose.msra.mxu0 %v549
      %562 = vmatprep.subr.bf16.mxu0 0
      %563 = vmatpush1.bf16.xpose.msra.mxu0 %v546
      %564 = vmatprep.subr.bf16.mxu0 0
      %565 = vmatpush1.bf16.xpose.msra.mxu0 %v543
      %566 = vmatprep.subr.bf16.mxu0 0
      %567 = vmatpush1.bf16.xpose.msra.mxu0 %v540
      %568 = vmatprep.subr.bf16.mxu0 0
      %569 = vmatpush1.bf16.xpose.msra.mxu0 %v537
      %570 = vmatprep.subr.bf16.mxu0 0
      %571 = vmatpush2.bf16.xpose.msra.mxu0 0
      %572 = vmatprep.subr.bf16.mxu0 0
      %573 = vmatpush2.bf16.xpose.msra.mxu0 0
      %574 = vmatprep.subr.bf16.mxu0 0
      %575 = vmatpush2.bf16.xpose.msra.mxu0 0
      %576 = vmatprep.subr.bf16.mxu0 0
      %577 = vmatpush2.bf16.xpose.msra.mxu0 0
      %578 = vmatprep.subr.bf16.mxu0 0
      %579 = vmatpush2.bf16.xpose.msra.mxu0 0
      %580 = vmatprep.subr.bf16.mxu0 0
      %581 = vmatpush2.bf16.xpose.msra.mxu0 0
      %582 = vmatprep.subr.bf16.mxu0 0
      %583 = vmatpush2.bf16.xpose.msra.mxu0 0
      %584 = vmatprep.subr.bf16.mxu0 0
      %585 = vmatpush2.bf16.xpose.msra.mxu0 0
      %586 = vmatprep.mubr.bf16.mxu0 0
      %587 = vmatmul.mubr.bf16.gmra.mxu0 %v534
      %v588 = vpop.f32.mrf.mxu0
      %v589 = vadd.f32 %v500, %v588
      %v590 = vpop.f32.mrf.mxu0
      %v591 = vpop.f32.mrf.mxu0
      %v592 = vpop.f32.mrf.mxu0
      %593 = vdwg.mxu0
      %v594 = vmul.f32 %v589, 0.35355338
      %v595 = vpack.c.bf16 %v594, %v594
      %v596 = vpack.c.bf16 %v589, %v589
      %598 = vrot.lane.b32.xlu0 %v596, 96
      %v599 = vpop.permute.xlu0 %598
      %vm600 = vcmask 64512
      %v602 = vsel %vm600, %v595, 0
      %v605 = vsel %vm600, %v599, 0
      %607 = vmatprep.subr.bf16.mxu0 0
      %608 = vmatpush1.bf16.xpose.msra.mxu0 0
      %609 = vmatprep.subr.bf16.mxu0 0
      %610 = vmatpush1.bf16.xpose.msra.mxu0 0
      %611 = vmatprep.subr.bf16.mxu0 0
      %612 = vmatpush1.bf16.xpose.msra.mxu0 0
      %613 = vmatprep.subr.bf16.mxu0 0
      %614 = vmatpush1.bf16.xpose.msra.mxu0 0
      %615 = vmatprep.subr.bf16.mxu0 0
      %616 = vmatpush1.bf16.xpose.msra.mxu0 0
      %617 = vmatprep.subr.bf16.mxu0 0
      %618 = vmatpush1.bf16.xpose.msra.mxu0 0
      %619 = vmatprep.subr.bf16.mxu0 0
      %620 = vmatpush1.bf16.xpose.msra.mxu0 0
      %621 = vmatprep.subr.bf16.mxu0 0
      %622 = vmatpush1.bf16.xpose.msra.mxu0 %v605
      %623 = vmatprep.subr.bf16.mxu0 0
      %624 = vmatpush2.bf16.xpose.msra.mxu0 0
      %625 = vmatprep.subr.bf16.mxu0 0
      %626 = vmatpush2.bf16.xpose.msra.mxu0 0
      %627 = vmatprep.subr.bf16.mxu0 0
      %628 = vmatpush2.bf16.xpose.msra.mxu0 0
      %629 = vmatprep.subr.bf16.mxu0 0
      %630 = vmatpush2.bf16.xpose.msra.mxu0 0
      %631 = vmatprep.subr.bf16.mxu0 0
      %632 = vmatpush2.bf16.xpose.msra.mxu0 0
      %633 = vmatprep.subr.bf16.mxu0 0
      %634 = vmatpush2.bf16.xpose.msra.mxu0 0
      %635 = vmatprep.subr.bf16.mxu0 0
      %636 = vmatpush2.bf16.xpose.msra.mxu0 0
      %637 = vmatprep.subr.bf16.mxu0 0
      %638 = vmatpush2.bf16.xpose.msra.mxu0 0
      %639 = vmatprep.mubr.bf16.mxu0 0
      %640 = vmatmul.mubr.bf16.gmra.mxu0 %v602
      %v641 = vpop.f32.mrf.mxu0
      %v642 = vadd.f32 0.0, %v641
      %v643 = vpop.f32.mrf.mxu0
      %v644 = vpop.f32.mrf.mxu0
      %v645 = vpop.f32.mrf.mxu0
      %646 = vdwg.mxu0
      %v647 = vsel %vm600, %v642, -inf
      %648 = vmax.xlane.f32.xlu0 %v647
      %v649 = vpop.xlane.xlu0 %648
      %v650 = vsub.f32 %v642, %v649
      %v651 = vmul.f32 %v650, 1.442695
      %v652 = vpow.pop %v651
      %v653 = vsel %vm600, %v652, 0.0
      %654 = vadd.xlane.f32.xlu0 %v653
      %v655 = vpop.xlane.xlu0 %654
      %v656 = vrcp.pop %v655
      %v657 = vmul.f32 %v652, %v656
      %v658 = vpack.c.bf16 %v657, %v657
      %659 = vrot.lane.b32.xlu0 %v596, 64
      %v660 = vpop.permute.xlu0 %659
      %v662 = vsel %vm600, %v658, 0
      %vm664 = vcmask 1043456
      %v666 = vsel %vm664, %v660, 0
      %668 = vmatprep.subr.bf16.mxu0 0
      %669 = vmatpush1.bf16.msra.mxu0 0
      %670 = vmatprep.subr.bf16.mxu0 0
      %671 = vmatpush1.bf16.msra.mxu0 0
      %672 = vmatprep.subr.bf16.mxu0 0
      %673 = vmatpush1.bf16.msra.mxu0 0
      %674 = vmatprep.subr.bf16.mxu0 0
      %675 = vmatpush1.bf16.msra.mxu0 0
      %676 = vmatprep.subr.bf16.mxu0 0
      %677 = vmatpush1.bf16.msra.mxu0 0
      %678 = vmatprep.subr.bf16.mxu0 0
      %679 = vmatpush1.bf16.msra.mxu0 0
      %680 = vmatprep.subr.bf16.mxu0 0
      %681 = vmatpush1.bf16.msra.mxu0 0
      %682 = vmatprep.subr.bf16.mxu0 0
      %683 = vmatpush1.bf16.msra.mxu0 %v666
      %684 = vmatprep.subr.bf16.mxu0 0
      %685 = vmatpush2.bf16.msra.mxu0 0
      %686 = vmatprep.subr.bf16.mxu0 0
      %687 = vmatpush2.bf16.msra.mxu0 0
      %688 = vmatprep.subr.bf16.mxu0 0
      %689 = vmatpush2.bf16.msra.mxu0 0
      %690 = vmatprep.subr.bf16.mxu0 0
      %691 = vmatpush2.bf16.msra.mxu0 0
      %692 = vmatprep.subr.bf16.mxu0 0
      %693 = vmatpush2.bf16.msra.mxu0 0
      %694 = vmatprep.subr.bf16.mxu0 0
      %695 = vmatpush2.bf16.msra.mxu0 0
      %696 = vmatprep.subr.bf16.mxu0 0
      %697 = vmatpush2.bf16.msra.mxu0 0
      %698 = vmatprep.subr.bf16.mxu0 0
      %699 = vmatpush2.bf16.msra.mxu0 0
      %700 = vmatprep.mubr.bf16.mxu0 0
      %701 = vmatmul.mubr.bf16.gmra.mxu0 %v662
      %v702 = vpop.f32.mrf.mxu0
      %v703 = vadd.f32 0.0, %v702
      %v704 = vpop.f32.mrf.mxu0
      %v705 = vpop.f32.mrf.mxu0
      %v706 = vpop.f32.mrf.mxu0
      %707 = vdwg.mxu0
      %v708 = vpack.c.bf16 %v703, %v703
      %v709 = vld [vmem:[%s4] sm:$0xf]
      %v710 = vld [vmem:[%s4 + $0x4] sm:$0xf]
      %v711 = vld [vmem:[%s4 + $0x8] sm:$0xf]
      %v712 = vld [vmem:[%s4 + $0xc] sm:$0xf]
      %714 = vrot.lane.b32.xlu0 %v595, 120
      %v715 = vpop.permute.xlu0 %714
      %716 = vrot.lane.b32.xlu0 %v596, 88
      %v717 = vpop.permute.xlu0 %716
      %v719 = vsel %vm600, %v715, 0
      %v722 = vsel %vm600, %v717, 0
      %724 = vmatprep.subr.bf16.mxu0 0
      %725 = vmatpush1.bf16.xpose.msra.mxu0 0
      %726 = vmatprep.subr.bf16.mxu0 0
      %727 = vmatpush1.bf16.xpose.msra.mxu0 0
      %728 = vmatprep.subr.bf16.mxu0 0
      %729 = vmatpush1.bf16.xpose.msra.mxu0 0
      %730 = vmatprep.subr.bf16.mxu0 0
      %731 = vmatpush1.bf16.xpose.msra.mxu0 0
      %732 = vmatprep.subr.bf16.mxu0 0
      %733 = vmatpush1.bf16.xpose.msra.mxu0 0
      %734 = vmatprep.subr.bf16.mxu0 0
      %735 = vmatpush1.bf16.xpose.msra.mxu0 0
      %736 = vmatprep.subr.bf16.mxu0 0
      %737 = vmatpush1.bf16.xpose.msra.mxu0 0
      %738 = vmatprep.subr.bf16.mxu0 0
      %739 = vmatpush1.bf16.xpose.msra.mxu0 %v722
      %740 = vmatprep.subr.bf16.mxu0 0
      %741 = vmatpush2.bf16.xpose.msra.mxu0 0
      %742 = vmatprep.subr.bf16.mxu0 0
      %743 = vmatpush2.bf16.xpose.msra.mxu0 0
      %744 = vmatprep.subr.bf16.mxu0 0
      %745 = vmatpush2.bf16.xpose.msra.mxu0 0
      %746 = vmatprep.subr.bf16.mxu0 0
      %747 = vmatpush2.bf16.xpose.msra.mxu0 0
      %748 = vmatprep.subr.bf16.mxu0 0
      %749 = vmatpush2.bf16.xpose.msra.mxu0 0
      %750 = vmatprep.subr.bf16.mxu0 0
      %751 = vmatpush2.bf16.xpose.msra.mxu0 0
      %752 = vmatprep.subr.bf16.mxu0 0
      %753 = vmatpush2.bf16.xpose.msra.mxu0 0
      %754 = vmatprep.subr.bf16.mxu0 0
      %755 = vmatpush2.bf16.xpose.msra.mxu0 0
      %756 = vmatprep.mubr.bf16.mxu0 0
      %757 = vmatmul.mubr.bf16.gmra.mxu0 %v719
      %v758 = vpop.f32.mrf.mxu0
      %v759 = vadd.f32 0.0, %v758
      %v760 = vpop.f32.mrf.mxu0
      %v761 = vpop.f32.mrf.mxu0
      %v762 = vpop.f32.mrf.mxu0
      %763 = vdwg.mxu0
      %v764 = vsel %vm600, %v759, -inf
      %765 = vmax.xlane.f32.xlu0 %v764
      %v766 = vpop.xlane.xlu0 %765
      %v767 = vsub.f32 %v759, %v766
      %v768 = vmul.f32 %v767, 1.442695
      %v769 = vpow.pop %v768
      %v770 = vsel %vm600, %v769, 0.0
      %771 = vadd.xlane.f32.xlu0 %v770
      %v772 = vpop.xlane.xlu0 %771
      %v773 = vrcp.pop %v772
      %v774 = vmul.f32 %v769, %v773
      %v775 = vpack.c.bf16 %v774, %v774
      %776 = vrot.lane.b32.xlu0 %v596, 56
      %v777 = vpop.permute.xlu0 %776
      %v779 = vsel %vm600, %v775, 0
      %v782 = vsel %vm664, %v777, 0
      %784 = vmatprep.subr.bf16.mxu0 0
      %785 = vmatpush1.bf16.msra.mxu0 0
      %786 = vmatprep.subr.bf16.mxu0 0
      %787 = vmatpush1.bf16.msra.mxu0 0
      %788 = vmatprep.subr.bf16.mxu0 0
      %789 = vmatpush1.bf16.msra.mxu0 0
      %790 = vmatprep.subr.bf16.mxu0 0
      %791 = vmatpush1.bf16.msra.mxu0 0
      %792 = vmatprep.subr.bf16.mxu0 0
      %793 = vmatpush1.bf16.msra.mxu0 0
      %794 = vmatprep.subr.bf16.mxu0 0
      %795 = vmatpush1.bf16.msra.mxu0 0
      %796 = vmatprep.subr.bf16.mxu0 0
      %797 = vmatpush1.bf16.msra.mxu0 0
      %798 = vmatprep.subr.bf16.mxu0 0
      %799 = vmatpush1.bf16.msra.mxu0 %v782
      %800 = vmatprep.subr.bf16.mxu0 0
      %801 = vmatpush2.bf16.msra.mxu0 0
      %802 = vmatprep.subr.bf16.mxu0 0
      %803 = vmatpush2.bf16.msra.mxu0 0
      %804 = vmatprep.subr.bf16.mxu0 0
      %805 = vmatpush2.bf16.msra.mxu0 0
      %806 = vmatprep.subr.bf16.mxu0 0
      %807 = vmatpush2.bf16.msra.mxu0 0
      %808 = vmatprep.subr.bf16.mxu0 0
      %809 = vmatpush2.bf16.msra.mxu0 0
      %810 = vmatprep.subr.bf16.mxu0 0
      %811 = vmatpush2.bf16.msra.mxu0 0
      %812 = vmatprep.subr.bf16.mxu0 0
      %813 = vmatpush2.bf16.msra.mxu0 0
      %814 = vmatprep.subr.bf16.mxu0 0
      %815 = vmatpush2.bf16.msra.mxu0 0
      %816 = vmatprep.mubr.bf16.mxu0 0
      %817 = vmatmul.mubr.bf16.gmra.mxu0 %v779
      %v818 = vpop.f32.mrf.mxu0
      %v819 = vadd.f32 0.0, %v818
      %v820 = vpop.f32.mrf.mxu0
      %v821 = vpop.f32.mrf.mxu0
      %v822 = vpop.f32.mrf.mxu0
      %823 = vdwg.mxu0
      %v824 = vpack.c.bf16 %v819, %v819
      %s825 = scalar_lea.vmem %s4, 16
      %v826 = vld [vmem:[%s825] sm:$0xf]
      %v827 = vld [vmem:[%s825 + $0x4] sm:$0xf]
      %v828 = vld [vmem:[%s825 + $0x8] sm:$0xf]
      %v829 = vld [vmem:[%s825 + $0xc] sm:$0xf]
      %v834 = vunpack.c.l.b16 %v826
      %v835 = vunpack.c.l.b16 %v827
      %v836 = vunpack.c.l.b16 %v828
      %v837 = vunpack.c.l.b16 %v829
      %v838 = vpack.c.b16 %v835, %v834
      %v839 = vpack.c.b16 %v837, %v836
      %v841 = vsel %vm600, %v824, 0
      %v844 = vsel %vm600, %v838, 0
      %v847 = vsel %vm600, %v839, 0
      %849 = vmatprep.subr.bf16.mxu0 0
      %850 = vmatpush1.bf16.xpose.msra.mxu0 0
      %851 = vmatprep.subr.bf16.mxu0 0
      %852 = vmatpush1.bf16.xpose.msra.mxu0 0
      %853 = vmatprep.subr.bf16.mxu0 0
      %854 = vmatpush1.bf16.xpose.msra.mxu0 0
      %855 = vmatprep.subr.bf16.mxu0 0
      %856 = vmatpush1.bf16.xpose.msra.mxu0 0
      %857 = vmatprep.subr.bf16.mxu0 0
      %858 = vmatpush1.bf16.xpose.msra.mxu0 0
      %859 = vmatprep.subr.bf16.mxu0 0
      %860 = vmatpush1.bf16.xpose.msra.mxu0 0
      %861 = vmatprep.subr.bf16.mxu0 0
      %862 = vmatpush1.bf16.xpose.msra.mxu0 %v847
      %863 = vmatprep.subr.bf16.mxu0 0
      %864 = vmatpush1.bf16.xpose.msra.mxu0 %v844
      %865 = vmatprep.subr.bf16.mxu0 0
      %866 = vmatpush2.bf16.xpose.msra.mxu0 0
      %867 = vmatprep.subr.bf16.mxu0 0
      %868 = vmatpush2.bf16.xpose.msra.mxu0 0
      %869 = vmatprep.subr.bf16.mxu0 0
      %870 = vmatpush2.bf16.xpose.msra.mxu0 0
      %871 = vmatprep.subr.bf16.mxu0 0
      %872 = vmatpush2.bf16.xpose.msra.mxu0 0
      %873 = vmatprep.subr.bf16.mxu0 0
      %874 = vmatpush2.bf16.xpose.msra.mxu0 0
      %875 = vmatprep.subr.bf16.mxu0 0
      %876 = vmatpush2.bf16.xpose.msra.mxu0 0
      %877 = vmatprep.subr.bf16.mxu0 0
      %878 = vmatpush2.bf16.xpose.msra.mxu0 0
      %879 = vmatprep.subr.bf16.mxu0 0
      %880 = vmatpush2.bf16.xpose.msra.mxu0 0
      %881 = vmatprep.mubr.bf16.mxu0 0
      %882 = vmatmul.mubr.bf16.gmra.mxu0 %v841
      %v883 = vpop.f32.mrf.mxu0
      %v884 = vadd.f32 0.0, %v883
      %v885 = vpop.f32.mrf.mxu0
      %v886 = vpop.f32.mrf.mxu0
      %v887 = vpop.f32.mrf.mxu0
      %888 = vdwg.mxu0
      %v893 = vunpack.c.l.b16 %v709
      %v894 = vunpack.c.l.b16 %v710
      %v895 = vunpack.c.l.b16 %v711
      %v896 = vunpack.c.l.b16 %v712
      %v897 = vpack.c.b16 %v894, %v893
      %v898 = vpack.c.b16 %v896, %v895
      %v900 = vsel %vm600, %v708, 0
      %v903 = vsel %vm600, %v897, 0
      %v906 = vsel %vm600, %v898, 0
      %908 = vmatprep.subr.bf16.mxu0 0
      %909 = vmatpush1.bf16.xpose.msra.mxu0 0
      %910 = vmatprep.subr.bf16.mxu0 0
      %911 = vmatpush1.bf16.xpose.msra.mxu0 0
      %912 = vmatprep.subr.bf16.mxu0 0
      %913 = vmatpush1.bf16.xpose.msra.mxu0 0
      %914 = vmatprep.subr.bf16.mxu0 0
      %915 = vmatpush1.bf16.xpose.msra.mxu0 0
      %916 = vmatprep.subr.bf16.mxu0 0
      %917 = vmatpush1.bf16.xpose.msra.mxu0 0
      %918 = vmatprep.subr.bf16.mxu0 0
      %919 = vmatpush1.bf16.xpose.msra.mxu0 0
      %920 = vmatprep.subr.bf16.mxu0 0
      %921 = vmatpush1.bf16.xpose.msra.mxu0 %v906
      %922 = vmatprep.subr.bf16.mxu0 0
      %923 = vmatpush1.bf16.xpose.msra.mxu0 %v903
      %924 = vmatprep.subr.bf16.mxu0 0
      %925 = vmatpush2.bf16.xpose.msra.mxu0 0
      %926 = vmatprep.subr.bf16.mxu0 0
      %927 = vmatpush2.bf16.xpose.msra.mxu0 0
      %928 = vmatprep.subr.bf16.mxu0 0
      %929 = vmatpush2.bf16.xpose.msra.mxu0 0
      %930 = vmatprep.subr.bf16.mxu0 0
      %931 = vmatpush2.bf16.xpose.msra.mxu0 0
      %932 = vmatprep.subr.bf16.mxu0 0
      %933 = vmatpush2.bf16.xpose.msra.mxu0 0
      %934 = vmatprep.subr.bf16.mxu0 0
      %935 = vmatpush2.bf16.xpose.msra.mxu0 0
      %936 = vmatprep.subr.bf16.mxu0 0
      %937 = vmatpush2.bf16.xpose.msra.mxu0 0
      %938 = vmatprep.subr.bf16.mxu0 0
      %939 = vmatpush2.bf16.xpose.msra.mxu0 0
      %940 = vmatprep.mubr.bf16.mxu0 0
      %941 = vmatmul.mubr.bf16.gmra.mxu0 %v900
      %v942 = vpop.f32.mrf.mxu0
      %v943 = vadd.f32 %v884, %v942
      %v944 = vpop.f32.mrf.mxu0
      %v945 = vpop.f32.mrf.mxu0
      %v946 = vpop.f32.mrf.mxu0
      %947 = vdwg.mxu0
      %948 = vrot.lane.b32.xlu0 %v595, 112
      %v949 = vpop.permute.xlu0 %948
      %950 = vrot.lane.b32.xlu0 %v596, 80
      %v951 = vpop.permute.xlu0 %950
      %v953 = vsel %vm600, %v949, 0
      %v956 = vsel %vm600, %v951, 0
      %958 = vmatprep.subr.bf16.mxu0 0
      %959 = vmatpush1.bf16.xpose.msra.mxu0 0
      %960 = vmatprep.subr.bf16.mxu0 0
      %961 = vmatpush1.bf16.xpose.msra.mxu0 0
      %962 = vmatprep.subr.bf16.mxu0 0
      %963 = vmatpush1.bf16.xpose.msra.mxu0 0
      %964 = vmatprep.subr.bf16.mxu0 0
      %965 = vmatpush1.bf16.xpose.msra.mxu0 0
      %966 = vmatprep.subr.bf16.mxu0 0
      %967 = vmatpush1.bf16.xpose.msra.mxu0 0
      %968 = vmatprep.subr.bf16.mxu0 0
      %969 = vmatpush1.bf16.xpose.msra.mxu0 0
      %970 = vmatprep.subr.bf16.mxu0 0
      %971 = vmatpush1.bf16.xpose.msra.mxu0 0
      %972 = vmatprep.subr.bf16.mxu0 0
      %973 = vmatpush1.bf16.xpose.msra.mxu0 %v956
      %974 = vmatprep.subr.bf16.mxu0 0
      %975 = vmatpush2.bf16.xpose.msra.mxu0 0
      %976 = vmatprep.subr.bf16.mxu0 0
      %977 = vmatpush2.bf16.xpose.msra.mxu0 0
      %978 = vmatprep.subr.bf16.mxu0 0
      %979 = vmatpush2.bf16.xpose.msra.mxu0 0
      %980 = vmatprep.subr.bf16.mxu0 0
      %981 = vmatpush2.bf16.xpose.msra.mxu0 0
      %982 = vmatprep.subr.bf16.mxu0 0
      %983 = vmatpush2.bf16.xpose.msra.mxu0 0
      %984 = vmatprep.subr.bf16.mxu0 0
      %985 = vmatpush2.bf16.xpose.msra.mxu0 0
      %986 = vmatprep.subr.bf16.mxu0 0
      %987 = vmatpush2.bf16.xpose.msra.mxu0 0
      %988 = vmatprep.subr.bf16.mxu0 0
      %989 = vmatpush2.bf16.xpose.msra.mxu0 0
      %990 = vmatprep.mubr.bf16.mxu0 0
      %991 = vmatmul.mubr.bf16.gmra.mxu0 %v953
      %v992 = vpop.f32.mrf.mxu0
      %v993 = vadd.f32 0.0, %v992
      %v994 = vpop.f32.mrf.mxu0
      %v995 = vpop.f32.mrf.mxu0
      %v996 = vpop.f32.mrf.mxu0
      %997 = vdwg.mxu0
      %v998 = vsel %vm600, %v993, -inf
      %999 = vmax.xlane.f32.xlu0 %v998
      %v1000 = vpop.xlane.xlu0 %999
      %v1001 = vsub.f32 %v993, %v1000
      %v1002 = vmul.f32 %v1001, 1.442695
      %v1003 = vpow.pop %v1002
      %v1004 = vsel %vm600, %v1003, 0.0
      %1005 = vadd.xlane.f32.xlu0 %v1004
      %v1006 = vpop.xlane.xlu0 %1005
      %v1007 = vrcp.pop %v1006
      %v1008 = vmul.f32 %v1003, %v1007
      %v1009 = vpack.c.bf16 %v1008, %v1008
      %1010 = vrot.lane.b32.xlu0 %v596, 48
      %v1011 = vpop.permute.xlu0 %1010
      %v1013 = vsel %vm600, %v1009, 0
      %v1016 = vsel %vm664, %v1011, 0
      %1018 = vmatprep.subr.bf16.mxu0 0
      %1019 = vmatpush1.bf16.msra.mxu0 0
      %1020 = vmatprep.subr.bf16.mxu0 0
      %1021 = vmatpush1.bf16.msra.mxu0 0
      %1022 = vmatprep.subr.bf16.mxu0 0
      %1023 = vmatpush1.bf16.msra.mxu0 0
      %1024 = vmatprep.subr.bf16.mxu0 0
      %1025 = vmatpush1.bf16.msra.mxu0 0
      %1026 = vmatprep.subr.bf16.mxu0 0
      %1027 = vmatpush1.bf16.msra.mxu0 0
      %1028 = vmatprep.subr.bf16.mxu0 0
      %1029 = vmatpush1.bf16.msra.mxu0 0
      %1030 = vmatprep.subr.bf16.mxu0 0
      %1031 = vmatpush1.bf16.msra.mxu0 0
      %1032 = vmatprep.subr.bf16.mxu0 0
      %1033 = vmatpush1.bf16.msra.mxu0 %v1016
      %1034 = vmatprep.subr.bf16.mxu0 0
      %1035 = vmatpush2.bf16.msra.mxu0 0
      %1036 = vmatprep.subr.bf16.mxu0 0
      %1037 = vmatpush2.bf16.msra.mxu0 0
      %1038 = vmatprep.subr.bf16.mxu0 0
      %1039 = vmatpush2.bf16.msra.mxu0 0
      %1040 = vmatprep.subr.bf16.mxu0 0
      %1041 = vmatpush2.bf16.msra.mxu0 0
      %1042 = vmatprep.subr.bf16.mxu0 0
      %1043 = vmatpush2.bf16.msra.mxu0 0
      %1044 = vmatprep.subr.bf16.mxu0 0
      %1045 = vmatpush2.bf16.msra.mxu0 0
      %1046 = vmatprep.subr.bf16.mxu0 0
      %1047 = vmatpush2.bf16.msra.mxu0 0
      %1048 = vmatprep.subr.bf16.mxu0 0
      %1049 = vmatpush2.bf16.msra.mxu0 0
      %1050 = vmatprep.mubr.bf16.mxu0 0
      %1051 = vmatmul.mubr.bf16.gmra.mxu0 %v1013
      %v1052 = vpop.f32.mrf.mxu0
      %v1053 = vadd.f32 0.0, %v1052
      %v1054 = vpop.f32.mrf.mxu0
      %v1055 = vpop.f32.mrf.mxu0
      %v1056 = vpop.f32.mrf.mxu0
      %1057 = vdwg.mxu0
      %v1058 = vpack.c.bf16 %v1053, %v1053
      %s1059 = scalar_lea.vmem %s4, 32
      %v1060 = vld [vmem:[%s1059] sm:$0xf]
      %v1061 = vld [vmem:[%s1059 + $0x4] sm:$0xf]
      %v1062 = vld [vmem:[%s1059 + $0x8] sm:$0xf]
      %v1063 = vld [vmem:[%s1059 + $0xc] sm:$0xf]
      %v1068 = vunpack.c.l.b16 %v1060
      %v1069 = vunpack.c.l.b16 %v1061
      %v1070 = vunpack.c.l.b16 %v1062
      %v1071 = vunpack.c.l.b16 %v1063
      %v1072 = vpack.c.b16 %v1069, %v1068
      %v1073 = vpack.c.b16 %v1071, %v1070
      %v1075 = vsel %vm600, %v1058, 0
      %v1078 = vsel %vm600, %v1072, 0
      %v1081 = vsel %vm600, %v1073, 0
      %1083 = vmatprep.subr.bf16.mxu0 0
      %1084 = vmatpush1.bf16.xpose.msra.mxu0 0
      %1085 = vmatprep.subr.bf16.mxu0 0
      %1086 = vmatpush1.bf16.xpose.msra.mxu0 0
      %1087 = vmatprep.subr.bf16.mxu0 0
      %1088 = vmatpush1.bf16.xpose.msra.mxu0 0
      %1089 = vmatprep.subr.bf16.mxu0 0
      %1090 = vmatpush1.bf16.xpose.msra.mxu0 0
      %1091 = vmatprep.subr.bf16.mxu0 0
      %1092 = vmatpush1.bf16.xpose.msra.mxu0 0
      %1093 = vmatprep.subr.bf16.mxu0 0
      %1094 = vmatpush1.bf16.xpose.msra.mxu0 0
      %1095 = vmatprep.subr.bf16.mxu0 0
      %1096 = vmatpush1.bf16.xpose.msra.mxu0 %v1081
      %1097 = vmatprep.subr.bf16.mxu0 0
      %1098 = vmatpush1.bf16.xpose.msra.mxu0 %v1078
      %1099 = vmatprep.subr.bf16.mxu0 0
      %1100 = vmatpush2.bf16.xpose.msra.mxu0 0
      %1101 = vmatprep.subr.bf16.mxu0 0
      %1102 = vmatpush2.bf16.xpose.msra.mxu0 0
      %1103 = vmatprep.subr.bf16.mxu0 0
      %1104 = vmatpush2.bf16.xpose.msra.mxu0 0
      %1105 = vmatprep.subr.bf16.mxu0 0
      %1106 = vmatpush2.bf16.xpose.msra.mxu0 0
      %1107 = vmatprep.subr.bf16.mxu0 0
      %1108 = vmatpush2.bf16.xpose.msra.mxu0 0
      %1109 = vmatprep.subr.bf16.mxu0 0
      %1110 = vmatpush2.bf16.xpose.msra.mxu0 0
      %1111 = vmatprep.subr.bf16.mxu0 0
      %1112 = vmatpush2.bf16.xpose.msra.mxu0 0
      %1113 = vmatprep.subr.bf16.mxu0 0
      %1114 = vmatpush2.bf16.xpose.msra.mxu0 0
      %1115 = vmatprep.mubr.bf16.mxu0 0
      %1116 = vmatmul.mubr.bf16.gmra.mxu0 %v1075
      %v1117 = vpop.f32.mrf.mxu0
      %v1118 = vadd.f32 0.0, %v1117
      %v1119 = vpop.f32.mrf.mxu0
      %v1120 = vpop.f32.mrf.mxu0
      %v1121 = vpop.f32.mrf.mxu0
      %1122 = vdwg.mxu0
      %v1123 = vadd.f32 %v943, %v1118
      %1124 = vrot.lane.b32.xlu0 %v595, 104
      %v1125 = vpop.permute.xlu0 %1124
      %1126 = vrot.lane.b32.xlu0 %v596, 72
      %v1127 = vpop.permute.xlu0 %1126
      %v1129 = vsel %vm600, %v1125, 0
      %v1132 = vsel %vm600, %v1127, 0
      %1134 = vmatprep.subr.bf16.mxu0 0
      %1135 = vmatpush1.bf16.xpose.msra.mxu0 0
      %1136 = vmatprep.subr.bf16.mxu0 0
      %1137 = vmatpush1.bf16.xpose.msra.mxu0 0
      %1138 = vmatprep.subr.bf16.mxu0 0
      %1139 = vmatpush1.bf16.xpose.msra.mxu0 0
      %1140 = vmatprep.subr.bf16.mxu0 0
      %1141 = vmatpush1.bf16.xpose.msra.mxu0 0
      %1142 = vmatprep.subr.bf16.mxu0 0
      %1143 = vmatpush1.bf16.xpose.msra.mxu0 0
      %1144 = vmatprep.subr.bf16.mxu0 0
      %1145 = vmatpush1.bf16.xpose.msra.mxu0 0
      %1146 = vmatprep.subr.bf16.mxu0 0
      %1147 = vmatpush1.bf16.xpose.msra.mxu0 0
      %1148 = vmatprep.subr.bf16.mxu0 0
      %1149 = vmatpush1.bf16.xpose.msra.mxu0 %v1132
      %1150 = vmatprep.subr.bf16.mxu0 0
      %1151 = vmatpush2.bf16.xpose.msra.mxu0 0
      %1152 = vmatprep.subr.bf16.mxu0 0
      %1153 = vmatpush2.bf16.xpose.msra.mxu0 0
      %1154 = vmatprep.subr.bf16.mxu0 0
      %1155 = vmatpush2.bf16.xpose.msra.mxu0 0
      %1156 = vmatprep.subr.bf16.mxu0 0
      %1157 = vmatpush2.bf16.xpose.msra.mxu0 0
      %1158 = vmatprep.subr.bf16.mxu0 0
      %1159 = vmatpush2.bf16.xpose.msra.mxu0 0
      %1160 = vmatprep.subr.bf16.mxu0 0
      %1161 = vmatpush2.bf16.xpose.msra.mxu0 0
      %1162 = vmatprep.subr.bf16.mxu0 0
      %1163 = vmatpush2.bf16.xpose.msra.mxu0 0
      %1164 = vmatprep.subr.bf16.mxu0 0
      %1165 = vmatpush2.bf16.xpose.msra.mxu0 0
      %1166 = vmatprep.mubr.bf16.mxu0 0
      %1167 = vmatmul.mubr.bf16.gmra.mxu0 %v1129
      %v1168 = vpop.f32.mrf.mxu0
      %v1169 = vadd.f32 0.0, %v1168
      %v1170 = vpop.f32.mrf.mxu0
      %v1171 = vpop.f32.mrf.mxu0
      %v1172 = vpop.f32.mrf.mxu0
      %1173 = vdwg.mxu0
      %v1174 = vsel %vm600, %v1169, -inf
      %1175 = vmax.xlane.f32.xlu0 %v1174
      %v1176 = vpop.xlane.xlu0 %1175
      %v1177 = vsub.f32 %v1169, %v1176
      %v1178 = vmul.f32 %v1177, 1.442695
      %v1179 = vpow.pop %v1178
      %v1180 = vsel %vm600, %v1179, 0.0
      %1181 = vadd.xlane.f32.xlu0 %v1180
      %v1182 = vpop.xlane.xlu0 %1181
      %v1183 = vrcp.pop %v1182
      %v1184 = vmul.f32 %v1179, %v1183
      %v1185 = vpack.c.bf16 %v1184, %v1184
      %1186 = vrot.lane.b32.xlu0 %v596, 40
      %v1187 = vpop.permute.xlu0 %1186
      %v1189 = vsel %vm600, %v1185, 0
      %v1192 = vsel %vm664, %v1187, 0
      %1194 = vmatprep.subr.bf16.mxu0 0
      %1195 = vmatpush1.bf16.msra.mxu0 0
      %1196 = vmatprep.subr.bf16.mxu0 0
      %1197 = vmatpush1.bf16.msra.mxu0 0
      %1198 = vmatprep.subr.bf16.mxu0 0
      %1199 = vmatpush1.bf16.msra.mxu0 0
      %1200 = vmatprep.subr.bf16.mxu0 0
      %1201 = vmatpush1.bf16.msra.mxu0 0
      %1202 = vmatprep.subr.bf16.mxu0 0
      %1203 = vmatpush1.bf16.msra.mxu0 0
      %1204 = vmatprep.subr.bf16.mxu0 0
      %1205 = vmatpush1.bf16.msra.mxu0 0
      %1206 = vmatprep.subr.bf16.mxu0 0
      %1207 = vmatpush1.bf16.msra.mxu0 0
      %1208 = vmatprep.subr.bf16.mxu0 0
      %1209 = vmatpush1.bf16.msra.mxu0 %v1192
      %1210 = vmatprep.subr.bf16.mxu0 0
      %1211 = vmatpush2.bf16.msra.mxu0 0
      %1212 = vmatprep.subr.bf16.mxu0 0
      %1213 = vmatpush2.bf16.msra.mxu0 0
      %1214 = vmatprep.subr.bf16.mxu0 0
      %1215 = vmatpush2.bf16.msra.mxu0 0
      %1216 = vmatprep.subr.bf16.mxu0 0
      %1217 = vmatpush2.bf16.msra.mxu0 0
      %1218 = vmatprep.subr.bf16.mxu0 0
      %1219 = vmatpush2.bf16.msra.mxu0 0
      %1220 = vmatprep.subr.bf16.mxu0 0
      %1221 = vmatpush2.bf16.msra.mxu0 0
      %1222 = vmatprep.subr.bf16.mxu0 0
      %1223 = vmatpush2.bf16.msra.mxu0 0
      %1224 = vmatprep.subr.bf16.mxu0 0
      %1225 = vmatpush2.bf16.msra.mxu0 0
      %1226 = vmatprep.mubr.bf16.mxu0 0
      %1227 = vmatmul.mubr.bf16.gmra.mxu0 %v1189
      %v1228 = vpop.f32.mrf.mxu0
      %v1229 = vadd.f32 0.0, %v1228
      %v1230 = vpop.f32.mrf.mxu0
      %v1231 = vpop.f32.mrf.mxu0
      %v1232 = vpop.f32.mrf.mxu0
      %1233 = vdwg.mxu0
      %v1234 = vpack.c.bf16 %v1229, %v1229
      %s1235 = scalar_lea.vmem %s4, 48
      %v1236 = vld [vmem:[%s1235] sm:$0xf]
      %v1237 = vld [vmem:[%s1235 + $0x4] sm:$0xf]
      %v1238 = vld [vmem:[%s1235 + $0x8] sm:$0xf]
      %v1239 = vld [vmem:[%s1235 + $0xc] sm:$0xf]
      %v1244 = vunpack.c.l.b16 %v1236
      %v1245 = vunpack.c.l.b16 %v1237
      %v1246 = vunpack.c.l.b16 %v1238
      %v1247 = vunpack.c.l.b16 %v1239
      %v1248 = vpack.c.b16 %v1245, %v1244
      %v1249 = vpack.c.b16 %v1247, %v1246
      %v1251 = vsel %vm600, %v1234, 0
      %v1254 = vsel %vm600, %v1248, 0
      %v1257 = vsel %vm600, %v1249, 0
      %1259 = vmatprep.subr.bf16.mxu0 0
      %1260 = vmatpush1.bf16.xpose.msra.mxu0 0
      %1261 = vmatprep.subr.bf16.mxu0 0
      %1262 = vmatpush1.bf16.xpose.msra.mxu0 0
      %1263 = vmatprep.subr.bf16.mxu0 0
      %1264 = vmatpush1.bf16.xpose.msra.mxu0 0
      %1265 = vmatprep.subr.bf16.mxu0 0
      %1266 = vmatpush1.bf16.xpose.msra.mxu0 0
      %1267 = vmatprep.subr.bf16.mxu0 0
      %1268 = vmatpush1.bf16.xpose.msra.mxu0 0
      %1269 = vmatprep.subr.bf16.mxu0 0
      %1270 = vmatpush1.bf16.xpose.msra.mxu0 0
      %1271 = vmatprep.subr.bf16.mxu0 0
      %1272 = vmatpush1.bf16.xpose.msra.mxu0 %v1257
      %1273 = vmatprep.subr.bf16.mxu0 0
      %1274 = vmatpush1.bf16.xpose.msra.mxu0 %v1254
      %1275 = vmatprep.subr.bf16.mxu0 0
      %1276 = vmatpush2.bf16.xpose.msra.mxu0 0
      %1277 = vmatprep.subr.bf16.mxu0 0
      %1278 = vmatpush2.bf16.xpose.msra.mxu0 0
      %1279 = vmatprep.subr.bf16.mxu0 0
      %1280 = vmatpush2.bf16.xpose.msra.mxu0 0
      %1281 = vmatprep.subr.bf16.mxu0 0
      %1282 = vmatpush2.bf16.xpose.msra.mxu0 0
      %1283 = vmatprep.subr.bf16.mxu0 0
      %1284 = vmatpush2.bf16.xpose.msra.mxu0 0
      %1285 = vmatprep.subr.bf16.mxu0 0
      %1286 = vmatpush2.bf16.xpose.msra.mxu0 0
      %1287 = vmatprep.subr.bf16.mxu0 0
      %1288 = vmatpush2.bf16.xpose.msra.mxu0 0
      %1289 = vmatprep.subr.bf16.mxu0 0
      %1290 = vmatpush2.bf16.xpose.msra.mxu0 0
      %1291 = vmatprep.mubr.bf16.mxu0 0
      %1292 = vmatmul.mubr.bf16.gmra.mxu0 %v1251
      %v1293 = vpop.f32.mrf.mxu0
      %v1294 = vadd.f32 0.0, %v1293
      %v1295 = vpop.f32.mrf.mxu0
      %v1296 = vpop.f32.mrf.mxu0
      %v1297 = vpop.f32.mrf.mxu0
      %1298 = vdwg.mxu0
      %v1299 = vadd.f32 %v1123, %v1294
      %v1300 = vld [vmem:[%s5] sm:$0x1]
      %v1302 = vlaneseq
      %v1303 = vshrl.u32 %v1302, 7
      %v1304 = vsub.s32 0, %v1303
      %v1305 = vrot.slane %v1300, %v1304
      %v1307 = vadd.f32 %v1299, %v1305
      %v1308 = vld [vmem:[%s6] sm:$0x1]
      %v1309 = vld [vmem:[%s7] sm:$0x1]
      %v1310 = vadd.f32 %v1307, %v482
      %v1311 = vsel %vm532, %v1310, 0.0
      %1312 = vadd.xlane.f32.xlu0 %v1311
      %v1313 = vpop.xlane.xlu0 %1312
      %v1314 = vrcp.pop 32.0
      %v1315 = vmul.f32 %v1313, %v1314
      %v1316 = vsub.f32 %v1310, %v1315
      %v1317 = vmul.f32 %v1316, %v1316
      %v1318 = vsel %vm532, %v1317, 0.0
      %1319 = vadd.xlane.f32.xlu0 %v1318
      %v1320 = vpop.xlane.xlu0 %1319
      %v1321 = vmul.f32 %v1320, %v1314
      %v1322 = vadd.f32 %v1321, 1e-05
      %v1323 = vrsqrt.pop %v1322
      %v1324 = vmul.f32 %v1316, %v1323
      %v1326 = vlaneseq
      %v1327 = vshrl.u32 %v1326, 7
      %v1328 = vsub.s32 0, %v1327
      %v1329 = vrot.slane %v1308, %v1328
      %v1331 = vmul.f32 %v1324, %v1329
      %v1333 = vlaneseq
      %v1334 = vshrl.u32 %v1333, 7
      %v1335 = vsub.s32 0, %v1334
      %v1336 = vrot.slane %v1309, %v1335
      %v1338 = vadd.f32 %v1331, %v1336
      %v1339 = vld [vmem:[%s475] sm:$0xf]
      %v1340 = vld [vmem:[%s8] sm:$0xf]
      %v1341 = vld [vmem:[%s8 + $0x4] sm:$0xf]
      %v1342 = vld [vmem:[%s8 + $0x8] sm:$0xf]
      %v1343 = vld [vmem:[%s8 + $0xc] sm:$0xf]
      %v1344 = vpack.c.bf16 %v1338, %v1338
      %v1345 = vld [vmem:[%s9] sm:$0x1]
      %v1347 = vlaneseq
      %v1348 = vshrl.u32 %v1347, 7
      %v1349 = vsub.s32 0, %v1348
      %v1350 = vrot.slane %v1345, %v1349
      %v1356 = vunpack.c.l.b16 %v1340
      %v1357 = vunpack.c.l.b16 %v1341
      %v1358 = vunpack.c.l.b16 %v1342
      %v1359 = vunpack.c.l.b16 %v1343
      %v1360 = vpack.c.b16 %v1357, %v1356
      %v1361 = vpack.c.b16 %v1359, %v1358
      %v1363 = vsel %vm532, %v1344, 0
      %v1366 = vsel %vm532, %v1360, 0
      %v1369 = vsel %vm532, %v1361, 0
      %1371 = vmatprep.subr.bf16.mxu0 0
      %1372 = vmatpush1.bf16.xpose.msra.mxu0 0
      %1373 = vmatprep.subr.bf16.mxu0 0
      %1374 = vmatpush1.bf16.xpose.msra.mxu0 0
      %1375 = vmatprep.subr.bf16.mxu0 0
      %1376 = vmatpush1.bf16.xpose.msra.mxu0 0
      %1377 = vmatprep.subr.bf16.mxu0 0
      %1378 = vmatpush1.bf16.xpose.msra.mxu0 0
      %1379 = vmatprep.subr.bf16.mxu0 0
      %1380 = vmatpush1.bf16.xpose.msra.mxu0 0
      %1381 = vmatprep.subr.bf16.mxu0 0
      %1382 = vmatpush1.bf16.xpose.msra.mxu0 0
      %1383 = vmatprep.subr.bf16.mxu0 0
      %1384 = vmatpush1.bf16.xpose.msra.mxu0 %v1369
      %1385 = vmatprep.subr.bf16.mxu0 0
      %1386 = vmatpush1.bf16.xpose.msra.mxu0 %v1366
      %1387 = vmatprep.subr.bf16.mxu0 0
      %1388 = vmatpush2.bf16.xpose.msra.mxu0 0
      %1389 = vmatprep.subr.bf16.mxu0 0
      %1390 = vmatpush2.bf16.xpose.msra.mxu0 0
      %1391 = vmatprep.subr.bf16.mxu0 0
      %1392 = vmatpush2.bf16.xpose.msra.mxu0 0
      %1393 = vmatprep.subr.bf16.mxu0 0
      %1394 = vmatpush2.bf16.xpose.msra.mxu0 0
      %1395 = vmatprep.subr.bf16.mxu0 0
      %1396 = vmatpush2.bf16.xpose.msra.mxu0 0
      %1397 = vmatprep.subr.bf16.mxu0 0
      %1398 = vmatpush2.bf16.xpose.msra.mxu0 0
      %1399 = vmatprep.subr.bf16.mxu0 0
      %1400 = vmatpush2.bf16.xpose.msra.mxu0 0
      %1401 = vmatprep.subr.bf16.mxu0 0
      %1402 = vmatpush2.bf16.xpose.msra.mxu0 0
      %1403 = vmatprep.mubr.bf16.mxu0 0
      %1404 = vmatmul.mubr.bf16.gmra.mxu0 %v1363
      %v1405 = vpop.f32.mrf.mxu0
      %v1406 = vadd.f32 %v1350, %v1405
      %v1407 = vpop.f32.mrf.mxu0
      %v1408 = vpop.f32.mrf.mxu0
      %v1409 = vpop.f32.mrf.mxu0
      %1410 = vdwg.mxu0
      %v1411 = vmul.f32 %v1406, 0.35355338
      %v1412 = vpack.c.bf16 %v1411, %v1411
      %v1414 = vsel %vm600, %v1412, 0
      %v1417 = vsel %vm600, %v1339, 0
      %1419 = vmatprep.subr.bf16.mxu0 0
      %1420 = vmatpush1.bf16.xpose.msra.mxu0 0
      %1421 = vmatprep.subr.bf16.mxu0 0
      %1422 = vmatpush1.bf16.xpose.msra.mxu0 0
      %1423 = vmatprep.subr.bf16.mxu0 0
      %1424 = vmatpush1.bf16.xpose.msra.mxu0 0
      %1425 = vmatprep.subr.bf16.mxu0 0
      %1426 = vmatpush1.bf16.xpose.msra.mxu0 0
      %1427 = vmatprep.subr.bf16.mxu0 0
      %1428 = vmatpush1.bf16.xpose.msra.mxu0 0
      %1429 = vmatprep.subr.bf16.mxu0 0
      %1430 = vmatpush1.bf16.xpose.msra.mxu0 0
      %1431 = vmatprep.subr.bf16.mxu0 0
      %1432 = vmatpush1.bf16.xpose.msra.mxu0 0
      %1433 = vmatprep.subr.bf16.mxu0 0
      %1434 = vmatpush1.bf16.xpose.msra.mxu0 %v1417
      %1435 = vmatprep.subr.bf16.mxu0 0
      %1436 = vmatpush2.bf16.xpose.msra.mxu0 0
      %1437 = vmatprep.subr.bf16.mxu0 0
      %1438 = vmatpush2.bf16.xpose.msra.mxu0 0
      %1439 = vmatprep.subr.bf16.mxu0 0
      %1440 = vmatpush2.bf16.xpose.msra.mxu0 0
      %1441 = vmatprep.subr.bf16.mxu0 0
      %1442 = vmatpush2.bf16.xpose.msra.mxu0 0
      %1443 = vmatprep.subr.bf16.mxu0 0
      %1444 = vmatpush2.bf16.xpose.msra.mxu0 0
      %1445 = vmatprep.subr.bf16.mxu0 0
      %1446 = vmatpush2.bf16.xpose.msra.mxu0 0
      %1447 = vmatprep.subr.bf16.mxu0 0
      %1448 = vmatpush2.bf16.xpose.msra.mxu0 0
      %1449 = vmatprep.subr.bf16.mxu0 0
      %1450 = vmatpush2.bf16.xpose.msra.mxu0 0
      %1451 = vmatprep.mubr.bf16.mxu0 0
      %1452 = vmatmul.mubr.bf16.gmra.mxu0 %v1414
      %v1453 = vpop.f32.mrf.mxu0
      %v1454 = vadd.f32 0.0, %v1453
      %v1455 = vpop.f32.mrf.mxu0
      %v1456 = vpop.f32.mrf.mxu0
      %v1457 = vpop.f32.mrf.mxu0
      %1458 = vdwg.mxu0
      %v1459 = vsel %vm600, %v1454, -inf
      %1460 = vmax.xlane.f32.xlu0 %v1459
      %v1461 = vpop.xlane.xlu0 %1460
      %v1462 = vsub.f32 %v1454, %v1461
      %v1463 = vmul.f32 %v1462, 1.442695
      %v1464 = vpow.pop %v1463
      %v1465 = vsel %vm600, %v1464, 0.0
      %1466 = vadd.xlane.f32.xlu0 %v1465
      %v1467 = vpop.xlane.xlu0 %1466
      %v1468 = vrcp.pop %v1467
      %v1469 = vmul.f32 %v1464, %v1468
      %v1470 = vpack.c.bf16 %v1469, %v1469
      %v1472 = vunpack.c.l.b16 %v1339
      %v1473 = vpack.c.b16 %v1472, %v1472
      %1474 = vrot.lane.b32.xlu0 %v1473, 96
      %v1475 = vpop.permute.xlu0 %1474
      %v1477 = vsel %vm600, %v1470, 0
      %v1480 = vsel %vm664, %v1475, 0
      %1482 = vmatprep.subr.bf16.mxu0 0
      %1483 = vmatpush1.bf16.msra.mxu0 0
      %1484 = vmatprep.subr.bf16.mxu0 0
      %1485 = vmatpush1.bf16.msra.mxu0 0
      %1486 = vmatprep.subr.bf16.mxu0 0
      %1487 = vmatpush1.bf16.msra.mxu0 0
      %1488 = vmatprep.subr.bf16.mxu0 0
      %1489 = vmatpush1.bf16.msra.mxu0 0
      %1490 = vmatprep.subr.bf16.mxu0 0
      %1491 = vmatpush1.bf16.msra.mxu0 0
      %1492 = vmatprep.subr.bf16.mxu0 0
      %1493 = vmatpush1.bf16.msra.mxu0 0
      %1494 = vmatprep.subr.bf16.mxu0 0
      %1495 = vmatpush1.bf16.msra.mxu0 0
      %1496 = vmatprep.subr.bf16.mxu0 0
      %1497 = vmatpush1.bf16.msra.mxu0 %v1480
      %1498 = vmatprep.subr.bf16.mxu0 0
      %1499 = vmatpush2.bf16.msra.mxu0 0
      %1500 = vmatprep.subr.bf16.mxu0 0
      %1501 = vmatpush2.bf16.msra.mxu0 0
      %1502 = vmatprep.subr.bf16.mxu0 0
      %1503 = vmatpush2.bf16.msra.mxu0 0
      %1504 = vmatprep.subr.bf16.mxu0 0
      %1505 = vmatpush2.bf16.msra.mxu0 0
      %1506 = vmatprep.subr.bf16.mxu0 0
      %1507 = vmatpush2.bf16.msra.mxu0 0
      %1508 = vmatprep.subr.bf16.mxu0 0
      %1509 = vmatpush2.bf16.msra.mxu0 0
      %1510 = vmatprep.subr.bf16.mxu0 0
      %1511 = vmatpush2.bf16.msra.mxu0 0
      %1512 = vmatprep.subr.bf16.mxu0 0
      %1513 = vmatpush2.bf16.msra.mxu0 0
      %1514 = vmatprep.mubr.bf16.mxu0 0
      %1515 = vmatmul.mubr.bf16.gmra.mxu0 %v1477
      %v1516 = vpop.f32.mrf.mxu0
      %v1517 = vadd.f32 0.0, %v1516
      %v1518 = vpop.f32.mrf.mxu0
      %v1519 = vpop.f32.mrf.mxu0
      %v1520 = vpop.f32.mrf.mxu0
      %1521 = vdwg.mxu0
      %v1522 = vpack.c.bf16 %v1517, %v1517
      %v1523 = vld [vmem:[%s10] sm:$0xf]
      %v1524 = vld [vmem:[%s10 + $0x4] sm:$0xf]
      %v1525 = vld [vmem:[%s10 + $0x8] sm:$0xf]
      %v1526 = vld [vmem:[%s10 + $0xc] sm:$0xf]
      %1528 = vrot.lane.b32.xlu0 %v1412, 120
      %v1529 = vpop.permute.xlu0 %1528
      %1530 = vrot.lane.b32.xlu0 %v1473, 120
      %v1531 = vpop.permute.xlu0 %1530
      %v1533 = vsel %vm600, %v1529, 0
      %v1536 = vsel %vm600, %v1531, 0
      %1538 = vmatprep.subr.bf16.mxu0 0
      %1539 = vmatpush1.bf16.xpose.msra.mxu0 0
      %1540 = vmatprep.subr.bf16.mxu0 0
      %1541 = vmatpush1.bf16.xpose.msra.mxu0 0
      %1542 = vmatprep.subr.bf16.mxu0 0
      %1543 = vmatpush1.bf16.xpose.msra.mxu0 0
      %1544 = vmatprep.subr.bf16.mxu0 0
      %1545 = vmatpush1.bf16.xpose.msra.mxu0 0
      %1546 = vmatprep.subr.bf16.mxu0 0
      %1547 = vmatpush1.bf16.xpose.msra.mxu0 0
      %1548 = vmatprep.subr.bf16.mxu0 0
      %1549 = vmatpush1.bf16.xpose.msra.mxu0 0
      %1550 = vmatprep.subr.bf16.mxu0 0
      %1551 = vmatpush1.bf16.xpose.msra.mxu0 0
      %1552 = vmatprep.subr.bf16.mxu0 0
      %1553 = vmatpush1.bf16.xpose.msra.mxu0 %v1536
      %1554 = vmatprep.subr.bf16.mxu0 0
      %1555 = vmatpush2.bf16.xpose.msra.mxu0 0
      %1556 = vmatprep.subr.bf16.mxu0 0
      %1557 = vmatpush2.bf16.xpose.msra.mxu0 0
      %1558 = vmatprep.subr.bf16.mxu0 0
      %1559 = vmatpush2.bf16.xpose.msra.mxu0 0
      %1560 = vmatprep.subr.bf16.mxu0 0
      %1561 = vmatpush2.bf16.xpose.msra.mxu0 0
      %1562 = vmatprep.subr.bf16.mxu0 0
      %1563 = vmatpush2.bf16.xpose.msra.mxu0 0
      %1564 = vmatprep.subr.bf16.mxu0 0
      %1565 = vmatpush2.bf16.xpose.msra.mxu0 0
      %1566 = vmatprep.subr.bf16.mxu0 0
      %1567 = vmatpush2.bf16.xpose.msra.mxu0 0
      %1568 = vmatprep.subr.bf16.mxu0 0
      %1569 = vmatpush2.bf16.xpose.msra.mxu0 0
      %1570 = vmatprep.mubr.bf16.mxu0 0
      %1571 = vmatmul.mubr.bf16.gmra.mxu0 %v1533
      %v1572 = vpop.f32.mrf.mxu0
      %v1573 = vadd.f32 0.0, %v1572
      %v1574 = vpop.f32.mrf.mxu0
      %v1575 = vpop.f32.mrf.mxu0
      %v1576 = vpop.f32.mrf.mxu0
      %1577 = vdwg.mxu0
      %v1578 = vsel %vm600, %v1573, -inf
      %1579 = vmax.xlane.f32.xlu0 %v1578
      %v1580 = vpop.xlane.xlu0 %1579
      %v1581 = vsub.f32 %v1573, %v1580
      %v1582 = vmul.f32 %v1581, 1.442695
      %v1583 = vpow.pop %v1582
      %v1584 = vsel %vm600, %v1583, 0.0
      %1585 = vadd.xlane.f32.xlu0 %v1584
      %v1586 = vpop.xlane.xlu0 %1585
      %v1587 = vrcp.pop %v1586
      %v1588 = vmul.f32 %v1583, %v1587
      %v1589 = vpack.c.bf16 %v1588, %v1588
      %1590 = vrot.lane.b32.xlu0 %v1473, 88
      %v1591 = vpop.permute.xlu0 %1590
      %v1593 = vsel %vm600, %v1589, 0
      %v1596 = vsel %vm664, %v1591, 0
      %1598 = vmatprep.subr.bf16.mxu0 0
      %1599 = vmatpush1.bf16.msra.mxu0 0
      %1600 = vmatprep.subr.bf16.mxu0 0
      %1601 = vmatpush1.bf16.msra.mxu0 0
      %1602 = vmatprep.subr.bf16.mxu0 0
      %1603 = vmatpush1.bf16.msra.mxu0 0
      %1604 = vmatprep.subr.bf16.mxu0 0
      %1605 = vmatpush1.bf16.msra.mxu0 0
      %1606 = vmatprep.subr.bf16.mxu0 0
      %1607 = vmatpush1.bf16.msra.mxu0 0
      %1608 = vmatprep.subr.bf16.mxu0 0
      %1609 = vmatpush1.bf16.msra.mxu0 0
      %1610 = vmatprep.subr.bf16.mxu0 0
      %1611 = vmatpush1.bf16.msra.mxu0 0
      %1612 = vmatprep.subr.bf16.mxu0 0
      %1613 = vmatpush1.bf16.msra.mxu0 %v1596
      %1614 = vmatprep.subr.bf16.mxu0 0
      %1615 = vmatpush2.bf16.msra.mxu0 0
      %1616 = vmatprep.subr.bf16.mxu0 0
      %1617 = vmatpush2.bf16.msra.mxu0 0
      %1618 = vmatprep.subr.bf16.mxu0 0
      %1619 = vmatpush2.bf16.msra.mxu0 0
      %1620 = vmatprep.subr.bf16.mxu0 0
      %1621 = vmatpush2.bf16.msra.mxu0 0
      %1622 = vmatprep.subr.bf16.mxu0 0
      %1623 = vmatpush2.bf16.msra.mxu0 0
      %1624 = vmatprep.subr.bf16.mxu0 0
      %1625 = vmatpush2.bf16.msra.mxu0 0
      %1626 = vmatprep.subr.bf16.mxu0 0
      %1627 = vmatpush2.bf16.msra.mxu0 0
      %1628 = vmatprep.subr.bf16.mxu0 0
      %1629 = vmatpush2.bf16.msra.mxu0 0
      %1630 = vmatprep.mubr.bf16.mxu0 0
      %1631 = vmatmul.mubr.bf16.gmra.mxu0 %v1593
      %v1632 = vpop.f32.mrf.mxu0
      %v1633 = vadd.f32 0.0, %v1632
      %v1634 = vpop.f32.mrf.mxu0
      %v1635 = vpop.f32.mrf.mxu0
      %v1636 = vpop.f32.mrf.mxu0
      %1637 = vdwg.mxu0
      %v1638 = vpack.c.bf16 %v1633, %v1633
      %s1639 = scalar_lea.vmem %s10, 16
      %v1640 = vld [vmem:[%s1639] sm:$0xf]
      %v1641 = vld [vmem:[%s1639 + $0x4] sm:$0xf]
      %v1642 = vld [vmem:[%s1639 + $0x8] sm:$0xf]
      %v1643 = vld [vmem:[%s1639 + $0xc] sm:$0xf]
      %v1648 = vunpack.c.l.b16 %v1640
      %v1649 = vunpack.c.l.b16 %v1641
      %v1650 = vunpack.c.l.b16 %v1642
      %v1651 = vunpack.c.l.b16 %v1643
      %v1652 = vpack.c.b16 %v1649, %v1648
      %v1653 = vpack.c.b16 %v1651, %v1650
      %v1655 = vsel %vm600, %v1638, 0
      %v1658 = vsel %vm600, %v1652, 0
      %v1661 = vsel %vm600, %v1653, 0
      %1663 = vmatprep.subr.bf16.mxu0 0
      %1664 = vmatpush1.bf16.xpose.msra.mxu0 0
      %1665 = vmatprep.subr.bf16.mxu0 0
      %1666 = vmatpush1.bf16.xpose.msra.mxu0 0
      %1667 = vmatprep.subr.bf16.mxu0 0
      %1668 = vmatpush1.bf16.xpose.msra.mxu0 0
      %1669 = vmatprep.subr.bf16.mxu0 0
      %1670 = vmatpush1.bf16.xpose.msra.mxu0 0
      %1671 = vmatprep.subr.bf16.mxu0 0
      %1672 = vmatpush1.bf16.xpose.msra.mxu0 0
      %1673 = vmatprep.subr.bf16.mxu0 0
      %1674 = vmatpush1.bf16.xpose.msra.mxu0 0
      %1675 = vmatprep.subr.bf16.mxu0 0
      %1676 = vmatpush1.bf16.xpose.msra.mxu0 %v1661
      %1677 = vmatprep.subr.bf16.mxu0 0
      %1678 = vmatpush1.bf16.xpose.msra.mxu0 %v1658
      %1679 = vmatprep.subr.bf16.mxu0 0
      %1680 = vmatpush2.bf16.xpose.msra.mxu0 0
      %1681 = vmatprep.subr.bf16.mxu0 0
      %1682 = vmatpush2.bf16.xpose.msra.mxu0 0
      %1683 = vmatprep.subr.bf16.mxu0 0
      %1684 = vmatpush2.bf16.xpose.msra.mxu0 0
      %1685 = vmatprep.subr.bf16.mxu0 0
      %1686 = vmatpush2.bf16.xpose.msra.mxu0 0
      %1687 = vmatprep.subr.bf16.mxu0 0
      %1688 = vmatpush2.bf16.xpose.msra.mxu0 0
      %1689 = vmatprep.subr.bf16.mxu0 0
      %1690 = vmatpush2.bf16.xpose.msra.mxu0 0
      %1691 = vmatprep.subr.bf16.mxu0 0
      %1692 = vmatpush2.bf16.xpose.msra.mxu0 0
      %1693 = vmatprep.subr.bf16.mxu0 0
      %1694 = vmatpush2.bf16.xpose.msra.mxu0 0
      %1695 = vmatprep.mubr.bf16.mxu0 0
      %1696 = vmatmul.mubr.bf16.gmra.mxu0 %v1655
      %v1697 = vpop.f32.mrf.mxu0
      %v1698 = vadd.f32 0.0, %v1697
      %v1699 = vpop.f32.mrf.mxu0
      %v1700 = vpop.f32.mrf.mxu0
      %v1701 = vpop.f32.mrf.mxu0
      %1702 = vdwg.mxu0
      %v1707 = vunpack.c.l.b16 %v1523
      %v1708 = vunpack.c.l.b16 %v1524
      %v1709 = vunpack.c.l.b16 %v1525
      %v1710 = vunpack.c.l.b16 %v1526
      %v1711 = vpack.c.b16 %v1708, %v1707
      %v1712 = vpack.c.b16 %v1710, %v1709
      %v1714 = vsel %vm600, %v1522, 0
      %v1717 = vsel %vm600, %v1711, 0
      %v1720 = vsel %vm600, %v1712, 0
      %1722 = vmatprep.subr.bf16.mxu0 0
      %1723 = vmatpush1.bf16.xpose.msra.mxu0 0
      %1724 = vmatprep.subr.bf16.mxu0 0
      %1725 = vmatpush1.bf16.xpose.msra.mxu0 0
      %1726 = vmatprep.subr.bf16.mxu0 0
      %1727 = vmatpush1.bf16.xpose.msra.mxu0 0
      %1728 = vmatprep.subr.bf16.mxu0 0
      %1729 = vmatpush1.bf16.xpose.msra.mxu0 0
      %1730 = vmatprep.subr.bf16.mxu0 0
      %1731 = vmatpush1.bf16.xpose.msra.mxu0 0
      %1732 = vmatprep.subr.bf16.mxu0 0
      %1733 = vmatpush1.bf16.xpose.msra.mxu0 0
      %1734 = vmatprep.subr.bf16.mxu0 0
      %1735 = vmatpush1.bf16.xpose.msra.mxu0 %v1720
      %1736 = vmatprep.subr.bf16.mxu0 0
      %1737 = vmatpush1.bf16.xpose.msra.mxu0 %v1717
      %1738 = vmatprep.subr.bf16.mxu0 0
      %1739 = vmatpush2.bf16.xpose.msra.mxu0 0
      %1740 = vmatprep.subr.bf16.mxu0 0
      %1741 = vmatpush2.bf16.xpose.msra.mxu0 0
      %1742 = vmatprep.subr.bf16.mxu0 0
      %1743 = vmatpush2.bf16.xpose.msra.mxu0 0
      %1744 = vmatprep.subr.bf16.mxu0 0
      %1745 = vmatpush2.bf16.xpose.msra.mxu0 0
      %1746 = vmatprep.subr.bf16.mxu0 0
      %1747 = vmatpush2.bf16.xpose.msra.mxu0 0
      %1748 = vmatprep.subr.bf16.mxu0 0
      %1749 = vmatpush2.bf16.xpose.msra.mxu0 0
      %1750 = vmatprep.subr.bf16.mxu0 0
      %1751 = vmatpush2.bf16.xpose.msra.mxu0 0
      %1752 = vmatprep.subr.bf16.mxu0 0
      %1753 = vmatpush2.bf16.xpose.msra.mxu0 0
      %1754 = vmatprep.mubr.bf16.mxu0 0
      %1755 = vmatmul.mubr.bf16.gmra.mxu0 %v1714
      %v1756 = vpop.f32.mrf.mxu0
      %v1757 = vadd.f32 %v1698, %v1756
      %v1758 = vpop.f32.mrf.mxu0
      %v1759 = vpop.f32.mrf.mxu0
      %v1760 = vpop.f32.mrf.mxu0
      %1761 = vdwg.mxu0
      %1762 = vrot.lane.b32.xlu0 %v1412, 112
      %v1763 = vpop.permute.xlu0 %1762
      %1764 = vrot.lane.b32.xlu0 %v1473, 112
      %v1765 = vpop.permute.xlu0 %1764
      %v1767 = vsel %vm600, %v1763, 0
      %v1770 = vsel %vm600, %v1765, 0
      %1772 = vmatprep.subr.bf16.mxu0 0
      %1773 = vmatpush1.bf16.xpose.msra.mxu0 0
      %1774 = vmatprep.subr.bf16.mxu0 0
      %1775 = vmatpush1.bf16.xpose.msra.mxu0 0
      %1776 = vmatprep.subr.bf16.mxu0 0
      %1777 = vmatpush1.bf16.xpose.msra.mxu0 0
      %1778 = vmatprep.subr.bf16.mxu0 0
      %1779 = vmatpush1.bf16.xpose.msra.mxu0 0
      %1780 = vmatprep.subr.bf16.mxu0 0
      %1781 = vmatpush1.bf16.xpose.msra.mxu0 0
      %1782 = vmatprep.subr.bf16.mxu0 0
      %1783 = vmatpush1.bf16.xpose.msra.mxu0 0
      %1784 = vmatprep.subr.bf16.mxu0 0
      %1785 = vmatpush1.bf16.xpose.msra.mxu0 0
      %1786 = vmatprep.subr.bf16.mxu0 0
      %1787 = vmatpush1.bf16.xpose.msra.mxu0 %v1770
      %1788 = vmatprep.subr.bf16.mxu0 0
      %1789 = vmatpush2.bf16.xpose.msra.mxu0 0
      %1790 = vmatprep.subr.bf16.mxu0 0
      %1791 = vmatpush2.bf16.xpose.msra.mxu0 0
      %1792 = vmatprep.subr.bf16.mxu0 0
      %1793 = vmatpush2.bf16.xpose.msra.mxu0 0
      %1794 = vmatprep.subr.bf16.mxu0 0
      %1795 = vmatpush2.bf16.xpose.msra.mxu0 0
      %1796 = vmatprep.subr.bf16.mxu0 0
      %1797 = vmatpush2.bf16.xpose.msra.mxu0 0
      %1798 = vmatprep.subr.bf16.mxu0 0
      %1799 = vmatpush2.bf16.xpose.msra.mxu0 0
      %1800 = vmatprep.subr.bf16.mxu0 0
      %1801 = vmatpush2.bf16.xpose.msra.mxu0 0
      %1802 = vmatprep.subr.bf16.mxu0 0
      %1803 = vmatpush2.bf16.xpose.msra.mxu0 0
      %1804 = vmatprep.mubr.bf16.mxu0 0
      %1805 = vmatmul.mubr.bf16.gmra.mxu0 %v1767
      %v1806 = vpop.f32.mrf.mxu0
      %v1807 = vadd.f32 0.0, %v1806
      %v1808 = vpop.f32.mrf.mxu0
      %v1809 = vpop.f32.mrf.mxu0
      %v1810 = vpop.f32.mrf.mxu0
      %1811 = vdwg.mxu0
      %v1812 = vsel %vm600, %v1807, -inf
      %1813 = vmax.xlane.f32.xlu0 %v1812
      %v1814 = vpop.xlane.xlu0 %1813
      %v1815 = vsub.f32 %v1807, %v1814
      %v1816 = vmul.f32 %v1815, 1.442695
      %v1817 = vpow.pop %v1816
      %v1818 = vsel %vm600, %v1817, 0.0
      %1819 = vadd.xlane.f32.xlu0 %v1818
      %v1820 = vpop.xlane.xlu0 %1819
      %v1821 = vrcp.pop %v1820
      %v1822 = vmul.f32 %v1817, %v1821
      %v1823 = vpack.c.bf16 %v1822, %v1822
      %1824 = vrot.lane.b32.xlu0 %v1473, 80
      %v1825 = vpop.permute.xlu0 %1824
      %v1827 = vsel %vm600, %v1823, 0
      %v1830 = vsel %vm664, %v1825, 0
      %1832 = vmatprep.subr.bf16.mxu0 0
      %1833 = vmatpush1.bf16.msra.mxu0 0
      %1834 = vmatprep.subr.bf16.mxu0 0
      %1835 = vmatpush1.bf16.msra.mxu0 0
      %1836 = vmatprep.subr.bf16.mxu0 0
      %1837 = vmatpush1.bf16.msra.mxu0 0
      %1838 = vmatprep.subr.bf16.mxu0 0
      %1839 = vmatpush1.bf16.msra.mxu0 0
      %1840 = vmatprep.subr.bf16.mxu0 0
      %1841 = vmatpush1.bf16.msra.mxu0 0
      %1842 = vmatprep.subr.bf16.mxu0 0
      %1843 = vmatpush1.bf16.msra.mxu0 0
      %1844 = vmatprep.subr.bf16.mxu0 0
      %1845 = vmatpush1.bf16.msra.mxu0 0
      %1846 = vmatprep.subr.bf16.mxu0 0
      %1847 = vmatpush1.bf16.msra.mxu0 %v1830
      %1848 = vmatprep.subr.bf16.mxu0 0
      %1849 = vmatpush2.bf16.msra.mxu0 0
      %1850 = vmatprep.subr.bf16.mxu0 0
      %1851 = vmatpush2.bf16.msra.mxu0 0
      %1852 = vmatprep.subr.bf16.mxu0 0
      %1853 = vmatpush2.bf16.msra.mxu0 0
      %1854 = vmatprep.subr.bf16.mxu0 0
      %1855 = vmatpush2.bf16.msra.mxu0 0
      %1856 = vmatprep.subr.bf16.mxu0 0
      %1857 = vmatpush2.bf16.msra.mxu0 0
      %1858 = vmatprep.subr.bf16.mxu0 0
      %1859 = vmatpush2.bf16.msra.mxu0 0
      %1860 = vmatprep.subr.bf16.mxu0 0
      %1861 = vmatpush2.bf16.msra.mxu0 0
      %1862 = vmatprep.subr.bf16.mxu0 0
      %1863 = vmatpush2.bf16.msra.mxu0 0
      %1864 = vmatprep.mubr.bf16.mxu0 0
      %1865 = vmatmul.mubr.bf16.gmra.mxu0 %v1827
      %v1866 = vpop.f32.mrf.mxu0
      %v1867 = vadd.f32 0.0, %v1866
      %v1868 = vpop.f32.mrf.mxu0
      %v1869 = vpop.f32.mrf.mxu0
      %v1870 = vpop.f32.mrf.mxu0
      %1871 = vdwg.mxu0
      %v1872 = vpack.c.bf16 %v1867, %v1867
      %s1873 = scalar_lea.vmem %s10, 32
      %v1874 = vld [vmem:[%s1873] sm:$0xf]
      %v1875 = vld [vmem:[%s1873 + $0x4] sm:$0xf]
      %v1876 = vld [vmem:[%s1873 + $0x8] sm:$0xf]
      %v1877 = vld [vmem:[%s1873 + $0xc] sm:$0xf]
      %v1882 = vunpack.c.l.b16 %v1874
      %v1883 = vunpack.c.l.b16 %v1875
      %v1884 = vunpack.c.l.b16 %v1876
      %v1885 = vunpack.c.l.b16 %v1877
      %v1886 = vpack.c.b16 %v1883, %v1882
      %v1887 = vpack.c.b16 %v1885, %v1884
      %v1889 = vsel %vm600, %v1872, 0
      %v1892 = vsel %vm600, %v1886, 0
      %v1895 = vsel %vm600, %v1887, 0
      %1897 = vmatprep.subr.bf16.mxu0 0
      %1898 = vmatpush1.bf16.xpose.msra.mxu0 0
      %1899 = vmatprep.subr.bf16.mxu0 0
      %1900 = vmatpush1.bf16.xpose.msra.mxu0 0
      %1901 = vmatprep.subr.bf16.mxu0 0
      %1902 = vmatpush1.bf16.xpose.msra.mxu0 0
      %1903 = vmatprep.subr.bf16.mxu0 0
      %1904 = vmatpush1.bf16.xpose.msra.mxu0 0
      %1905 = vmatprep.subr.bf16.mxu0 0
      %1906 = vmatpush1.bf16.xpose.msra.mxu0 0
      %1907 = vmatprep.subr.bf16.mxu0 0
      %1908 = vmatpush1.bf16.xpose.msra.mxu0 0
      %1909 = vmatprep.subr.bf16.mxu0 0
      %1910 = vmatpush1.bf16.xpose.msra.mxu0 %v1895
      %1911 = vmatprep.subr.bf16.mxu0 0
      %1912 = vmatpush1.bf16.xpose.msra.mxu0 %v1892
      %1913 = vmatprep.subr.bf16.mxu0 0
      %1914 = vmatpush2.bf16.xpose.msra.mxu0 0
      %1915 = vmatprep.subr.bf16.mxu0 0
      %1916 = vmatpush2.bf16.xpose.msra.mxu0 0
      %1917 = vmatprep.subr.bf16.mxu0 0
      %1918 = vmatpush2.bf16.xpose.msra.mxu0 0
      %1919 = vmatprep.subr.bf16.mxu0 0
      %1920 = vmatpush2.bf16.xpose.msra.mxu0 0
      %1921 = vmatprep.subr.bf16.mxu0 0
      %1922 = vmatpush2.bf16.xpose.msra.mxu0 0
      %1923 = vmatprep.subr.bf16.mxu0 0
      %1924 = vmatpush2.bf16.xpose.msra.mxu0 0
      %1925 = vmatprep.subr.bf16.mxu0 0
      %1926 = vmatpush2.bf16.xpose.msra.mxu0 0
      %1927 = vmatprep.subr.bf16.mxu0 0
      %1928 = vmatpush2.bf16.xpose.msra.mxu0 0
      %1929 = vmatprep.mubr.bf16.mxu0 0
      %1930 = vmatmul.mubr.bf16.gmra.mxu0 %v1889
      %v1931 = vpop.f32.mrf.mxu0
      %v1932 = vadd.f32 0.0, %v1931
      %v1933 = vpop.f32.mrf.mxu0
      %v1934 = vpop.f32.mrf.mxu0
      %v1935 = vpop.f32.mrf.mxu0
      %1936 = vdwg.mxu0
      %v1937 = vadd.f32 %v1757, %v1932
      %1938 = vrot.lane.b32.xlu0 %v1412, 104
      %v1939 = vpop.permute.xlu0 %1938
      %1940 = vrot.lane.b32.xlu0 %v1473, 104
      %v1941 = vpop.permute.xlu0 %1940
      %v1943 = vsel %vm600, %v1939, 0
      %v1946 = vsel %vm600, %v1941, 0
      %1948 = vmatprep.subr.bf16.mxu0 0
      %1949 = vmatpush1.bf16.xpose.msra.mxu0 0
      %1950 = vmatprep.subr.bf16.mxu0 0
      %1951 = vmatpush1.bf16.xpose.msra.mxu0 0
      %1952 = vmatprep.subr.bf16.mxu0 0
      %1953 = vmatpush1.bf16.xpose.msra.mxu0 0
      %1954 = vmatprep.subr.bf16.mxu0 0
      %1955 = vmatpush1.bf16.xpose.msra.mxu0 0
      %1956 = vmatprep.subr.bf16.mxu0 0
      %1957 = vmatpush1.bf16.xpose.msra.mxu0 0
      %1958 = vmatprep.subr.bf16.mxu0 0
      %1959 = vmatpush1.bf16.xpose.msra.mxu0 0
      %1960 = vmatprep.subr.bf16.mxu0 0
      %1961 = vmatpush1.bf16.xpose.msra.mxu0 0
      %1962 = vmatprep.subr.bf16.mxu0 0
      %1963 = vmatpush1.bf16.xpose.msra.mxu0 %v1946
      %1964 = vmatprep.subr.bf16.mxu0 0
      %1965 = vmatpush2.bf16.xpose.msra.mxu0 0
      %1966 = vmatprep.subr.bf16.mxu0 0
      %1967 = vmatpush2.bf16.xpose.msra.mxu0 0
      %1968 = vmatprep.subr.bf16.mxu0 0
      %1969 = vmatpush2.bf16.xpose.msra.mxu0 0
      %1970 = vmatprep.subr.bf16.mxu0 0
      %1971 = vmatpush2.bf16.xpose.msra.mxu0 0
      %1972 = vmatprep.subr.bf16.mxu0 0
      %1973 = vmatpush2.bf16.xpose.msra.mxu0 0
      %1974 = vmatprep.subr.bf16.mxu0 0
      %1975 = vmatpush2.bf16.xpose.msra.mxu0 0
      %1976 = vmatprep.subr.bf16.mxu0 0
      %1977 = vmatpush2.bf16.xpose.msra.mxu0 0
      %1978 = vmatprep.subr.bf16.mxu0 0
      %1979 = vmatpush2.bf16.xpose.msra.mxu0 0
      %1980 = vmatprep.mubr.bf16.mxu0 0
      %1981 = vmatmul.mubr.bf16.gmra.mxu0 %v1943
      %v1982 = vpop.f32.mrf.mxu0
      %v1983 = vadd.f32 0.0, %v1982
      %v1984 = vpop.f32.mrf.mxu0
      %v1985 = vpop.f32.mrf.mxu0
      %v1986 = vpop.f32.mrf.mxu0
      %1987 = vdwg.mxu0
      %v1988 = vsel %vm600, %v1983, -inf
      %1989 = vmax.xlane.f32.xlu0 %v1988
      %v1990 = vpop.xlane.xlu0 %1989
      %v1991 = vsub.f32 %v1983, %v1990
      %v1992 = vmul.f32 %v1991, 1.442695
      %v1993 = vpow.pop %v1992
      %v1994 = vsel %vm600, %v1993, 0.0
      %1995 = vadd.xlane.f32.xlu0 %v1994
      %v1996 = vpop.xlane.xlu0 %1995
      %v1997 = vrcp.pop %v1996
      %v1998 = vmul.f32 %v1993, %v1997
      %v1999 = vpack.c.bf16 %v1998, %v1998
      %2000 = vrot.lane.b32.xlu0 %v1473, 72
      %v2001 = vpop.permute.xlu0 %2000
      %v2003 = vsel %vm600, %v1999, 0
      %v2006 = vsel %vm664, %v2001, 0
      %2008 = vmatprep.subr.bf16.mxu0 0
      %2009 = vmatpush1.bf16.msra.mxu0 0
      %2010 = vmatprep.subr.bf16.mxu0 0
      %2011 = vmatpush1.bf16.msra.mxu0 0
      %2012 = vmatprep.subr.bf16.mxu0 0
      %2013 = vmatpush1.bf16.msra.mxu0 0
      %2014 = vmatprep.subr.bf16.mxu0 0
      %2015 = vmatpush1.bf16.msra.mxu0 0
      %2016 = vmatprep.subr.bf16.mxu0 0
      %2017 = vmatpush1.bf16.msra.mxu0 0
      %2018 = vmatprep.subr.bf16.mxu0 0
      %2019 = vmatpush1.bf16.msra.mxu0 0
      %2020 = vmatprep.subr.bf16.mxu0 0
      %2021 = vmatpush1.bf16.msra.mxu0 0
      %2022 = vmatprep.subr.bf16.mxu0 0
      %2023 = vmatpush1.bf16.msra.mxu0 %v2006
      %2024 = vmatprep.subr.bf16.mxu0 0
      %2025 = vmatpush2.bf16.msra.mxu0 0
      %2026 = vmatprep.subr.bf16.mxu0 0
      %2027 = vmatpush2.bf16.msra.mxu0 0
      %2028 = vmatprep.subr.bf16.mxu0 0
      %2029 = vmatpush2.bf16.msra.mxu0 0
      %2030 = vmatprep.subr.bf16.mxu0 0
      %2031 = vmatpush2.bf16.msra.mxu0 0
      %2032 = vmatprep.subr.bf16.mxu0 0
      %2033 = vmatpush2.bf16.msra.mxu0 0
      %2034 = vmatprep.subr.bf16.mxu0 0
      %2035 = vmatpush2.bf16.msra.mxu0 0
      %2036 = vmatprep.subr.bf16.mxu0 0
      %2037 = vmatpush2.bf16.msra.mxu0 0
      %2038 = vmatprep.subr.bf16.mxu0 0
      %2039 = vmatpush2.bf16.msra.mxu0 0
      %2040 = vmatprep.mubr.bf16.mxu0 0
      %2041 = vmatmul.mubr.bf16.gmra.mxu0 %v2003
      %v2042 = vpop.f32.mrf.mxu0
      %v2043 = vadd.f32 0.0, %v2042
      %v2044 = vpop.f32.mrf.mxu0
      %v2045 = vpop.f32.mrf.mxu0
      %v2046 = vpop.f32.mrf.mxu0
      %2047 = vdwg.mxu0
      %v2048 = vpack.c.bf16 %v2043, %v2043
      %s2049 = scalar_lea.vmem %s10, 48
      %v2050 = vld [vmem:[%s2049] sm:$0xf]
      %v2051 = vld [vmem:[%s2049 + $0x4] sm:$0xf]
      %v2052 = vld [vmem:[%s2049 + $0x8] sm:$0xf]
      %v2053 = vld [vmem:[%s2049 + $0xc] sm:$0xf]
      %v2058 = vunpack.c.l.b16 %v2050
      %v2059 = vunpack.c.l.b16 %v2051
      %v2060 = vunpack.c.l.b16 %v2052
      %v2061 = vunpack.c.l.b16 %v2053
      %v2062 = vpack.c.b16 %v2059, %v2058
      %v2063 = vpack.c.b16 %v2061, %v2060
      %v2065 = vsel %vm600, %v2048, 0
      %v2068 = vsel %vm600, %v2062, 0
      %v2071 = vsel %vm600, %v2063, 0
      %2073 = vmatprep.subr.bf16.mxu0 0
      %2074 = vmatpush1.bf16.xpose.msra.mxu0 0
      %2075 = vmatprep.subr.bf16.mxu0 0
      %2076 = vmatpush1.bf16.xpose.msra.mxu0 0
      %2077 = vmatprep.subr.bf16.mxu0 0
      %2078 = vmatpush1.bf16.xpose.msra.mxu0 0
      %2079 = vmatprep.subr.bf16.mxu0 0
      %2080 = vmatpush1.bf16.xpose.msra.mxu0 0
      %2081 = vmatprep.subr.bf16.mxu0 0
      %2082 = vmatpush1.bf16.xpose.msra.mxu0 0
      %2083 = vmatprep.subr.bf16.mxu0 0
      %2084 = vmatpush1.bf16.xpose.msra.mxu0 0
      %2085 = vmatprep.subr.bf16.mxu0 0
      %2086 = vmatpush1.bf16.xpose.msra.mxu0 %v2071
      %2087 = vmatprep.subr.bf16.mxu0 0
      %2088 = vmatpush1.bf16.xpose.msra.mxu0 %v2068
      %2089 = vmatprep.subr.bf16.mxu0 0
      %2090 = vmatpush2.bf16.xpose.msra.mxu0 0
      %2091 = vmatprep.subr.bf16.mxu0 0
      %2092 = vmatpush2.bf16.xpose.msra.mxu0 0
      %2093 = vmatprep.subr.bf16.mxu0 0
      %2094 = vmatpush2.bf16.xpose.msra.mxu0 0
      %2095 = vmatprep.subr.bf16.mxu0 0
      %2096 = vmatpush2.bf16.xpose.msra.mxu0 0
      %2097 = vmatprep.subr.bf16.mxu0 0
      %2098 = vmatpush2.bf16.xpose.msra.mxu0 0
      %2099 = vmatprep.subr.bf16.mxu0 0
      %2100 = vmatpush2.bf16.xpose.msra.mxu0 0
      %2101 = vmatprep.subr.bf16.mxu0 0
      %2102 = vmatpush2.bf16.xpose.msra.mxu0 0
      %2103 = vmatprep.subr.bf16.mxu0 0
      %2104 = vmatpush2.bf16.xpose.msra.mxu0 0
      %2105 = vmatprep.mubr.bf16.mxu0 0
      %2106 = vmatmul.mubr.bf16.gmra.mxu0 %v2065
      %v2107 = vpop.f32.mrf.mxu0
      %v2108 = vadd.f32 0.0, %v2107
      %v2109 = vpop.f32.mrf.mxu0
      %v2110 = vpop.f32.mrf.mxu0
      %v2111 = vpop.f32.mrf.mxu0
      %2112 = vdwg.mxu0
      %v2113 = vadd.f32 %v1937, %v2108
      %v2114 = vld [vmem:[%s11] sm:$0x1]
      %v2116 = vlaneseq
      %v2117 = vshrl.u32 %v2116, 7
      %v2118 = vsub.s32 0, %v2117
      %v2119 = vrot.slane %v2114, %v2118
      %v2121 = vadd.f32 %v2113, %v2119
      %v2122 = vld [vmem:[%s12] sm:$0x1]
      %v2123 = vld [vmem:[%s13] sm:$0x1]
      %v2124 = vadd.f32 %v2121, %v1338
      %v2125 = vsel %vm532, %v2124, 0.0
      %2126 = vadd.xlane.f32.xlu0 %v2125
      %v2127 = vpop.xlane.xlu0 %2126
      %v2128 = vmul.f32 %v2127, %v1314
      %v2129 = vsub.f32 %v2124, %v2128
      %v2130 = vmul.f32 %v2129, %v2129
      %v2131 = vsel %vm532, %v2130, 0.0
      %2132 = vadd.xlane.f32.xlu0 %v2131
      %v2133 = vpop.xlane.xlu0 %2132
      %v2134 = vmul.f32 %v2133, %v1314
      %v2135 = vadd.f32 %v2134, 1e-05
      %v2136 = vrsqrt.pop %v2135
      %v2137 = vmul.f32 %v2129, %v2136
      %v2139 = vlaneseq
      %v2140 = vshrl.u32 %v2139, 7
      %v2141 = vsub.s32 0, %v2140
      %v2142 = vrot.slane %v2122, %v2141
      %v2144 = vmul.f32 %v2137, %v2142
      %v2146 = vlaneseq
      %v2147 = vshrl.u32 %v2146, 7
      %v2148 = vsub.s32 0, %v2147
      %v2149 = vrot.slane %v2123, %v2148
      %v2151 = vadd.f32 %v2144, %v2149
      %v2152 = vpack.c.bf16 %v2151, %v2151
      %vm2153 = vcmask 257024
      %2154 = vst.msk [vmem:[%s479] sm:$0xf] %vm2153, %v2152
      %p2155 = scmp.lt.s32.totalorder %s25, 1
      %s2156 = scalar_select %p2155, %s25, 1
      %s2157 = smul.addr %s2156, 4
      %s2158 = scalar_lea.vmem %s14, %s2157
      // Predicated region
      $region77: #{_lambda_.6} parent=75 // pred_check
        %p2159 = pneg %p347
      $region78: #{_lambda_.6} parent=75 // pred_check_branch
        %2161 = sbr.rel (%p2159) target = $region80
      $region79: #{_lambda_.6} parent=75 // pred_region
        _
      $region80: #{_lambda_.6} parent=75 // pred_fallthru
        _
    $region76: #{_lambda_.6} parent=5 // pred_fallthru
      _
    %p2162 = scmp.le.s32.totalorder 2, %s20
    // Predicated region
    $region81: #{_lambda_.6} parent=5 // pred_check
      %p2163 = pneg %p2162
    $region82: #{_lambda_.6} parent=5 // pred_check_branch
      %2165 = sbr.rel (%p2163) target = $region84
    $region83: #{_lambda_.6} parent=5 // pred_region
      %s2166 = ssub.s32 %s20, 2
      // Predicated region
      $region85: #{_lambda_.6} parent=83 // pred_check
        %p2167 = pneg %p353
      $region86: #{_lambda_.6} parent=83 // pred_check_branch
        %2169 = sbr.rel (%p2167) target = $region88
      $region87: #{_lambda_.6} parent=83 // pred_region
        %p2170 = scmp.lt.s32.totalorder %s26, 1
        %s2171 = scalar_select %p2170, %s26, 1
        %s2172 = smul.addr %s2171, 4
        %s2173 = scalar_lea.vmem %s14, %s2172
      $region88: #{_lambda_.6} parent=83 // pred_fallthru
        _
    $region84: #{_lambda_.6} parent=5 // pred_fallthru
      _
  $region6: #{_lambda_.6} parent=0 // loop_footer
    %s24 = sadd.s32 1, %s20
  $region7: #{_lambda_.6} parent=0 // loop_footer_branch
    %19 = sbr.rel target = $region3
  $region8: #{_lambda_.6} parent=0 // loop_exit
    _

</llo_original>
